<compile_context>
chip_gen: v7x
topology: tpu7x:2x2x1
jax: 0.10.0
libtpu: 0.0.40
codegen_flags: <defaults>
</compile_context>

<pallas_src>
import functools

import jax
import jax.numpy as jnp
from jax.experimental import pallas as pl
from jax.experimental.pallas import tpu as pltpu

BN_EPS = 1e-5


def _round_up(x, m):
    return (x + m - 1) // m * m


# ----------------------------------------------------------------------------
# Fused matmul kernels:  out = act( (A @ W) * scale + shift )
#   - scale/shift are per-output-column (folds conv bias / BN / linear bias)
#   - act in {"none", "leaky"} is a static Python choice
# ----------------------------------------------------------------------------
def _mm_kernel_single(a_ref, w_ref, scale_ref, shift_ref, o_ref, *, act):
    # Single K step: compute, apply epilogue, store. No scratch, no acc copy.
    y = jnp.dot(a_ref[...], w_ref[...], preferred_element_type=jnp.float32)
    y = y * scale_ref[...] + shift_ref[...]
    if act == "leaky":
        y = jnp.where(y > 0, y, 0.2 * y)
    o_ref[...] = y.astype(o_ref.dtype)


def _mm_kernel_multi(a_ref, w_ref, scale_ref, shift_ref, o_ref, acc_ref, *,
                     act, nk):
    # grid = (N tiles [parallel], K tiles [arbitrary, last]); f32 accumulator.
    k = pl.program_id(1)

    @pl.when(k == 0)
    def _():
        acc_ref[...] = jnp.zeros_like(acc_ref)

    acc_ref[...] += jnp.dot(a_ref[...], w_ref[...],
                            preferred_element_type=jnp.float32)

    @pl.when(k == nk - 1)
    def _():
        y = acc_ref[...] * scale_ref[...] + shift_ref[...]
        if act == "leaky":
            y = jnp.where(y > 0, y, 0.2 * y)
        o_ref[...] = y.astype(o_ref.dtype)


def pallas_matmul(a, w, scale, shift, act="none", out_dtype=jnp.bfloat16,
                  max_tk=4096, tn_pref=256):
    """bf16 matmul (f32 accum) with fused per-column scale/shift + activation."""
    M, K = a.shape
    K2, N = w.shape
    assert K == K2
    Mp = _round_up(M, 8)
    Np = _round_up(N, 128)

    tn = tn_pref if (Np % tn_pref == 0) else 128
    tn = min(tn, Np)
    nn = Np // tn

    a_p = a.astype(jnp.bfloat16)
    if Mp != M:
        a_p = jnp.pad(a_p, ((0, Mp - M), (0, 0)))
    w_p = w.astype(jnp.bfloat16)
    if Np != N:
        w_p = jnp.pad(w_p, ((0, 0), (0, Np - N)))
    sc_p = jnp.pad(scale.reshape(1, N).astype(jnp.float32),
                   ((0, 0), (0, Np - N)))
    sh_p = jnp.pad(shift.reshape(1, N).astype(jnp.float32),
                   ((0, 0), (0, Np - N)))

    # K tiling: only the 8192-K fused FC1 needs a reduction loop.
    if K > max_tk and K % max_tk == 0:
        tk = max_tk
    else:
        tk = K
    nk = K // tk

    if nk == 1:
        out = pl.pallas_call(
            functools.partial(_mm_kernel_single, act=act),
            out_shape=jax.ShapeDtypeStruct((Mp, Np), out_dtype),
            grid_spec=pltpu.PrefetchScalarGridSpec(
                num_scalar_prefetch=0,
                grid=(nn,),
                in_specs=[
                    pl.BlockSpec((Mp, K), lambda n: (0, 0)),
                    pl.BlockSpec((K, tn), lambda n: (0, n)),
                    pl.BlockSpec((1, tn), lambda n: (0, n)),
                    pl.BlockSpec((1, tn), lambda n: (0, n)),
                ],
                out_specs=pl.BlockSpec((Mp, tn), lambda n: (0, n)),
            ),
            compiler_params=pltpu.CompilerParams(
                dimension_semantics=("parallel",)),
        )(a_p, w_p, sc_p, sh_p)
    else:
        out = pl.pallas_call(
            functools.partial(_mm_kernel_multi, act=act, nk=nk),
            out_shape=jax.ShapeDtypeStruct((Mp, Np), out_dtype),
            grid_spec=pltpu.PrefetchScalarGridSpec(
                num_scalar_prefetch=0,
                grid=(nn, nk),
                in_specs=[
                    pl.BlockSpec((Mp, tk), lambda n, k: (0, k)),
                    pl.BlockSpec((tk, tn), lambda n, k: (k, n)),
                    pl.BlockSpec((1, tn), lambda n, k: (0, n)),
                    pl.BlockSpec((1, tn), lambda n, k: (0, n)),
                ],
                out_specs=pl.BlockSpec((Mp, tn), lambda n, k: (0, n)),
                scratch_shapes=[pltpu.VMEM((Mp, tn), jnp.float32)],
            ),
            compiler_params=pltpu.CompilerParams(
                dimension_semantics=("parallel", "arbitrary")),
        )(a_p, w_p, sc_p, sh_p)

    if Mp != M or Np != N:
        out = out[:M, :N]
    return out


# ----------------------------------------------------------------------------
# Conv as im2col (glue, plain JAX, bf16) + Pallas matmul (hot path).
# TODO(synk): im2col + NHWC transpose could be fused into the matmul via an
# Element-gather index_map; left in JAX since activations are tiny at batch=2.
# ----------------------------------------------------------------------------
def _im2col(x_nhwc, kh, kw, stride, pad):
    N, H, W, C = x_nhwc.shape
    xp = jnp.pad(x_nhwc, ((0, 0), (pad, pad), (pad, pad), (0, 0)))
    Ho = (H + 2 * pad - kh) // stride + 1
    Wo = (W + 2 * pad - kw) // stride + 1
    patches = []
    for i in range(kh):
        for j in range(kw):
            patches.append(xp[:, i:i + Ho * stride:stride,
                               j:j + Wo * stride:stride, :])
    cols = jnp.stack(patches, axis=3)                 # (N, Ho, Wo, kh*kw, C)
    return cols.reshape(N * Ho * Wo, kh * kw * C), Ho, Wo


def _conv_w_to_mat(w_oikk):
    O, C, kh, kw = w_oikk.shape
    # patch flatten order is (i, j, c) -> weight index (i*kw + j)*C + c
    return jnp.transpose(w_oikk, (2, 3, 1, 0)).reshape(kh * kw * C, O)


def conv_block(x_nhwc, w_mat, scale, shift, stride, pad, kh, kw):
    """Conv2d (no bias) + folded BN + LeakyReLU(0.2); w_mat is (kh*kw*C, O)."""
    N = x_nhwc.shape[0]
    O = w_mat.shape[1]
    cols, Ho, Wo = _im2col(x_nhwc, kh, kw, stride, pad)
    out = pallas_matmul(cols, w_mat, scale, shift, act="leaky")
    return out.reshape(N, Ho, Wo, O)


# ----------------------------------------------------------------------------
# Parameters (deterministic, synthetic — PyTorch-shaped), then a one-time
# preparation step that folds BN, pre-transposes / fuses / casts weights.
# ----------------------------------------------------------------------------
def init_params(seed=0):
    key = jax.random.PRNGKey(seed)
    ks = list(jax.random.split(key, 24))

    def nrm(k, shape, s=0.05):
        return s * jax.random.normal(k, shape, dtype=jnp.float32)

    p = {}
    p["conv1_w"] = nrm(ks[0], (64, 1, 4, 4))
    p["conv2_w"] = nrm(ks[1], (128, 64, 4, 4))
    p["conv3_w"] = nrm(ks[2], (256, 128, 4, 4))
    p["conv4_w"] = nrm(ks[3], (512, 256, 3, 3))
    kidx = 4
    for i, c in zip((2, 3, 4), (128, 256, 512)):
        p[f"bn{i}_gamma"] = 1.0 + nrm(ks[kidx], (c,), 0.01); kidx += 1
        p[f"bn{i}_beta"] = nrm(ks[kidx], (c,), 0.01); kidx += 1
        p[f"bn{i}_mean"] = nrm(ks[kidx], (c,), 0.01); kidx += 1
        p[f"bn{i}_var"] = 1.0 + jnp.abs(nrm(ks[kidx], (c,), 0.01)); kidx += 1
    p["dis_fc1_w"] = nrm(ks[kidx], (512, 8192)); kidx += 1   # (out, in) like torch
    p["dis_fc1_b"] = nrm(ks[kidx], (512,)); kidx += 1
    p["dis_fc2_w"] = nrm(ks[kidx], (1, 512)); kidx += 1
    p["dis_fc2_b"] = nrm(ks[kidx], (1,)); kidx += 1
    p["cls_fc1_w"] = nrm(ks[kidx], (512, 8192)); kidx += 1
    p["cls_fc1_b"] = nrm(ks[kidx], (512,)); kidx += 1
    p["cls_fc2_w"] = nrm(ks[kidx], (10, 512)); kidx += 1
    p["cls_fc2_b"] = nrm(ks[kidx], (10,)); kidx += 1
    return p


def prepare_params(p):
    """One-time (outside jit): fold BN, pre-transpose/fuse/cast weights."""
    q = {}

    def fold_bn(i):
        scale = p[f"bn{i}_gamma"] / jnp.sqrt(p[f"bn{i}_var"] + BN_EPS)
        shift = p[f"bn{i}_beta"] - p[f"bn{i}_mean"] * scale
        return scale, shift

    # Conv weights as (kh*kw*C, O) bf16 matrices.
    for name, (kh, kw) in (("conv1_w", (4, 4)), ("conv2_w", (4, 4)),
                           ("conv3_w", (4, 4)), ("conv4_w", (3, 3))):
        q[name] = _conv_w_to_mat(p[name]).astype(jnp.bfloat16)
        q[name + "_k"] = (kh, kw)

    q["conv1_scale"] = jnp.ones((64,), jnp.float32)
    q["conv1_shift"] = jnp.zeros((64,), jnp.float32)
    for i in (2, 3, 4):
        q[f"conv{i}_scale"], q[f"conv{i}_shift"] = fold_bn(i)

    # Fused FC1: shared input feat (8192) -> [dis(512) | cls(512)] = 1024 cols.
    q["fc1_w"] = jnp.concatenate(
        [p["dis_fc1_w"].T, p["cls_fc1_w"].T], axis=1).astype(jnp.bfloat16)
    q["fc1_b"] = jnp.concatenate([p["dis_fc1_b"], p["cls_fc1_b"]])
    q["fc1_scale"] = jnp.ones((1024,), jnp.float32)

    # Fused FC2: block-diagonal (1024, 11) weight so one matmul serves both
    # heads (col 0 sees h_dis only, cols 1..10 see h_cls only).
    fc2_w = jnp.zeros((1024, 11), jnp.float32)
    fc2_w = fc2_w.at[:512, 0:1].set(p["dis_fc2_w"].T)
    fc2_w = fc2_w.at[512:, 1:11].set(p["cls_fc2_w"].T)
    q["fc2_w"] = fc2_w.astype(jnp.bfloat16)
    q["fc2_b"] = jnp.concatenate([p["dis_fc2_b"], p["cls_fc2_b"]])
    q["fc2_scale"] = jnp.ones((11,), jnp.float32)
    return q


# ----------------------------------------------------------------------------
# Full forward pass of `discriminator`
# ----------------------------------------------------------------------------
def discriminator_forward(x_nchw, q):
    # TODO(synk): Dropout layers are identity (inference); BatchNorm uses
    # running statistics (inference), both folded / skipped as in model.eval().
    N = x_nchw.shape[0]
    x = jnp.transpose(x_nchw, (0, 2, 3, 1)).astype(jnp.bfloat16)   # NHWC bf16

    # conv1 (no BN) + LeakyReLU, then conv2/3/4 + BN(eval) + LeakyReLU
    x = conv_block(x, q["conv1_w"], q["conv1_scale"], q["conv1_shift"],
                   stride=2, pad=1, kh=4, kw=4)
    x = conv_block(x, q["conv2_w"], q["conv2_scale"], q["conv2_shift"],
                   stride=2, pad=1, kh=4, kw=4)
    x = conv_block(x, q["conv3_w"], q["conv3_scale"], q["conv3_shift"],
                   stride=2, pad=1, kh=4, kw=4)
    x = conv_block(x, q["conv4_w"], q["conv4_scale"], q["conv4_shift"],
                   stride=1, pad=1, kh=3, kw=3)

    # x: (N, 4, 4, 512) -> flatten in PyTorch NCHW order: (N, 512*4*4)
    feat = jnp.transpose(x, (0, 3, 1, 2)).reshape(N, 512 * 4 * 4)

    # Fused FC1 (both heads) + LeakyReLU: (N, 8192) @ (8192, 1024)
    h = pallas_matmul(feat, q["fc1_w"], q["fc1_scale"], q["fc1_b"],
                      act="leaky")

    # Fused FC2 (block-diagonal): (N, 1024) @ (1024, 11) -> raw logits (f32)
    raw = pallas_matmul(h, q["fc2_w"], q["fc2_scale"], q["fc2_b"],
                        act="none", out_dtype=jnp.float32)

    # Tiny tail in plain JAX (cheaper than extra kernel launches on (N, 11)).
    y = jax.nn.sigmoid(raw[:, 0:1])
    z = jax.nn.log_softmax(raw[:, 1:11], axis=-1)
    return y, z


if __name__ == "__main__":
    params = init_params(seed=0)
    prepared = prepare_params(params)   # one-time weight folding / casting

    # Input spatial size must be 32x32 (three stride-2 convs -> 4x4, as implied
    # by x.view(-1, 512*4*4) in the PyTorch forward). Batch = 2, channels = 1.
    x = jax.random.normal(jax.random.PRNGKey(0), (2, 1, 32, 32),
                          dtype=jnp.float32)

    fwd = jax.jit(discriminator_forward)
    y, z = fwd(x, prepared)
    (y, z) = jax.block_until_ready((y, z))

    assert y.shape == (2, 1) and z.shape == (2, 10)
    assert bool(jnp.all((y >= 0.0) & (y <= 1.0)))
    # log-softmax rows should sum (in prob space) to ~1
    assert bool(jnp.allclose(jnp.sum(jnp.exp(z), axis=1), 1.0, atol=1e-3))
    print("KERNEL_OK")
</pallas_src>

<mosaic_0001>
module attributes {stable_mosaic.version = 11 : i64} {
  func.func @_mm_kernel_single(%arg0: i32, %arg1: memref<512x16xbf16, #tpu.memory_space<vmem>>, %arg2: memref<16x128xbf16, #tpu.memory_space<vmem>>, %arg3: memref<1x128xf32, #tpu.memory_space<vmem>>, %arg4: memref<1x128xf32, #tpu.memory_space<vmem>>, %arg5: memref<512x128xbf16, #tpu.memory_space<vmem>>) attributes {dimension_semantics = [#tpu.dimension_semantics<parallel>], iteration_bounds = array<i64: 1>, scalar_prefetch = 0 : i64, scratch_operands = 0 : i64, tpu.core_type = #tpu.core_type<tc>, window_params = [{pipeline_mode = #tpu.pipeline_mode<synchronous>, transform_indices = @transform_0, window_bounds = array<i64: 512, 16>}, {transform_indices = @transform_1, window_bounds = array<i64: 16, 128>}, {transform_indices = @transform_2, window_bounds = array<i64: 1, 128>}, {transform_indices = @transform_3, window_bounds = array<i64: 1, 128>}, {transform_indices = @transform_4, window_bounds = array<i64: 512, 128>}]} {
    %c0 = arith.constant 0 : index
    %c0_0 = arith.constant 0 : index
    %0 = vector.load %arg1[%c0, %c0_0] : memref<512x16xbf16, #tpu.memory_space<vmem>>, vector<512x16xbf16>
    %c0_1 = arith.constant 0 : index
    %c0_2 = arith.constant 0 : index
    %1 = vector.load %arg2[%c0_1, %c0_2] : memref<16x128xbf16, #tpu.memory_space<vmem>>, vector<16x128xbf16>
    %cst = arith.constant dense<0.000000e+00> : vector<512x128xf32>
    %2 = tpu.matmul %0, %1, %cst {dimension_numbers = #tpu.dot_dimension_numbers<[1], [0], [0], [1], [0, 0, 1, 1], [], []>} : vector<512x16xbf16>, vector<16x128xbf16>, vector<512x128xf32> -> vector<512x128xf32>
    %c0_3 = arith.constant 0 : index
    %c0_4 = arith.constant 0 : index
    %3 = vector.load %arg3[%c0_3, %c0_4] : memref<1x128xf32, #tpu.memory_space<vmem>>, vector<1x128xf32>
    %4 = vector.broadcast %3 : vector<1x128xf32> to vector<512x128xf32>
    %5 = arith.mulf %2, %4 : vector<512x128xf32>
    %c0_5 = arith.constant 0 : index
    %c0_6 = arith.constant 0 : index
    %6 = vector.load %arg4[%c0_5, %c0_6] : memref<1x128xf32, #tpu.memory_space<vmem>>, vector<1x128xf32>
    %7 = vector.broadcast %6 : vector<1x128xf32> to vector<512x128xf32>
    %8 = arith.addf %5, %7 : vector<512x128xf32>
    %cst_7 = arith.constant 0.000000e+00 : f32
    %9 = vector.broadcast %cst_7 : f32 to vector<512x128xf32>
    %10 = arith.cmpf ogt, %8, %9 : vector<512x128xf32>
    %cst_8 = arith.constant 2.000000e-01 : f32
    %11 = vector.broadcast %cst_8 : f32 to vector<512x128xf32>
    %12 = arith.mulf %11, %8 : vector<512x128xf32>
    %13 = arith.select %10, %8, %12 : vector<512x128xi1>, vector<512x128xf32>
    %14 = arith.truncf %13 : vector<512x128xf32> to vector<512x128xbf16>
    %c0_9 = arith.constant 0 : index
    %c0_10 = arith.constant 0 : index
    %15 = vector.load %arg5[%c0_9, %c0_10] : memref<512x128xbf16, #tpu.memory_space<vmem>>, vector<512x128xbf16>
    tpu.vector_store %arg5[%c0_9, %c0_10], %14 {strides = array<i32>} : memref<512x128xbf16, #tpu.memory_space<vmem>>, vector<512x128xbf16>,
    return
  }
  func.func @transform_0(%arg0: i32) -> (i32, i32) {
    %c0_i32 = arith.constant 0 : i32
    %c0_i32_0 = arith.constant 0 : i32
    %c0_i32_1 = arith.constant 0 : i32
    return %c0_i32, %c0_i32_0 : i32, i32
  }
  func.func @transform_1(%arg0: i32) -> (i32, i32) {
    %c0_i32 = arith.constant 0 : i32
    %c0_i32_0 = arith.constant 0 : i32
    return %c0_i32, %arg0 : i32, i32
  }
  func.func @transform_2(%arg0: i32) -> (i32, i32) {
    %c0_i32 = arith.constant 0 : i32
    %c0_i32_0 = arith.constant 0 : i32
    return %c0_i32, %arg0 : i32, i32
  }
  func.func @transform_3(%arg0: i32) -> (i32, i32) {
    %c0_i32 = arith.constant 0 : i32
    %c0_i32_0 = arith.constant 0 : i32
    return %c0_i32, %arg0 : i32, i32
  }
  func.func @transform_4(%arg0: i32) -> (i32, i32) {
    %c0_i32 = arith.constant 0 : i32
    %c0_i32_0 = arith.constant 0 : i32
    return %c0_i32, %arg0 : i32, i32
  }
}

module attributes {stable_mosaic.version = 11 : i64} {
  func.func @_mm_kernel_single(%arg0: i32, %arg1: memref<128x1024xbf16, #tpu.memory_space<vmem>>, %arg2: memref<1024x128xbf16, #tpu.memory_space<vmem>>, %arg3: memref<1x128xf32, #tpu.memory_space<vmem>>, %arg4: memref<1x128xf32, #tpu.memory_space<vmem>>, %arg5: memref<128x128xbf16, #tpu.memory_space<vmem>>) attributes {dimension_semantics = [#tpu.dimension_semantics<parallel>], iteration_bounds = array<i64: 1>, scalar_prefetch = 0 : i64, scratch_operands = 0 : i64, tpu.core_type = #tpu.core_type<tc>, window_params = [{pipeline_mode = #tpu.pipeline_mode<synchronous>, transform_indices = @transform_0, window_bounds = array<i64: 128, 1024>}, {transform_indices = @transform_1, window_bounds = array<i64: 1024, 128>}, {transform_indices = @transform_2, window_bounds = array<i64: 1, 128>}, {transform_indices = @transform_3, window_bounds = array<i64: 1, 128>}, {transform_indices = @transform_4, window_bounds = array<i64: 128, 128>}]} {
    %c0 = arith.constant 0 : index
    %c0_0 = arith.constant 0 : index
    %0 = vector.load %arg1[%c0, %c0_0] : memref<128x1024xbf16, #tpu.memory_space<vmem>>, vector<128x1024xbf16>
    %c0_1 = arith.constant 0 : index
    %c0_2 = arith.constant 0 : index
    %1 = vector.load %arg2[%c0_1, %c0_2] : memref<1024x128xbf16, #tpu.memory_space<vmem>>, vector<1024x128xbf16>
    %cst = arith.constant dense<0.000000e+00> : vector<128x128xf32>
    %2 = tpu.matmul %0, %1, %cst {dimension_numbers = #tpu.dot_dimension_numbers<[1], [0], [0], [1], [0, 0, 1, 1], [], []>} : vector<128x1024xbf16>, vector<1024x128xbf16>, vector<128x128xf32> -> vector<128x128xf32>
    %c0_3 = arith.constant 0 : index
    %c0_4 = arith.constant 0 : index
    %3 = vector.load %arg3[%c0_3, %c0_4] : memref<1x128xf32, #tpu.memory_space<vmem>>, vector<1x128xf32>
    %4 = vector.broadcast %3 : vector<1x128xf32> to vector<128x128xf32>
    %5 = arith.mulf %2, %4 : vector<128x128xf32>
    %c0_5 = arith.constant 0 : index
    %c0_6 = arith.constant 0 : index
    %6 = vector.load %arg4[%c0_5, %c0_6] : memref<1x128xf32, #tpu.memory_space<vmem>>, vector<1x128xf32>
    %7 = vector.broadcast %6 : vector<1x128xf32> to vector<128x128xf32>
    %8 = arith.addf %5, %7 : vector<128x128xf32>
    %cst_7 = arith.constant 0.000000e+00 : f32
    %9 = vector.broadcast %cst_7 : f32 to vector<128x128xf32>
    %10 = arith.cmpf ogt, %8, %9 : vector<128x128xf32>
    %cst_8 = arith.constant 2.000000e-01 : f32
    %11 = vector.broadcast %cst_8 : f32 to vector<128x128xf32>
    %12 = arith.mulf %11, %8 : vector<128x128xf32>
    %13 = arith.select %10, %8, %12 : vector<128x128xi1>, vector<128x128xf32>
    %14 = arith.truncf %13 : vector<128x128xf32> to vector<128x128xbf16>
    %c0_9 = arith.constant 0 : index
    %c0_10 = arith.constant 0 : index
    %15 = vector.load %arg5[%c0_9, %c0_10] : memref<128x128xbf16, #tpu.memory_space<vmem>>, vector<128x128xbf16>
    tpu.vector_store %arg5[%c0_9, %c0_10], %14 {strides = array<i32>} : memref<128x128xbf16, #tpu.memory_space<vmem>>, vector<128x128xbf16>,
    return
  }
  func.func @transform_0(%arg0: i32) -> (i32, i32) {
    %c0_i32 = arith.constant 0 : i32
    %c0_i32_0 = arith.constant 0 : i32
    %c0_i32_1 = arith.constant 0 : i32
    return %c0_i32, %c0_i32_0 : i32, i32
  }
  func.func @transform_1(%arg0: i32) -> (i32, i32) {
    %c0_i32 = arith.constant 0 : i32
    %c0_i32_0 = arith.constant 0 : i32
    return %c0_i32, %arg0 : i32, i32
  }
  func.func @transform_2(%arg0: i32) -> (i32, i32) {
    %c0_i32 = arith.constant 0 : i32
    %c0_i32_0 = arith.constant 0 : i32
    return %c0_i32, %arg0 : i32, i32
  }
  func.func @transform_3(%arg0: i32) -> (i32, i32) {
    %c0_i32 = arith.constant 0 : i32
    %c0_i32_0 = arith.constant 0 : i32
    return %c0_i32, %arg0 : i32, i32
  }
  func.func @transform_4(%arg0: i32) -> (i32, i32) {
    %c0_i32 = arith.constant 0 : i32
    %c0_i32_0 = arith.constant 0 : i32
    return %c0_i32, %arg0 : i32, i32
  }
}

module attributes {stable_mosaic.version = 11 : i64} {
  func.func @_mm_kernel_single(%arg0: i32, %arg1: memref<32x2048xbf16, #tpu.memory_space<vmem>>, %arg2: memref<2048x256xbf16, #tpu.memory_space<vmem>>, %arg3: memref<1x256xf32, #tpu.memory_space<vmem>>, %arg4: memref<1x256xf32, #tpu.memory_space<vmem>>, %arg5: memref<32x256xbf16, #tpu.memory_space<vmem>>) attributes {dimension_semantics = [#tpu.dimension_semantics<parallel>], iteration_bounds = array<i64: 1>, scalar_prefetch = 0 : i64, scratch_operands = 0 : i64, tpu.core_type = #tpu.core_type<tc>, window_params = [{pipeline_mode = #tpu.pipeline_mode<synchronous>, transform_indices = @transform_0, window_bounds = array<i64: 32, 2048>}, {transform_indices = @transform_1, window_bounds = array<i64: 2048, 256>}, {transform_indices = @transform_2, window_bounds = array<i64: 1, 256>}, {transform_indices = @transform_3, window_bounds = array<i64: 1, 256>}, {transform_indices = @transform_4, window_bounds = array<i64: 32, 256>}]} {
    %c0 = arith.constant 0 : index
    %c0_0 = arith.constant 0 : index
    %0 = vector.load %arg1[%c0, %c0_0] : memref<32x2048xbf16, #tpu.memory_space<vmem>>, vector<32x2048xbf16>
    %c0_1 = arith.constant 0 : index
    %c0_2 = arith.constant 0 : index
    %1 = vector.load %arg2[%c0_1, %c0_2] : memref<2048x256xbf16, #tpu.memory_space<vmem>>, vector<2048x256xbf16>
    %cst = arith.constant dense<0.000000e+00> : vector<32x256xf32>
    %2 = tpu.matmul %0, %1, %cst {dimension_numbers = #tpu.dot_dimension_numbers<[1], [0], [0], [1], [0, 0, 1, 1], [], []>} : vector<32x2048xbf16>, vector<2048x256xbf16>, vector<32x256xf32> -> vector<32x256xf32>
    %c0_3 = arith.constant 0 : index
    %c0_4 = arith.constant 0 : index
    %3 = vector.load %arg3[%c0_3, %c0_4] : memref<1x256xf32, #tpu.memory_space<vmem>>, vector<1x256xf32>
    %4 = vector.broadcast %3 : vector<1x256xf32> to vector<32x256xf32>
    %5 = arith.mulf %2, %4 : vector<32x256xf32>
    %c0_5 = arith.constant 0 : index
    %c0_6 = arith.constant 0 : index
    %6 = vector.load %arg4[%c0_5, %c0_6] : memref<1x256xf32, #tpu.memory_space<vmem>>, vector<1x256xf32>
    %7 = vector.broadcast %6 : vector<1x256xf32> to vector<32x256xf32>
    %8 = arith.addf %5, %7 : vector<32x256xf32>
    %cst_7 = arith.constant 0.000000e+00 : f32
    %9 = vector.broadcast %cst_7 : f32 to vector<32x256xf32>
    %10 = arith.cmpf ogt, %8, %9 : vector<32x256xf32>
    %cst_8 = arith.constant 2.000000e-01 : f32
    %11 = vector.broadcast %cst_8 : f32 to vector<32x256xf32>
    %12 = arith.mulf %11, %8 : vector<32x256xf32>
    %13 = arith.select %10, %8, %12 : vector<32x256xi1>, vector<32x256xf32>
    %14 = arith.truncf %13 : vector<32x256xf32> to vector<32x256xbf16>
    %c0_9 = arith.constant 0 : index
    %c0_10 = arith.constant 0 : index
    %15 = vector.load %arg5[%c0_9, %c0_10] : memref<32x256xbf16, #tpu.memory_space<vmem>>, vector<32x256xbf16>
    tpu.vector_store %arg5[%c0_9, %c0_10], %14 {strides = array<i32>} : memref<32x256xbf16, #tpu.memory_space<vmem>>, vector<32x256xbf16>,
    return
  }
  func.func @transform_0(%arg0: i32) -> (i32, i32) {
    %c0_i32 = arith.constant 0 : i32
    %c0_i32_0 = arith.constant 0 : i32
    %c0_i32_1 = arith.constant 0 : i32
    return %c0_i32, %c0_i32_0 : i32, i32
  }
  func.func @transform_1(%arg0: i32) -> (i32, i32) {
    %c0_i32 = arith.constant 0 : i32
    %c0_i32_0 = arith.constant 0 : i32
    return %c0_i32, %arg0 : i32, i32
  }
  func.func @transform_2(%arg0: i32) -> (i32, i32) {
    %c0_i32 = arith.constant 0 : i32
    %c0_i32_0 = arith.constant 0 : i32
    return %c0_i32, %arg0 : i32, i32
  }
  func.func @transform_3(%arg0: i32) -> (i32, i32) {
    %c0_i32 = arith.constant 0 : i32
    %c0_i32_0 = arith.constant 0 : i32
    return %c0_i32, %arg0 : i32, i32
  }
  func.func @transform_4(%arg0: i32) -> (i32, i32) {
    %c0_i32 = arith.constant 0 : i32
    %c0_i32_0 = arith.constant 0 : i32
    return %c0_i32, %arg0 : i32, i32
  }
}

module attributes {stable_mosaic.version = 11 : i64} {
  func.func @_mm_kernel_single(%arg0: i32, %arg1: memref<32x2304xbf16, #tpu.memory_space<vmem>>, %arg2: memref<2304x256xbf16, #tpu.memory_space<vmem>>, %arg3: memref<1x256xf32, #tpu.memory_space<vmem>>, %arg4: memref<1x256xf32, #tpu.memory_space<vmem>>, %arg5: memref<32x256xbf16, #tpu.memory_space<vmem>>) attributes {dimension_semantics = [#tpu.dimension_semantics<parallel>], iteration_bounds = array<i64: 2>, scalar_prefetch = 0 : i64, scratch_operands = 0 : i64, tpu.core_type = #tpu.core_type<tc>, window_params = [{pipeline_mode = #tpu.pipeline_mode<synchronous>, transform_indices = @transform_0, window_bounds = array<i64: 32, 2304>}, {transform_indices = @transform_1, window_bounds = array<i64: 2304, 256>}, {transform_indices = @transform_2, window_bounds = array<i64: 1, 256>}, {transform_indices = @transform_3, window_bounds = array<i64: 1, 256>}, {transform_indices = @transform_4, window_bounds = array<i64: 32, 256>}]} {
    %c0 = arith.constant 0 : index
    %c0_0 = arith.constant 0 : index
    %0 = vector.load %arg1[%c0, %c0_0] : memref<32x2304xbf16, #tpu.memory_space<vmem>>, vector<32x2304xbf16>
    %c0_1 = arith.constant 0 : index
    %c0_2 = arith.constant 0 : index
    %1 = vector.load %arg2[%c0_1, %c0_2] : memref<2304x256xbf16, #tpu.memory_space<vmem>>, vector<2304x256xbf16>
    %cst = arith.constant dense<0.000000e+00> : vector<32x256xf32>
    %2 = tpu.matmul %0, %1, %cst {dimension_numbers = #tpu.dot_dimension_numbers<[1], [0], [0], [1], [0, 0, 1, 1], [], []>} : vector<32x2304xbf16>, vector<2304x256xbf16>, vector<32x256xf32> -> vector<32x256xf32>
    %c0_3 = arith.constant 0 : index
    %c0_4 = arith.constant 0 : index
    %3 = vector.load %arg3[%c0_3, %c0_4] : memref<1x256xf32, #tpu.memory_space<vmem>>, vector<1x256xf32>
    %4 = vector.broadcast %3 : vector<1x256xf32> to vector<32x256xf32>
    %5 = arith.mulf %2, %4 : vector<32x256xf32>
    %c0_5 = arith.constant 0 : index
    %c0_6 = arith.constant 0 : index
    %6 = vector.load %arg4[%c0_5, %c0_6] : memref<1x256xf32, #tpu.memory_space<vmem>>, vector<1x256xf32>
    %7 = vector.broadcast %6 : vector<1x256xf32> to vector<32x256xf32>
    %8 = arith.addf %5, %7 : vector<32x256xf32>
    %cst_7 = arith.constant 0.000000e+00 : f32
    %9 = vector.broadcast %cst_7 : f32 to vector<32x256xf32>
    %10 = arith.cmpf ogt, %8, %9 : vector<32x256xf32>
    %cst_8 = arith.constant 2.000000e-01 : f32
    %11 = vector.broadcast %cst_8 : f32 to vector<32x256xf32>
    %12 = arith.mulf %11, %8 : vector<32x256xf32>
    %13 = arith.select %10, %8, %12 : vector<32x256xi1>, vector<32x256xf32>
    %14 = arith.truncf %13 : vector<32x256xf32> to vector<32x256xbf16>
    %c0_9 = arith.constant 0 : index
    %c0_10 = arith.constant 0 : index
    %15 = vector.load %arg5[%c0_9, %c0_10] : memref<32x256xbf16, #tpu.memory_space<vmem>>, vector<32x256xbf16>
    tpu.vector_store %arg5[%c0_9, %c0_10], %14 {strides = array<i32>} : memref<32x256xbf16, #tpu.memory_space<vmem>>, vector<32x256xbf16>,
    return
  }
  func.func @transform_0(%arg0: i32) -> (i32, i32) {
    %c0_i32 = arith.constant 0 : i32
    %c0_i32_0 = arith.constant 0 : i32
    %c0_i32_1 = arith.constant 0 : i32
    return %c0_i32, %c0_i32_0 : i32, i32
  }
  func.func @transform_1(%arg0: i32) -> (i32, i32) {
    %c0_i32 = arith.constant 0 : i32
    %c0_i32_0 = arith.constant 0 : i32
    return %c0_i32, %arg0 : i32, i32
  }
  func.func @transform_2(%arg0: i32) -> (i32, i32) {
    %c0_i32 = arith.constant 0 : i32
    %c0_i32_0 = arith.constant 0 : i32
    return %c0_i32, %arg0 : i32, i32
  }
  func.func @transform_3(%arg0: i32) -> (i32, i32) {
    %c0_i32 = arith.constant 0 : i32
    %c0_i32_0 = arith.constant 0 : i32
    return %c0_i32, %arg0 : i32, i32
  }
  func.func @transform_4(%arg0: i32) -> (i32, i32) {
    %c0_i32 = arith.constant 0 : i32
    %c0_i32_0 = arith.constant 0 : i32
    return %c0_i32, %arg0 : i32, i32
  }
}

module attributes {stable_mosaic.version = 11 : i64} {
  func.func @_mm_kernel_multi(%arg0: i32, %arg1: i32, %arg2: memref<8x4096xbf16, #tpu.memory_space<vmem>>, %arg3: memref<4096x256xbf16, #tpu.memory_space<vmem>>, %arg4: memref<1x256xf32, #tpu.memory_space<vmem>>, %arg5: memref<1x256xf32, #tpu.memory_space<vmem>>, %arg6: memref<8x256xbf16, #tpu.memory_space<vmem>>, %arg7: memref<8x256xf32, #tpu.memory_space<vmem>>) attributes {dimension_semantics = [#tpu.dimension_semantics<parallel>, #tpu.dimension_semantics<arbitrary>], iteration_bounds = array<i64: 4, 2>, scalar_prefetch = 0 : i64, scratch_operands = 1 : i64, tpu.core_type = #tpu.core_type<tc>, window_params = [{transform_indices = @transform_0, window_bounds = array<i64: 8, 4096>}, {transform_indices = @transform_1, window_bounds = array<i64: 4096, 256>}, {transform_indices = @transform_2, window_bounds = array<i64: 1, 256>}, {transform_indices = @transform_3, window_bounds = array<i64: 1, 256>}, {transform_indices = @transform_4, window_bounds = array<i64: 8, 256>}]} {
    %c0_i32 = arith.constant 0 : i32
    %0 = arith.cmpi eq, %arg1, %c0_i32 : i32
    %1 = arith.extui %0 : i1 to i32
    %c0_i32_0 = arith.constant 0 : i32
    %2 = arith.cmpi ne, %1, %c0_i32_0 : i32
    scf.if %2 {
      %cst_9 = arith.constant 0.000000e+00 : f32
      %12 = vector.broadcast %cst_9 : f32 to vector<8x256xf32>
      %c0_10 = arith.constant 0 : index
      %c0_11 = arith.constant 0 : index
      %13 = vector.load %arg7[%c0_10, %c0_11] : memref<8x256xf32, #tpu.memory_space<vmem>>, vector<8x256xf32>
      tpu.vector_store %arg7[%c0_10, %c0_11], %12 {strides = array<i32>} : memref<8x256xf32, #tpu.memory_space<vmem>>, vector<8x256xf32>,
    } else {
    }
    %c0 = arith.constant 0 : index
    %c0_1 = arith.constant 0 : index
    %3 = vector.load %arg7[%c0, %c0_1] : memref<8x256xf32, #tpu.memory_space<vmem>>, vector<8x256xf32>
    %c0_2 = arith.constant 0 : index
    %c0_3 = arith.constant 0 : index
    %4 = vector.load %arg2[%c0_2, %c0_3] : memref<8x4096xbf16, #tpu.memory_space<vmem>>, vector<8x4096xbf16>
    %c0_4 = arith.constant 0 : index
    %c0_5 = arith.constant 0 : index
    %5 = vector.load %arg3[%c0_4, %c0_5] : memref<4096x256xbf16, #tpu.memory_space<vmem>>, vector<4096x256xbf16>
    %cst = arith.constant dense<0.000000e+00> : vector<8x256xf32>
    %6 = tpu.matmul %4, %5, %cst {dimension_numbers = #tpu.dot_dimension_numbers<[1], [0], [0], [1], [0, 0, 1, 1], [], []>} : vector<8x4096xbf16>, vector<4096x256xbf16>, vector<8x256xf32> -> vector<8x256xf32>
    %7 = arith.addf %3, %6 : vector<8x256xf32>
    %c0_6 = arith.constant 0 : index
    %c0_7 = arith.constant 0 : index
    %8 = vector.load %arg7[%c0_6, %c0_7] : memref<8x256xf32, #tpu.memory_space<vmem>>, vector<8x256xf32>
    tpu.vector_store %arg7[%c0_6, %c0_7], %7 {strides = array<i32>} : memref<8x256xf32, #tpu.memory_space<vmem>>, vector<8x256xf32>,
    %c1_i32 = arith.constant 1 : i32
    %9 = arith.cmpi eq, %arg1, %c1_i32 : i32
    %10 = arith.extui %9 : i1 to i32
    %c0_i32_8 = arith.constant 0 : i32
    %11 = arith.cmpi ne, %10, %c0_i32_8 : i32
    scf.if %11 {
      %c0_9 = arith.constant 0 : index
      %c0_10 = arith.constant 0 : index
      %12 = vector.load %arg7[%c0_9, %c0_10] : memref<8x256xf32, #tpu.memory_space<vmem>>, vector<8x256xf32>
      %c0_11 = arith.constant 0 : index
      %c0_12 = arith.constant 0 : index
      %13 = vector.load %arg4[%c0_11, %c0_12] : memref<1x256xf32, #tpu.memory_space<vmem>>, vector<1x256xf32>
      %14 = vector.broadcast %13 : vector<1x256xf32> to vector<8x256xf32>
      %15 = arith.mulf %12, %14 : vector<8x256xf32>
      %c0_13 = arith.constant 0 : index
      %c0_14 = arith.constant 0 : index
      %16 = vector.load %arg5[%c0_13, %c0_14] : memref<1x256xf32, #tpu.memory_space<vmem>>, vector<1x256xf32>
      %17 = vector.broadcast %16 : vector<1x256xf32> to vector<8x256xf32>
      %18 = arith.addf %15, %17 : vector<8x256xf32>
      %cst_15 = arith.constant 0.000000e+00 : f32
      %19 = vector.broadcast %cst_15 : f32 to vector<8x256xf32>
      %20 = arith.cmpf ogt, %18, %19 : vector<8x256xf32>
      %cst_16 = arith.constant 2.000000e-01 : f32
      %21 = vector.broadcast %cst_16 : f32 to vector<8x256xf32>
      %22 = arith.mulf %21, %18 : vector<8x256xf32>
      %23 = arith.select %20, %18, %22 : vector<8x256xi1>, vector<8x256xf32>
      %24 = arith.truncf %23 : vector<8x256xf32> to vector<8x256xbf16>
      %c0_17 = arith.constant 0 : index
      %c0_18 = arith.constant 0 : index
      %25 = vector.load %arg6[%c0_17, %c0_18] : memref<8x256xbf16, #tpu.memory_space<vmem>>, vector<8x256xbf16>
      tpu.vector_store %arg6[%c0_17, %c0_18], %24 {strides = array<i32>} : memref<8x256xbf16, #tpu.memory_space<vmem>>, vector<8x256xbf16>,
    } else {
    }
    return
  }
  func.func @transform_0(%arg0: i32, %arg1: i32) -> (i32, i32) {
    %c0_i32 = arith.constant 0 : i32
    %c0_i32_0 = arith.constant 0 : i32
    return %c0_i32, %arg1 : i32, i32
  }
  func.func @transform_1(%arg0: i32, %arg1: i32) -> (i32, i32) {
    %c0_i32 = arith.constant 0 : i32
    return %arg1, %arg0 : i32, i32
  }
  func.func @transform_2(%arg0: i32, %arg1: i32) -> (i32, i32) {
    %c0_i32 = arith.constant 0 : i32
    %c0_i32_0 = arith.constant 0 : i32
    return %c0_i32, %arg0 : i32, i32
  }
  func.func @transform_3(%arg0: i32, %arg1: i32) -> (i32, i32) {
    %c0_i32 = arith.constant 0 : i32
    %c0_i32_0 = arith.constant 0 : i32
    return %c0_i32, %arg0 : i32, i32
  }
  func.func @transform_4(%arg0: i32, %arg1: i32) -> (i32, i32) {
    %c0_i32 = arith.constant 0 : i32
    %c0_i32_0 = arith.constant 0 : i32
    return %c0_i32, %arg0 : i32, i32
  }
}

module attributes {stable_mosaic.version = 11 : i64} {
  func.func @_mm_kernel_single(%arg0: i32, %arg1: memref<8x1024xbf16, #tpu.memory_space<vmem>>, %arg2: memref<1024x128xbf16, #tpu.memory_space<vmem>>, %arg3: memref<1x128xf32, #tpu.memory_space<vmem>>, %arg4: memref<1x128xf32, #tpu.memory_space<vmem>>, %arg5: memref<8x128xf32, #tpu.memory_space<vmem>>) attributes {dimension_semantics = [#tpu.dimension_semantics<parallel>], iteration_bounds = array<i64: 1>, scalar_prefetch = 0 : i64, scratch_operands = 0 : i64, tpu.core_type = #tpu.core_type<tc>, window_params = [{pipeline_mode = #tpu.pipeline_mode<synchronous>, transform_indices = @transform_0, window_bounds = array<i64: 8, 1024>}, {transform_indices = @transform_1, window_bounds = array<i64: 1024, 128>}, {transform_indices = @transform_2, window_bounds = array<i64: 1, 128>}, {transform_indices = @transform_3, window_bounds = array<i64: 1, 128>}, {transform_indices = @transform_4, window_bounds = array<i64: 8, 128>}]} {
    %c0 = arith.constant 0 : index
    %c0_0 = arith.constant 0 : index
    %0 = vector.load %arg1[%c0, %c0_0] : memref<8x1024xbf16, #tpu.memory_space<vmem>>, vector<8x1024xbf16>
    %c0_1 = arith.constant 0 : index
    %c0_2 = arith.constant 0 : index
    %1 = vector.load %arg2[%c0_1, %c0_2] : memref<1024x128xbf16, #tpu.memory_space<vmem>>, vector<1024x128xbf16>
    %cst = arith.constant dense<0.000000e+00> : vector<8x128xf32>
    %2 = tpu.matmul %0, %1, %cst {dimension_numbers = #tpu.dot_dimension_numbers<[1], [0], [0], [1], [0, 0, 1, 1], [], []>} : vector<8x1024xbf16>, vector<1024x128xbf16>, vector<8x128xf32> -> vector<8x128xf32>
    %c0_3 = arith.constant 0 : index
    %c0_4 = arith.constant 0 : index
    %3 = vector.load %arg3[%c0_3, %c0_4] : memref<1x128xf32, #tpu.memory_space<vmem>>, vector<1x128xf32>
    %4 = vector.broadcast %3 : vector<1x128xf32> to vector<8x128xf32>
    %5 = arith.mulf %2, %4 : vector<8x128xf32>
    %c0_5 = arith.constant 0 : index
    %c0_6 = arith.constant 0 : index
    %6 = vector.load %arg4[%c0_5, %c0_6] : memref<1x128xf32, #tpu.memory_space<vmem>>, vector<1x128xf32>
    %7 = vector.broadcast %6 : vector<1x128xf32> to vector<8x128xf32>
    %8 = arith.addf %5, %7 : vector<8x128xf32>
    %c0_7 = arith.constant 0 : index
    %c0_8 = arith.constant 0 : index
    %9 = vector.load %arg5[%c0_7, %c0_8] : memref<8x128xf32, #tpu.memory_space<vmem>>, vector<8x128xf32>
    tpu.vector_store %arg5[%c0_7, %c0_8], %8 {strides = array<i32>} : memref<8x128xf32, #tpu.memory_space<vmem>>, vector<8x128xf32>,
    return
  }
  func.func @transform_0(%arg0: i32) -> (i32, i32) {
    %c0_i32 = arith.constant 0 : i32
    %c0_i32_0 = arith.constant 0 : i32
    %c0_i32_1 = arith.constant 0 : i32
    return %c0_i32, %c0_i32_0 : i32, i32
  }
  func.func @transform_1(%arg0: i32) -> (i32, i32) {
    %c0_i32 = arith.constant 0 : i32
    %c0_i32_0 = arith.constant 0 : i32
    return %c0_i32, %arg0 : i32, i32
  }
  func.func @transform_2(%arg0: i32) -> (i32, i32) {
    %c0_i32 = arith.constant 0 : i32
    %c0_i32_0 = arith.constant 0 : i32
    return %c0_i32, %arg0 : i32, i32
  }
  func.func @transform_3(%arg0: i32) -> (i32, i32) {
    %c0_i32 = arith.constant 0 : i32
    %c0_i32_0 = arith.constant 0 : i32
    return %c0_i32, %arg0 : i32, i32
  }
  func.func @transform_4(%arg0: i32) -> (i32, i32) {
    %c0_i32 = arith.constant 0 : i32
    %c0_i32_0 = arith.constant 0 : i32
    return %c0_i32, %arg0 : i32, i32
  }
}

</mosaic_0001>

<llo_original>
// kernel: discriminator_forward.6
$region0: #{discriminator_forward.6}
  #allocation0 [shape = 'u32[]', space=smem, size = 0x4, offset = 0x4, fixed_abs, tag = 'smem constant byte address 0x4 - core index']
  #allocation1 [shape = 'u32[144,128]{1,0:T(1,128)}', space=vmem, size = 0x12000, scoped, tag = 'internal scratch']
  %s0 = inlined_call_operand.vmem [shape: bf16[512,16], index: 0, kind: input, shape index: {}]
  %s1 = inlined_call_operand.vmem [shape: bf16[16,128], index: 1, kind: input, shape index: {}]
  %s2 = inlined_call_operand.vmem [shape: f32[1,128], index: 2, kind: input, shape index: {}]
  %s3 = inlined_call_operand.vmem [shape: f32[1,128], index: 3, kind: input, shape index: {}]
  %s4 = inlined_call_operand.vmem [shape: bf16[512,128], index: 4, kind: output, shape index: {}]
  %s5 = sld [smem:[#allocation0]]
  $region26: #{discriminator_forward.6} parent=0
    _
  %s7 = ssub.s32 1, %s5
  %s8 = scalar_select 0, %s7, %s5
  // Predicated region
  $region2: #{discriminator_forward.6} parent=0 // pred_check
    _
  $region3: #{discriminator_forward.6} parent=0 // pred_check_branch
    %10 = sbr.rel (0) target = $region5
  $region4: #{discriminator_forward.6} parent=0 // pred_region
    _
  $region5: #{discriminator_forward.6} parent=0 // pred_fallthru
    _
  // Predicated region
  $region6: #{discriminator_forward.6} parent=0 // pred_check
    _
  $region7: #{discriminator_forward.6} parent=0 // pred_check_branch
    %12 = sbr.rel (0) target = $region9
  $region8: #{discriminator_forward.6} parent=0 // pred_region
    _
  $region9: #{discriminator_forward.6} parent=0 // pred_fallthru
    _
  // Predicated region
  $region10: #{discriminator_forward.6} parent=0 // pred_check
    _
  $region11: #{discriminator_forward.6} parent=0 // pred_check_branch
    %14 = sbr.rel (0) target = $region13
  $region12: #{discriminator_forward.6} parent=0 // pred_region
    _
  $region13: #{discriminator_forward.6} parent=0 // pred_fallthru
    _
  // Predicated region
  $region14: #{discriminator_forward.6} parent=0 // pred_check
    _
  $region15: #{discriminator_forward.6} parent=0 // pred_check_branch
    %16 = sbr.rel (0) target = $region17
  $region16: #{discriminator_forward.6} parent=0 // pred_region
    _
  $region17: #{discriminator_forward.6} parent=0 // pred_fallthru
    _
  %v18 = vld [vmem:[%s0] sm:$0xf]
  %v19 = vld [vmem:[%s0 + $0x4] sm:$0xf]
  %v20 = vld [vmem:[%s0 + $0x8] sm:$0xf]
  %v21 = vld [vmem:[%s0 + $0xc] sm:$0xf]
  %v22 = vld [vmem:[%s0 + $0x10] sm:$0xf]
  %v23 = vld [vmem:[%s0 + $0x14] sm:$0xf]
  %v24 = vld [vmem:[%s0 + $0x18] sm:$0xf]
  %v25 = vld [vmem:[%s0 + $0x1c] sm:$0xf]
  %v26 = vld [vmem:[%s0 + $0x20] sm:$0xf]
  %v27 = vld [vmem:[%s0 + $0x24] sm:$0xf]
  %v28 = vld [vmem:[%s0 + $0x28] sm:$0xf]
  %v29 = vld [vmem:[%s0 + $0x2c] sm:$0xf]
  %v30 = vld [vmem:[%s0 + $0x30] sm:$0xf]
  %v31 = vld [vmem:[%s0 + $0x34] sm:$0xf]
  %v32 = vld [vmem:[%s0 + $0x38] sm:$0xf]
  %v33 = vld [vmem:[%s0 + $0x3c] sm:$0xf]
  %v34 = vld [vmem:[%s0 + $0x40] sm:$0xf]
  %v35 = vld [vmem:[%s0 + $0x44] sm:$0xf]
  %v36 = vld [vmem:[%s0 + $0x48] sm:$0xf]
  %v37 = vld [vmem:[%s0 + $0x4c] sm:$0xf]
  %v38 = vld [vmem:[%s0 + $0x50] sm:$0xf]
  %v39 = vld [vmem:[%s0 + $0x54] sm:$0xf]
  %v40 = vld [vmem:[%s0 + $0x58] sm:$0xf]
  %v41 = vld [vmem:[%s0 + $0x5c] sm:$0xf]
  %v42 = vld [vmem:[%s0 + $0x60] sm:$0xf]
  %v43 = vld [vmem:[%s0 + $0x64] sm:$0xf]
  %v44 = vld [vmem:[%s0 + $0x68] sm:$0xf]
  %v45 = vld [vmem:[%s0 + $0x6c] sm:$0xf]
  %v46 = vld [vmem:[%s0 + $0x70] sm:$0xf]
  %v47 = vld [vmem:[%s0 + $0x74] sm:$0xf]
  %v48 = vld [vmem:[%s0 + $0x78] sm:$0xf]
  %v49 = vld [vmem:[%s0 + $0x7c] sm:$0xf]
  %v50 = vld [vmem:[%s0 + $0x80] sm:$0xf]
  %v51 = vld [vmem:[%s0 + $0x84] sm:$0xf]
  %v52 = vld [vmem:[%s0 + $0x88] sm:$0xf]
  %v53 = vld [vmem:[%s0 + $0x8c] sm:$0xf]
  %v54 = vld [vmem:[%s0 + $0x90] sm:$0xf]
  %v55 = vld [vmem:[%s0 + $0x94] sm:$0xf]
  %v56 = vld [vmem:[%s0 + $0x98] sm:$0xf]
  %v57 = vld [vmem:[%s0 + $0x9c] sm:$0xf]
  %v58 = vld [vmem:[%s0 + $0xa0] sm:$0xf]
  %v59 = vld [vmem:[%s0 + $0xa4] sm:$0xf]
  %v60 = vld [vmem:[%s0 + $0xa8] sm:$0xf]
  %v61 = vld [vmem:[%s0 + $0xac] sm:$0xf]
  %v62 = vld [vmem:[%s0 + $0xb0] sm:$0xf]
  %v63 = vld [vmem:[%s0 + $0xb4] sm:$0xf]
  %v64 = vld [vmem:[%s0 + $0xb8] sm:$0xf]
  %v65 = vld [vmem:[%s0 + $0xbc] sm:$0xf]
  %v66 = vld [vmem:[%s0 + $0xc0] sm:$0xf]
  %v67 = vld [vmem:[%s0 + $0xc4] sm:$0xf]
  %v68 = vld [vmem:[%s0 + $0xc8] sm:$0xf]
  %v69 = vld [vmem:[%s0 + $0xcc] sm:$0xf]
  %v70 = vld [vmem:[%s0 + $0xd0] sm:$0xf]
  %v71 = vld [vmem:[%s0 + $0xd4] sm:$0xf]
  %v72 = vld [vmem:[%s0 + $0xd8] sm:$0xf]
  %v73 = vld [vmem:[%s0 + $0xdc] sm:$0xf]
  %v74 = vld [vmem:[%s0 + $0xe0] sm:$0xf]
  %v75 = vld [vmem:[%s0 + $0xe4] sm:$0xf]
  %v76 = vld [vmem:[%s0 + $0xe8] sm:$0xf]
  %v77 = vld [vmem:[%s0 + $0xec] sm:$0xf]
  %v78 = vld [vmem:[%s0 + $0xf0] sm:$0xf]
  %v79 = vld [vmem:[%s0 + $0xf4] sm:$0xf]
  %v80 = vld [vmem:[%s0 + $0xf8] sm:$0xf]
  %v81 = vld [vmem:[%s0 + $0xfc] sm:$0xf]
  %v82 = vld [vmem:[%s1] sm:$0xf]
  %v83 = vld [vmem:[%s1 + $0x4] sm:$0xf]
  %v148 = vunpack.c.l.b16 %v18
  %v149 = vunpack.c.l.b16 %v19
  %v150 = vunpack.c.l.b16 %v20
  %v151 = vunpack.c.l.b16 %v21
  %v152 = vunpack.c.l.b16 %v22
  %v153 = vunpack.c.l.b16 %v23
  %v154 = vunpack.c.l.b16 %v24
  %v155 = vunpack.c.l.b16 %v25
  %v156 = vunpack.c.l.b16 %v26
  %v157 = vunpack.c.l.b16 %v27
  %v158 = vunpack.c.l.b16 %v28
  %v159 = vunpack.c.l.b16 %v29
  %v160 = vunpack.c.l.b16 %v30
  %v161 = vunpack.c.l.b16 %v31
  %v162 = vunpack.c.l.b16 %v32
  %v163 = vunpack.c.l.b16 %v33
  %v164 = vunpack.c.l.b16 %v34
  %v165 = vunpack.c.l.b16 %v35
  %v166 = vunpack.c.l.b16 %v36
  %v167 = vunpack.c.l.b16 %v37
  %v168 = vunpack.c.l.b16 %v38
  %v169 = vunpack.c.l.b16 %v39
  %v170 = vunpack.c.l.b16 %v40
  %v171 = vunpack.c.l.b16 %v41
  %v172 = vunpack.c.l.b16 %v42
  %v173 = vunpack.c.l.b16 %v43
  %v174 = vunpack.c.l.b16 %v44
  %v175 = vunpack.c.l.b16 %v45
  %v176 = vunpack.c.l.b16 %v46
  %v177 = vunpack.c.l.b16 %v47
  %v178 = vunpack.c.l.b16 %v48
  %v179 = vunpack.c.l.b16 %v49
  %v180 = vunpack.c.l.b16 %v50
  %v181 = vunpack.c.l.b16 %v51
  %v182 = vunpack.c.l.b16 %v52
  %v183 = vunpack.c.l.b16 %v53
  %v184 = vunpack.c.l.b16 %v54
  %v185 = vunpack.c.l.b16 %v55
  %v186 = vunpack.c.l.b16 %v56
  %v187 = vunpack.c.l.b16 %v57
  %v188 = vunpack.c.l.b16 %v58
  %v189 = vunpack.c.l.b16 %v59
  %v190 = vunpack.c.l.b16 %v60
  %v191 = vunpack.c.l.b16 %v61
  %v192 = vunpack.c.l.b16 %v62
  %v193 = vunpack.c.l.b16 %v63
  %v194 = vunpack.c.l.b16 %v64
  %v195 = vunpack.c.l.b16 %v65
  %v196 = vunpack.c.l.b16 %v66
  %v197 = vunpack.c.l.b16 %v67
  %v198 = vunpack.c.l.b16 %v68
  %v199 = vunpack.c.l.b16 %v69
  %v200 = vunpack.c.l.b16 %v70
  %v201 = vunpack.c.l.b16 %v71
  %v202 = vunpack.c.l.b16 %v72
  %v203 = vunpack.c.l.b16 %v73
  %v204 = vunpack.c.l.b16 %v74
  %v205 = vunpack.c.l.b16 %v75
  %v206 = vunpack.c.l.b16 %v76
  %v207 = vunpack.c.l.b16 %v77
  %v208 = vunpack.c.l.b16 %v78
  %v209 = vunpack.c.l.b16 %v79
  %v210 = vunpack.c.l.b16 %v80
  %v211 = vunpack.c.l.b16 %v81
  %v212 = vpack.c.b16 %v149, %v148
  %v213 = vpack.c.b16 %v151, %v150
  %v214 = vpack.c.b16 %v153, %v152
  %v215 = vpack.c.b16 %v155, %v154
  %v216 = vpack.c.b16 %v157, %v156
  %v217 = vpack.c.b16 %v159, %v158
  %v218 = vpack.c.b16 %v161, %v160
  %v219 = vpack.c.b16 %v163, %v162
  %v220 = vpack.c.b16 %v165, %v164
  %v221 = vpack.c.b16 %v167, %v166
  %v222 = vpack.c.b16 %v169, %v168
  %v223 = vpack.c.b16 %v171, %v170
  %v224 = vpack.c.b16 %v173, %v172
  %v225 = vpack.c.b16 %v175, %v174
  %v226 = vpack.c.b16 %v177, %v176
  %v227 = vpack.c.b16 %v179, %v178
  %v228 = vpack.c.b16 %v181, %v180
  %v229 = vpack.c.b16 %v183, %v182
  %v230 = vpack.c.b16 %v185, %v184
  %v231 = vpack.c.b16 %v187, %v186
  %v232 = vpack.c.b16 %v189, %v188
  %v233 = vpack.c.b16 %v191, %v190
  %v234 = vpack.c.b16 %v193, %v192
  %v235 = vpack.c.b16 %v195, %v194
  %v236 = vpack.c.b16 %v197, %v196
  %v237 = vpack.c.b16 %v199, %v198
  %v238 = vpack.c.b16 %v201, %v200
  %v239 = vpack.c.b16 %v203, %v202
  %v240 = vpack.c.b16 %v205, %v204
  %v241 = vpack.c.b16 %v207, %v206
  %v242 = vpack.c.b16 %v209, %v208
  %v243 = vpack.c.b16 %v211, %v210
  %v246 = vunpack.c.l.b16 %v82
  %v247 = vunpack.c.l.b16 %v83
  %v248 = vpack.c.b16 %v247, %v246
  %vm250 = vcmask 130048
  %v252 = vsel %vm250, %v212, 0
  %v255 = vsel %vm250, %v213, 0
  %v258 = vsel %vm250, %v214, 0
  %v261 = vsel %vm250, %v215, 0
  %v264 = vsel %vm250, %v216, 0
  %v267 = vsel %vm250, %v217, 0
  %v270 = vsel %vm250, %v218, 0
  %v273 = vsel %vm250, %v219, 0
  %v276 = vsel %vm250, %v220, 0
  %v279 = vsel %vm250, %v221, 0
  %v282 = vsel %vm250, %v222, 0
  %v285 = vsel %vm250, %v223, 0
  %v288 = vsel %vm250, %v224, 0
  %v291 = vsel %vm250, %v225, 0
  %v294 = vsel %vm250, %v226, 0
  %v297 = vsel %vm250, %v227, 0
  %v300 = vsel %vm250, %v228, 0
  %v303 = vsel %vm250, %v229, 0
  %v306 = vsel %vm250, %v230, 0
  %v309 = vsel %vm250, %v231, 0
  %v312 = vsel %vm250, %v232, 0
  %v315 = vsel %vm250, %v233, 0
  %v318 = vsel %vm250, %v234, 0
  %v321 = vsel %vm250, %v235, 0
  %v324 = vsel %vm250, %v236, 0
  %v327 = vsel %vm250, %v237, 0
  %v330 = vsel %vm250, %v238, 0
  %v333 = vsel %vm250, %v239, 0
  %v336 = vsel %vm250, %v240, 0
  %v339 = vsel %vm250, %v241, 0
  %v342 = vsel %vm250, %v242, 0
  %v345 = vsel %vm250, %v243, 0
  %347 = vmatprep.subr.bf16.mxu0 0
  %348 = vmatpush1.bf16.msra.mxu0 %v248
  %349 = vmatprep.subr.bf16.mxu0 0
  %350 = vmatpush1.bf16.msra.mxu0 0
  %351 = vmatprep.subr.bf16.mxu0 0
  %352 = vmatpush1.bf16.msra.mxu0 0
  %353 = vmatprep.subr.bf16.mxu0 0
  %354 = vmatpush1.bf16.msra.mxu0 0
  %355 = vmatprep.subr.bf16.mxu0 0
  %356 = vmatpush1.bf16.msra.mxu0 0
  %357 = vmatprep.subr.bf16.mxu0 0
  %358 = vmatpush1.bf16.msra.mxu0 0
  %359 = vmatprep.subr.bf16.mxu0 0
  %360 = vmatpush1.bf16.msra.mxu0 0
  %361 = vmatprep.subr.bf16.mxu0 0
  %362 = vmatpush1.bf16.msra.mxu0 0
  %363 = vmatprep.subr.bf16.mxu0 0
  %364 = vmatpush1.bf16.msra.mxu0 0
  %365 = vmatprep.subr.bf16.mxu0 0
  %366 = vmatpush1.bf16.msra.mxu0 0
  %367 = vmatprep.subr.bf16.mxu0 0
  %368 = vmatpush1.bf16.msra.mxu0 0
  %369 = vmatprep.subr.bf16.mxu0 0
  %370 = vmatpush1.bf16.msra.mxu0 0
  %371 = vmatprep.subr.bf16.mxu0 0
  %372 = vmatpush1.bf16.msra.mxu0 0
  %373 = vmatprep.subr.bf16.mxu0 0
  %374 = vmatpush1.bf16.msra.mxu0 0
  %375 = vmatprep.subr.bf16.mxu0 0
  %376 = vmatpush1.bf16.msra.mxu0 0
  %377 = vmatprep.subr.bf16.mxu0 0
  %378 = vmatpush1.bf16.msra.mxu0 0
  %379 = vmatprep.mubr.bf16.mxu0 0
  %380 = vmatmul.mubr.bf16.gmra.mrb[0].mxu0 %v252
  %v381 = vpop.f32.mrb[0].mxu0
  %v382 = vadd.f32 0.0, %v381
  %v383 = vpop.f32.mrb[0].mxu0
  %v384 = vpop.f32.mrb[0].mxu0
  %v385 = vadd.f32 0.0, %v384
  %v386 = vpop.f32.mrb[0].mxu0
  %387 = vmatprep.mubr.bf16.mxu0 0
  %388 = vmatmul.mubr.bf16.gmra.mrb[0].mxu0 %v255
  %v389 = vpop.f32.mrb[0].mxu0
  %v390 = vadd.f32 0.0, %v389
  %v391 = vpop.f32.mrb[0].mxu0
  %v392 = vpop.f32.mrb[0].mxu0
  %v393 = vadd.f32 0.0, %v392
  %v394 = vpop.f32.mrb[0].mxu0
  %395 = vmatprep.mubr.bf16.mxu0 0
  %396 = vmatmul.mubr.bf16.gmra.mrb[0].mxu0 %v258
  %v397 = vpop.f32.mrb[0].mxu0
  %v398 = vadd.f32 0.0, %v397
  %v399 = vpop.f32.mrb[0].mxu0
  %v400 = vpop.f32.mrb[0].mxu0
  %v401 = vadd.f32 0.0, %v400
  %v402 = vpop.f32.mrb[0].mxu0
  %403 = vmatprep.mubr.bf16.mxu0 0
  %404 = vmatmul.mubr.bf16.gmra.mrb[0].mxu0 %v261
  %v405 = vpop.f32.mrb[0].mxu0
  %v406 = vadd.f32 0.0, %v405
  %v407 = vpop.f32.mrb[0].mxu0
  %v408 = vpop.f32.mrb[0].mxu0
  %v409 = vadd.f32 0.0, %v408
  %v410 = vpop.f32.mrb[0].mxu0
  %411 = vmatprep.mubr.bf16.mxu0 0
  %412 = vmatmul.mubr.bf16.gmra.mrb[0].mxu0 %v264
  %v413 = vpop.f32.mrb[0].mxu0
  %v414 = vadd.f32 0.0, %v413
  %v415 = vpop.f32.mrb[0].mxu0
  %v416 = vpop.f32.mrb[0].mxu0
  %v417 = vadd.f32 0.0, %v416
  %v418 = vpop.f32.mrb[0].mxu0
  %419 = vmatprep.mubr.bf16.mxu0 0
  %420 = vmatmul.mubr.bf16.gmra.mrb[0].mxu0 %v267
  %v421 = vpop.f32.mrb[0].mxu0
  %v422 = vadd.f32 0.0, %v421
  %v423 = vpop.f32.mrb[0].mxu0
  %v424 = vpop.f32.mrb[0].mxu0
  %v425 = vadd.f32 0.0, %v424
  %v426 = vpop.f32.mrb[0].mxu0
  %427 = vmatprep.mubr.bf16.mxu0 0
  %428 = vmatmul.mubr.bf16.gmra.mrb[0].mxu0 %v270
  %v429 = vpop.f32.mrb[0].mxu0
  %v430 = vadd.f32 0.0, %v429
  %v431 = vpop.f32.mrb[0].mxu0
  %v432 = vpop.f32.mrb[0].mxu0
  %v433 = vadd.f32 0.0, %v432
  %v434 = vpop.f32.mrb[0].mxu0
  %435 = vmatprep.mubr.bf16.mxu0 0
  %436 = vmatmul.mubr.bf16.gmra.mrb[0].mxu0 %v273
  %v437 = vpop.f32.mrb[0].mxu0
  %v438 = vadd.f32 0.0, %v437
  %v439 = vpop.f32.mrb[0].mxu0
  %v440 = vpop.f32.mrb[0].mxu0
  %v441 = vadd.f32 0.0, %v440
  %v442 = vpop.f32.mrb[0].mxu0
  %443 = vmatprep.mubr.bf16.mxu0 0
  %444 = vmatmul.mubr.bf16.gmra.mrb[0].mxu0 %v276
  %v445 = vpop.f32.mrb[0].mxu0
  %v446 = vadd.f32 0.0, %v445
  %v447 = vpop.f32.mrb[0].mxu0
  %v448 = vpop.f32.mrb[0].mxu0
  %v449 = vadd.f32 0.0, %v448
  %v450 = vpop.f32.mrb[0].mxu0
  %451 = vmatprep.mubr.bf16.mxu0 0
  %452 = vmatmul.mubr.bf16.gmra.mrb[0].mxu0 %v279
  %v453 = vpop.f32.mrb[0].mxu0
  %v454 = vadd.f32 0.0, %v453
  %v455 = vpop.f32.mrb[0].mxu0
  %v456 = vpop.f32.mrb[0].mxu0
  %v457 = vadd.f32 0.0, %v456
  %v458 = vpop.f32.mrb[0].mxu0
  %459 = vmatprep.mubr.bf16.mxu0 0
  %460 = vmatmul.mubr.bf16.gmra.mrb[0].mxu0 %v282
  %v461 = vpop.f32.mrb[0].mxu0
  %v462 = vadd.f32 0.0, %v461
  %v463 = vpop.f32.mrb[0].mxu0
  %v464 = vpop.f32.mrb[0].mxu0
  %v465 = vadd.f32 0.0, %v464
  %v466 = vpop.f32.mrb[0].mxu0
  %467 = vmatprep.mubr.bf16.mxu0 0
  %468 = vmatmul.mubr.bf16.gmra.mrb[0].mxu0 %v285
  %v469 = vpop.f32.mrb[0].mxu0
  %v470 = vadd.f32 0.0, %v469
  %v471 = vpop.f32.mrb[0].mxu0
  %v472 = vpop.f32.mrb[0].mxu0
  %v473 = vadd.f32 0.0, %v472
  %v474 = vpop.f32.mrb[0].mxu0
  %475 = vmatprep.mubr.bf16.mxu0 0
  %476 = vmatmul.mubr.bf16.gmra.mrb[0].mxu0 %v288
  %v477 = vpop.f32.mrb[0].mxu0
  %v478 = vadd.f32 0.0, %v477
  %v479 = vpop.f32.mrb[0].mxu0
  %v480 = vpop.f32.mrb[0].mxu0
  %v481 = vadd.f32 0.0, %v480
  %v482 = vpop.f32.mrb[0].mxu0
  %483 = vmatprep.mubr.bf16.mxu0 0
  %484 = vmatmul.mubr.bf16.gmra.mrb[0].mxu0 %v291
  %v485 = vpop.f32.mrb[0].mxu0
  %v486 = vadd.f32 0.0, %v485
  %v487 = vpop.f32.mrb[0].mxu0
  %v488 = vpop.f32.mrb[0].mxu0
  %v489 = vadd.f32 0.0, %v488
  %v490 = vpop.f32.mrb[0].mxu0
  %491 = vmatprep.mubr.bf16.mxu0 0
  %492 = vmatmul.mubr.bf16.gmra.mrb[0].mxu0 %v294
  %v493 = vpop.f32.mrb[0].mxu0
  %v494 = vadd.f32 0.0, %v493
  %v495 = vpop.f32.mrb[0].mxu0
  %v496 = vpop.f32.mrb[0].mxu0
  %v497 = vadd.f32 0.0, %v496
  %v498 = vpop.f32.mrb[0].mxu0
  %499 = vmatprep.mubr.bf16.mxu0 0
  %500 = vmatmul.mubr.bf16.gmra.mrb[0].mxu0 %v297
  %v501 = vpop.f32.mrb[0].mxu0
  %v502 = vadd.f32 0.0, %v501
  %v503 = vpop.f32.mrb[0].mxu0
  %v504 = vpop.f32.mrb[0].mxu0
  %v505 = vadd.f32 0.0, %v504
  %v506 = vpop.f32.mrb[0].mxu0
  %507 = vmatprep.mubr.bf16.mxu0 0
  %508 = vmatmul.mubr.bf16.gmra.mrb[0].mxu0 %v300
  %v509 = vpop.f32.mrb[0].mxu0
  %v510 = vadd.f32 0.0, %v509
  %v511 = vpop.f32.mrb[0].mxu0
  %v512 = vpop.f32.mrb[0].mxu0
  %v513 = vadd.f32 0.0, %v512
  %v514 = vpop.f32.mrb[0].mxu0
  %515 = vmatprep.mubr.bf16.mxu0 0
  %516 = vmatmul.mubr.bf16.gmra.mrb[0].mxu0 %v303
  %v517 = vpop.f32.mrb[0].mxu0
  %v518 = vadd.f32 0.0, %v517
  %v519 = vpop.f32.mrb[0].mxu0
  %v520 = vpop.f32.mrb[0].mxu0
  %v521 = vadd.f32 0.0, %v520
  %v522 = vpop.f32.mrb[0].mxu0
  %523 = vmatprep.mubr.bf16.mxu0 0
  %524 = vmatmul.mubr.bf16.gmra.mrb[0].mxu0 %v306
  %v525 = vpop.f32.mrb[0].mxu0
  %v526 = vadd.f32 0.0, %v525
  %v527 = vpop.f32.mrb[0].mxu0
  %v528 = vpop.f32.mrb[0].mxu0
  %v529 = vadd.f32 0.0, %v528
  %v530 = vpop.f32.mrb[0].mxu0
  %531 = vmatprep.mubr.bf16.mxu0 0
  %532 = vmatmul.mubr.bf16.gmra.mrb[0].mxu0 %v309
  %v533 = vpop.f32.mrb[0].mxu0
  %v534 = vadd.f32 0.0, %v533
  %v535 = vpop.f32.mrb[0].mxu0
  %v536 = vpop.f32.mrb[0].mxu0
  %v537 = vadd.f32 0.0, %v536
  %v538 = vpop.f32.mrb[0].mxu0
  %539 = vmatprep.mubr.bf16.mxu0 0
  %540 = vmatmul.mubr.bf16.gmra.mrb[0].mxu0 %v312
  %v541 = vpop.f32.mrb[0].mxu0
  %v542 = vadd.f32 0.0, %v541
  %v543 = vpop.f32.mrb[0].mxu0
  %v544 = vpop.f32.mrb[0].mxu0
  %v545 = vadd.f32 0.0, %v544
  %v546 = vpop.f32.mrb[0].mxu0
  %547 = vmatprep.mubr.bf16.mxu0 0
  %548 = vmatmul.mubr.bf16.gmra.mrb[0].mxu0 %v315
  %v549 = vpop.f32.mrb[0].mxu0
  %v550 = vadd.f32 0.0, %v549
  %v551 = vpop.f32.mrb[0].mxu0
  %v552 = vpop.f32.mrb[0].mxu0
  %v553 = vadd.f32 0.0, %v552
  %v554 = vpop.f32.mrb[0].mxu0
  %555 = vmatprep.mubr.bf16.mxu0 0
  %556 = vmatmul.mubr.bf16.gmra.mrb[0].mxu0 %v318
  %v557 = vpop.f32.mrb[0].mxu0
  %v558 = vadd.f32 0.0, %v557
  %v559 = vpop.f32.mrb[0].mxu0
  %v560 = vpop.f32.mrb[0].mxu0
  %v561 = vadd.f32 0.0, %v560
  %v562 = vpop.f32.mrb[0].mxu0
  %563 = vmatprep.mubr.bf16.mxu0 0
  %564 = vmatmul.mubr.bf16.gmra.mrb[0].mxu0 %v321
  %v565 = vpop.f32.mrb[0].mxu0
  %v566 = vadd.f32 0.0, %v565
  %v567 = vpop.f32.mrb[0].mxu0
  %v568 = vpop.f32.mrb[0].mxu0
  %v569 = vadd.f32 0.0, %v568
  %v570 = vpop.f32.mrb[0].mxu0
  %571 = vmatprep.mubr.bf16.mxu0 0
  %572 = vmatmul.mubr.bf16.gmra.mrb[0].mxu0 %v324
  %v573 = vpop.f32.mrb[0].mxu0
  %v574 = vadd.f32 0.0, %v573
  %v575 = vpop.f32.mrb[0].mxu0
  %v576 = vpop.f32.mrb[0].mxu0
  %v577 = vadd.f32 0.0, %v576
  %v578 = vpop.f32.mrb[0].mxu0
  %579 = vmatprep.mubr.bf16.mxu0 0
  %580 = vmatmul.mubr.bf16.gmra.mrb[0].mxu0 %v327
  %v581 = vpop.f32.mrb[0].mxu0
  %v582 = vadd.f32 0.0, %v581
  %v583 = vpop.f32.mrb[0].mxu0
  %v584 = vpop.f32.mrb[0].mxu0
  %v585 = vadd.f32 0.0, %v584
  %v586 = vpop.f32.mrb[0].mxu0
  %587 = vmatprep.mubr.bf16.mxu0 0
  %588 = vmatmul.mubr.bf16.gmra.mrb[0].mxu0 %v330
  %v589 = vpop.f32.mrb[0].mxu0
  %v590 = vadd.f32 0.0, %v589
  %v591 = vpop.f32.mrb[0].mxu0
  %v592 = vpop.f32.mrb[0].mxu0
  %v593 = vadd.f32 0.0, %v592
  %v594 = vpop.f32.mrb[0].mxu0
  %595 = vmatprep.mubr.bf16.mxu0 0
  %596 = vmatmul.mubr.bf16.gmra.mrb[0].mxu0 %v333
  %v597 = vpop.f32.mrb[0].mxu0
  %v598 = vadd.f32 0.0, %v597
  %v599 = vpop.f32.mrb[0].mxu0
  %v600 = vpop.f32.mrb[0].mxu0
  %v601 = vadd.f32 0.0, %v600
  %v602 = vpop.f32.mrb[0].mxu0
  %603 = vmatprep.mubr.bf16.mxu0 0
  %604 = vmatmul.mubr.bf16.gmra.mrb[0].mxu0 %v336
  %v605 = vpop.f32.mrb[0].mxu0
  %v606 = vadd.f32 0.0, %v605
  %v607 = vpop.f32.mrb[0].mxu0
  %v608 = vpop.f32.mrb[0].mxu0
  %v609 = vadd.f32 0.0, %v608
  %v610 = vpop.f32.mrb[0].mxu0
  %611 = vmatprep.mubr.bf16.mxu0 0
  %612 = vmatmul.mubr.bf16.gmra.mrb[0].mxu0 %v339
  %v613 = vpop.f32.mrb[0].mxu0
  %v614 = vadd.f32 0.0, %v613
  %v615 = vpop.f32.mrb[0].mxu0
  %v616 = vpop.f32.mrb[0].mxu0
  %v617 = vadd.f32 0.0, %v616
  %v618 = vpop.f32.mrb[0].mxu0
  %619 = vmatprep.mubr.bf16.mxu0 0
  %620 = vmatmul.mubr.bf16.gmra.mrb[0].mxu0 %v342
  %v621 = vpop.f32.mrb[0].mxu0
  %v622 = vadd.f32 0.0, %v621
  %v623 = vpop.f32.mrb[0].mxu0
  %v624 = vpop.f32.mrb[0].mxu0
  %v625 = vadd.f32 0.0, %v624
  %v626 = vpop.f32.mrb[0].mxu0
  %627 = vmatprep.mubr.bf16.mxu0 0
  %628 = vmatmul.mubr.bf16.gmra.mrb[0].mxu0 %v345
  %v629 = vpop.f32.mrb[0].mxu0
  %v630 = vadd.f32 0.0, %v629
  %v631 = vpop.f32.mrb[0].mxu0
  %v632 = vpop.f32.mrb[0].mxu0
  %v633 = vadd.f32 0.0, %v632
  %v634 = vpop.f32.mrb[0].mxu0
  %635 = vdwg.mxu0
  %v636 = vld [vmem:[%s2] sm:$0x1]
  %v638 = vlaneseq
  %v639 = vshrl.u32 %v638, 7
  %v640 = vsub.s32 0, %v639
  %v641 = vrot.slane %v636, %v640
  %v643 = vmul.f32 %v382, %v641
  %v644 = vmul.f32 %v385, %v641
  %v645 = vmul.f32 %v390, %v641
  %v646 = vmul.f32 %v393, %v641
  %v647 = vmul.f32 %v398, %v641
  %v648 = vmul.f32 %v401, %v641
  %v649 = vmul.f32 %v406, %v641
  %v650 = vmul.f32 %v409, %v641
  %v651 = vmul.f32 %v414, %v641
  %v652 = vmul.f32 %v417, %v641
  %v653 = vmul.f32 %v422, %v641
  %v654 = vmul.f32 %v425, %v641
  %v655 = vmul.f32 %v430, %v641
  %v656 = vmul.f32 %v433, %v641
  %v657 = vmul.f32 %v438, %v641
  %v658 = vmul.f32 %v441, %v641
  %v659 = vmul.f32 %v446, %v641
  %v660 = vmul.f32 %v449, %v641
  %v661 = vmul.f32 %v454, %v641
  %v662 = vmul.f32 %v457, %v641
  %v663 = vmul.f32 %v462, %v641
  %v664 = vmul.f32 %v465, %v641
  %v665 = vmul.f32 %v470, %v641
  %v666 = vmul.f32 %v473, %v641
  %v667 = vmul.f32 %v478, %v641
  %v668 = vmul.f32 %v481, %v641
  %v669 = vmul.f32 %v486, %v641
  %v670 = vmul.f32 %v489, %v641
  %v671 = vmul.f32 %v494, %v641
  %v672 = vmul.f32 %v497, %v641
  %v673 = vmul.f32 %v502, %v641
  %v674 = vmul.f32 %v505, %v641
  %v675 = vmul.f32 %v510, %v641
  %v676 = vmul.f32 %v513, %v641
  %v677 = vmul.f32 %v518, %v641
  %v678 = vmul.f32 %v521, %v641
  %v679 = vmul.f32 %v526, %v641
  %v680 = vmul.f32 %v529, %v641
  %v681 = vmul.f32 %v534, %v641
  %v682 = vmul.f32 %v537, %v641
  %v683 = vmul.f32 %v542, %v641
  %v684 = vmul.f32 %v545, %v641
  %v685 = vmul.f32 %v550, %v641
  %v686 = vmul.f32 %v553, %v641
  %v687 = vmul.f32 %v558, %v641
  %v688 = vmul.f32 %v561, %v641
  %v689 = vmul.f32 %v566, %v641
  %v690 = vmul.f32 %v569, %v641
  %v691 = vmul.f32 %v574, %v641
  %v692 = vmul.f32 %v577, %v641
  %v693 = vmul.f32 %v582, %v641
  %v694 = vmul.f32 %v585, %v641
  %v695 = vmul.f32 %v590, %v641
  %v696 = vmul.f32 %v593, %v641
  %v697 = vmul.f32 %v598, %v641
  %v698 = vmul.f32 %v601, %v641
  %v699 = vmul.f32 %v606, %v641
  %v700 = vmul.f32 %v609, %v641
  %v701 = vmul.f32 %v614, %v641
  %v702 = vmul.f32 %v617, %v641
  %v703 = vmul.f32 %v622, %v641
  %v704 = vmul.f32 %v625, %v641
  %v705 = vmul.f32 %v630, %v641
  %v706 = vmul.f32 %v633, %v641
  %v707 = vld [vmem:[%s3] sm:$0x1]
  %v709 = vlaneseq
  %v710 = vshrl.u32 %v709, 7
  %v711 = vsub.s32 0, %v710
  %v712 = vrot.slane %v707, %v711
  %v714 = vadd.f32 %v643, %v712
  %v715 = vadd.f32 %v644, %v712
  %v716 = vadd.f32 %v645, %v712
  %v717 = vadd.f32 %v646, %v712
  %v718 = vadd.f32 %v647, %v712
  %v719 = vadd.f32 %v648, %v712
  %v720 = vadd.f32 %v649, %v712
  %v721 = vadd.f32 %v650, %v712
  %v722 = vadd.f32 %v651, %v712
  %v723 = vadd.f32 %v652, %v712
  %v724 = vadd.f32 %v653, %v712
  %v725 = vadd.f32 %v654, %v712
  %v726 = vadd.f32 %v655, %v712
  %v727 = vadd.f32 %v656, %v712
  %v728 = vadd.f32 %v657, %v712
  %v729 = vadd.f32 %v658, %v712
  %v730 = vadd.f32 %v659, %v712
  %v731 = vadd.f32 %v660, %v712
  %v732 = vadd.f32 %v661, %v712
  %v733 = vadd.f32 %v662, %v712
  %v734 = vadd.f32 %v663, %v712
  %v735 = vadd.f32 %v664, %v712
  %v736 = vadd.f32 %v665, %v712
  %v737 = vadd.f32 %v666, %v712
  %v738 = vadd.f32 %v667, %v712
  %v739 = vadd.f32 %v668, %v712
  %v740 = vadd.f32 %v669, %v712
  %v741 = vadd.f32 %v670, %v712
  %v742 = vadd.f32 %v671, %v712
  %v743 = vadd.f32 %v672, %v712
  %v744 = vadd.f32 %v673, %v712
  %v745 = vadd.f32 %v674, %v712
  %v746 = vadd.f32 %v675, %v712
  %v747 = vadd.f32 %v676, %v712
  %v748 = vadd.f32 %v677, %v712
  %v749 = vadd.f32 %v678, %v712
  %v750 = vadd.f32 %v679, %v712
  %v751 = vadd.f32 %v680, %v712
  %v752 = vadd.f32 %v681, %v712
  %v753 = vadd.f32 %v682, %v712
  %v754 = vadd.f32 %v683, %v712
  %v755 = vadd.f32 %v684, %v712
  %v756 = vadd.f32 %v685, %v712
  %v757 = vadd.f32 %v686, %v712
  %v758 = vadd.f32 %v687, %v712
  %v759 = vadd.f32 %v688, %v712
  %v760 = vadd.f32 %v689, %v712
  %v761 = vadd.f32 %v690, %v712
  %v762 = vadd.f32 %v691, %v712
  %v763 = vadd.f32 %v692, %v712
  %v764 = vadd.f32 %v693, %v712
  %v765 = vadd.f32 %v694, %v712
  %v766 = vadd.f32 %v695, %v712
  %v767 = vadd.f32 %v696, %v712
  %v768 = vadd.f32 %v697, %v712
  %v769 = vadd.f32 %v698, %v712
  %v770 = vadd.f32 %v699, %v712
  %v771 = vadd.f32 %v700, %v712
  %v772 = vadd.f32 %v701, %v712
  %v773 = vadd.f32 %v702, %v712
  %v774 = vadd.f32 %v703, %v712
  %v775 = vadd.f32 %v704, %v712
  %v776 = vadd.f32 %v705, %v712
  %v777 = vadd.f32 %v706, %v712
  %vm778 = vcmp.gt.f32.partialorder %v714, 0.0
  %vm779 = vcmp.gt.f32.partialorder %v715, 0.0
  %vm780 = vcmp.gt.f32.partialorder %v716, 0.0
  %vm781 = vcmp.gt.f32.partialorder %v717, 0.0
  %vm782 = vcmp.gt.f32.partialorder %v718, 0.0
  %vm783 = vcmp.gt.f32.partialorder %v719, 0.0
  %vm784 = vcmp.gt.f32.partialorder %v720, 0.0
  %vm785 = vcmp.gt.f32.partialorder %v721, 0.0
  %vm786 = vcmp.gt.f32.partialorder %v722, 0.0
  %vm787 = vcmp.gt.f32.partialorder %v723, 0.0
  %vm788 = vcmp.gt.f32.partialorder %v724, 0.0
  %vm789 = vcmp.gt.f32.partialorder %v725, 0.0
  %vm790 = vcmp.gt.f32.partialorder %v726, 0.0
  %vm791 = vcmp.gt.f32.partialorder %v727, 0.0
  %vm792 = vcmp.gt.f32.partialorder %v728, 0.0
  %vm793 = vcmp.gt.f32.partialorder %v729, 0.0
  %vm794 = vcmp.gt.f32.partialorder %v730, 0.0
  %vm795 = vcmp.gt.f32.partialorder %v731, 0.0
  %vm796 = vcmp.gt.f32.partialorder %v732, 0.0
  %vm797 = vcmp.gt.f32.partialorder %v733, 0.0
  %vm798 = vcmp.gt.f32.partialorder %v734, 0.0
  %vm799 = vcmp.gt.f32.partialorder %v735, 0.0
  %vm800 = vcmp.gt.f32.partialorder %v736, 0.0
  %vm801 = vcmp.gt.f32.partialorder %v737, 0.0
  %vm802 = vcmp.gt.f32.partialorder %v738, 0.0
  %vm803 = vcmp.gt.f32.partialorder %v739, 0.0
  %vm804 = vcmp.gt.f32.partialorder %v740, 0.0
  %vm805 = vcmp.gt.f32.partialorder %v741, 0.0
  %vm806 = vcmp.gt.f32.partialorder %v742, 0.0
  %vm807 = vcmp.gt.f32.partialorder %v743, 0.0
  %vm808 = vcmp.gt.f32.partialorder %v744, 0.0
  %vm809 = vcmp.gt.f32.partialorder %v745, 0.0
  %vm810 = vcmp.gt.f32.partialorder %v746, 0.0
  %vm811 = vcmp.gt.f32.partialorder %v747, 0.0
  %vm812 = vcmp.gt.f32.partialorder %v748, 0.0
  %vm813 = vcmp.gt.f32.partialorder %v749, 0.0
  %vm814 = vcmp.gt.f32.partialorder %v750, 0.0
  %vm815 = vcmp.gt.f32.partialorder %v751, 0.0
  %vm816 = vcmp.gt.f32.partialorder %v752, 0.0
  %vm817 = vcmp.gt.f32.partialorder %v753, 0.0
  %vm818 = vcmp.gt.f32.partialorder %v754, 0.0
  %vm819 = vcmp.gt.f32.partialorder %v755, 0.0
  %vm820 = vcmp.gt.f32.partialorder %v756, 0.0
  %vm821 = vcmp.gt.f32.partialorder %v757, 0.0
  %vm822 = vcmp.gt.f32.partialorder %v758, 0.0
  %vm823 = vcmp.gt.f32.partialorder %v759, 0.0
  %vm824 = vcmp.gt.f32.partialorder %v760, 0.0
  %vm825 = vcmp.gt.f32.partialorder %v761, 0.0
  %vm826 = vcmp.gt.f32.partialorder %v762, 0.0
  %vm827 = vcmp.gt.f32.partialorder %v763, 0.0
  %vm828 = vcmp.gt.f32.partialorder %v764, 0.0
  %vm829 = vcmp.gt.f32.partialorder %v765, 0.0
  %vm830 = vcmp.gt.f32.partialorder %v766, 0.0
  %vm831 = vcmp.gt.f32.partialorder %v767, 0.0
  %vm832 = vcmp.gt.f32.partialorder %v768, 0.0
  %vm833 = vcmp.gt.f32.partialorder %v769, 0.0
  %vm834 = vcmp.gt.f32.partialorder %v770, 0.0
  %vm835 = vcmp.gt.f32.partialorder %v771, 0.0
  %vm836 = vcmp.gt.f32.partialorder %v772, 0.0
  %vm837 = vcmp.gt.f32.partialorder %v773, 0.0
  %vm838 = vcmp.gt.f32.partialorder %v774, 0.0
  %vm839 = vcmp.gt.f32.partialorder %v775, 0.0
  %vm840 = vcmp.gt.f32.partialorder %v776, 0.0
  %vm841 = vcmp.gt.f32.partialorder %v777, 0.0
  %v842 = vmul.f32 %v714, 0.2
  %v843 = vmul.f32 %v715, 0.2
  %v844 = vmul.f32 %v716, 0.2
  %v845 = vmul.f32 %v717, 0.2
  %v846 = vmul.f32 %v718, 0.2
  %v847 = vmul.f32 %v719, 0.2
  %v848 = vmul.f32 %v720, 0.2
  %v849 = vmul.f32 %v721, 0.2
  %v850 = vmul.f32 %v722, 0.2
  %v851 = vmul.f32 %v723, 0.2
  %v852 = vmul.f32 %v724, 0.2
  %v853 = vmul.f32 %v725, 0.2
  %v854 = vmul.f32 %v726, 0.2
  %v855 = vmul.f32 %v727, 0.2
  %v856 = vmul.f32 %v728, 0.2
  %v857 = vmul.f32 %v729, 0.2
  %v858 = vmul.f32 %v730, 0.2
  %v859 = vmul.f32 %v731, 0.2
  %v860 = vmul.f32 %v732, 0.2
  %v861 = vmul.f32 %v733, 0.2
  %v862 = vmul.f32 %v734, 0.2
  %v863 = vmul.f32 %v735, 0.2
  %v864 = vmul.f32 %v736, 0.2
  %v865 = vmul.f32 %v737, 0.2
  %v866 = vmul.f32 %v738, 0.2
  %v867 = vmul.f32 %v739, 0.2
  %v868 = vmul.f32 %v740, 0.2
  %v869 = vmul.f32 %v741, 0.2
  %v870 = vmul.f32 %v742, 0.2
  %v871 = vmul.f32 %v743, 0.2
  %v872 = vmul.f32 %v744, 0.2
  %v873 = vmul.f32 %v745, 0.2
  %v874 = vmul.f32 %v746, 0.2
  %v875 = vmul.f32 %v747, 0.2
  %v876 = vmul.f32 %v748, 0.2
  %v877 = vmul.f32 %v749, 0.2
  %v878 = vmul.f32 %v750, 0.2
  %v879 = vmul.f32 %v751, 0.2
  %v880 = vmul.f32 %v752, 0.2
  %v881 = vmul.f32 %v753, 0.2
  %v882 = vmul.f32 %v754, 0.2
  %v883 = vmul.f32 %v755, 0.2
  %v884 = vmul.f32 %v756, 0.2
  %v885 = vmul.f32 %v757, 0.2
  %v886 = vmul.f32 %v758, 0.2
  %v887 = vmul.f32 %v759, 0.2
  %v888 = vmul.f32 %v760, 0.2
  %v889 = vmul.f32 %v761, 0.2
  %v890 = vmul.f32 %v762, 0.2
  %v891 = vmul.f32 %v763, 0.2
  %v892 = vmul.f32 %v764, 0.2
  %v893 = vmul.f32 %v765, 0.2
  %v894 = vmul.f32 %v766, 0.2
  %v895 = vmul.f32 %v767, 0.2
  %v896 = vmul.f32 %v768, 0.2
  %v897 = vmul.f32 %v769, 0.2
  %v898 = vmul.f32 %v770, 0.2
  %v899 = vmul.f32 %v771, 0.2
  %v900 = vmul.f32 %v772, 0.2
  %v901 = vmul.f32 %v773, 0.2
  %v902 = vmul.f32 %v774, 0.2
  %v903 = vmul.f32 %v775, 0.2
  %v904 = vmul.f32 %v776, 0.2
  %v905 = vmul.f32 %v777, 0.2
  %v906 = vsel %vm778, %v714, %v842
  %v907 = vsel %vm779, %v715, %v843
  %v908 = vsel %vm780, %v716, %v844
  %v909 = vsel %vm781, %v717, %v845
  %v910 = vsel %vm782, %v718, %v846
  %v911 = vsel %vm783, %v719, %v847
  %v912 = vsel %vm784, %v720, %v848
  %v913 = vsel %vm785, %v721, %v849
  %v914 = vsel %vm786, %v722, %v850
  %v915 = vsel %vm787, %v723, %v851
  %v916 = vsel %vm788, %v724, %v852
  %v917 = vsel %vm789, %v725, %v853
  %v918 = vsel %vm790, %v726, %v854
  %v919 = vsel %vm791, %v727, %v855
  %v920 = vsel %vm792, %v728, %v856
  %v921 = vsel %vm793, %v729, %v857
  %v922 = vsel %vm794, %v730, %v858
  %v923 = vsel %vm795, %v731, %v859
  %v924 = vsel %vm796, %v732, %v860
  %v925 = vsel %vm797, %v733, %v861
  %v926 = vsel %vm798, %v734, %v862
  %v927 = vsel %vm799, %v735, %v863
  %v928 = vsel %vm800, %v736, %v864
  %v929 = vsel %vm801, %v737, %v865
  %v930 = vsel %vm802, %v738, %v866
  %v931 = vsel %vm803, %v739, %v867
  %v932 = vsel %vm804, %v740, %v868
  %v933 = vsel %vm805, %v741, %v869
  %v934 = vsel %vm806, %v742, %v870
  %v935 = vsel %vm807, %v743, %v871
  %v936 = vsel %vm808, %v744, %v872
  %v937 = vsel %vm809, %v745, %v873
  %v938 = vsel %vm810, %v746, %v874
  %v939 = vsel %vm811, %v747, %v875
  %v940 = vsel %vm812, %v748, %v876
  %v941 = vsel %vm813, %v749, %v877
  %v942 = vsel %vm814, %v750, %v878
  %v943 = vsel %vm815, %v751, %v879
  %v944 = vsel %vm816, %v752, %v880
  %v945 = vsel %vm817, %v753, %v881
  %v946 = vsel %vm818, %v754, %v882
  %v947 = vsel %vm819, %v755, %v883
  %v948 = vsel %vm820, %v756, %v884
  %v949 = vsel %vm821, %v757, %v885
  %v950 = vsel %vm822, %v758, %v886
  %v951 = vsel %vm823, %v759, %v887
  %v952 = vsel %vm824, %v760, %v888
  %v953 = vsel %vm825, %v761, %v889
  %v954 = vsel %vm826, %v762, %v890
  %v955 = vsel %vm827, %v763, %v891
  %v956 = vsel %vm828, %v764, %v892
  %v957 = vsel %vm829, %v765, %v893
  %v958 = vsel %vm830, %v766, %v894
  %v959 = vsel %vm831, %v767, %v895
  %v960 = vsel %vm832, %v768, %v896
  %v961 = vsel %vm833, %v769, %v897
  %v962 = vsel %vm834, %v770, %v898
  %v963 = vsel %vm835, %v771, %v899
  %v964 = vsel %vm836, %v772, %v900
  %v965 = vsel %vm837, %v773, %v901
  %v966 = vsel %vm838, %v774, %v902
  %v967 = vsel %vm839, %v775, %v903
  %v968 = vsel %vm840, %v776, %v904
  %v969 = vsel %vm841, %v777, %v905
  %v970 = vpack.c.bf16 %v907, %v906
  %v971 = vpack.c.bf16 %v909, %v908
  %v972 = vpack.c.bf16 %v911, %v910
  %v973 = vpack.c.bf16 %v913, %v912
  %v974 = vpack.c.bf16 %v915, %v914
  %v975 = vpack.c.bf16 %v917, %v916
  %v976 = vpack.c.bf16 %v919, %v918
  %v977 = vpack.c.bf16 %v921, %v920
  %v978 = vpack.c.bf16 %v923, %v922
  %v979 = vpack.c.bf16 %v925, %v924
  %v980 = vpack.c.bf16 %v927, %v926
  %v981 = vpack.c.bf16 %v929, %v928
  %v982 = vpack.c.bf16 %v931, %v930
  %v983 = vpack.c.bf16 %v933, %v932
  %v984 = vpack.c.bf16 %v935, %v934
  %v985 = vpack.c.bf16 %v937, %v936
  %v986 = vpack.c.bf16 %v939, %v938
  %v987 = vpack.c.bf16 %v941, %v940
  %v988 = vpack.c.bf16 %v943, %v942
  %v989 = vpack.c.bf16 %v945, %v944
  %v990 = vpack.c.bf16 %v947, %v946
  %v991 = vpack.c.bf16 %v949, %v948
  %v992 = vpack.c.bf16 %v951, %v950
  %v993 = vpack.c.bf16 %v953, %v952
  %v994 = vpack.c.bf16 %v955, %v954
  %v995 = vpack.c.bf16 %v957, %v956
  %v996 = vpack.c.bf16 %v959, %v958
  %v997 = vpack.c.bf16 %v961, %v960
  %v998 = vpack.c.bf16 %v963, %v962
  %v999 = vpack.c.bf16 %v965, %v964
  %v1000 = vpack.c.bf16 %v967, %v966
  %v1001 = vpack.c.bf16 %v969, %v968
  %v1034 = vunpack.c.l.b16 %v970
  %v1035 = vunpack.c.h.b16 %v970
  %v1036 = vunpack.c.l.b16 %v971
  %v1037 = vunpack.c.h.b16 %v971
  %v1038 = vunpack.c.l.b16 %v972
  %v1039 = vunpack.c.h.b16 %v972
  %v1040 = vunpack.c.l.b16 %v973
  %v1041 = vunpack.c.h.b16 %v973
  %v1042 = vunpack.c.l.b16 %v974
  %v1043 = vunpack.c.h.b16 %v974
  %v1044 = vunpack.c.l.b16 %v975
  %v1045 = vunpack.c.h.b16 %v975
  %v1046 = vunpack.c.l.b16 %v976
  %v1047 = vunpack.c.h.b16 %v976
  %v1048 = vunpack.c.l.b16 %v977
  %v1049 = vunpack.c.h.b16 %v977
  %v1050 = vunpack.c.l.b16 %v978
  %v1051 = vunpack.c.h.b16 %v978
  %v1052 = vunpack.c.l.b16 %v979
  %v1053 = vunpack.c.h.b16 %v979
  %v1054 = vunpack.c.l.b16 %v980
  %v1055 = vunpack.c.h.b16 %v980
  %v1056 = vunpack.c.l.b16 %v981
  %v1057 = vunpack.c.h.b16 %v981
  %v1058 = vunpack.c.l.b16 %v982
  %v1059 = vunpack.c.h.b16 %v982
  %v1060 = vunpack.c.l.b16 %v983
  %v1061 = vunpack.c.h.b16 %v983
  %v1062 = vunpack.c.l.b16 %v984
  %v1063 = vunpack.c.h.b16 %v984
  %v1064 = vunpack.c.l.b16 %v985
  %v1065 = vunpack.c.h.b16 %v985
  %v1066 = vunpack.c.l.b16 %v986
  %v1067 = vunpack.c.h.b16 %v986
  %v1068 = vunpack.c.l.b16 %v987
  %v1069 = vunpack.c.h.b16 %v987
  %v1070 = vunpack.c.l.b16 %v988
  %v1071 = vunpack.c.h.b16 %v988
  %v1072 = vunpack.c.l.b16 %v989
  %v1073 = vunpack.c.h.b16 %v989
  %v1074 = vunpack.c.l.b16 %v990
  %v1075 = vunpack.c.h.b16 %v990
  %v1076 = vunpack.c.l.b16 %v991
  %v1077 = vunpack.c.h.b16 %v991
  %v1078 = vunpack.c.l.b16 %v992
  %v1079 = vunpack.c.h.b16 %v992
  %v1080 = vunpack.c.l.b16 %v993
  %v1081 = vunpack.c.h.b16 %v993
  %v1082 = vunpack.c.l.b16 %v994
  %v1083 = vunpack.c.h.b16 %v994
  %v1084 = vunpack.c.l.b16 %v995
  %v1085 = vunpack.c.h.b16 %v995
  %v1086 = vunpack.c.l.b16 %v996
  %v1087 = vunpack.c.h.b16 %v996
  %v1088 = vunpack.c.l.b16 %v997
  %v1089 = vunpack.c.h.b16 %v997
  %v1090 = vunpack.c.l.b16 %v998
  %v1091 = vunpack.c.h.b16 %v998
  %v1092 = vunpack.c.l.b16 %v999
  %v1093 = vunpack.c.h.b16 %v999
  %v1094 = vunpack.c.l.b16 %v1000
  %v1095 = vunpack.c.h.b16 %v1000
  %v1096 = vunpack.c.l.b16 %v1001
  %v1097 = vunpack.c.h.b16 %v1001
  %v1098 = vpack.c.b16 %v1034, %v1034
  %v1099 = vpack.c.b16 %v1035, %v1035
  %v1100 = vpack.c.b16 %v1036, %v1036
  %v1101 = vpack.c.b16 %v1037, %v1037
  %v1102 = vpack.c.b16 %v1038, %v1038
  %v1103 = vpack.c.b16 %v1039, %v1039
  %v1104 = vpack.c.b16 %v1040, %v1040
  %v1105 = vpack.c.b16 %v1041, %v1041
  %v1106 = vpack.c.b16 %v1042, %v1042
  %v1107 = vpack.c.b16 %v1043, %v1043
  %v1108 = vpack.c.b16 %v1044, %v1044
  %v1109 = vpack.c.b16 %v1045, %v1045
  %v1110 = vpack.c.b16 %v1046, %v1046
  %v1111 = vpack.c.b16 %v1047, %v1047
  %v1112 = vpack.c.b16 %v1048, %v1048
  %v1113 = vpack.c.b16 %v1049, %v1049
  %v1114 = vpack.c.b16 %v1050, %v1050
  %v1115 = vpack.c.b16 %v1051, %v1051
  %v1116 = vpack.c.b16 %v1052, %v1052
  %v1117 = vpack.c.b16 %v1053, %v1053
  %v1118 = vpack.c.b16 %v1054, %v1054
  %v1119 = vpack.c.b16 %v1055, %v1055
  %v1120 = vpack.c.b16 %v1056, %v1056
  %v1121 = vpack.c.b16 %v1057, %v1057
  %v1122 = vpack.c.b16 %v1058, %v1058
  %v1123 = vpack.c.b16 %v1059, %v1059
  %v1124 = vpack.c.b16 %v1060, %v1060
  %v1125 = vpack.c.b16 %v1061, %v1061
  %v1126 = vpack.c.b16 %v1062, %v1062
  %v1127 = vpack.c.b16 %v1063, %v1063
  %v1128 = vpack.c.b16 %v1064, %v1064
  %v1129 = vpack.c.b16 %v1065, %v1065
  %v1130 = vpack.c.b16 %v1066, %v1066
  %v1131 = vpack.c.b16 %v1067, %v1067
  %v1132 = vpack.c.b16 %v1068, %v1068
  %v1133 = vpack.c.b16 %v1069, %v1069
  %v1134 = vpack.c.b16 %v1070, %v1070
  %v1135 = vpack.c.b16 %v1071, %v1071
  %v1136 = vpack.c.b16 %v1072, %v1072
  %v1137 = vpack.c.b16 %v1073, %v1073
  %v1138 = vpack.c.b16 %v1074, %v1074
  %v1139 = vpack.c.b16 %v1075, %v1075
  %v1140 = vpack.c.b16 %v1076, %v1076
  %v1141 = vpack.c.b16 %v1077, %v1077
  %v1142 = vpack.c.b16 %v1078, %v1078
  %v1143 = vpack.c.b16 %v1079, %v1079
  %v1144 = vpack.c.b16 %v1080, %v1080
  %v1145 = vpack.c.b16 %v1081, %v1081
  %v1146 = vpack.c.b16 %v1082, %v1082
  %v1147 = vpack.c.b16 %v1083, %v1083
  %v1148 = vpack.c.b16 %v1084, %v1084
  %v1149 = vpack.c.b16 %v1085, %v1085
  %v1150 = vpack.c.b16 %v1086, %v1086
  %v1151 = vpack.c.b16 %v1087, %v1087
  %v1152 = vpack.c.b16 %v1088, %v1088
  %v1153 = vpack.c.b16 %v1089, %v1089
  %v1154 = vpack.c.b16 %v1090, %v1090
  %v1155 = vpack.c.b16 %v1091, %v1091
  %v1156 = vpack.c.b16 %v1092, %v1092
  %v1157 = vpack.c.b16 %v1093, %v1093
  %v1158 = vpack.c.b16 %v1094, %v1094
  %v1159 = vpack.c.b16 %v1095, %v1095
  %v1160 = vpack.c.b16 %v1096, %v1096
  %v1161 = vpack.c.b16 %v1097, %v1097
  %1226 = vst [vmem:[%s4] sm:$0xf] %v1098
  %1227 = vst [vmem:[%s4 + $0x4] sm:$0xf] %v1099
  %1228 = vst [vmem:[%s4 + $0x8] sm:$0xf] %v1100
  %1229 = vst [vmem:[%s4 + $0xc] sm:$0xf] %v1101
  %1230 = vst [vmem:[%s4 + $0x10] sm:$0xf] %v1102
  %1231 = vst [vmem:[%s4 + $0x14] sm:$0xf] %v1103
  %1232 = vst [vmem:[%s4 + $0x18] sm:$0xf] %v1104
  %1233 = vst [vmem:[%s4 + $0x1c] sm:$0xf] %v1105
  %1234 = vst [vmem:[%s4 + $0x20] sm:$0xf] %v1106
  %1235 = vst [vmem:[%s4 + $0x24] sm:$0xf] %v1107
  %1236 = vst [vmem:[%s4 + $0x28] sm:$0xf] %v1108
  %1237 = vst [vmem:[%s4 + $0x2c] sm:$0xf] %v1109
  %1238 = vst [vmem:[%s4 + $0x30] sm:$0xf] %v1110
  %1239 = vst [vmem:[%s4 + $0x34] sm:$0xf] %v1111
  %1240 = vst [vmem:[%s4 + $0x38] sm:$0xf] %v1112
  %1241 = vst [vmem:[%s4 + $0x3c] sm:$0xf] %v1113
  %1242 = vst [vmem:[%s4 + $0x40] sm:$0xf] %v1114
  %1243 = vst [vmem:[%s4 + $0x44] sm:$0xf] %v1115
  %1244 = vst [vmem:[%s4 + $0x48] sm:$0xf] %v1116
  %1245 = vst [vmem:[%s4 + $0x4c] sm:$0xf] %v1117
  %1246 = vst [vmem:[%s4 + $0x50] sm:$0xf] %v1118
  %1247 = vst [vmem:[%s4 + $0x54] sm:$0xf] %v1119
  %1248 = vst [vmem:[%s4 + $0x58] sm:$0xf] %v1120
  %1249 = vst [vmem:[%s4 + $0x5c] sm:$0xf] %v1121
  %1250 = vst [vmem:[%s4 + $0x60] sm:$0xf] %v1122
  %1251 = vst [vmem:[%s4 + $0x64] sm:$0xf] %v1123
  %1252 = vst [vmem:[%s4 + $0x68] sm:$0xf] %v1124
  %1253 = vst [vmem:[%s4 + $0x6c] sm:$0xf] %v1125
  %1254 = vst [vmem:[%s4 + $0x70] sm:$0xf] %v1126
  %1255 = vst [vmem:[%s4 + $0x74] sm:$0xf] %v1127
  %1256 = vst [vmem:[%s4 + $0x78] sm:$0xf] %v1128
  %1257 = vst [vmem:[%s4 + $0x7c] sm:$0xf] %v1129
  %1258 = vst [vmem:[%s4 + $0x80] sm:$0xf] %v1130
  %1259 = vst [vmem:[%s4 + $0x84] sm:$0xf] %v1131
  %1260 = vst [vmem:[%s4 + $0x88] sm:$0xf] %v1132
  %1261 = vst [vmem:[%s4 + $0x8c] sm:$0xf] %v1133
  %1262 = vst [vmem:[%s4 + $0x90] sm:$0xf] %v1134
  %1263 = vst [vmem:[%s4 + $0x94] sm:$0xf] %v1135
  %1264 = vst [vmem:[%s4 + $0x98] sm:$0xf] %v1136
  %1265 = vst [vmem:[%s4 + $0x9c] sm:$0xf] %v1137
  %1266 = vst [vmem:[%s4 + $0xa0] sm:$0xf] %v1138
  %1267 = vst [vmem:[%s4 + $0xa4] sm:$0xf] %v1139
  %1268 = vst [vmem:[%s4 + $0xa8] sm:$0xf] %v1140
  %1269 = vst [vmem:[%s4 + $0xac] sm:$0xf] %v1141
  %1270 = vst [vmem:[%s4 + $0xb0] sm:$0xf] %v1142
  %1271 = vst [vmem:[%s4 + $0xb4] sm:$0xf] %v1143
  %1272 = vst [vmem:[%s4 + $0xb8] sm:$0xf] %v1144
  %1273 = vst [vmem:[%s4 + $0xbc] sm:$0xf] %v1145
  %1274 = vst [vmem:[%s4 + $0xc0] sm:$0xf] %v1146
  %1275 = vst [vmem:[%s4 + $0xc4] sm:$0xf] %v1147
  %1276 = vst [vmem:[%s4 + $0xc8] sm:$0xf] %v1148
  %1277 = vst [vmem:[%s4 + $0xcc] sm:$0xf] %v1149
  %1278 = vst [vmem:[%s4 + $0xd0] sm:$0xf] %v1150
  %1279 = vst [vmem:[%s4 + $0xd4] sm:$0xf] %v1151
  %1280 = vst [vmem:[%s4 + $0xd8] sm:$0xf] %v1152
  %1281 = vst [vmem:[%s4 + $0xdc] sm:$0xf] %v1153
  %1282 = vst [vmem:[%s4 + $0xe0] sm:$0xf] %v1154
  %1283 = vst [vmem:[%s4 + $0xe4] sm:$0xf] %v1155
  %1284 = vst [vmem:[%s4 + $0xe8] sm:$0xf] %v1156
  %1285 = vst [vmem:[%s4 + $0xec] sm:$0xf] %v1157
  %1286 = vst [vmem:[%s4 + $0xf0] sm:$0xf] %v1158
  %1287 = vst [vmem:[%s4 + $0xf4] sm:$0xf] %v1159
  %1288 = vst [vmem:[%s4 + $0xf8] sm:$0xf] %v1160
  %1289 = vst [vmem:[%s4 + $0xfc] sm:$0xf] %v1161
  // Predicated region
  $region18: #{discriminator_forward.6} parent=0 // pred_check
    _
  $region19: #{discriminator_forward.6} parent=0 // pred_check_branch
    %1291 = sbr.rel (0) target = $region21
  $region20: #{discriminator_forward.6} parent=0 // pred_region
    _
  $region21: #{discriminator_forward.6} parent=0 // pred_fallthru
    _
  // Predicated region
  $region22: #{discriminator_forward.6} parent=0 // pred_check
    _
  $region23: #{discriminator_forward.6} parent=0 // pred_check_branch
    %1293 = sbr.rel (0) target = $region25
  $region24: #{discriminator_forward.6} parent=0 // pred_region
    _
  $region25: #{discriminator_forward.6} parent=0 // pred_fallthru
    _

// kernel: discriminator_forward.7
$region0: #{discriminator_forward.7}
  #allocation0 [shape = 'u32[]', space=smem, size = 0x4, offset = 0x4, fixed_abs, tag = 'smem constant byte address 0x4 - core index']
  #allocation1 [shape = 'u32[144,128]{1,0:T(1,128)}', space=vmem, size = 0x12000, scoped, tag = 'internal scratch']
  %s0 = inlined_call_operand.vmem [shape: bf16[128,1024], index: 0, kind: input, shape index: {}]
  %s1 = inlined_call_operand.hbm [shape: bf16[1024,128], index: 1, kind: input, shape index: {}]
  %s2 = inlined_call_operand.hbm [shape: f32[1,128], index: 2, kind: input, shape index: {}]
  %s3 = inlined_call_operand.hbm [shape: f32[1,128], index: 3, kind: input, shape index: {}]
  %s4 = inlined_call_operand.vmem [shape: bf16[128,128], index: 4, kind: output, shape index: {}]
  %s5 = sld [smem:[#allocation0]]
  $region38: #{discriminator_forward.7} parent=0
    _
  %s7 = ssub.s32 1, %s5
  %s8 = scalar_select 0, %s7, %s5
  $region1: #{discriminator_forward.7} parent=0
    #allocation2 [shape = 'u8[262144]{0}', space=vmem, size = 0x40000, scoped, tag = 'input window, operand 1, single buffered']
    #allocation3 [shape = 's32[1]{0}', space=sflag, size = 0x4, scoped, tag = 'scoped memory for discriminator_forward.7']
    #allocation4 [shape = 'u8[512]{0}', space=vmem, size = 0x400, scoped, tag = 'input window, operand 2, single buffered']
    #allocation5 [shape = 's32[1]{0}', space=sflag, size = 0x4, scoped, tag = 'scoped memory for discriminator_forward.7']
    #allocation6 [shape = 'u8[512]{0}', space=vmem, size = 0x400, scoped, tag = 'input window, operand 3, single buffered']
    %9 = vsyncpa [#allocation3], 0
    %10 = vsyncpa [#allocation5], 0
    // Predicated region
    $region2: #{discriminator_forward.7} parent=1 // pred_check
      _
    $region3: #{discriminator_forward.7} parent=1 // pred_check_branch
      %12 = sbr.rel (0) target = $region5
    $region4: #{discriminator_forward.7} parent=1 // pred_region
      _
    $region5: #{discriminator_forward.7} parent=1 // pred_fallthru
      _
    // Predicated region
    $region6: #{discriminator_forward.7} parent=1 // pred_check
      _
    $region7: #{discriminator_forward.7} parent=1 // pred_check_branch
      %14 = sbr.rel (0) target = $region9
    $region8: #{discriminator_forward.7} parent=1 // pred_region
      %s16 = ssub.s32 8192, 8192
      %17 = vsyncadd [#allocation3], %s16
      %s18 = sshll.u32 [#allocation2], 4
      %s19 = int_to_ptr.vmem [resolvable:$true] %s18
      %24 = dma.hbm_to_vmem [thread:$0]  %s1, 8192, %s19, [#allocation3], 64, 64, 4
    $region9: #{discriminator_forward.7} parent=1 // pred_fallthru
      _
    // Predicated region
    $region10: #{discriminator_forward.7} parent=1 // pred_check
      _
    $region11: #{discriminator_forward.7} parent=1 // pred_check_branch
      %26 = sbr.rel (0) target = $region13
    $region12: #{discriminator_forward.7} parent=1 // pred_region
      %s28 = ssub.s32 16, 16
      %29 = vsyncadd [#allocation5], %s28
      %s31 = sshll.u32 [#allocation4], 4
      %s32 = int_to_ptr.vmem [resolvable:$true] %s31
      %34 = dma.hbm_to_vmem [thread:$0]  %s2, 16, %s32, [#allocation5]
    $region13: #{discriminator_forward.7} parent=1 // pred_fallthru
      _
    // Predicated region
    $region14: #{discriminator_forward.7} parent=1 // pred_check
      _
    $region15: #{discriminator_forward.7} parent=1 // pred_check_branch
      %36 = sbr.rel (0) target = $region17
    $region16: #{discriminator_forward.7} parent=1 // pred_region
      %s38 = ssub.s32 16, 16
      %39 = vsyncadd [#allocation5], %s38
      %s41 = sshll.u32 [#allocation6], 4
      %s42 = int_to_ptr.vmem [resolvable:$true] %s41
      %44 = dma.hbm_to_vmem [thread:$0]  %s3, 16, %s42, [#allocation5]
    $region17: #{discriminator_forward.7} parent=1 // pred_fallthru
      _
    // Predicated region
    $region18: #{discriminator_forward.7} parent=1 // pred_check
      _
    $region19: #{discriminator_forward.7} parent=1 // pred_check_branch
      %46 = sbr.rel (0) target = $region21
    $region20: #{discriminator_forward.7} parent=1 // pred_region
      %47 = dma.done [#allocation3], 8192
    $region21: #{discriminator_forward.7} parent=1 // pred_fallthru
      _
    // Predicated region
    $region22: #{discriminator_forward.7} parent=1 // pred_check
      _
    $region23: #{discriminator_forward.7} parent=1 // pred_check_branch
      %49 = sbr.rel (0) target = $region25
    $region24: #{discriminator_forward.7} parent=1 // pred_region
      %50 = dma.done [#allocation5], 16
    $region25: #{discriminator_forward.7} parent=1 // pred_fallthru
      _
    // Predicated region
    $region26: #{discriminator_forward.7} parent=1 // pred_check
      _
    $region27: #{discriminator_forward.7} parent=1 // pred_check_branch
      %52 = sbr.rel (0) target = $region29
    $region28: #{discriminator_forward.7} parent=1 // pred_region
      %53 = dma.done [#allocation5], 16
    $region29: #{discriminator_forward.7} parent=1 // pred_fallthru
      _
    %v55 = vld [vmem:[%s0] sm:$0xff]
    %v56 = vld [vmem:[%s0 + $0x8] sm:$0xff]
    %v57 = vld [vmem:[%s0 + $0x10] sm:$0xff]
    %v58 = vld [vmem:[%s0 + $0x18] sm:$0xff]
    %v59 = vld [vmem:[%s0 + $0x20] sm:$0xff]
    %v60 = vld [vmem:[%s0 + $0x28] sm:$0xff]
    %v61 = vld [vmem:[%s0 + $0x30] sm:$0xff]
    %v62 = vld [vmem:[%s0 + $0x38] sm:$0xff]
    %v63 = vld [vmem:[%s0 + $0x40] sm:$0xff]
    %v64 = vld [vmem:[%s0 + $0x48] sm:$0xff]
    %v65 = vld [vmem:[%s0 + $0x50] sm:$0xff]
    %v66 = vld [vmem:[%s0 + $0x58] sm:$0xff]
    %v67 = vld [vmem:[%s0 + $0x60] sm:$0xff]
    %v68 = vld [vmem:[%s0 + $0x68] sm:$0xff]
    %v69 = vld [vmem:[%s0 + $0x70] sm:$0xff]
    %v70 = vld [vmem:[%s0 + $0x78] sm:$0xff]
    %v71 = vld [vmem:[%s0 + $0x80] sm:$0xff]
    %v72 = vld [vmem:[%s0 + $0x88] sm:$0xff]
    %v73 = vld [vmem:[%s0 + $0x90] sm:$0xff]
    %v74 = vld [vmem:[%s0 + $0x98] sm:$0xff]
    %v75 = vld [vmem:[%s0 + $0xa0] sm:$0xff]
    %v76 = vld [vmem:[%s0 + $0xa8] sm:$0xff]
    %v77 = vld [vmem:[%s0 + $0xb0] sm:$0xff]
    %v78 = vld [vmem:[%s0 + $0xb8] sm:$0xff]
    %v79 = vld [vmem:[%s0 + $0xc0] sm:$0xff]
    %v80 = vld [vmem:[%s0 + $0xc8] sm:$0xff]
    %v81 = vld [vmem:[%s0 + $0xd0] sm:$0xff]
    %v82 = vld [vmem:[%s0 + $0xd8] sm:$0xff]
    %v83 = vld [vmem:[%s0 + $0xe0] sm:$0xff]
    %v84 = vld [vmem:[%s0 + $0xe8] sm:$0xff]
    %v85 = vld [vmem:[%s0 + $0xf0] sm:$0xff]
    %v86 = vld [vmem:[%s0 + $0xf8] sm:$0xff]
    %v87 = vld [vmem:[%s0 + $0x100] sm:$0xff]
    %v88 = vld [vmem:[%s0 + $0x108] sm:$0xff]
    %v89 = vld [vmem:[%s0 + $0x110] sm:$0xff]
    %v90 = vld [vmem:[%s0 + $0x118] sm:$0xff]
    %v91 = vld [vmem:[%s0 + $0x120] sm:$0xff]
    %v92 = vld [vmem:[%s0 + $0x128] sm:$0xff]
    %v93 = vld [vmem:[%s0 + $0x130] sm:$0xff]
    %v94 = vld [vmem:[%s0 + $0x138] sm:$0xff]
    %v95 = vld [vmem:[%s0 + $0x140] sm:$0xff]
    %v96 = vld [vmem:[%s0 + $0x148] sm:$0xff]
    %v97 = vld [vmem:[%s0 + $0x150] sm:$0xff]
    %v98 = vld [vmem:[%s0 + $0x158] sm:$0xff]
    %v99 = vld [vmem:[%s0 + $0x160] sm:$0xff]
    %v100 = vld [vmem:[%s0 + $0x168] sm:$0xff]
    %v101 = vld [vmem:[%s0 + $0x170] sm:$0xff]
    %v102 = vld [vmem:[%s0 + $0x178] sm:$0xff]
    %v103 = vld [vmem:[%s0 + $0x180] sm:$0xff]
    %v104 = vld [vmem:[%s0 + $0x188] sm:$0xff]
    %v105 = vld [vmem:[%s0 + $0x190] sm:$0xff]
    %v106 = vld [vmem:[%s0 + $0x198] sm:$0xff]
    %v107 = vld [vmem:[%s0 + $0x1a0] sm:$0xff]
    %v108 = vld [vmem:[%s0 + $0x1a8] sm:$0xff]
    %v109 = vld [vmem:[%s0 + $0x1b0] sm:$0xff]
    %v110 = vld [vmem:[%s0 + $0x1b8] sm:$0xff]
    %v111 = vld [vmem:[%s0 + $0x1c0] sm:$0xff]
    %v112 = vld [vmem:[%s0 + $0x1c8] sm:$0xff]
    %v113 = vld [vmem:[%s0 + $0x1d0] sm:$0xff]
    %v114 = vld [vmem:[%s0 + $0x1d8] sm:$0xff]
    %v115 = vld [vmem:[%s0 + $0x1e0] sm:$0xff]
    %v116 = vld [vmem:[%s0 + $0x1e8] sm:$0xff]
    %v117 = vld [vmem:[%s0 + $0x1f0] sm:$0xff]
    %v118 = vld [vmem:[%s0 + $0x1f8] sm:$0xff]
    %v119 = vld [vmem:[#allocation2] sm:$0xf]
    %v120 = vld [vmem:[#allocation2 + $0x4] sm:$0xf]
    %v121 = vld [vmem:[#allocation2 + $0x8] sm:$0xf]
    %v122 = vld [vmem:[#allocation2 + $0xc] sm:$0xf]
    %v123 = vld [vmem:[#allocation2 + $0x10] sm:$0xf]
    %v124 = vld [vmem:[#allocation2 + $0x14] sm:$0xf]
    %v125 = vld [vmem:[#allocation2 + $0x18] sm:$0xf]
    %v126 = vld [vmem:[#allocation2 + $0x1c] sm:$0xf]
    %v127 = vld [vmem:[#allocation2 + $0x20] sm:$0xf]
    %v128 = vld [vmem:[#allocation2 + $0x24] sm:$0xf]
    %v129 = vld [vmem:[#allocation2 + $0x28] sm:$0xf]
    %v130 = vld [vmem:[#allocation2 + $0x2c] sm:$0xf]
    %v131 = vld [vmem:[#allocation2 + $0x30] sm:$0xf]
    %v132 = vld [vmem:[#allocation2 + $0x34] sm:$0xf]
    %v133 = vld [vmem:[#allocation2 + $0x38] sm:$0xf]
    %v134 = vld [vmem:[#allocation2 + $0x3c] sm:$0xf]
    %v135 = vld [vmem:[#allocation2 + $0x40] sm:$0xf]
    %v136 = vld [vmem:[#allocation2 + $0x44] sm:$0xf]
    %v137 = vld [vmem:[#allocation2 + $0x48] sm:$0xf]
    %v138 = vld [vmem:[#allocation2 + $0x4c] sm:$0xf]
    %v139 = vld [vmem:[#allocation2 + $0x50] sm:$0xf]
    %v140 = vld [vmem:[#allocation2 + $0x54] sm:$0xf]
    %v141 = vld [vmem:[#allocation2 + $0x58] sm:$0xf]
    %v142 = vld [vmem:[#allocation2 + $0x5c] sm:$0xf]
    %v143 = vld [vmem:[#allocation2 + $0x60] sm:$0xf]
    %v144 = vld [vmem:[#allocation2 + $0x64] sm:$0xf]
    %v145 = vld [vmem:[#allocation2 + $0x68] sm:$0xf]
    %v146 = vld [vmem:[#allocation2 + $0x6c] sm:$0xf]
    %v147 = vld [vmem:[#allocation2 + $0x70] sm:$0xf]
    %v148 = vld [vmem:[#allocation2 + $0x74] sm:$0xf]
    %v149 = vld [vmem:[#allocation2 + $0x78] sm:$0xf]
    %v150 = vld [vmem:[#allocation2 + $0x7c] sm:$0xf]
    %v151 = vld [vmem:[#allocation2 + $0x80] sm:$0xf]
    %v152 = vld [vmem:[#allocation2 + $0x84] sm:$0xf]
    %v153 = vld [vmem:[#allocation2 + $0x88] sm:$0xf]
    %v154 = vld [vmem:[#allocation2 + $0x8c] sm:$0xf]
    %v155 = vld [vmem:[#allocation2 + $0x90] sm:$0xf]
    %v156 = vld [vmem:[#allocation2 + $0x94] sm:$0xf]
    %v157 = vld [vmem:[#allocation2 + $0x98] sm:$0xf]
    %v158 = vld [vmem:[#allocation2 + $0x9c] sm:$0xf]
    %v159 = vld [vmem:[#allocation2 + $0xa0] sm:$0xf]
    %v160 = vld [vmem:[#allocation2 + $0xa4] sm:$0xf]
    %v161 = vld [vmem:[#allocation2 + $0xa8] sm:$0xf]
    %v162 = vld [vmem:[#allocation2 + $0xac] sm:$0xf]
    %v163 = vld [vmem:[#allocation2 + $0xb0] sm:$0xf]
    %v164 = vld [vmem:[#allocation2 + $0xb4] sm:$0xf]
    %v165 = vld [vmem:[#allocation2 + $0xb8] sm:$0xf]
    %v166 = vld [vmem:[#allocation2 + $0xbc] sm:$0xf]
    %v167 = vld [vmem:[#allocation2 + $0xc0] sm:$0xf]
    %v168 = vld [vmem:[#allocation2 + $0xc4] sm:$0xf]
    %v169 = vld [vmem:[#allocation2 + $0xc8] sm:$0xf]
    %v170 = vld [vmem:[#allocation2 + $0xcc] sm:$0xf]
    %v171 = vld [vmem:[#allocation2 + $0xd0] sm:$0xf]
    %v172 = vld [vmem:[#allocation2 + $0xd4] sm:$0xf]
    %v173 = vld [vmem:[#allocation2 + $0xd8] sm:$0xf]
    %v174 = vld [vmem:[#allocation2 + $0xdc] sm:$0xf]
    %v175 = vld [vmem:[#allocation2 + $0xe0] sm:$0xf]
    %v176 = vld [vmem:[#allocation2 + $0xe4] sm:$0xf]
    %v177 = vld [vmem:[#allocation2 + $0xe8] sm:$0xf]
    %v178 = vld [vmem:[#allocation2 + $0xec] sm:$0xf]
    %v179 = vld [vmem:[#allocation2 + $0xf0] sm:$0xf]
    %v180 = vld [vmem:[#allocation2 + $0xf4] sm:$0xf]
    %v181 = vld [vmem:[#allocation2 + $0xf8] sm:$0xf]
    %v182 = vld [vmem:[#allocation2 + $0xfc] sm:$0xf]
    %v183 = vld [vmem:[#allocation2 + $0x100] sm:$0xf]
    %v184 = vld [vmem:[#allocation2 + $0x104] sm:$0xf]
    %v185 = vld [vmem:[#allocation2 + $0x108] sm:$0xf]
    %v186 = vld [vmem:[#allocation2 + $0x10c] sm:$0xf]
    %v187 = vld [vmem:[#allocation2 + $0x110] sm:$0xf]
    %v188 = vld [vmem:[#allocation2 + $0x114] sm:$0xf]
    %v189 = vld [vmem:[#allocation2 + $0x118] sm:$0xf]
    %v190 = vld [vmem:[#allocation2 + $0x11c] sm:$0xf]
    %v191 = vld [vmem:[#allocation2 + $0x120] sm:$0xf]
    %v192 = vld [vmem:[#allocation2 + $0x124] sm:$0xf]
    %v193 = vld [vmem:[#allocation2 + $0x128] sm:$0xf]
    %v194 = vld [vmem:[#allocation2 + $0x12c] sm:$0xf]
    %v195 = vld [vmem:[#allocation2 + $0x130] sm:$0xf]
    %v196 = vld [vmem:[#allocation2 + $0x134] sm:$0xf]
    %v197 = vld [vmem:[#allocation2 + $0x138] sm:$0xf]
    %v198 = vld [vmem:[#allocation2 + $0x13c] sm:$0xf]
    %v199 = vld [vmem:[#allocation2 + $0x140] sm:$0xf]
    %v200 = vld [vmem:[#allocation2 + $0x144] sm:$0xf]
    %v201 = vld [vmem:[#allocation2 + $0x148] sm:$0xf]
    %v202 = vld [vmem:[#allocation2 + $0x14c] sm:$0xf]
    %v203 = vld [vmem:[#allocation2 + $0x150] sm:$0xf]
    %v204 = vld [vmem:[#allocation2 + $0x154] sm:$0xf]
    %v205 = vld [vmem:[#allocation2 + $0x158] sm:$0xf]
    %v206 = vld [vmem:[#allocation2 + $0x15c] sm:$0xf]
    %v207 = vld [vmem:[#allocation2 + $0x160] sm:$0xf]
    %v208 = vld [vmem:[#allocation2 + $0x164] sm:$0xf]
    %v209 = vld [vmem:[#allocation2 + $0x168] sm:$0xf]
    %v210 = vld [vmem:[#allocation2 + $0x16c] sm:$0xf]
    %v211 = vld [vmem:[#allocation2 + $0x170] sm:$0xf]
    %v212 = vld [vmem:[#allocation2 + $0x174] sm:$0xf]
    %v213 = vld [vmem:[#allocation2 + $0x178] sm:$0xf]
    %v214 = vld [vmem:[#allocation2 + $0x17c] sm:$0xf]
    %v215 = vld [vmem:[#allocation2 + $0x180] sm:$0xf]
    %v216 = vld [vmem:[#allocation2 + $0x184] sm:$0xf]
    %v217 = vld [vmem:[#allocation2 + $0x188] sm:$0xf]
    %v218 = vld [vmem:[#allocation2 + $0x18c] sm:$0xf]
    %v219 = vld [vmem:[#allocation2 + $0x190] sm:$0xf]
    %v220 = vld [vmem:[#allocation2 + $0x194] sm:$0xf]
    %v221 = vld [vmem:[#allocation2 + $0x198] sm:$0xf]
    %v222 = vld [vmem:[#allocation2 + $0x19c] sm:$0xf]
    %v223 = vld [vmem:[#allocation2 + $0x1a0] sm:$0xf]
    %v224 = vld [vmem:[#allocation2 + $0x1a4] sm:$0xf]
    %v225 = vld [vmem:[#allocation2 + $0x1a8] sm:$0xf]
    %v226 = vld [vmem:[#allocation2 + $0x1ac] sm:$0xf]
    %v227 = vld [vmem:[#allocation2 + $0x1b0] sm:$0xf]
    %v228 = vld [vmem:[#allocation2 + $0x1b4] sm:$0xf]
    %v229 = vld [vmem:[#allocation2 + $0x1b8] sm:$0xf]
    %v230 = vld [vmem:[#allocation2 + $0x1bc] sm:$0xf]
    %v231 = vld [vmem:[#allocation2 + $0x1c0] sm:$0xf]
    %v232 = vld [vmem:[#allocation2 + $0x1c4] sm:$0xf]
    %v233 = vld [vmem:[#allocation2 + $0x1c8] sm:$0xf]
    %v234 = vld [vmem:[#allocation2 + $0x1cc] sm:$0xf]
    %v235 = vld [vmem:[#allocation2 + $0x1d0] sm:$0xf]
    %v236 = vld [vmem:[#allocation2 + $0x1d4] sm:$0xf]
    %v237 = vld [vmem:[#allocation2 + $0x1d8] sm:$0xf]
    %v238 = vld [vmem:[#allocation2 + $0x1dc] sm:$0xf]
    %v239 = vld [vmem:[#allocation2 + $0x1e0] sm:$0xf]
    %v240 = vld [vmem:[#allocation2 + $0x1e4] sm:$0xf]
    %v241 = vld [vmem:[#allocation2 + $0x1e8] sm:$0xf]
    %v242 = vld [vmem:[#allocation2 + $0x1ec] sm:$0xf]
    %v243 = vld [vmem:[#allocation2 + $0x1f0] sm:$0xf]
    %v244 = vld [vmem:[#allocation2 + $0x1f4] sm:$0xf]
    %v245 = vld [vmem:[#allocation2 + $0x1f8] sm:$0xf]
    %v246 = vld [vmem:[#allocation2 + $0x1fc] sm:$0xf]
    %v311 = vunpack.c.l.b16 %v55
    %v312 = vunpack.c.h.b16 %v55
    %v313 = vunpack.c.l.b16 %v56
    %v314 = vunpack.c.h.b16 %v56
    %v315 = vunpack.c.l.b16 %v57
    %v316 = vunpack.c.h.b16 %v57
    %v317 = vunpack.c.l.b16 %v58
    %v318 = vunpack.c.h.b16 %v58
    %v319 = vunpack.c.l.b16 %v59
    %v320 = vunpack.c.h.b16 %v59
    %v321 = vunpack.c.l.b16 %v60
    %v322 = vunpack.c.h.b16 %v60
    %v323 = vunpack.c.l.b16 %v61
    %v324 = vunpack.c.h.b16 %v61
    %v325 = vunpack.c.l.b16 %v62
    %v326 = vunpack.c.h.b16 %v62
    %v327 = vunpack.c.l.b16 %v63
    %v328 = vunpack.c.h.b16 %v63
    %v329 = vunpack.c.l.b16 %v64
    %v330 = vunpack.c.h.b16 %v64
    %v331 = vunpack.c.l.b16 %v65
    %v332 = vunpack.c.h.b16 %v65
    %v333 = vunpack.c.l.b16 %v66
    %v334 = vunpack.c.h.b16 %v66
    %v335 = vunpack.c.l.b16 %v67
    %v336 = vunpack.c.h.b16 %v67
    %v337 = vunpack.c.l.b16 %v68
    %v338 = vunpack.c.h.b16 %v68
    %v339 = vunpack.c.l.b16 %v69
    %v340 = vunpack.c.h.b16 %v69
    %v341 = vunpack.c.l.b16 %v70
    %v342 = vunpack.c.h.b16 %v70
    %v343 = vunpack.c.l.b16 %v71
    %v344 = vunpack.c.h.b16 %v71
    %v345 = vunpack.c.l.b16 %v72
    %v346 = vunpack.c.h.b16 %v72
    %v347 = vunpack.c.l.b16 %v73
    %v348 = vunpack.c.h.b16 %v73
    %v349 = vunpack.c.l.b16 %v74
    %v350 = vunpack.c.h.b16 %v74
    %v351 = vunpack.c.l.b16 %v75
    %v352 = vunpack.c.h.b16 %v75
    %v353 = vunpack.c.l.b16 %v76
    %v354 = vunpack.c.h.b16 %v76
    %v355 = vunpack.c.l.b16 %v77
    %v356 = vunpack.c.h.b16 %v77
    %v357 = vunpack.c.l.b16 %v78
    %v358 = vunpack.c.h.b16 %v78
    %v359 = vunpack.c.l.b16 %v79
    %v360 = vunpack.c.h.b16 %v79
    %v361 = vunpack.c.l.b16 %v80
    %v362 = vunpack.c.h.b16 %v80
    %v363 = vunpack.c.l.b16 %v81
    %v364 = vunpack.c.h.b16 %v81
    %v365 = vunpack.c.l.b16 %v82
    %v366 = vunpack.c.h.b16 %v82
    %v367 = vunpack.c.l.b16 %v83
    %v368 = vunpack.c.h.b16 %v83
    %v369 = vunpack.c.l.b16 %v84
    %v370 = vunpack.c.h.b16 %v84
    %v371 = vunpack.c.l.b16 %v85
    %v372 = vunpack.c.h.b16 %v85
    %v373 = vunpack.c.l.b16 %v86
    %v374 = vunpack.c.h.b16 %v86
    %v375 = vunpack.c.l.b16 %v87
    %v376 = vunpack.c.h.b16 %v87
    %v377 = vunpack.c.l.b16 %v88
    %v378 = vunpack.c.h.b16 %v88
    %v379 = vunpack.c.l.b16 %v89
    %v380 = vunpack.c.h.b16 %v89
    %v381 = vunpack.c.l.b16 %v90
    %v382 = vunpack.c.h.b16 %v90
    %v383 = vunpack.c.l.b16 %v91
    %v384 = vunpack.c.h.b16 %v91
    %v385 = vunpack.c.l.b16 %v92
    %v386 = vunpack.c.h.b16 %v92
    %v387 = vunpack.c.l.b16 %v93
    %v388 = vunpack.c.h.b16 %v93
    %v389 = vunpack.c.l.b16 %v94
    %v390 = vunpack.c.h.b16 %v94
    %v391 = vunpack.c.l.b16 %v95
    %v392 = vunpack.c.h.b16 %v95
    %v393 = vunpack.c.l.b16 %v96
    %v394 = vunpack.c.h.b16 %v96
    %v395 = vunpack.c.l.b16 %v97
    %v396 = vunpack.c.h.b16 %v97
    %v397 = vunpack.c.l.b16 %v98
    %v398 = vunpack.c.h.b16 %v98
    %v399 = vunpack.c.l.b16 %v99
    %v400 = vunpack.c.h.b16 %v99
    %v401 = vunpack.c.l.b16 %v100
    %v402 = vunpack.c.h.b16 %v100
    %v403 = vunpack.c.l.b16 %v101
    %v404 = vunpack.c.h.b16 %v101
    %v405 = vunpack.c.l.b16 %v102
    %v406 = vunpack.c.h.b16 %v102
    %v407 = vunpack.c.l.b16 %v103
    %v408 = vunpack.c.h.b16 %v103
    %v409 = vunpack.c.l.b16 %v104
    %v410 = vunpack.c.h.b16 %v104
    %v411 = vunpack.c.l.b16 %v105
    %v412 = vunpack.c.h.b16 %v105
    %v413 = vunpack.c.l.b16 %v106
    %v414 = vunpack.c.h.b16 %v106
    %v415 = vunpack.c.l.b16 %v107
    %v416 = vunpack.c.h.b16 %v107
    %v417 = vunpack.c.l.b16 %v108
    %v418 = vunpack.c.h.b16 %v108
    %v419 = vunpack.c.l.b16 %v109
    %v420 = vunpack.c.h.b16 %v109
    %v421 = vunpack.c.l.b16 %v110
    %v422 = vunpack.c.h.b16 %v110
    %v423 = vunpack.c.l.b16 %v111
    %v424 = vunpack.c.h.b16 %v111
    %v425 = vunpack.c.l.b16 %v112
    %v426 = vunpack.c.h.b16 %v112
    %v427 = vunpack.c.l.b16 %v113
    %v428 = vunpack.c.h.b16 %v113
    %v429 = vunpack.c.l.b16 %v114
    %v430 = vunpack.c.h.b16 %v114
    %v431 = vunpack.c.l.b16 %v115
    %v432 = vunpack.c.h.b16 %v115
    %v433 = vunpack.c.l.b16 %v116
    %v434 = vunpack.c.h.b16 %v116
    %v435 = vunpack.c.l.b16 %v117
    %v436 = vunpack.c.h.b16 %v117
    %v437 = vunpack.c.l.b16 %v118
    %v438 = vunpack.c.h.b16 %v118
    %v439 = vpack.c.b16 %v319, %v311
    %v440 = vpack.c.b16 %v320, %v312
    %v441 = vpack.c.b16 %v321, %v313
    %v442 = vpack.c.b16 %v322, %v314
    %v443 = vpack.c.b16 %v323, %v315
    %v444 = vpack.c.b16 %v324, %v316
    %v445 = vpack.c.b16 %v325, %v317
    %v446 = vpack.c.b16 %v326, %v318
    %v447 = vpack.c.b16 %v335, %v327
    %v448 = vpack.c.b16 %v336, %v328
    %v449 = vpack.c.b16 %v337, %v329
    %v450 = vpack.c.b16 %v338, %v330
    %v451 = vpack.c.b16 %v339, %v331
    %v452 = vpack.c.b16 %v340, %v332
    %v453 = vpack.c.b16 %v341, %v333
    %v454 = vpack.c.b16 %v342, %v334
    %v455 = vpack.c.b16 %v351, %v343
    %v456 = vpack.c.b16 %v352, %v344
    %v457 = vpack.c.b16 %v353, %v345
    %v458 = vpack.c.b16 %v354, %v346
    %v459 = vpack.c.b16 %v355, %v347
    %v460 = vpack.c.b16 %v356, %v348
    %v461 = vpack.c.b16 %v357, %v349
    %v462 = vpack.c.b16 %v358, %v350
    %v463 = vpack.c.b16 %v367, %v359
    %v464 = vpack.c.b16 %v368, %v360
    %v465 = vpack.c.b16 %v369, %v361
    %v466 = vpack.c.b16 %v370, %v362
    %v467 = vpack.c.b16 %v371, %v363
    %v468 = vpack.c.b16 %v372, %v364
    %v469 = vpack.c.b16 %v373, %v365
    %v470 = vpack.c.b16 %v374, %v366
    %v471 = vpack.c.b16 %v383, %v375
    %v472 = vpack.c.b16 %v384, %v376
    %v473 = vpack.c.b16 %v385, %v377
    %v474 = vpack.c.b16 %v386, %v378
    %v475 = vpack.c.b16 %v387, %v379
    %v476 = vpack.c.b16 %v388, %v380
    %v477 = vpack.c.b16 %v389, %v381
    %v478 = vpack.c.b16 %v390, %v382
    %v479 = vpack.c.b16 %v399, %v391
    %v480 = vpack.c.b16 %v400, %v392
    %v481 = vpack.c.b16 %v401, %v393
    %v482 = vpack.c.b16 %v402, %v394
    %v483 = vpack.c.b16 %v403, %v395
    %v484 = vpack.c.b16 %v404, %v396
    %v485 = vpack.c.b16 %v405, %v397
    %v486 = vpack.c.b16 %v406, %v398
    %v487 = vpack.c.b16 %v415, %v407
    %v488 = vpack.c.b16 %v416, %v408
    %v489 = vpack.c.b16 %v417, %v409
    %v490 = vpack.c.b16 %v418, %v410
    %v491 = vpack.c.b16 %v419, %v411
    %v492 = vpack.c.b16 %v420, %v412
    %v493 = vpack.c.b16 %v421, %v413
    %v494 = vpack.c.b16 %v422, %v414
    %v495 = vpack.c.b16 %v431, %v423
    %v496 = vpack.c.b16 %v432, %v424
    %v497 = vpack.c.b16 %v433, %v425
    %v498 = vpack.c.b16 %v434, %v426
    %v499 = vpack.c.b16 %v435, %v427
    %v500 = vpack.c.b16 %v436, %v428
    %v501 = vpack.c.b16 %v437, %v429
    %v502 = vpack.c.b16 %v438, %v430
    %v695 = vunpack.c.l.b16 %v119
    %v696 = vunpack.c.l.b16 %v120
    %v697 = vunpack.c.l.b16 %v121
    %v698 = vunpack.c.l.b16 %v122
    %v699 = vunpack.c.l.b16 %v123
    %v700 = vunpack.c.l.b16 %v124
    %v701 = vunpack.c.l.b16 %v125
    %v702 = vunpack.c.l.b16 %v126
    %v703 = vunpack.c.l.b16 %v127
    %v704 = vunpack.c.l.b16 %v128
    %v705 = vunpack.c.l.b16 %v129
    %v706 = vunpack.c.l.b16 %v130
    %v707 = vunpack.c.l.b16 %v131
    %v708 = vunpack.c.l.b16 %v132
    %v709 = vunpack.c.l.b16 %v133
    %v710 = vunpack.c.l.b16 %v134
    %v711 = vunpack.c.l.b16 %v135
    %v712 = vunpack.c.l.b16 %v136
    %v713 = vunpack.c.l.b16 %v137
    %v714 = vunpack.c.l.b16 %v138
    %v715 = vunpack.c.l.b16 %v139
    %v716 = vunpack.c.l.b16 %v140
    %v717 = vunpack.c.l.b16 %v141
    %v718 = vunpack.c.l.b16 %v142
    %v719 = vunpack.c.l.b16 %v143
    %v720 = vunpack.c.l.b16 %v144
    %v721 = vunpack.c.l.b16 %v145
    %v722 = vunpack.c.l.b16 %v146
    %v723 = vunpack.c.l.b16 %v147
    %v724 = vunpack.c.l.b16 %v148
    %v725 = vunpack.c.l.b16 %v149
    %v726 = vunpack.c.l.b16 %v150
    %v727 = vunpack.c.l.b16 %v151
    %v728 = vunpack.c.l.b16 %v152
    %v729 = vunpack.c.l.b16 %v153
    %v730 = vunpack.c.l.b16 %v154
    %v731 = vunpack.c.l.b16 %v155
    %v732 = vunpack.c.l.b16 %v156
    %v733 = vunpack.c.l.b16 %v157
    %v734 = vunpack.c.l.b16 %v158
    %v735 = vunpack.c.l.b16 %v159
    %v736 = vunpack.c.l.b16 %v160
    %v737 = vunpack.c.l.b16 %v161
    %v738 = vunpack.c.l.b16 %v162
    %v739 = vunpack.c.l.b16 %v163
    %v740 = vunpack.c.l.b16 %v164
    %v741 = vunpack.c.l.b16 %v165
    %v742 = vunpack.c.l.b16 %v166
    %v743 = vunpack.c.l.b16 %v167
    %v744 = vunpack.c.l.b16 %v168
    %v745 = vunpack.c.l.b16 %v169
    %v746 = vunpack.c.l.b16 %v170
    %v747 = vunpack.c.l.b16 %v171
    %v748 = vunpack.c.l.b16 %v172
    %v749 = vunpack.c.l.b16 %v173
    %v750 = vunpack.c.l.b16 %v174
    %v751 = vunpack.c.l.b16 %v175
    %v752 = vunpack.c.l.b16 %v176
    %v753 = vunpack.c.l.b16 %v177
    %v754 = vunpack.c.l.b16 %v178
    %v755 = vunpack.c.l.b16 %v179
    %v756 = vunpack.c.l.b16 %v180
    %v757 = vunpack.c.l.b16 %v181
    %v758 = vunpack.c.l.b16 %v182
    %v759 = vunpack.c.l.b16 %v183
    %v760 = vunpack.c.l.b16 %v184
    %v761 = vunpack.c.l.b16 %v185
    %v762 = vunpack.c.l.b16 %v186
    %v763 = vunpack.c.l.b16 %v187
    %v764 = vunpack.c.l.b16 %v188
    %v765 = vunpack.c.l.b16 %v189
    %v766 = vunpack.c.l.b16 %v190
    %v767 = vunpack.c.l.b16 %v191
    %v768 = vunpack.c.l.b16 %v192
    %v769 = vunpack.c.l.b16 %v193
    %v770 = vunpack.c.l.b16 %v194
    %v771 = vunpack.c.l.b16 %v195
    %v772 = vunpack.c.l.b16 %v196
    %v773 = vunpack.c.l.b16 %v197
    %v774 = vunpack.c.l.b16 %v198
    %v775 = vunpack.c.l.b16 %v199
    %v776 = vunpack.c.l.b16 %v200
    %v777 = vunpack.c.l.b16 %v201
    %v778 = vunpack.c.l.b16 %v202
    %v779 = vunpack.c.l.b16 %v203
    %v780 = vunpack.c.l.b16 %v204
    %v781 = vunpack.c.l.b16 %v205
    %v782 = vunpack.c.l.b16 %v206
    %v783 = vunpack.c.l.b16 %v207
    %v784 = vunpack.c.l.b16 %v208
    %v785 = vunpack.c.l.b16 %v209
    %v786 = vunpack.c.l.b16 %v210
    %v787 = vunpack.c.l.b16 %v211
    %v788 = vunpack.c.l.b16 %v212
    %v789 = vunpack.c.l.b16 %v213
    %v790 = vunpack.c.l.b16 %v214
    %v791 = vunpack.c.l.b16 %v215
    %v792 = vunpack.c.l.b16 %v216
    %v793 = vunpack.c.l.b16 %v217
    %v794 = vunpack.c.l.b16 %v218
    %v795 = vunpack.c.l.b16 %v219
    %v796 = vunpack.c.l.b16 %v220
    %v797 = vunpack.c.l.b16 %v221
    %v798 = vunpack.c.l.b16 %v222
    %v799 = vunpack.c.l.b16 %v223
    %v800 = vunpack.c.l.b16 %v224
    %v801 = vunpack.c.l.b16 %v225
    %v802 = vunpack.c.l.b16 %v226
    %v803 = vunpack.c.l.b16 %v227
    %v804 = vunpack.c.l.b16 %v228
    %v805 = vunpack.c.l.b16 %v229
    %v806 = vunpack.c.l.b16 %v230
    %v807 = vunpack.c.l.b16 %v231
    %v808 = vunpack.c.l.b16 %v232
    %v809 = vunpack.c.l.b16 %v233
    %v810 = vunpack.c.l.b16 %v234
    %v811 = vunpack.c.l.b16 %v235
    %v812 = vunpack.c.l.b16 %v236
    %v813 = vunpack.c.l.b16 %v237
    %v814 = vunpack.c.l.b16 %v238
    %v815 = vunpack.c.l.b16 %v239
    %v816 = vunpack.c.l.b16 %v240
    %v817 = vunpack.c.l.b16 %v241
    %v818 = vunpack.c.l.b16 %v242
    %v819 = vunpack.c.l.b16 %v243
    %v820 = vunpack.c.l.b16 %v244
    %v821 = vunpack.c.l.b16 %v245
    %v822 = vunpack.c.l.b16 %v246
    %v823 = vpack.c.b16 %v696, %v695
    %v824 = vpack.c.b16 %v698, %v697
    %v825 = vpack.c.b16 %v700, %v699
    %v826 = vpack.c.b16 %v702, %v701
    %v827 = vpack.c.b16 %v704, %v703
    %v828 = vpack.c.b16 %v706, %v705
    %v829 = vpack.c.b16 %v708, %v707
    %v830 = vpack.c.b16 %v710, %v709
    %v831 = vpack.c.b16 %v712, %v711
    %v832 = vpack.c.b16 %v714, %v713
    %v833 = vpack.c.b16 %v716, %v715
    %v834 = vpack.c.b16 %v718, %v717
    %v835 = vpack.c.b16 %v720, %v719
    %v836 = vpack.c.b16 %v722, %v721
    %v837 = vpack.c.b16 %v724, %v723
    %v838 = vpack.c.b16 %v726, %v725
    %v839 = vpack.c.b16 %v728, %v727
    %v840 = vpack.c.b16 %v730, %v729
    %v841 = vpack.c.b16 %v732, %v731
    %v842 = vpack.c.b16 %v734, %v733
    %v843 = vpack.c.b16 %v736, %v735
    %v844 = vpack.c.b16 %v738, %v737
    %v845 = vpack.c.b16 %v740, %v739
    %v846 = vpack.c.b16 %v742, %v741
    %v847 = vpack.c.b16 %v744, %v743
    %v848 = vpack.c.b16 %v746, %v745
    %v849 = vpack.c.b16 %v748, %v747
    %v850 = vpack.c.b16 %v750, %v749
    %v851 = vpack.c.b16 %v752, %v751
    %v852 = vpack.c.b16 %v754, %v753
    %v853 = vpack.c.b16 %v756, %v755
    %v854 = vpack.c.b16 %v758, %v757
    %v855 = vpack.c.b16 %v760, %v759
    %v856 = vpack.c.b16 %v762, %v761
    %v857 = vpack.c.b16 %v764, %v763
    %v858 = vpack.c.b16 %v766, %v765
    %v859 = vpack.c.b16 %v768, %v767
    %v860 = vpack.c.b16 %v770, %v769
    %v861 = vpack.c.b16 %v772, %v771
    %v862 = vpack.c.b16 %v774, %v773
    %v863 = vpack.c.b16 %v776, %v775
    %v864 = vpack.c.b16 %v778, %v777
    %v865 = vpack.c.b16 %v780, %v779
    %v866 = vpack.c.b16 %v782, %v781
    %v867 = vpack.c.b16 %v784, %v783
    %v868 = vpack.c.b16 %v786, %v785
    %v869 = vpack.c.b16 %v788, %v787
    %v870 = vpack.c.b16 %v790, %v789
    %v871 = vpack.c.b16 %v792, %v791
    %v872 = vpack.c.b16 %v794, %v793
    %v873 = vpack.c.b16 %v796, %v795
    %v874 = vpack.c.b16 %v798, %v797
    %v875 = vpack.c.b16 %v800, %v799
    %v876 = vpack.c.b16 %v802, %v801
    %v877 = vpack.c.b16 %v804, %v803
    %v878 = vpack.c.b16 %v806, %v805
    %v879 = vpack.c.b16 %v808, %v807
    %v880 = vpack.c.b16 %v810, %v809
    %v881 = vpack.c.b16 %v812, %v811
    %v882 = vpack.c.b16 %v814, %v813
    %v883 = vpack.c.b16 %v816, %v815
    %v884 = vpack.c.b16 %v818, %v817
    %v885 = vpack.c.b16 %v820, %v819
    %v886 = vpack.c.b16 %v822, %v821
    %951 = vmatprep.subr.bf16.mxu0 0
    %952 = vmatpush1.bf16.msra.mxu0 %v823
    %953 = vmatprep.subr.bf16.mxu0 0
    %954 = vmatpush1.bf16.msra.mxu0 %v824
    %955 = vmatprep.subr.bf16.mxu0 0
    %956 = vmatpush1.bf16.msra.mxu0 %v825
    %957 = vmatprep.subr.bf16.mxu0 0
    %958 = vmatpush1.bf16.msra.mxu0 %v826
    %959 = vmatprep.subr.bf16.mxu0 0
    %960 = vmatpush1.bf16.msra.mxu0 %v827
    %961 = vmatprep.subr.bf16.mxu0 0
    %962 = vmatpush1.bf16.msra.mxu0 %v828
    %963 = vmatprep.subr.bf16.mxu0 0
    %964 = vmatpush1.bf16.msra.mxu0 %v829
    %965 = vmatprep.subr.bf16.mxu0 0
    %966 = vmatpush1.bf16.msra.mxu0 %v830
    %967 = vmatprep.subr.bf16.mxu0 0
    %968 = vmatpush1.bf16.msra.mxu0 %v831
    %969 = vmatprep.subr.bf16.mxu0 0
    %970 = vmatpush1.bf16.msra.mxu0 %v832
    %971 = vmatprep.subr.bf16.mxu0 0
    %972 = vmatpush1.bf16.msra.mxu0 %v833
    %973 = vmatprep.subr.bf16.mxu0 0
    %974 = vmatpush1.bf16.msra.mxu0 %v834
    %975 = vmatprep.subr.bf16.mxu0 0
    %976 = vmatpush1.bf16.msra.mxu0 %v835
    %977 = vmatprep.subr.bf16.mxu0 0
    %978 = vmatpush1.bf16.msra.mxu0 %v836
    %979 = vmatprep.subr.bf16.mxu0 0
    %980 = vmatpush1.bf16.msra.mxu0 %v837
    %981 = vmatprep.subr.bf16.mxu0 0
    %982 = vmatpush1.bf16.msra.mxu0 %v838
    %983 = vmatprep.mubr.bf16.mxu0 %v440
    %984 = vmatmul.mubr.bf16.gmra.mrb[0].mxu0 %v439
    %v985 = vpop.f32.mrb[0].mxu0
    %v986 = vadd.f32 0.0, %v985
    %v987 = vpop.f32.mrb[0].mxu0
    %v988 = vpop.f32.mrb[0].mxu0
    %v989 = vadd.f32 0.0, %v988
    %v990 = vpop.f32.mrb[0].mxu0
    %991 = vmatprep.mubr.bf16.mxu0 %v448
    %992 = vmatmul.mubr.bf16.gmra.mrb[0].mxu0 %v447
    %v993 = vpop.f32.mrb[0].mxu0
    %v994 = vadd.f32 0.0, %v993
    %v995 = vpop.f32.mrb[0].mxu0
    %v996 = vpop.f32.mrb[0].mxu0
    %v997 = vadd.f32 0.0, %v996
    %v998 = vpop.f32.mrb[0].mxu0
    %999 = vmatprep.mubr.bf16.mxu0 %v456
    %1000 = vmatmul.mubr.bf16.gmra.mrb[0].mxu0 %v455
    %v1001 = vpop.f32.mrb[0].mxu0
    %v1002 = vadd.f32 0.0, %v1001
    %v1003 = vpop.f32.mrb[0].mxu0
    %v1004 = vpop.f32.mrb[0].mxu0
    %v1005 = vadd.f32 0.0, %v1004
    %v1006 = vpop.f32.mrb[0].mxu0
    %1007 = vmatprep.mubr.bf16.mxu0 %v464
    %1008 = vmatmul.mubr.bf16.gmra.mrb[0].mxu0 %v463
    %v1009 = vpop.f32.mrb[0].mxu0
    %v1010 = vadd.f32 0.0, %v1009
    %v1011 = vpop.f32.mrb[0].mxu0
    %v1012 = vpop.f32.mrb[0].mxu0
    %v1013 = vadd.f32 0.0, %v1012
    %v1014 = vpop.f32.mrb[0].mxu0
    %1015 = vmatprep.mubr.bf16.mxu0 %v472
    %1016 = vmatmul.mubr.bf16.gmra.mrb[0].mxu0 %v471
    %v1017 = vpop.f32.mrb[0].mxu0
    %v1018 = vadd.f32 0.0, %v1017
    %v1019 = vpop.f32.mrb[0].mxu0
    %v1020 = vpop.f32.mrb[0].mxu0
    %v1021 = vadd.f32 0.0, %v1020
    %v1022 = vpop.f32.mrb[0].mxu0
    %1023 = vmatprep.mubr.bf16.mxu0 %v480
    %1024 = vmatmul.mubr.bf16.gmra.mrb[0].mxu0 %v479
    %v1025 = vpop.f32.mrb[0].mxu0
    %v1026 = vadd.f32 0.0, %v1025
    %v1027 = vpop.f32.mrb[0].mxu0
    %v1028 = vpop.f32.mrb[0].mxu0
    %v1029 = vadd.f32 0.0, %v1028
    %v1030 = vpop.f32.mrb[0].mxu0
    %1031 = vmatprep.mubr.bf16.mxu0 %v488
    %1032 = vmatmul.mubr.bf16.gmra.mrb[0].mxu0 %v487
    %v1033 = vpop.f32.mrb[0].mxu0
    %v1034 = vadd.f32 0.0, %v1033
    %v1035 = vpop.f32.mrb[0].mxu0
    %v1036 = vpop.f32.mrb[0].mxu0
    %v1037 = vadd.f32 0.0, %v1036
    %v1038 = vpop.f32.mrb[0].mxu0
    %1039 = vmatprep.mubr.bf16.mxu0 %v496
    %1040 = vmatmul.mubr.bf16.gmra.mrb[0].mxu0 %v495
    %v1041 = vpop.f32.mrb[0].mxu0
    %v1042 = vadd.f32 0.0, %v1041
    %v1043 = vpop.f32.mrb[0].mxu0
    %v1044 = vpop.f32.mrb[0].mxu0
    %v1045 = vadd.f32 0.0, %v1044
    %v1046 = vpop.f32.mrb[0].mxu0
    %1047 = vdwg.mxu0
    %1048 = vmatprep.subr.bf16.mxu0 0
    %1049 = vmatpush1.bf16.msra.mxu0 %v839
    %1050 = vmatprep.subr.bf16.mxu0 0
    %1051 = vmatpush1.bf16.msra.mxu0 %v840
    %1052 = vmatprep.subr.bf16.mxu0 0
    %1053 = vmatpush1.bf16.msra.mxu0 %v841
    %1054 = vmatprep.subr.bf16.mxu0 0
    %1055 = vmatpush1.bf16.msra.mxu0 %v842
    %1056 = vmatprep.subr.bf16.mxu0 0
    %1057 = vmatpush1.bf16.msra.mxu0 %v843
    %1058 = vmatprep.subr.bf16.mxu0 0
    %1059 = vmatpush1.bf16.msra.mxu0 %v844
    %1060 = vmatprep.subr.bf16.mxu0 0
    %1061 = vmatpush1.bf16.msra.mxu0 %v845
    %1062 = vmatprep.subr.bf16.mxu0 0
    %1063 = vmatpush1.bf16.msra.mxu0 %v846
    %1064 = vmatprep.subr.bf16.mxu0 0
    %1065 = vmatpush1.bf16.msra.mxu0 %v847
    %1066 = vmatprep.subr.bf16.mxu0 0
    %1067 = vmatpush1.bf16.msra.mxu0 %v848
    %1068 = vmatprep.subr.bf16.mxu0 0
    %1069 = vmatpush1.bf16.msra.mxu0 %v849
    %1070 = vmatprep.subr.bf16.mxu0 0
    %1071 = vmatpush1.bf16.msra.mxu0 %v850
    %1072 = vmatprep.subr.bf16.mxu0 0
    %1073 = vmatpush1.bf16.msra.mxu0 %v851
    %1074 = vmatprep.subr.bf16.mxu0 0
    %1075 = vmatpush1.bf16.msra.mxu0 %v852
    %1076 = vmatprep.subr.bf16.mxu0 0
    %1077 = vmatpush1.bf16.msra.mxu0 %v853
    %1078 = vmatprep.subr.bf16.mxu0 0
    %1079 = vmatpush1.bf16.msra.mxu0 %v854
    %1080 = vmatprep.mubr.bf16.mxu0 %v442
    %1081 = vmatmul.mubr.bf16.gmra.mrb[0].mxu0 %v441
    %v1082 = vpop.f32.mrb[0].mxu0
    %v1083 = vadd.f32 %v986, %v1082
    %v1084 = vpop.f32.mrb[0].mxu0
    %v1085 = vpop.f32.mrb[0].mxu0
    %v1086 = vadd.f32 %v989, %v1085
    %v1087 = vpop.f32.mrb[0].mxu0
    %1088 = vmatprep.mubr.bf16.mxu0 %v450
    %1089 = vmatmul.mubr.bf16.gmra.mrb[0].mxu0 %v449
    %v1090 = vpop.f32.mrb[0].mxu0
    %v1091 = vadd.f32 %v994, %v1090
    %v1092 = vpop.f32.mrb[0].mxu0
    %v1093 = vpop.f32.mrb[0].mxu0
    %v1094 = vadd.f32 %v997, %v1093
    %v1095 = vpop.f32.mrb[0].mxu0
    %1096 = vmatprep.mubr.bf16.mxu0 %v458
    %1097 = vmatmul.mubr.bf16.gmra.mrb[0].mxu0 %v457
    %v1098 = vpop.f32.mrb[0].mxu0
    %v1099 = vadd.f32 %v1002, %v1098
    %v1100 = vpop.f32.mrb[0].mxu0
    %v1101 = vpop.f32.mrb[0].mxu0
    %v1102 = vadd.f32 %v1005, %v1101
    %v1103 = vpop.f32.mrb[0].mxu0
    %1104 = vmatprep.mubr.bf16.mxu0 %v466
    %1105 = vmatmul.mubr.bf16.gmra.mrb[0].mxu0 %v465
    %v1106 = vpop.f32.mrb[0].mxu0
    %v1107 = vadd.f32 %v1010, %v1106
    %v1108 = vpop.f32.mrb[0].mxu0
    %v1109 = vpop.f32.mrb[0].mxu0
    %v1110 = vadd.f32 %v1013, %v1109
    %v1111 = vpop.f32.mrb[0].mxu0
    %1112 = vmatprep.mubr.bf16.mxu0 %v474
    %1113 = vmatmul.mubr.bf16.gmra.mrb[0].mxu0 %v473
    %v1114 = vpop.f32.mrb[0].mxu0
    %v1115 = vadd.f32 %v1018, %v1114
    %v1116 = vpop.f32.mrb[0].mxu0
    %v1117 = vpop.f32.mrb[0].mxu0
    %v1118 = vadd.f32 %v1021, %v1117
    %v1119 = vpop.f32.mrb[0].mxu0
    %1120 = vmatprep.mubr.bf16.mxu0 %v482
    %1121 = vmatmul.mubr.bf16.gmra.mrb[0].mxu0 %v481
    %v1122 = vpop.f32.mrb[0].mxu0
    %v1123 = vadd.f32 %v1026, %v1122
    %v1124 = vpop.f32.mrb[0].mxu0
    %v1125 = vpop.f32.mrb[0].mxu0
    %v1126 = vadd.f32 %v1029, %v1125
    %v1127 = vpop.f32.mrb[0].mxu0
    %1128 = vmatprep.mubr.bf16.mxu0 %v490
    %1129 = vmatmul.mubr.bf16.gmra.mrb[0].mxu0 %v489
    %v1130 = vpop.f32.mrb[0].mxu0
    %v1131 = vadd.f32 %v1034, %v1130
    %v1132 = vpop.f32.mrb[0].mxu0
    %v1133 = vpop.f32.mrb[0].mxu0
    %v1134 = vadd.f32 %v1037, %v1133
    %v1135 = vpop.f32.mrb[0].mxu0
    %1136 = vmatprep.mubr.bf16.mxu0 %v498
    %1137 = vmatmul.mubr.bf16.gmra.mrb[0].mxu0 %v497
    %v1138 = vpop.f32.mrb[0].mxu0
    %v1139 = vadd.f32 %v1042, %v1138
    %v1140 = vpop.f32.mrb[0].mxu0
    %v1141 = vpop.f32.mrb[0].mxu0
    %v1142 = vadd.f32 %v1045, %v1141
    %v1143 = vpop.f32.mrb[0].mxu0
    %1144 = vdwg.mxu0
    %1145 = vmatprep.subr.bf16.mxu0 0
    %1146 = vmatpush1.bf16.msra.mxu0 %v855
    %1147 = vmatprep.subr.bf16.mxu0 0
    %1148 = vmatpush1.bf16.msra.mxu0 %v856
    %1149 = vmatprep.subr.bf16.mxu0 0
    %1150 = vmatpush1.bf16.msra.mxu0 %v857
    %1151 = vmatprep.subr.bf16.mxu0 0
    %1152 = vmatpush1.bf16.msra.mxu0 %v858
    %1153 = vmatprep.subr.bf16.mxu0 0
    %1154 = vmatpush1.bf16.msra.mxu0 %v859
    %1155 = vmatprep.subr.bf16.mxu0 0
    %1156 = vmatpush1.bf16.msra.mxu0 %v860
    %1157 = vmatprep.subr.bf16.mxu0 0
    %1158 = vmatpush1.bf16.msra.mxu0 %v861
    %1159 = vmatprep.subr.bf16.mxu0 0
    %1160 = vmatpush1.bf16.msra.mxu0 %v862
    %1161 = vmatprep.subr.bf16.mxu0 0
    %1162 = vmatpush1.bf16.msra.mxu0 %v863
    %1163 = vmatprep.subr.bf16.mxu0 0
    %1164 = vmatpush1.bf16.msra.mxu0 %v864
    %1165 = vmatprep.subr.bf16.mxu0 0
    %1166 = vmatpush1.bf16.msra.mxu0 %v865
    %1167 = vmatprep.subr.bf16.mxu0 0
    %1168 = vmatpush1.bf16.msra.mxu0 %v866
    %1169 = vmatprep.subr.bf16.mxu0 0
    %1170 = vmatpush1.bf16.msra.mxu0 %v867
    %1171 = vmatprep.subr.bf16.mxu0 0
    %1172 = vmatpush1.bf16.msra.mxu0 %v868
    %1173 = vmatprep.subr.bf16.mxu0 0
    %1174 = vmatpush1.bf16.msra.mxu0 %v869
    %1175 = vmatprep.subr.bf16.mxu0 0
    %1176 = vmatpush1.bf16.msra.mxu0 %v870
    %1177 = vmatprep.mubr.bf16.mxu0 %v444
    %1178 = vmatmul.mubr.bf16.gmra.mrb[0].mxu0 %v443
    %v1179 = vpop.f32.mrb[0].mxu0
    %v1180 = vadd.f32 %v1083, %v1179
    %v1181 = vpop.f32.mrb[0].mxu0
    %v1182 = vpop.f32.mrb[0].mxu0
    %v1183 = vadd.f32 %v1086, %v1182
    %v1184 = vpop.f32.mrb[0].mxu0
    %1185 = vmatprep.mubr.bf16.mxu0 %v452
    %1186 = vmatmul.mubr.bf16.gmra.mrb[0].mxu0 %v451
    %v1187 = vpop.f32.mrb[0].mxu0
    %v1188 = vadd.f32 %v1091, %v1187
    %v1189 = vpop.f32.mrb[0].mxu0
    %v1190 = vpop.f32.mrb[0].mxu0
    %v1191 = vadd.f32 %v1094, %v1190
    %v1192 = vpop.f32.mrb[0].mxu0
    %1193 = vmatprep.mubr.bf16.mxu0 %v460
    %1194 = vmatmul.mubr.bf16.gmra.mrb[0].mxu0 %v459
    %v1195 = vpop.f32.mrb[0].mxu0
    %v1196 = vadd.f32 %v1099, %v1195
    %v1197 = vpop.f32.mrb[0].mxu0
    %v1198 = vpop.f32.mrb[0].mxu0
    %v1199 = vadd.f32 %v1102, %v1198
    %v1200 = vpop.f32.mrb[0].mxu0
    %1201 = vmatprep.mubr.bf16.mxu0 %v468
    %1202 = vmatmul.mubr.bf16.gmra.mrb[0].mxu0 %v467
    %v1203 = vpop.f32.mrb[0].mxu0
    %v1204 = vadd.f32 %v1107, %v1203
    %v1205 = vpop.f32.mrb[0].mxu0
    %v1206 = vpop.f32.mrb[0].mxu0
    %v1207 = vadd.f32 %v1110, %v1206
    %v1208 = vpop.f32.mrb[0].mxu0
    %1209 = vmatprep.mubr.bf16.mxu0 %v476
    %1210 = vmatmul.mubr.bf16.gmra.mrb[0].mxu0 %v475
    %v1211 = vpop.f32.mrb[0].mxu0
    %v1212 = vadd.f32 %v1115, %v1211
    %v1213 = vpop.f32.mrb[0].mxu0
    %v1214 = vpop.f32.mrb[0].mxu0
    %v1215 = vadd.f32 %v1118, %v1214
    %v1216 = vpop.f32.mrb[0].mxu0
    %1217 = vmatprep.mubr.bf16.mxu0 %v484
    %1218 = vmatmul.mubr.bf16.gmra.mrb[0].mxu0 %v483
    %v1219 = vpop.f32.mrb[0].mxu0
    %v1220 = vadd.f32 %v1123, %v1219
    %v1221 = vpop.f32.mrb[0].mxu0
    %v1222 = vpop.f32.mrb[0].mxu0
    %v1223 = vadd.f32 %v1126, %v1222
    %v1224 = vpop.f32.mrb[0].mxu0
    %1225 = vmatprep.mubr.bf16.mxu0 %v492
    %1226 = vmatmul.mubr.bf16.gmra.mrb[0].mxu0 %v491
    %v1227 = vpop.f32.mrb[0].mxu0
    %v1228 = vadd.f32 %v1131, %v1227
    %v1229 = vpop.f32.mrb[0].mxu0
    %v1230 = vpop.f32.mrb[0].mxu0
    %v1231 = vadd.f32 %v1134, %v1230
    %v1232 = vpop.f32.mrb[0].mxu0
    %1233 = vmatprep.mubr.bf16.mxu0 %v500
    %1234 = vmatmul.mubr.bf16.gmra.mrb[0].mxu0 %v499
    %v1235 = vpop.f32.mrb[0].mxu0
    %v1236 = vadd.f32 %v1139, %v1235
    %v1237 = vpop.f32.mrb[0].mxu0
    %v1238 = vpop.f32.mrb[0].mxu0
    %v1239 = vadd.f32 %v1142, %v1238
    %v1240 = vpop.f32.mrb[0].mxu0
    %1241 = vdwg.mxu0
    %1242 = vmatprep.subr.bf16.mxu0 0
    %1243 = vmatpush1.bf16.msra.mxu0 %v871
    %1244 = vmatprep.subr.bf16.mxu0 0
    %1245 = vmatpush1.bf16.msra.mxu0 %v872
    %1246 = vmatprep.subr.bf16.mxu0 0
    %1247 = vmatpush1.bf16.msra.mxu0 %v873
    %1248 = vmatprep.subr.bf16.mxu0 0
    %1249 = vmatpush1.bf16.msra.mxu0 %v874
    %1250 = vmatprep.subr.bf16.mxu0 0
    %1251 = vmatpush1.bf16.msra.mxu0 %v875
    %1252 = vmatprep.subr.bf16.mxu0 0
    %1253 = vmatpush1.bf16.msra.mxu0 %v876
    %1254 = vmatprep.subr.bf16.mxu0 0
    %1255 = vmatpush1.bf16.msra.mxu0 %v877
    %1256 = vmatprep.subr.bf16.mxu0 0
    %1257 = vmatpush1.bf16.msra.mxu0 %v878
    %1258 = vmatprep.subr.bf16.mxu0 0
    %1259 = vmatpush1.bf16.msra.mxu0 %v879
    %1260 = vmatprep.subr.bf16.mxu0 0
    %1261 = vmatpush1.bf16.msra.mxu0 %v880
    %1262 = vmatprep.subr.bf16.mxu0 0
    %1263 = vmatpush1.bf16.msra.mxu0 %v881
    %1264 = vmatprep.subr.bf16.mxu0 0
    %1265 = vmatpush1.bf16.msra.mxu0 %v882
    %1266 = vmatprep.subr.bf16.mxu0 0
    %1267 = vmatpush1.bf16.msra.mxu0 %v883
    %1268 = vmatprep.subr.bf16.mxu0 0
    %1269 = vmatpush1.bf16.msra.mxu0 %v884
    %1270 = vmatprep.subr.bf16.mxu0 0
    %1271 = vmatpush1.bf16.msra.mxu0 %v885
    %1272 = vmatprep.subr.bf16.mxu0 0
    %1273 = vmatpush1.bf16.msra.mxu0 %v886
    %1274 = vmatprep.mubr.bf16.mxu0 %v446
    %1275 = vmatmul.mubr.bf16.gmra.mrb[0].mxu0 %v445
    %v1276 = vpop.f32.mrb[0].mxu0
    %v1277 = vadd.f32 %v1180, %v1276
    %v1278 = vpop.f32.mrb[0].mxu0
    %v1279 = vpop.f32.mrb[0].mxu0
    %v1280 = vadd.f32 %v1183, %v1279
    %v1281 = vpop.f32.mrb[0].mxu0
    %1282 = vmatprep.mubr.bf16.mxu0 %v454
    %1283 = vmatmul.mubr.bf16.gmra.mrb[0].mxu0 %v453
    %v1284 = vpop.f32.mrb[0].mxu0
    %v1285 = vadd.f32 %v1188, %v1284
    %v1286 = vpop.f32.mrb[0].mxu0
    %v1287 = vpop.f32.mrb[0].mxu0
    %v1288 = vadd.f32 %v1191, %v1287
    %v1289 = vpop.f32.mrb[0].mxu0
    %1290 = vmatprep.mubr.bf16.mxu0 %v462
    %1291 = vmatmul.mubr.bf16.gmra.mrb[0].mxu0 %v461
    %v1292 = vpop.f32.mrb[0].mxu0
    %v1293 = vadd.f32 %v1196, %v1292
    %v1294 = vpop.f32.mrb[0].mxu0
    %v1295 = vpop.f32.mrb[0].mxu0
    %v1296 = vadd.f32 %v1199, %v1295
    %v1297 = vpop.f32.mrb[0].mxu0
    %1298 = vmatprep.mubr.bf16.mxu0 %v470
    %1299 = vmatmul.mubr.bf16.gmra.mrb[0].mxu0 %v469
    %v1300 = vpop.f32.mrb[0].mxu0
    %v1301 = vadd.f32 %v1204, %v1300
    %v1302 = vpop.f32.mrb[0].mxu0
    %v1303 = vpop.f32.mrb[0].mxu0
    %v1304 = vadd.f32 %v1207, %v1303
    %v1305 = vpop.f32.mrb[0].mxu0
    %1306 = vmatprep.mubr.bf16.mxu0 %v478
    %1307 = vmatmul.mubr.bf16.gmra.mrb[0].mxu0 %v477
    %v1308 = vpop.f32.mrb[0].mxu0
    %v1309 = vadd.f32 %v1212, %v1308
    %v1310 = vpop.f32.mrb[0].mxu0
    %v1311 = vpop.f32.mrb[0].mxu0
    %v1312 = vadd.f32 %v1215, %v1311
    %v1313 = vpop.f32.mrb[0].mxu0
    %1314 = vmatprep.mubr.bf16.mxu0 %v486
    %1315 = vmatmul.mubr.bf16.gmra.mrb[0].mxu0 %v485
    %v1316 = vpop.f32.mrb[0].mxu0
    %v1317 = vadd.f32 %v1220, %v1316
    %v1318 = vpop.f32.mrb[0].mxu0
    %v1319 = vpop.f32.mrb[0].mxu0
    %v1320 = vadd.f32 %v1223, %v1319
    %v1321 = vpop.f32.mrb[0].mxu0
    %1322 = vmatprep.mubr.bf16.mxu0 %v494
    %1323 = vmatmul.mubr.bf16.gmra.mrb[0].mxu0 %v493
    %v1324 = vpop.f32.mrb[0].mxu0
    %v1325 = vadd.f32 %v1228, %v1324
    %v1326 = vpop.f32.mrb[0].mxu0
    %v1327 = vpop.f32.mrb[0].mxu0
    %v1328 = vadd.f32 %v1231, %v1327
    %v1329 = vpop.f32.mrb[0].mxu0
    %1330 = vmatprep.mubr.bf16.mxu0 %v502
    %1331 = vmatmul.mubr.bf16.gmra.mrb[0].mxu0 %v501
    %v1332 = vpop.f32.mrb[0].mxu0
    %v1333 = vadd.f32 %v1236, %v1332
    %v1334 = vpop.f32.mrb[0].mxu0
    %v1335 = vpop.f32.mrb[0].mxu0
    %v1336 = vadd.f32 %v1239, %v1335
    %v1337 = vpop.f32.mrb[0].mxu0
    %1338 = vdwg.mxu0
    %v1339 = vld [vmem:[#allocation4] sm:$0x1]
    %v1341 = vlaneseq
    %v1342 = vshrl.u32 %v1341, 7
    %v1343 = vsub.s32 0, %v1342
    %v1344 = vrot.slane %v1339, %v1343
    %v1346 = vmul.f32 %v1277, %v1344
    %v1347 = vmul.f32 %v1280, %v1344
    %v1348 = vmul.f32 %v1285, %v1344
    %v1349 = vmul.f32 %v1288, %v1344
    %v1350 = vmul.f32 %v1293, %v1344
    %v1351 = vmul.f32 %v1296, %v1344
    %v1352 = vmul.f32 %v1301, %v1344
    %v1353 = vmul.f32 %v1304, %v1344
    %v1354 = vmul.f32 %v1309, %v1344
    %v1355 = vmul.f32 %v1312, %v1344
    %v1356 = vmul.f32 %v1317, %v1344
    %v1357 = vmul.f32 %v1320, %v1344
    %v1358 = vmul.f32 %v1325, %v1344
    %v1359 = vmul.f32 %v1328, %v1344
    %v1360 = vmul.f32 %v1333, %v1344
    %v1361 = vmul.f32 %v1336, %v1344
    %v1362 = vld [vmem:[#allocation6] sm:$0x1]
    %v1364 = vlaneseq
    %v1365 = vshrl.u32 %v1364, 7
    %v1366 = vsub.s32 0, %v1365
    %v1367 = vrot.slane %v1362, %v1366
    %v1369 = vadd.f32 %v1346, %v1367
    %v1370 = vadd.f32 %v1347, %v1367
    %v1371 = vadd.f32 %v1348, %v1367
    %v1372 = vadd.f32 %v1349, %v1367
    %v1373 = vadd.f32 %v1350, %v1367
    %v1374 = vadd.f32 %v1351, %v1367
    %v1375 = vadd.f32 %v1352, %v1367
    %v1376 = vadd.f32 %v1353, %v1367
    %v1377 = vadd.f32 %v1354, %v1367
    %v1378 = vadd.f32 %v1355, %v1367
    %v1379 = vadd.f32 %v1356, %v1367
    %v1380 = vadd.f32 %v1357, %v1367
    %v1381 = vadd.f32 %v1358, %v1367
    %v1382 = vadd.f32 %v1359, %v1367
    %v1383 = vadd.f32 %v1360, %v1367
    %v1384 = vadd.f32 %v1361, %v1367
    %vm1385 = vcmp.gt.f32.partialorder %v1369, 0.0
    %vm1386 = vcmp.gt.f32.partialorder %v1370, 0.0
    %vm1387 = vcmp.gt.f32.partialorder %v1371, 0.0
    %vm1388 = vcmp.gt.f32.partialorder %v1372, 0.0
    %vm1389 = vcmp.gt.f32.partialorder %v1373, 0.0
    %vm1390 = vcmp.gt.f32.partialorder %v1374, 0.0
    %vm1391 = vcmp.gt.f32.partialorder %v1375, 0.0
    %vm1392 = vcmp.gt.f32.partialorder %v1376, 0.0
    %vm1393 = vcmp.gt.f32.partialorder %v1377, 0.0
    %vm1394 = vcmp.gt.f32.partialorder %v1378, 0.0
    %vm1395 = vcmp.gt.f32.partialorder %v1379, 0.0
    %vm1396 = vcmp.gt.f32.partialorder %v1380, 0.0
    %vm1397 = vcmp.gt.f32.partialorder %v1381, 0.0
    %vm1398 = vcmp.gt.f32.partialorder %v1382, 0.0
    %vm1399 = vcmp.gt.f32.partialorder %v1383, 0.0
    %vm1400 = vcmp.gt.f32.partialorder %v1384, 0.0
    %v1401 = vmul.f32 %v1369, 0.2
    %v1402 = vmul.f32 %v1370, 0.2
    %v1403 = vmul.f32 %v1371, 0.2
    %v1404 = vmul.f32 %v1372, 0.2
    %v1405 = vmul.f32 %v1373, 0.2
    %v1406 = vmul.f32 %v1374, 0.2
    %v1407 = vmul.f32 %v1375, 0.2
    %v1408 = vmul.f32 %v1376, 0.2
    %v1409 = vmul.f32 %v1377, 0.2
    %v1410 = vmul.f32 %v1378, 0.2
    %v1411 = vmul.f32 %v1379, 0.2
    %v1412 = vmul.f32 %v1380, 0.2
    %v1413 = vmul.f32 %v1381, 0.2
    %v1414 = vmul.f32 %v1382, 0.2
    %v1415 = vmul.f32 %v1383, 0.2
    %v1416 = vmul.f32 %v1384, 0.2
    %v1417 = vsel %vm1385, %v1369, %v1401
    %v1418 = vsel %vm1386, %v1370, %v1402
    %v1419 = vsel %vm1387, %v1371, %v1403
    %v1420 = vsel %vm1388, %v1372, %v1404
    %v1421 = vsel %vm1389, %v1373, %v1405
    %v1422 = vsel %vm1390, %v1374, %v1406
    %v1423 = vsel %vm1391, %v1375, %v1407
    %v1424 = vsel %vm1392, %v1376, %v1408
    %v1425 = vsel %vm1393, %v1377, %v1409
    %v1426 = vsel %vm1394, %v1378, %v1410
    %v1427 = vsel %vm1395, %v1379, %v1411
    %v1428 = vsel %vm1396, %v1380, %v1412
    %v1429 = vsel %vm1397, %v1381, %v1413
    %v1430 = vsel %vm1398, %v1382, %v1414
    %v1431 = vsel %vm1399, %v1383, %v1415
    %v1432 = vsel %vm1400, %v1384, %v1416
    %v1433 = vpack.c.bf16 %v1418, %v1417
    %v1434 = vpack.c.bf16 %v1420, %v1419
    %v1435 = vpack.c.bf16 %v1422, %v1421
    %v1436 = vpack.c.bf16 %v1424, %v1423
    %v1437 = vpack.c.bf16 %v1426, %v1425
    %v1438 = vpack.c.bf16 %v1428, %v1427
    %v1439 = vpack.c.bf16 %v1430, %v1429
    %v1440 = vpack.c.bf16 %v1432, %v1431
    %v1449 = vunpack.c.l.b16 %v1433
    %v1450 = vunpack.c.h.b16 %v1433
    %v1451 = vunpack.c.l.b16 %v1434
    %v1452 = vunpack.c.h.b16 %v1434
    %v1453 = vunpack.c.l.b16 %v1435
    %v1454 = vunpack.c.h.b16 %v1435
    %v1455 = vunpack.c.l.b16 %v1436
    %v1456 = vunpack.c.h.b16 %v1436
    %v1457 = vunpack.c.l.b16 %v1437
    %v1458 = vunpack.c.h.b16 %v1437
    %v1459 = vunpack.c.l.b16 %v1438
    %v1460 = vunpack.c.h.b16 %v1438
    %v1461 = vunpack.c.l.b16 %v1439
    %v1462 = vunpack.c.h.b16 %v1439
    %v1463 = vunpack.c.l.b16 %v1440
    %v1464 = vunpack.c.h.b16 %v1440
    %v1465 = vpack.c.b16 %v1449, %v1449
    %v1466 = vpack.c.b16 %v1450, %v1450
    %v1467 = vpack.c.b16 %v1451, %v1451
    %v1468 = vpack.c.b16 %v1452, %v1452
    %v1469 = vpack.c.b16 %v1453, %v1453
    %v1470 = vpack.c.b16 %v1454, %v1454
    %v1471 = vpack.c.b16 %v1455, %v1455
    %v1472 = vpack.c.b16 %v1456, %v1456
    %v1473 = vpack.c.b16 %v1457, %v1457
    %v1474 = vpack.c.b16 %v1458, %v1458
    %v1475 = vpack.c.b16 %v1459, %v1459
    %v1476 = vpack.c.b16 %v1460, %v1460
    %v1477 = vpack.c.b16 %v1461, %v1461
    %v1478 = vpack.c.b16 %v1462, %v1462
    %v1479 = vpack.c.b16 %v1463, %v1463
    %v1480 = vpack.c.b16 %v1464, %v1464
    %1497 = vst [vmem:[%s4] sm:$0xf] %v1465
    %1498 = vst [vmem:[%s4 + $0x4] sm:$0xf] %v1466
    %1499 = vst [vmem:[%s4 + $0x8] sm:$0xf] %v1467
    %1500 = vst [vmem:[%s4 + $0xc] sm:$0xf] %v1468
    %1501 = vst [vmem:[%s4 + $0x10] sm:$0xf] %v1469
    %1502 = vst [vmem:[%s4 + $0x14] sm:$0xf] %v1470
    %1503 = vst [vmem:[%s4 + $0x18] sm:$0xf] %v1471
    %1504 = vst [vmem:[%s4 + $0x1c] sm:$0xf] %v1472
    %1505 = vst [vmem:[%s4 + $0x20] sm:$0xf] %v1473
    %1506 = vst [vmem:[%s4 + $0x24] sm:$0xf] %v1474
    %1507 = vst [vmem:[%s4 + $0x28] sm:$0xf] %v1475
    %1508 = vst [vmem:[%s4 + $0x2c] sm:$0xf] %v1476
    %1509 = vst [vmem:[%s4 + $0x30] sm:$0xf] %v1477
    %1510 = vst [vmem:[%s4 + $0x34] sm:$0xf] %v1478
    %1511 = vst [vmem:[%s4 + $0x38] sm:$0xf] %v1479
    %1512 = vst [vmem:[%s4 + $0x3c] sm:$0xf] %v1480
    // Predicated region
    $region30: #{discriminator_forward.7} parent=1 // pred_check
      _
    $region31: #{discriminator_forward.7} parent=1 // pred_check_branch
      %1514 = sbr.rel (0) target = $region33
    $region32: #{discriminator_forward.7} parent=1 // pred_region
      _
    $region33: #{discriminator_forward.7} parent=1 // pred_fallthru
      _
    // Predicated region
    $region34: #{discriminator_forward.7} parent=1 // pred_check
      _
    $region35: #{discriminator_forward.7} parent=1 // pred_check_branch
      %1516 = sbr.rel (0) target = $region37
    $region36: #{discriminator_forward.7} parent=1 // pred_region
      _
    $region37: #{discriminator_forward.7} parent=1 // pred_fallthru
      _
    %1517 = vsyncpa [#allocation3], 1
    %1518 = vsyncpa [#allocation5], 1

// kernel: discriminator_forward.9
$region0: #{discriminator_forward.9}
  #allocation0 [shape = 'u32[]', space=smem, size = 0x4, offset = 0x4, fixed_abs, tag = 'smem constant byte address 0x4 - core index']
  #allocation1 [shape = 'u32[144,128]{1,0:T(1,128)}', space=vmem, size = 0x12000, scoped, tag = 'internal scratch']
  %s0 = inlined_call_operand.vmem [shape: bf16[32,2304], index: 0, kind: input, shape index: {}]
  %s1 = inlined_call_operand.hbm [shape: bf16[2304,512], index: 1, kind: input, shape index: {}]
  %s2 = inlined_call_operand.hbm [shape: f32[1,512], index: 2, kind: input, shape index: {}]
  %s3 = inlined_call_operand.hbm [shape: f32[1,512], index: 3, kind: input, shape index: {}]
  %s4 = inlined_call_operand.vmem [shape: bf16[32,512], index: 4, kind: output, shape index: {}]
  %s5 = sld [smem:[#allocation0]]
  $region95: #{discriminator_forward.9} parent=0
    _
  %s7 = ssub.s32 1, %s5
  %s8 = scalar_select 0, %s7, %s5
  $region1: #{discriminator_forward.9} parent=0
    #allocation2 [shape = 'u8[2359296]{0}', space=vmem, size = 0x240000, scoped, tag = 'input window, operand 1']
    #allocation3 [shape = 's32[2]{0}', space=sflag, size = 0x8, scoped, tag = 'scoped memory for discriminator_forward.9']
    #allocation4 [shape = 'u8[2048]{0}', space=vmem, size = 0x800, scoped, tag = 'input window, operand 2']
    #allocation5 [shape = 's32[2]{0}', space=sflag, size = 0x8, scoped, tag = 'scoped memory for discriminator_forward.9']
    #allocation6 [shape = 'u8[2048]{0}', space=vmem, size = 0x800, scoped, tag = 'input window, operand 3']
    #allocation7 [shape = 'u8[32768]{0}', space=vmem, size = 0x8000, scoped, tag = 'output window, operand 0']
    %9 = vsyncpa [#allocation3], 0
    %s10 = scalar_lea.sflag [#allocation3], 1
    %11 = vsyncpa %s10, 0
    %12 = vsyncpa [#allocation5], 0
    %s13 = scalar_lea.sflag [#allocation5], 1
    %14 = vsyncpa %s13, 0
    loop: start=0, step=1, limit=4
    $region2: #{discriminator_forward.9} parent=1 // loop_pre_header
      _
    $region3: #{discriminator_forward.9} parent=1 // loop_header
      %s16 = sphi 0, %s20
      %p17 = scmp.ge.s32.totalorder %s16, 4
      %s24 = sphi 0, %s24
      %s26 = sphi 0, %s24
      %s27 = sphi 0, %s26
      %s41 = sphi 0, %s27
      %s47 = sphi 0, %s49
      %s50 = sphi 0, %s47
      %s51 = sphi 0, %s50
      %s67 = sphi 0, %s51
      %s73 = sphi 0, %s75
      %s76 = sphi 0, %s73
      %s77 = sphi 0, %s76
      %s93 = sphi 0, %s77
      %s99 = sphi 0, %s101
      %s102 = sphi 0, %s99
      %s103 = sphi 0, %s102
      %s119 = sphi 0, %s103
      %s125 = sphi 0, %s127
      %s128 = sphi 0, %s125
      %s129 = sphi 0, %s128
      %s145 = sphi 0, %s129
    $region4: #{discriminator_forward.9} parent=1 // loop_header_branch
      %19 = sbr.rel (%p17) target = $region8
    $region5: #{discriminator_forward.9} parent=1 // loop_body
      %s21 = ssub.s32 %s16, 1
      %s22 = ssub.s32 %s16, 2
      %s23 = sadd.s32 %s16, 1
      %s25 = sadd.s32 %s24, 1
      %p28 = scmp.eq.s32.totalorder %s16, 1
      %p29 = scmp.ne.s32.totalorder %s24, %s26
      %p30 = scmp.eq.s32.totalorder %s16, 0
      %p31 = por %p29, %p30
      %p32 = scmp.ne.s32.totalorder %s24, %s26
      %p33 = scmp.eq.s32.totalorder %s21, 1
      %p34 = por %p32, %p33
      %p35 = scmp.ne.s32.totalorder %s26, %s27
      %p36 = scmp.eq.s32.totalorder %s21, 0
      %p37 = por %p35, %p36
      %p38 = scmp.ne.s32.totalorder %s26, %s27
      %p39 = scmp.eq.s32.totalorder %s22, 1
      %p40 = por %p38, %p39
      %p42 = scmp.ne.s32.totalorder %s27, %s41
      %p43 = scmp.eq.s32.totalorder %s22, 0
      %p44 = por %p42, %p43
      %s45 = ssub.s32 %s16, %s23
      %p46 = scmp.eq.s32.totalorder %s45, 0
      %s48 = sadd.s32 %s47, 1
      %s49 = scalar_select %p46, %s47, %s48
      %p52 = pneg %p46
      %p53 = scmp.eq.s32.totalorder %s16, 1
      %p54 = por %p52, %p53
      %p55 = scmp.ne.s32.totalorder %s47, %s50
      %p56 = scmp.eq.s32.totalorder %s16, 0
      %p57 = por %p55, %p56
      %p58 = scmp.ne.s32.totalorder %s47, %s50
      %p59 = scmp.eq.s32.totalorder %s21, 1
      %p60 = por %p58, %p59
      %p61 = scmp.ne.s32.totalorder %s50, %s51
      %p62 = scmp.eq.s32.totalorder %s21, 0
      %p63 = por %p61, %p62
      %p64 = scmp.ne.s32.totalorder %s50, %s51
      %p65 = scmp.eq.s32.totalorder %s22, 1
      %p66 = por %p64, %p65
      %p68 = scmp.ne.s32.totalorder %s51, %s67
      %p69 = scmp.eq.s32.totalorder %s22, 0
      %p70 = por %p68, %p69
      %s71 = ssub.s32 %s16, %s23
      %p72 = scmp.eq.s32.totalorder %s71, 0
      %s74 = sadd.s32 %s73, 1
      %s75 = scalar_select %p72, %s73, %s74
      %p78 = pneg %p72
      %p79 = scmp.eq.s32.totalorder %s16, 1
      %p80 = por %p78, %p79
      %p81 = scmp.ne.s32.totalorder %s73, %s76
      %p82 = scmp.eq.s32.totalorder %s16, 0
      %p83 = por %p81, %p82
      %p84 = scmp.ne.s32.totalorder %s73, %s76
      %p85 = scmp.eq.s32.totalorder %s21, 1
      %p86 = por %p84, %p85
      %p87 = scmp.ne.s32.totalorder %s76, %s77
      %p88 = scmp.eq.s32.totalorder %s21, 0
      %p89 = por %p87, %p88
      %p90 = scmp.ne.s32.totalorder %s76, %s77
      %p91 = scmp.eq.s32.totalorder %s22, 1
      %p92 = por %p90, %p91
      %p94 = scmp.ne.s32.totalorder %s77, %s93
      %p95 = scmp.eq.s32.totalorder %s22, 0
      %p96 = por %p94, %p95
      %s97 = ssub.s32 %s16, %s23
      %p98 = scmp.eq.s32.totalorder %s97, 0
      %s100 = sadd.s32 %s99, 1
      %s101 = scalar_select %p98, %s99, %s100
      %p104 = pneg %p98
      %p105 = scmp.eq.s32.totalorder %s16, 1
      %p106 = por %p104, %p105
      %p107 = scmp.ne.s32.totalorder %s99, %s102
      %p108 = scmp.eq.s32.totalorder %s16, 0
      %p109 = por %p107, %p108
      %p110 = scmp.ne.s32.totalorder %s99, %s102
      %p111 = scmp.eq.s32.totalorder %s21, 1
      %p112 = por %p110, %p111
      %p113 = scmp.ne.s32.totalorder %s102, %s103
      %p114 = scmp.eq.s32.totalorder %s21, 0
      %p115 = por %p113, %p114
      %p116 = scmp.ne.s32.totalorder %s102, %s103
      %p117 = scmp.eq.s32.totalorder %s22, 1
      %p118 = por %p116, %p117
      %p120 = scmp.ne.s32.totalorder %s103, %s119
      %p121 = scmp.eq.s32.totalorder %s22, 0
      %p122 = por %p120, %p121
      %s123 = ssub.s32 %s16, %s23
      %p124 = scmp.eq.s32.totalorder %s123, 0
      %s126 = sadd.s32 %s125, 1
      %s127 = scalar_select %p124, %s125, %s126
      %p130 = pneg %p124
      %p131 = scmp.eq.s32.totalorder %s16, 1
      %p132 = por %p130, %p131
      %p133 = scmp.ne.s32.totalorder %s125, %s128
      %p134 = scmp.eq.s32.totalorder %s16, 0
      %p135 = por %p133, %p134
      %p136 = scmp.ne.s32.totalorder %s125, %s128
      %p137 = scmp.eq.s32.totalorder %s21, 1
      %p138 = por %p136, %p137
      %p139 = scmp.ne.s32.totalorder %s128, %s129
      %p140 = scmp.eq.s32.totalorder %s21, 0
      %p141 = por %p139, %p140
      %p142 = scmp.ne.s32.totalorder %s128, %s129
      %p143 = scmp.eq.s32.totalorder %s22, 1
      %p144 = por %p142, %p143
      %p146 = scmp.ne.s32.totalorder %s129, %s145
      %p147 = scmp.eq.s32.totalorder %s22, 0
      %p148 = por %p146, %p147
      %p149 = scmp.le.s32.totalorder 1, %s16
      %p150 = scmp.lt.s32.totalorder %s16, 3
      %p151 = pnand %p149, %p150
      %p152 = pneg %p151
      // Predicated region
      $region9: #{discriminator_forward.9} parent=5 // pred_check
        _
      $region10: #{discriminator_forward.9} parent=5 // pred_check_branch
        %154 = sbr.rel (%p151) target = $region12
      $region11: #{discriminator_forward.9} parent=5 // pred_region
        %s155 = ssub.s32 %s16, 1
        // Predicated region
        $region13: #{discriminator_forward.9} parent=11 // pred_check
          %p156 = pneg %p37
        $region14: #{discriminator_forward.9} parent=11 // pred_check_branch
          %158 = sbr.rel (%p156) target = $region16
        $region15: #{discriminator_forward.9} parent=11 // pred_region
          _
        $region16: #{discriminator_forward.9} parent=11 // pred_fallthru
          _
      $region12: #{discriminator_forward.9} parent=5 // pred_fallthru
        _
      %p159 = scmp.lt.s32.totalorder %s16, 2
      // Predicated region
      $region17: #{discriminator_forward.9} parent=5 // pred_check
        %p160 = pneg %p159
      $region18: #{discriminator_forward.9} parent=5 // pred_check_branch
        %162 = sbr.rel (%p160) target = $region20
      $region19: #{discriminator_forward.9} parent=5 // pred_region
        // Predicated region
        $region21: #{discriminator_forward.9} parent=19 // pred_check
          %p163 = pneg %p57
        $region22: #{discriminator_forward.9} parent=19 // pred_check_branch
          %165 = sbr.rel (%p163) target = $region24
        $region23: #{discriminator_forward.9} parent=19 // pred_region
          %s166 = sand.u32 %s47, 1
          %s167 = scalar_lea.sflag [#allocation3], %s166
          %s168 = sand.u32 %s47, 1
          %s169 = smul.addr %s168, 2304
          %s170 = scalar_lea.vmem [#allocation2], %s169
          %s171 = smul.u32 2, %s16
          %s173 = ssub.s32 36864, 36864
          %174 = vsyncadd %s167, %s173
          %s175 = smul.addr %s171, 64
          %s176 = scalar_lea.hbm %s1, %s175
          %s177 = sshll.u32 %s170, 4
          %s178 = int_to_ptr.vmem [resolvable:$true] %s177
          %183 = dma.hbm_to_vmem [thread:$0]  %s176, 36864, %s178, %s167, 256, 128, 8
        $region24: #{discriminator_forward.9} parent=19 // pred_fallthru
          _
        // Predicated region
        $region25: #{discriminator_forward.9} parent=19 // pred_check
          %p184 = pneg %p83
        $region26: #{discriminator_forward.9} parent=19 // pred_check_branch
          %186 = sbr.rel (%p184) target = $region28
        $region27: #{discriminator_forward.9} parent=19 // pred_region
          %s187 = sand.u32 %s16, 1
          %s188 = scalar_lea.sflag [#allocation5], %s187
          %s189 = sand.u32 %s73, 1
          %s190 = smul.addr %s189, 2
          %s191 = scalar_lea.vmem [#allocation4], %s190
          %s192 = smul.u32 2, %s16
          %s194 = ssub.s32 32, 32
          %195 = vsyncadd %s188, %s194
          %s196 = smul.addr %s192, 16
          %s197 = scalar_lea.hbm %s2, %s196
          %s199 = sshll.u32 %s191, 4
          %s200 = int_to_ptr.vmem [resolvable:$true] %s199
          %202 = dma.hbm_to_vmem [thread:$0]  %s197, 32, %s200, %s188
        $region28: #{discriminator_forward.9} parent=19 // pred_fallthru
          _
        // Predicated region
        $region29: #{discriminator_forward.9} parent=19 // pred_check
          %p203 = pneg %p109
        $region30: #{discriminator_forward.9} parent=19 // pred_check_branch
          %205 = sbr.rel (%p203) target = $region32
        $region31: #{discriminator_forward.9} parent=19 // pred_region
          %s206 = sand.u32 %s16, 1
          %s207 = scalar_lea.sflag [#allocation5], %s206
          %s208 = sand.u32 %s99, 1
          %s209 = smul.addr %s208, 2
          %s210 = scalar_lea.vmem [#allocation6], %s209
          %s211 = smul.u32 2, %s16
          %s213 = ssub.s32 32, 32
          %214 = vsyncadd %s207, %s213
          %s215 = smul.addr %s211, 16
          %s216 = scalar_lea.hbm %s3, %s215
          %s218 = sshll.u32 %s210, 4
          %s219 = int_to_ptr.vmem [resolvable:$true] %s218
          %221 = dma.hbm_to_vmem [thread:$0]  %s216, 32, %s219, %s207
        $region32: #{discriminator_forward.9} parent=19 // pred_fallthru
          _
      $region20: #{discriminator_forward.9} parent=5 // pred_fallthru
        _
      %p222 = scmp.le.s32.totalorder 1, %s16
      %p223 = scmp.lt.s32.totalorder %s16, 3
      %p224 = pnand %p222, %p223
      %p225 = pneg %p224
      // Predicated region
      $region33: #{discriminator_forward.9} parent=5 // pred_check
        _
      $region34: #{discriminator_forward.9} parent=5 // pred_check_branch
        %227 = sbr.rel (%p224) target = $region36
      $region35: #{discriminator_forward.9} parent=5 // pred_region
        %s228 = ssub.s32 %s16, 1
        %s229 = sand.u32 %s50, 1
        %s230 = scalar_lea.sflag [#allocation3], %s229
        %s231 = sand.u32 %s50, 1
        %s232 = smul.addr %s231, 2304
        %s233 = scalar_lea.vmem [#allocation2], %s232
        // Predicated region
        $region37: #{discriminator_forward.9} parent=35 // pred_check
          %p234 = pneg %p63
        $region38: #{discriminator_forward.9} parent=35 // pred_check_branch
          %236 = sbr.rel (%p234) target = $region40
        $region39: #{discriminator_forward.9} parent=35 // pred_region
          %237 = dma.done %s230, 36864
        $region40: #{discriminator_forward.9} parent=35 // pred_fallthru
          _
        %s238 = sand.u32 %s21, 1
        %s239 = scalar_lea.sflag [#allocation5], %s238
        %s240 = sand.u32 %s76, 1
        %s241 = smul.addr %s240, 2
        %s242 = scalar_lea.vmem [#allocation4], %s241
        // Predicated region
        $region41: #{discriminator_forward.9} parent=35 // pred_check
          %p243 = pneg %p89
        $region42: #{discriminator_forward.9} parent=35 // pred_check_branch
          %245 = sbr.rel (%p243) target = $region44
        $region43: #{discriminator_forward.9} parent=35 // pred_region
          %246 = dma.done %s239, 32
        $region44: #{discriminator_forward.9} parent=35 // pred_fallthru
          _
        %s247 = sand.u32 %s21, 1
        %s248 = scalar_lea.sflag [#allocation5], %s247
        %s249 = sand.u32 %s102, 1
        %s250 = smul.addr %s249, 2
        %s251 = scalar_lea.vmem [#allocation6], %s250
        // Predicated region
        $region45: #{discriminator_forward.9} parent=35 // pred_check
          %p252 = pneg %p115
        $region46: #{discriminator_forward.9} parent=35 // pred_check_branch
          %254 = sbr.rel (%p252) target = $region48
        $region47: #{discriminator_forward.9} parent=35 // pred_region
          %255 = dma.done %s248, 32
        $region48: #{discriminator_forward.9} parent=35 // pred_fallthru
          _
        %p256 = pneg %p37
        %p257 = pneg %p34
        %s258 = sand.u32 %s50, 1
        %s259 = scalar_lea.sflag [#allocation3], %s258
        %s260 = sand.u32 %s50, 1
        %s261 = smul.addr %s260, 2304
        %s262 = scalar_lea.vmem [#allocation2], %s261
        %p263 = pneg %p63
        %p264 = pneg %p60
        %s265 = sand.u32 %s21, 1
        %s266 = scalar_lea.sflag [#allocation5], %s265
        %s267 = sand.u32 %s76, 1
        %s268 = smul.addr %s267, 2
        %s269 = scalar_lea.vmem [#allocation4], %s268
        %p270 = pneg %p89
        %p271 = pneg %p86
        %s272 = sand.u32 %s21, 1
        %s273 = scalar_lea.sflag [#allocation5], %s272
        %s274 = sand.u32 %s102, 1
        %s275 = smul.addr %s274, 2
        %s276 = scalar_lea.vmem [#allocation6], %s275
        %p277 = pneg %p115
        %p278 = pneg %p112
        %p279 = pneg %p141
        %p280 = pneg %p138
        %s281 = sand.u32 %s128, 1
        %s282 = sand.u32 %s128, 1
        %s283 = smul.addr %s282, 32
        %s284 = scalar_lea.vmem [#allocation7], %s283
        %s285 = smul.u32 2, %s21
        %s286 = smul.u32 2, %s21
        %s287 = smul.u32 2, %s21
        %s288 = smul.u32 2, %s21
        %v289 = vld [vmem:[%s0] sm:$0xff]
        %v290 = vld [vmem:[%s0 + $0x8] sm:$0xff]
        %v291 = vld [vmem:[%s0 + $0x10] sm:$0xff]
        %v292 = vld [vmem:[%s0 + $0x18] sm:$0xff]
        %v293 = vld [vmem:[%s0 + $0x20] sm:$0xff]
        %v294 = vld [vmem:[%s0 + $0x28] sm:$0xff]
        %v295 = vld [vmem:[%s0 + $0x30] sm:$0xff]
        %v296 = vld [vmem:[%s0 + $0x38] sm:$0xff]
        %v297 = vld [vmem:[%s0 + $0x40] sm:$0xff]
        %v298 = vld [vmem:[%s0 + $0x48] sm:$0xff]
        %v299 = vld [vmem:[%s0 + $0x50] sm:$0xff]
        %v300 = vld [vmem:[%s0 + $0x58] sm:$0xff]
        %v301 = vld [vmem:[%s0 + $0x60] sm:$0xff]
        %v302 = vld [vmem:[%s0 + $0x68] sm:$0xff]
        %v303 = vld [vmem:[%s0 + $0x70] sm:$0xff]
        %v304 = vld [vmem:[%s0 + $0x78] sm:$0xff]
        %v305 = vld [vmem:[%s0 + $0x80] sm:$0xff]
        %v306 = vld [vmem:[%s0 + $0x88] sm:$0xff]
        %v307 = vld [vmem:[%s0 + $0x90] sm:$0xff]
        %v308 = vld [vmem:[%s0 + $0x98] sm:$0xff]
        %v309 = vld [vmem:[%s0 + $0xa0] sm:$0xff]
        %v310 = vld [vmem:[%s0 + $0xa8] sm:$0xff]
        %v311 = vld [vmem:[%s0 + $0xb0] sm:$0xff]
        %v312 = vld [vmem:[%s0 + $0xb8] sm:$0xff]
        %v313 = vld [vmem:[%s0 + $0xc0] sm:$0xff]
        %v314 = vld [vmem:[%s0 + $0xc8] sm:$0xff]
        %v315 = vld [vmem:[%s0 + $0xd0] sm:$0xff]
        %v316 = vld [vmem:[%s0 + $0xd8] sm:$0xff]
        %v317 = vld [vmem:[%s0 + $0xe0] sm:$0xff]
        %v318 = vld [vmem:[%s0 + $0xe8] sm:$0xff]
        %v319 = vld [vmem:[%s0 + $0xf0] sm:$0xff]
        %v320 = vld [vmem:[%s0 + $0xf8] sm:$0xff]
        %v321 = vld [vmem:[%s0 + $0x100] sm:$0xff]
        %v322 = vld [vmem:[%s0 + $0x108] sm:$0xff]
        %v323 = vld [vmem:[%s0 + $0x110] sm:$0xff]
        %v324 = vld [vmem:[%s0 + $0x118] sm:$0xff]
        %v325 = vld [vmem:[%s233] sm:$0xff]
        %v326 = vld [vmem:[%s233 + $0x8] sm:$0xff]
        %v327 = vld [vmem:[%s233 + $0x10] sm:$0xff]
        %v328 = vld [vmem:[%s233 + $0x18] sm:$0xff]
        %v329 = vld [vmem:[%s233 + $0x20] sm:$0xff]
        %v330 = vld [vmem:[%s233 + $0x28] sm:$0xff]
        %v331 = vld [vmem:[%s233 + $0x30] sm:$0xff]
        %v332 = vld [vmem:[%s233 + $0x38] sm:$0xff]
        %v333 = vld [vmem:[%s233 + $0x40] sm:$0xff]
        %v334 = vld [vmem:[%s233 + $0x48] sm:$0xff]
        %v335 = vld [vmem:[%s233 + $0x50] sm:$0xff]
        %v336 = vld [vmem:[%s233 + $0x58] sm:$0xff]
        %v337 = vld [vmem:[%s233 + $0x60] sm:$0xff]
        %v338 = vld [vmem:[%s233 + $0x68] sm:$0xff]
        %v339 = vld [vmem:[%s233 + $0x70] sm:$0xff]
        %v340 = vld [vmem:[%s233 + $0x78] sm:$0xff]
        %v341 = vld [vmem:[%s233 + $0x80] sm:$0xff]
        %v342 = vld [vmem:[%s233 + $0x88] sm:$0xff]
        %v343 = vld [vmem:[%s233 + $0x90] sm:$0xff]
        %v344 = vld [vmem:[%s233 + $0x98] sm:$0xff]
        %v345 = vld [vmem:[%s233 + $0xa0] sm:$0xff]
        %v346 = vld [vmem:[%s233 + $0xa8] sm:$0xff]
        %v347 = vld [vmem:[%s233 + $0xb0] sm:$0xff]
        %v348 = vld [vmem:[%s233 + $0xb8] sm:$0xff]
        %v349 = vld [vmem:[%s233 + $0xc0] sm:$0xff]
        %v350 = vld [vmem:[%s233 + $0xc8] sm:$0xff]
        %v351 = vld [vmem:[%s233 + $0xd0] sm:$0xff]
        %v352 = vld [vmem:[%s233 + $0xd8] sm:$0xff]
        %v353 = vld [vmem:[%s233 + $0xe0] sm:$0xff]
        %v354 = vld [vmem:[%s233 + $0xe8] sm:$0xff]
        %v355 = vld [vmem:[%s233 + $0xf0] sm:$0xff]
        %v356 = vld [vmem:[%s233 + $0xf8] sm:$0xff]
        %v357 = vld [vmem:[%s233 + $0x100] sm:$0xff]
        %v358 = vld [vmem:[%s233 + $0x108] sm:$0xff]
        %v359 = vld [vmem:[%s233 + $0x110] sm:$0xff]
        %v360 = vld [vmem:[%s233 + $0x118] sm:$0xff]
        %v361 = vld [vmem:[%s233 + $0x120] sm:$0xff]
        %v362 = vld [vmem:[%s233 + $0x128] sm:$0xff]
        %v363 = vld [vmem:[%s233 + $0x130] sm:$0xff]
        %v364 = vld [vmem:[%s233 + $0x138] sm:$0xff]
        %v365 = vld [vmem:[%s233 + $0x140] sm:$0xff]
        %v366 = vld [vmem:[%s233 + $0x148] sm:$0xff]
        %v367 = vld [vmem:[%s233 + $0x150] sm:$0xff]
        %v368 = vld [vmem:[%s233 + $0x158] sm:$0xff]
        %v369 = vld [vmem:[%s233 + $0x160] sm:$0xff]
        %v370 = vld [vmem:[%s233 + $0x168] sm:$0xff]
        %v371 = vld [vmem:[%s233 + $0x170] sm:$0xff]
        %v372 = vld [vmem:[%s233 + $0x178] sm:$0xff]
        %v373 = vld [vmem:[%s233 + $0x180] sm:$0xff]
        %v374 = vld [vmem:[%s233 + $0x188] sm:$0xff]
        %v375 = vld [vmem:[%s233 + $0x190] sm:$0xff]
        %v376 = vld [vmem:[%s233 + $0x198] sm:$0xff]
        %v377 = vld [vmem:[%s233 + $0x1a0] sm:$0xff]
        %v378 = vld [vmem:[%s233 + $0x1a8] sm:$0xff]
        %v379 = vld [vmem:[%s233 + $0x1b0] sm:$0xff]
        %v380 = vld [vmem:[%s233 + $0x1b8] sm:$0xff]
        %v381 = vld [vmem:[%s233 + $0x1c0] sm:$0xff]
        %v382 = vld [vmem:[%s233 + $0x1c8] sm:$0xff]
        %v383 = vld [vmem:[%s233 + $0x1d0] sm:$0xff]
        %v384 = vld [vmem:[%s233 + $0x1d8] sm:$0xff]
        %v385 = vld [vmem:[%s233 + $0x1e0] sm:$0xff]
        %v386 = vld [vmem:[%s233 + $0x1e8] sm:$0xff]
        %v387 = vld [vmem:[%s233 + $0x1f0] sm:$0xff]
        %v388 = vld [vmem:[%s233 + $0x1f8] sm:$0xff]
        %v389 = vld [vmem:[%s233 + $0x200] sm:$0xff]
        %v390 = vld [vmem:[%s233 + $0x208] sm:$0xff]
        %v391 = vld [vmem:[%s233 + $0x210] sm:$0xff]
        %v392 = vld [vmem:[%s233 + $0x218] sm:$0xff]
        %v393 = vld [vmem:[%s233 + $0x220] sm:$0xff]
        %v394 = vld [vmem:[%s233 + $0x228] sm:$0xff]
        %v395 = vld [vmem:[%s233 + $0x230] sm:$0xff]
        %v396 = vld [vmem:[%s233 + $0x238] sm:$0xff]
        %v397 = vld [vmem:[%s233 + $0x240] sm:$0xff]
        %v398 = vld [vmem:[%s233 + $0x248] sm:$0xff]
        %v399 = vld [vmem:[%s233 + $0x250] sm:$0xff]
        %v400 = vld [vmem:[%s233 + $0x258] sm:$0xff]
        %v401 = vld [vmem:[%s233 + $0x260] sm:$0xff]
        %v402 = vld [vmem:[%s233 + $0x268] sm:$0xff]
        %v403 = vld [vmem:[%s233 + $0x270] sm:$0xff]
        %v404 = vld [vmem:[%s233 + $0x278] sm:$0xff]
        %v405 = vld [vmem:[%s233 + $0x280] sm:$0xff]
        %v406 = vld [vmem:[%s233 + $0x288] sm:$0xff]
        %v407 = vld [vmem:[%s233 + $0x290] sm:$0xff]
        %v408 = vld [vmem:[%s233 + $0x298] sm:$0xff]
        %v409 = vld [vmem:[%s233 + $0x2a0] sm:$0xff]
        %v410 = vld [vmem:[%s233 + $0x2a8] sm:$0xff]
        %v411 = vld [vmem:[%s233 + $0x2b0] sm:$0xff]
        %v412 = vld [vmem:[%s233 + $0x2b8] sm:$0xff]
        %v413 = vld [vmem:[%s233 + $0x2c0] sm:$0xff]
        %v414 = vld [vmem:[%s233 + $0x2c8] sm:$0xff]
        %v415 = vld [vmem:[%s233 + $0x2d0] sm:$0xff]
        %v416 = vld [vmem:[%s233 + $0x2d8] sm:$0xff]
        %v417 = vld [vmem:[%s233 + $0x2e0] sm:$0xff]
        %v418 = vld [vmem:[%s233 + $0x2e8] sm:$0xff]
        %v419 = vld [vmem:[%s233 + $0x2f0] sm:$0xff]
        %v420 = vld [vmem:[%s233 + $0x2f8] sm:$0xff]
        %v421 = vld [vmem:[%s233 + $0x300] sm:$0xff]
        %v422 = vld [vmem:[%s233 + $0x308] sm:$0xff]
        %v423 = vld [vmem:[%s233 + $0x310] sm:$0xff]
        %v424 = vld [vmem:[%s233 + $0x318] sm:$0xff]
        %v425 = vld [vmem:[%s233 + $0x320] sm:$0xff]
        %v426 = vld [vmem:[%s233 + $0x328] sm:$0xff]
        %v427 = vld [vmem:[%s233 + $0x330] sm:$0xff]
        %v428 = vld [vmem:[%s233 + $0x338] sm:$0xff]
        %v429 = vld [vmem:[%s233 + $0x340] sm:$0xff]
        %v430 = vld [vmem:[%s233 + $0x348] sm:$0xff]
        %v431 = vld [vmem:[%s233 + $0x350] sm:$0xff]
        %v432 = vld [vmem:[%s233 + $0x358] sm:$0xff]
        %v433 = vld [vmem:[%s233 + $0x360] sm:$0xff]
        %v434 = vld [vmem:[%s233 + $0x368] sm:$0xff]
        %v435 = vld [vmem:[%s233 + $0x370] sm:$0xff]
        %v436 = vld [vmem:[%s233 + $0x378] sm:$0xff]
        %v437 = vld [vmem:[%s233 + $0x380] sm:$0xff]
        %v438 = vld [vmem:[%s233 + $0x388] sm:$0xff]
        %v439 = vld [vmem:[%s233 + $0x390] sm:$0xff]
        %v440 = vld [vmem:[%s233 + $0x398] sm:$0xff]
        %v441 = vld [vmem:[%s233 + $0x3a0] sm:$0xff]
        %v442 = vld [vmem:[%s233 + $0x3a8] sm:$0xff]
        %v443 = vld [vmem:[%s233 + $0x3b0] sm:$0xff]
        %v444 = vld [vmem:[%s233 + $0x3b8] sm:$0xff]
        %v445 = vld [vmem:[%s233 + $0x3c0] sm:$0xff]
        %v446 = vld [vmem:[%s233 + $0x3c8] sm:$0xff]
        %v447 = vld [vmem:[%s233 + $0x3d0] sm:$0xff]
        %v448 = vld [vmem:[%s233 + $0x3d8] sm:$0xff]
        %v449 = vld [vmem:[%s233 + $0x3e0] sm:$0xff]
        %v450 = vld [vmem:[%s233 + $0x3e8] sm:$0xff]
        %v451 = vld [vmem:[%s233 + $0x3f0] sm:$0xff]
        %v452 = vld [vmem:[%s233 + $0x3f8] sm:$0xff]
        %v453 = vld [vmem:[%s233 + $0x400] sm:$0xff]
        %v454 = vld [vmem:[%s233 + $0x408] sm:$0xff]
        %v455 = vld [vmem:[%s233 + $0x410] sm:$0xff]
        %v456 = vld [vmem:[%s233 + $0x418] sm:$0xff]
        %v457 = vld [vmem:[%s233 + $0x420] sm:$0xff]
        %v458 = vld [vmem:[%s233 + $0x428] sm:$0xff]
        %v459 = vld [vmem:[%s233 + $0x430] sm:$0xff]
        %v460 = vld [vmem:[%s233 + $0x438] sm:$0xff]
        %v461 = vld [vmem:[%s233 + $0x440] sm:$0xff]
        %v462 = vld [vmem:[%s233 + $0x448] sm:$0xff]
        %v463 = vld [vmem:[%s233 + $0x450] sm:$0xff]
        %v464 = vld [vmem:[%s233 + $0x458] sm:$0xff]
        %v465 = vld [vmem:[%s233 + $0x460] sm:$0xff]
        %v466 = vld [vmem:[%s233 + $0x468] sm:$0xff]
        %v467 = vld [vmem:[%s233 + $0x470] sm:$0xff]
        %v468 = vld [vmem:[%s233 + $0x478] sm:$0xff]
        %v469 = vld [vmem:[%s233 + $0x480] sm:$0xff]
        %v470 = vld [vmem:[%s233 + $0x488] sm:$0xff]
        %v471 = vld [vmem:[%s233 + $0x490] sm:$0xff]
        %v472 = vld [vmem:[%s233 + $0x498] sm:$0xff]
        %v473 = vld [vmem:[%s233 + $0x4a0] sm:$0xff]
        %v474 = vld [vmem:[%s233 + $0x4a8] sm:$0xff]
        %v475 = vld [vmem:[%s233 + $0x4b0] sm:$0xff]
        %v476 = vld [vmem:[%s233 + $0x4b8] sm:$0xff]
        %v477 = vld [vmem:[%s233 + $0x4c0] sm:$0xff]
        %v478 = vld [vmem:[%s233 + $0x4c8] sm:$0xff]
        %v479 = vld [vmem:[%s233 + $0x4d0] sm:$0xff]
        %v480 = vld [vmem:[%s233 + $0x4d8] sm:$0xff]
        %v481 = vld [vmem:[%s233 + $0x4e0] sm:$0xff]
        %v482 = vld [vmem:[%s233 + $0x4e8] sm:$0xff]
        %v483 = vld [vmem:[%s233 + $0x4f0] sm:$0xff]
        %v484 = vld [vmem:[%s233 + $0x4f8] sm:$0xff]
        %v485 = vld [vmem:[%s233 + $0x500] sm:$0xff]
        %v486 = vld [vmem:[%s233 + $0x508] sm:$0xff]
        %v487 = vld [vmem:[%s233 + $0x510] sm:$0xff]
        %v488 = vld [vmem:[%s233 + $0x518] sm:$0xff]
        %v489 = vld [vmem:[%s233 + $0x520] sm:$0xff]
        %v490 = vld [vmem:[%s233 + $0x528] sm:$0xff]
        %v491 = vld [vmem:[%s233 + $0x530] sm:$0xff]
        %v492 = vld [vmem:[%s233 + $0x538] sm:$0xff]
        %v493 = vld [vmem:[%s233 + $0x540] sm:$0xff]
        %v494 = vld [vmem:[%s233 + $0x548] sm:$0xff]
        %v495 = vld [vmem:[%s233 + $0x550] sm:$0xff]
        %v496 = vld [vmem:[%s233 + $0x558] sm:$0xff]
        %v497 = vld [vmem:[%s233 + $0x560] sm:$0xff]
        %v498 = vld [vmem:[%s233 + $0x568] sm:$0xff]
        %v499 = vld [vmem:[%s233 + $0x570] sm:$0xff]
        %v500 = vld [vmem:[%s233 + $0x578] sm:$0xff]
        %v501 = vld [vmem:[%s233 + $0x580] sm:$0xff]
        %v502 = vld [vmem:[%s233 + $0x588] sm:$0xff]
        %v503 = vld [vmem:[%s233 + $0x590] sm:$0xff]
        %v504 = vld [vmem:[%s233 + $0x598] sm:$0xff]
        %v505 = vld [vmem:[%s233 + $0x5a0] sm:$0xff]
        %v506 = vld [vmem:[%s233 + $0x5a8] sm:$0xff]
        %v507 = vld [vmem:[%s233 + $0x5b0] sm:$0xff]
        %v508 = vld [vmem:[%s233 + $0x5b8] sm:$0xff]
        %v509 = vld [vmem:[%s233 + $0x5c0] sm:$0xff]
        %v510 = vld [vmem:[%s233 + $0x5c8] sm:$0xff]
        %v511 = vld [vmem:[%s233 + $0x5d0] sm:$0xff]
        %v512 = vld [vmem:[%s233 + $0x5d8] sm:$0xff]
        %v513 = vld [vmem:[%s233 + $0x5e0] sm:$0xff]
        %v514 = vld [vmem:[%s233 + $0x5e8] sm:$0xff]
        %v515 = vld [vmem:[%s233 + $0x5f0] sm:$0xff]
        %v516 = vld [vmem:[%s233 + $0x5f8] sm:$0xff]
        %v517 = vld [vmem:[%s233 + $0x600] sm:$0xff]
        %v518 = vld [vmem:[%s233 + $0x608] sm:$0xff]
        %v519 = vld [vmem:[%s233 + $0x610] sm:$0xff]
        %v520 = vld [vmem:[%s233 + $0x618] sm:$0xff]
        %v521 = vld [vmem:[%s233 + $0x620] sm:$0xff]
        %v522 = vld [vmem:[%s233 + $0x628] sm:$0xff]
        %v523 = vld [vmem:[%s233 + $0x630] sm:$0xff]
        %v524 = vld [vmem:[%s233 + $0x638] sm:$0xff]
        %v525 = vld [vmem:[%s233 + $0x640] sm:$0xff]
        %v526 = vld [vmem:[%s233 + $0x648] sm:$0xff]
        %v527 = vld [vmem:[%s233 + $0x650] sm:$0xff]
        %v528 = vld [vmem:[%s233 + $0x658] sm:$0xff]
        %v529 = vld [vmem:[%s233 + $0x660] sm:$0xff]
        %v530 = vld [vmem:[%s233 + $0x668] sm:$0xff]
        %v531 = vld [vmem:[%s233 + $0x670] sm:$0xff]
        %v532 = vld [vmem:[%s233 + $0x678] sm:$0xff]
        %v533 = vld [vmem:[%s233 + $0x680] sm:$0xff]
        %v534 = vld [vmem:[%s233 + $0x688] sm:$0xff]
        %v535 = vld [vmem:[%s233 + $0x690] sm:$0xff]
        %v536 = vld [vmem:[%s233 + $0x698] sm:$0xff]
        %v537 = vld [vmem:[%s233 + $0x6a0] sm:$0xff]
        %v538 = vld [vmem:[%s233 + $0x6a8] sm:$0xff]
        %v539 = vld [vmem:[%s233 + $0x6b0] sm:$0xff]
        %v540 = vld [vmem:[%s233 + $0x6b8] sm:$0xff]
        %v541 = vld [vmem:[%s233 + $0x6c0] sm:$0xff]
        %v542 = vld [vmem:[%s233 + $0x6c8] sm:$0xff]
        %v543 = vld [vmem:[%s233 + $0x6d0] sm:$0xff]
        %v544 = vld [vmem:[%s233 + $0x6d8] sm:$0xff]
        %v545 = vld [vmem:[%s233 + $0x6e0] sm:$0xff]
        %v546 = vld [vmem:[%s233 + $0x6e8] sm:$0xff]
        %v547 = vld [vmem:[%s233 + $0x6f0] sm:$0xff]
        %v548 = vld [vmem:[%s233 + $0x6f8] sm:$0xff]
        %v549 = vld [vmem:[%s233 + $0x700] sm:$0xff]
        %v550 = vld [vmem:[%s233 + $0x708] sm:$0xff]
        %v551 = vld [vmem:[%s233 + $0x710] sm:$0xff]
        %v552 = vld [vmem:[%s233 + $0x718] sm:$0xff]
        %v553 = vld [vmem:[%s233 + $0x720] sm:$0xff]
        %v554 = vld [vmem:[%s233 + $0x728] sm:$0xff]
        %v555 = vld [vmem:[%s233 + $0x730] sm:$0xff]
        %v556 = vld [vmem:[%s233 + $0x738] sm:$0xff]
        %v557 = vld [vmem:[%s233 + $0x740] sm:$0xff]
        %v558 = vld [vmem:[%s233 + $0x748] sm:$0xff]
        %v559 = vld [vmem:[%s233 + $0x750] sm:$0xff]
        %v560 = vld [vmem:[%s233 + $0x758] sm:$0xff]
        %v561 = vld [vmem:[%s233 + $0x760] sm:$0xff]
        %v562 = vld [vmem:[%s233 + $0x768] sm:$0xff]
        %v563 = vld [vmem:[%s233 + $0x770] sm:$0xff]
        %v564 = vld [vmem:[%s233 + $0x778] sm:$0xff]
        %v565 = vld [vmem:[%s233 + $0x780] sm:$0xff]
        %v566 = vld [vmem:[%s233 + $0x788] sm:$0xff]
        %v567 = vld [vmem:[%s233 + $0x790] sm:$0xff]
        %v568 = vld [vmem:[%s233 + $0x798] sm:$0xff]
        %v569 = vld [vmem:[%s233 + $0x7a0] sm:$0xff]
        %v570 = vld [vmem:[%s233 + $0x7a8] sm:$0xff]
        %v571 = vld [vmem:[%s233 + $0x7b0] sm:$0xff]
        %v572 = vld [vmem:[%s233 + $0x7b8] sm:$0xff]
        %v573 = vld [vmem:[%s233 + $0x7c0] sm:$0xff]
        %v574 = vld [vmem:[%s233 + $0x7c8] sm:$0xff]
        %v575 = vld [vmem:[%s233 + $0x7d0] sm:$0xff]
        %v576 = vld [vmem:[%s233 + $0x7d8] sm:$0xff]
        %v577 = vld [vmem:[%s233 + $0x7e0] sm:$0xff]
        %v578 = vld [vmem:[%s233 + $0x7e8] sm:$0xff]
        %v579 = vld [vmem:[%s233 + $0x7f0] sm:$0xff]
        %v580 = vld [vmem:[%s233 + $0x7f8] sm:$0xff]
        %v581 = vld [vmem:[%s233 + $0x800] sm:$0xff]
        %v582 = vld [vmem:[%s233 + $0x808] sm:$0xff]
        %v583 = vld [vmem:[%s233 + $0x810] sm:$0xff]
        %v584 = vld [vmem:[%s233 + $0x818] sm:$0xff]
        %v585 = vld [vmem:[%s233 + $0x820] sm:$0xff]
        %v586 = vld [vmem:[%s233 + $0x828] sm:$0xff]
        %v587 = vld [vmem:[%s233 + $0x830] sm:$0xff]
        %v588 = vld [vmem:[%s233 + $0x838] sm:$0xff]
        %v589 = vld [vmem:[%s233 + $0x840] sm:$0xff]
        %v590 = vld [vmem:[%s233 + $0x848] sm:$0xff]
        %v591 = vld [vmem:[%s233 + $0x850] sm:$0xff]
        %v592 = vld [vmem:[%s233 + $0x858] sm:$0xff]
        %v593 = vld [vmem:[%s233 + $0x860] sm:$0xff]
        %v594 = vld [vmem:[%s233 + $0x868] sm:$0xff]
        %v595 = vld [vmem:[%s233 + $0x870] sm:$0xff]
        %v596 = vld [vmem:[%s233 + $0x878] sm:$0xff]
        %v597 = vld [vmem:[%s233 + $0x880] sm:$0xff]
        %v598 = vld [vmem:[%s233 + $0x888] sm:$0xff]
        %v599 = vld [vmem:[%s233 + $0x890] sm:$0xff]
        %v600 = vld [vmem:[%s233 + $0x898] sm:$0xff]
        %v601 = vld [vmem:[%s233 + $0x8a0] sm:$0xff]
        %v602 = vld [vmem:[%s233 + $0x8a8] sm:$0xff]
        %v603 = vld [vmem:[%s233 + $0x8b0] sm:$0xff]
        %v604 = vld [vmem:[%s233 + $0x8b8] sm:$0xff]
        %v605 = vld [vmem:[%s233 + $0x8c0] sm:$0xff]
        %v606 = vld [vmem:[%s233 + $0x8c8] sm:$0xff]
        %v607 = vld [vmem:[%s233 + $0x8d0] sm:$0xff]
        %v608 = vld [vmem:[%s233 + $0x8d8] sm:$0xff]
        %v609 = vld [vmem:[%s233 + $0x8e0] sm:$0xff]
        %v610 = vld [vmem:[%s233 + $0x8e8] sm:$0xff]
        %v611 = vld [vmem:[%s233 + $0x8f0] sm:$0xff]
        %v612 = vld [vmem:[%s233 + $0x8f8] sm:$0xff]
        %v649 = vunpack.c.l.b16 %v289
        %v650 = vunpack.c.h.b16 %v289
        %v651 = vunpack.c.l.b16 %v290
        %v652 = vunpack.c.h.b16 %v290
        %v653 = vunpack.c.l.b16 %v291
        %v654 = vunpack.c.h.b16 %v291
        %v655 = vunpack.c.l.b16 %v292
        %v656 = vunpack.c.h.b16 %v292
        %v657 = vunpack.c.l.b16 %v293
        %v658 = vunpack.c.h.b16 %v293
        %v659 = vunpack.c.l.b16 %v294
        %v660 = vunpack.c.h.b16 %v294
        %v661 = vunpack.c.l.b16 %v295
        %v662 = vunpack.c.h.b16 %v295
        %v663 = vunpack.c.l.b16 %v296
        %v664 = vunpack.c.h.b16 %v296
        %v665 = vunpack.c.l.b16 %v297
        %v666 = vunpack.c.h.b16 %v297
        %v667 = vunpack.c.l.b16 %v298
        %v668 = vunpack.c.h.b16 %v298
        %v669 = vunpack.c.l.b16 %v299
        %v670 = vunpack.c.h.b16 %v299
        %v671 = vunpack.c.l.b16 %v300
        %v672 = vunpack.c.h.b16 %v300
        %v673 = vunpack.c.l.b16 %v301
        %v674 = vunpack.c.h.b16 %v301
        %v675 = vunpack.c.l.b16 %v302
        %v676 = vunpack.c.h.b16 %v302
        %v677 = vunpack.c.l.b16 %v303
        %v678 = vunpack.c.h.b16 %v303
        %v679 = vunpack.c.l.b16 %v304
        %v680 = vunpack.c.h.b16 %v304
        %v681 = vunpack.c.l.b16 %v305
        %v682 = vunpack.c.h.b16 %v305
        %v683 = vunpack.c.l.b16 %v306
        %v684 = vunpack.c.h.b16 %v306
        %v685 = vunpack.c.l.b16 %v307
        %v686 = vunpack.c.h.b16 %v307
        %v687 = vunpack.c.l.b16 %v308
        %v688 = vunpack.c.h.b16 %v308
        %v689 = vunpack.c.l.b16 %v309
        %v690 = vunpack.c.h.b16 %v309
        %v691 = vunpack.c.l.b16 %v310
        %v692 = vunpack.c.h.b16 %v310
        %v693 = vunpack.c.l.b16 %v311
        %v694 = vunpack.c.h.b16 %v311
        %v695 = vunpack.c.l.b16 %v312
        %v696 = vunpack.c.h.b16 %v312
        %v697 = vunpack.c.l.b16 %v313
        %v698 = vunpack.c.h.b16 %v313
        %v699 = vunpack.c.l.b16 %v314
        %v700 = vunpack.c.h.b16 %v314
        %v701 = vunpack.c.l.b16 %v315
        %v702 = vunpack.c.h.b16 %v315
        %v703 = vunpack.c.l.b16 %v316
        %v704 = vunpack.c.h.b16 %v316
        %v705 = vunpack.c.l.b16 %v317
        %v706 = vunpack.c.h.b16 %v317
        %v707 = vunpack.c.l.b16 %v318
        %v708 = vunpack.c.h.b16 %v318
        %v709 = vunpack.c.l.b16 %v319
        %v710 = vunpack.c.h.b16 %v319
        %v711 = vunpack.c.l.b16 %v320
        %v712 = vunpack.c.h.b16 %v320
        %v713 = vunpack.c.l.b16 %v321
        %v714 = vunpack.c.h.b16 %v321
        %v715 = vunpack.c.l.b16 %v322
        %v716 = vunpack.c.h.b16 %v322
        %v717 = vunpack.c.l.b16 %v323
        %v718 = vunpack.c.h.b16 %v323
        %v719 = vunpack.c.l.b16 %v324
        %v720 = vunpack.c.h.b16 %v324
        %v721 = vpack.c.b16 %v667, %v649
        %v722 = vpack.c.b16 %v668, %v650
        %v723 = vpack.c.b16 %v669, %v651
        %v724 = vpack.c.b16 %v670, %v652
        %v725 = vpack.c.b16 %v671, %v653
        %v726 = vpack.c.b16 %v672, %v654
        %v727 = vpack.c.b16 %v673, %v655
        %v728 = vpack.c.b16 %v674, %v656
        %v729 = vpack.c.b16 %v675, %v657
        %v730 = vpack.c.b16 %v676, %v658
        %v731 = vpack.c.b16 %v677, %v659
        %v732 = vpack.c.b16 %v678, %v660
        %v733 = vpack.c.b16 %v679, %v661
        %v734 = vpack.c.b16 %v680, %v662
        %v735 = vpack.c.b16 %v681, %v663
        %v736 = vpack.c.b16 %v682, %v664
        %v737 = vpack.c.b16 %v683, %v665
        %v738 = vpack.c.b16 %v684, %v666
        %v739 = vpack.c.b16 %v703, %v685
        %v740 = vpack.c.b16 %v704, %v686
        %v741 = vpack.c.b16 %v705, %v687
        %v742 = vpack.c.b16 %v706, %v688
        %v743 = vpack.c.b16 %v707, %v689
        %v744 = vpack.c.b16 %v708, %v690
        %v745 = vpack.c.b16 %v709, %v691
        %v746 = vpack.c.b16 %v710, %v692
        %v747 = vpack.c.b16 %v711, %v693
        %v748 = vpack.c.b16 %v712, %v694
        %v749 = vpack.c.b16 %v713, %v695
        %v750 = vpack.c.b16 %v714, %v696
        %v751 = vpack.c.b16 %v715, %v697
        %v752 = vpack.c.b16 %v716, %v698
        %v753 = vpack.c.b16 %v717, %v699
        %v754 = vpack.c.b16 %v718, %v700
        %v755 = vpack.c.b16 %v719, %v701
        %v756 = vpack.c.b16 %v720, %v702
        %v1081 = vunpack.c.l.b16 %v325
        %v1082 = vunpack.c.h.b16 %v325
        %v1083 = vunpack.c.l.b16 %v326
        %v1084 = vunpack.c.h.b16 %v326
        %v1085 = vunpack.c.l.b16 %v327
        %v1086 = vunpack.c.h.b16 %v327
        %v1087 = vunpack.c.l.b16 %v328
        %v1088 = vunpack.c.h.b16 %v328
        %v1089 = vunpack.c.l.b16 %v329
        %v1090 = vunpack.c.h.b16 %v329
        %v1091 = vunpack.c.l.b16 %v330
        %v1092 = vunpack.c.h.b16 %v330
        %v1093 = vunpack.c.l.b16 %v331
        %v1094 = vunpack.c.h.b16 %v331
        %v1095 = vunpack.c.l.b16 %v332
        %v1096 = vunpack.c.h.b16 %v332
        %v1097 = vunpack.c.l.b16 %v333
        %v1098 = vunpack.c.h.b16 %v333
        %v1099 = vunpack.c.l.b16 %v334
        %v1100 = vunpack.c.h.b16 %v334
        %v1101 = vunpack.c.l.b16 %v335
        %v1102 = vunpack.c.h.b16 %v335
        %v1103 = vunpack.c.l.b16 %v336
        %v1104 = vunpack.c.h.b16 %v336
        %v1105 = vunpack.c.l.b16 %v337
        %v1106 = vunpack.c.h.b16 %v337
        %v1107 = vunpack.c.l.b16 %v338
        %v1108 = vunpack.c.h.b16 %v338
        %v1109 = vunpack.c.l.b16 %v339
        %v1110 = vunpack.c.h.b16 %v339
        %v1111 = vunpack.c.l.b16 %v340
        %v1112 = vunpack.c.h.b16 %v340
        %v1113 = vunpack.c.l.b16 %v341
        %v1114 = vunpack.c.h.b16 %v341
        %v1115 = vunpack.c.l.b16 %v342
        %v1116 = vunpack.c.h.b16 %v342
        %v1117 = vunpack.c.l.b16 %v343
        %v1118 = vunpack.c.h.b16 %v343
        %v1119 = vunpack.c.l.b16 %v344
        %v1120 = vunpack.c.h.b16 %v344
        %v1121 = vunpack.c.l.b16 %v345
        %v1122 = vunpack.c.h.b16 %v345
        %v1123 = vunpack.c.l.b16 %v346
        %v1124 = vunpack.c.h.b16 %v346
        %v1125 = vunpack.c.l.b16 %v347
        %v1126 = vunpack.c.h.b16 %v347
        %v1127 = vunpack.c.l.b16 %v348
        %v1128 = vunpack.c.h.b16 %v348
        %v1129 = vunpack.c.l.b16 %v349
        %v1130 = vunpack.c.h.b16 %v349
        %v1131 = vunpack.c.l.b16 %v350
        %v1132 = vunpack.c.h.b16 %v350
        %v1133 = vunpack.c.l.b16 %v351
        %v1134 = vunpack.c.h.b16 %v351
        %v1135 = vunpack.c.l.b16 %v352
        %v1136 = vunpack.c.h.b16 %v352
        %v1137 = vunpack.c.l.b16 %v353
        %v1138 = vunpack.c.h.b16 %v353
        %v1139 = vunpack.c.l.b16 %v354
        %v1140 = vunpack.c.h.b16 %v354
        %v1141 = vunpack.c.l.b16 %v355
        %v1142 = vunpack.c.h.b16 %v355
        %v1143 = vunpack.c.l.b16 %v356
        %v1144 = vunpack.c.h.b16 %v356
        %v1145 = vunpack.c.l.b16 %v357
        %v1146 = vunpack.c.h.b16 %v357
        %v1147 = vunpack.c.l.b16 %v358
        %v1148 = vunpack.c.h.b16 %v358
        %v1149 = vunpack.c.l.b16 %v359
        %v1150 = vunpack.c.h.b16 %v359
        %v1151 = vunpack.c.l.b16 %v360
        %v1152 = vunpack.c.h.b16 %v360
        %v1153 = vunpack.c.l.b16 %v361
        %v1154 = vunpack.c.h.b16 %v361
        %v1155 = vunpack.c.l.b16 %v362
        %v1156 = vunpack.c.h.b16 %v362
        %v1157 = vunpack.c.l.b16 %v363
        %v1158 = vunpack.c.h.b16 %v363
        %v1159 = vunpack.c.l.b16 %v364
        %v1160 = vunpack.c.h.b16 %v364
        %v1161 = vunpack.c.l.b16 %v365
        %v1162 = vunpack.c.h.b16 %v365
        %v1163 = vunpack.c.l.b16 %v366
        %v1164 = vunpack.c.h.b16 %v366
        %v1165 = vunpack.c.l.b16 %v367
        %v1166 = vunpack.c.h.b16 %v367
        %v1167 = vunpack.c.l.b16 %v368
        %v1168 = vunpack.c.h.b16 %v368
        %v1169 = vunpack.c.l.b16 %v369
        %v1170 = vunpack.c.h.b16 %v369
        %v1171 = vunpack.c.l.b16 %v370
        %v1172 = vunpack.c.h.b16 %v370
        %v1173 = vunpack.c.l.b16 %v371
        %v1174 = vunpack.c.h.b16 %v371
        %v1175 = vunpack.c.l.b16 %v372
        %v1176 = vunpack.c.h.b16 %v372
        %v1177 = vunpack.c.l.b16 %v373
        %v1178 = vunpack.c.h.b16 %v373
        %v1179 = vunpack.c.l.b16 %v374
        %v1180 = vunpack.c.h.b16 %v374
        %v1181 = vunpack.c.l.b16 %v375
        %v1182 = vunpack.c.h.b16 %v375
        %v1183 = vunpack.c.l.b16 %v376
        %v1184 = vunpack.c.h.b16 %v376
        %v1185 = vunpack.c.l.b16 %v377
        %v1186 = vunpack.c.h.b16 %v377
        %v1187 = vunpack.c.l.b16 %v378
        %v1188 = vunpack.c.h.b16 %v378
        %v1189 = vunpack.c.l.b16 %v379
        %v1190 = vunpack.c.h.b16 %v379
        %v1191 = vunpack.c.l.b16 %v380
        %v1192 = vunpack.c.h.b16 %v380
        %v1193 = vunpack.c.l.b16 %v381
        %v1194 = vunpack.c.h.b16 %v381
        %v1195 = vunpack.c.l.b16 %v382
        %v1196 = vunpack.c.h.b16 %v382
        %v1197 = vunpack.c.l.b16 %v383
        %v1198 = vunpack.c.h.b16 %v383
        %v1199 = vunpack.c.l.b16 %v384
        %v1200 = vunpack.c.h.b16 %v384
        %v1201 = vunpack.c.l.b16 %v385
        %v1202 = vunpack.c.h.b16 %v385
        %v1203 = vunpack.c.l.b16 %v386
        %v1204 = vunpack.c.h.b16 %v386
        %v1205 = vunpack.c.l.b16 %v387
        %v1206 = vunpack.c.h.b16 %v387
        %v1207 = vunpack.c.l.b16 %v388
        %v1208 = vunpack.c.h.b16 %v388
        %v1209 = vunpack.c.l.b16 %v389
        %v1210 = vunpack.c.h.b16 %v389
        %v1211 = vunpack.c.l.b16 %v390
        %v1212 = vunpack.c.h.b16 %v390
        %v1213 = vunpack.c.l.b16 %v391
        %v1214 = vunpack.c.h.b16 %v391
        %v1215 = vunpack.c.l.b16 %v392
        %v1216 = vunpack.c.h.b16 %v392
        %v1217 = vunpack.c.l.b16 %v393
        %v1218 = vunpack.c.h.b16 %v393
        %v1219 = vunpack.c.l.b16 %v394
        %v1220 = vunpack.c.h.b16 %v394
        %v1221 = vunpack.c.l.b16 %v395
        %v1222 = vunpack.c.h.b16 %v395
        %v1223 = vunpack.c.l.b16 %v396
        %v1224 = vunpack.c.h.b16 %v396
        %v1225 = vunpack.c.l.b16 %v397
        %v1226 = vunpack.c.h.b16 %v397
        %v1227 = vunpack.c.l.b16 %v398
        %v1228 = vunpack.c.h.b16 %v398
        %v1229 = vunpack.c.l.b16 %v399
        %v1230 = vunpack.c.h.b16 %v399
        %v1231 = vunpack.c.l.b16 %v400
        %v1232 = vunpack.c.h.b16 %v400
        %v1233 = vunpack.c.l.b16 %v401
        %v1234 = vunpack.c.h.b16 %v401
        %v1235 = vunpack.c.l.b16 %v402
        %v1236 = vunpack.c.h.b16 %v402
        %v1237 = vunpack.c.l.b16 %v403
        %v1238 = vunpack.c.h.b16 %v403
        %v1239 = vunpack.c.l.b16 %v404
        %v1240 = vunpack.c.h.b16 %v404
        %v1241 = vunpack.c.l.b16 %v405
        %v1242 = vunpack.c.h.b16 %v405
        %v1243 = vunpack.c.l.b16 %v406
        %v1244 = vunpack.c.h.b16 %v406
        %v1245 = vunpack.c.l.b16 %v407
        %v1246 = vunpack.c.h.b16 %v407
        %v1247 = vunpack.c.l.b16 %v408
        %v1248 = vunpack.c.h.b16 %v408
        %v1249 = vunpack.c.l.b16 %v409
        %v1250 = vunpack.c.h.b16 %v409
        %v1251 = vunpack.c.l.b16 %v410
        %v1252 = vunpack.c.h.b16 %v410
        %v1253 = vunpack.c.l.b16 %v411
        %v1254 = vunpack.c.h.b16 %v411
        %v1255 = vunpack.c.l.b16 %v412
        %v1256 = vunpack.c.h.b16 %v412
        %v1257 = vunpack.c.l.b16 %v413
        %v1258 = vunpack.c.h.b16 %v413
        %v1259 = vunpack.c.l.b16 %v414
        %v1260 = vunpack.c.h.b16 %v414
        %v1261 = vunpack.c.l.b16 %v415
        %v1262 = vunpack.c.h.b16 %v415
        %v1263 = vunpack.c.l.b16 %v416
        %v1264 = vunpack.c.h.b16 %v416
        %v1265 = vunpack.c.l.b16 %v417
        %v1266 = vunpack.c.h.b16 %v417
        %v1267 = vunpack.c.l.b16 %v418
        %v1268 = vunpack.c.h.b16 %v418
        %v1269 = vunpack.c.l.b16 %v419
        %v1270 = vunpack.c.h.b16 %v419
        %v1271 = vunpack.c.l.b16 %v420
        %v1272 = vunpack.c.h.b16 %v420
        %v1273 = vunpack.c.l.b16 %v421
        %v1274 = vunpack.c.h.b16 %v421
        %v1275 = vunpack.c.l.b16 %v422
        %v1276 = vunpack.c.h.b16 %v422
        %v1277 = vunpack.c.l.b16 %v423
        %v1278 = vunpack.c.h.b16 %v423
        %v1279 = vunpack.c.l.b16 %v424
        %v1280 = vunpack.c.h.b16 %v424
        %v1281 = vunpack.c.l.b16 %v425
        %v1282 = vunpack.c.h.b16 %v425
        %v1283 = vunpack.c.l.b16 %v426
        %v1284 = vunpack.c.h.b16 %v426
        %v1285 = vunpack.c.l.b16 %v427
        %v1286 = vunpack.c.h.b16 %v427
        %v1287 = vunpack.c.l.b16 %v428
        %v1288 = vunpack.c.h.b16 %v428
        %v1289 = vunpack.c.l.b16 %v429
        %v1290 = vunpack.c.h.b16 %v429
        %v1291 = vunpack.c.l.b16 %v430
        %v1292 = vunpack.c.h.b16 %v430
        %v1293 = vunpack.c.l.b16 %v431
        %v1294 = vunpack.c.h.b16 %v431
        %v1295 = vunpack.c.l.b16 %v432
        %v1296 = vunpack.c.h.b16 %v432
        %v1297 = vunpack.c.l.b16 %v433
        %v1298 = vunpack.c.h.b16 %v433
        %v1299 = vunpack.c.l.b16 %v434
        %v1300 = vunpack.c.h.b16 %v434
        %v1301 = vunpack.c.l.b16 %v435
        %v1302 = vunpack.c.h.b16 %v435
        %v1303 = vunpack.c.l.b16 %v436
        %v1304 = vunpack.c.h.b16 %v436
        %v1305 = vunpack.c.l.b16 %v437
        %v1306 = vunpack.c.h.b16 %v437
        %v1307 = vunpack.c.l.b16 %v438
        %v1308 = vunpack.c.h.b16 %v438
        %v1309 = vunpack.c.l.b16 %v439
        %v1310 = vunpack.c.h.b16 %v439
        %v1311 = vunpack.c.l.b16 %v440
        %v1312 = vunpack.c.h.b16 %v440
        %v1313 = vunpack.c.l.b16 %v441
        %v1314 = vunpack.c.h.b16 %v441
        %v1315 = vunpack.c.l.b16 %v442
        %v1316 = vunpack.c.h.b16 %v442
        %v1317 = vunpack.c.l.b16 %v443
        %v1318 = vunpack.c.h.b16 %v443
        %v1319 = vunpack.c.l.b16 %v444
        %v1320 = vunpack.c.h.b16 %v444
        %v1321 = vunpack.c.l.b16 %v445
        %v1322 = vunpack.c.h.b16 %v445
        %v1323 = vunpack.c.l.b16 %v446
        %v1324 = vunpack.c.h.b16 %v446
        %v1325 = vunpack.c.l.b16 %v447
        %v1326 = vunpack.c.h.b16 %v447
        %v1327 = vunpack.c.l.b16 %v448
        %v1328 = vunpack.c.h.b16 %v448
        %v1329 = vunpack.c.l.b16 %v449
        %v1330 = vunpack.c.h.b16 %v449
        %v1331 = vunpack.c.l.b16 %v450
        %v1332 = vunpack.c.h.b16 %v450
        %v1333 = vunpack.c.l.b16 %v451
        %v1334 = vunpack.c.h.b16 %v451
        %v1335 = vunpack.c.l.b16 %v452
        %v1336 = vunpack.c.h.b16 %v452
        %v1337 = vunpack.c.l.b16 %v453
        %v1338 = vunpack.c.h.b16 %v453
        %v1339 = vunpack.c.l.b16 %v454
        %v1340 = vunpack.c.h.b16 %v454
        %v1341 = vunpack.c.l.b16 %v455
        %v1342 = vunpack.c.h.b16 %v455
        %v1343 = vunpack.c.l.b16 %v456
        %v1344 = vunpack.c.h.b16 %v456
        %v1345 = vunpack.c.l.b16 %v457
        %v1346 = vunpack.c.h.b16 %v457
        %v1347 = vunpack.c.l.b16 %v458
        %v1348 = vunpack.c.h.b16 %v458
        %v1349 = vunpack.c.l.b16 %v459
        %v1350 = vunpack.c.h.b16 %v459
        %v1351 = vunpack.c.l.b16 %v460
        %v1352 = vunpack.c.h.b16 %v460
        %v1353 = vunpack.c.l.b16 %v461
        %v1354 = vunpack.c.h.b16 %v461
        %v1355 = vunpack.c.l.b16 %v462
        %v1356 = vunpack.c.h.b16 %v462
        %v1357 = vunpack.c.l.b16 %v463
        %v1358 = vunpack.c.h.b16 %v463
        %v1359 = vunpack.c.l.b16 %v464
        %v1360 = vunpack.c.h.b16 %v464
        %v1361 = vunpack.c.l.b16 %v465
        %v1362 = vunpack.c.h.b16 %v465
        %v1363 = vunpack.c.l.b16 %v466
        %v1364 = vunpack.c.h.b16 %v466
        %v1365 = vunpack.c.l.b16 %v467
        %v1366 = vunpack.c.h.b16 %v467
        %v1367 = vunpack.c.l.b16 %v468
        %v1368 = vunpack.c.h.b16 %v468
        %v1369 = vunpack.c.l.b16 %v469
        %v1370 = vunpack.c.h.b16 %v469
        %v1371 = vunpack.c.l.b16 %v470
        %v1372 = vunpack.c.h.b16 %v470
        %v1373 = vunpack.c.l.b16 %v471
        %v1374 = vunpack.c.h.b16 %v471
        %v1375 = vunpack.c.l.b16 %v472
        %v1376 = vunpack.c.h.b16 %v472
        %v1377 = vunpack.c.l.b16 %v473
        %v1378 = vunpack.c.h.b16 %v473
        %v1379 = vunpack.c.l.b16 %v474
        %v1380 = vunpack.c.h.b16 %v474
        %v1381 = vunpack.c.l.b16 %v475
        %v1382 = vunpack.c.h.b16 %v475
        %v1383 = vunpack.c.l.b16 %v476
        %v1384 = vunpack.c.h.b16 %v476
        %v1385 = vunpack.c.l.b16 %v477
        %v1386 = vunpack.c.h.b16 %v477
        %v1387 = vunpack.c.l.b16 %v478
        %v1388 = vunpack.c.h.b16 %v478
        %v1389 = vunpack.c.l.b16 %v479
        %v1390 = vunpack.c.h.b16 %v479
        %v1391 = vunpack.c.l.b16 %v480
        %v1392 = vunpack.c.h.b16 %v480
        %v1393 = vunpack.c.l.b16 %v481
        %v1394 = vunpack.c.h.b16 %v481
        %v1395 = vunpack.c.l.b16 %v482
        %v1396 = vunpack.c.h.b16 %v482
        %v1397 = vunpack.c.l.b16 %v483
        %v1398 = vunpack.c.h.b16 %v483
        %v1399 = vunpack.c.l.b16 %v484
        %v1400 = vunpack.c.h.b16 %v484
        %v1401 = vunpack.c.l.b16 %v485
        %v1402 = vunpack.c.h.b16 %v485
        %v1403 = vunpack.c.l.b16 %v486
        %v1404 = vunpack.c.h.b16 %v486
        %v1405 = vunpack.c.l.b16 %v487
        %v1406 = vunpack.c.h.b16 %v487
        %v1407 = vunpack.c.l.b16 %v488
        %v1408 = vunpack.c.h.b16 %v488
        %v1409 = vunpack.c.l.b16 %v489
        %v1410 = vunpack.c.h.b16 %v489
        %v1411 = vunpack.c.l.b16 %v490
        %v1412 = vunpack.c.h.b16 %v490
        %v1413 = vunpack.c.l.b16 %v491
        %v1414 = vunpack.c.h.b16 %v491
        %v1415 = vunpack.c.l.b16 %v492
        %v1416 = vunpack.c.h.b16 %v492
        %v1417 = vunpack.c.l.b16 %v493
        %v1418 = vunpack.c.h.b16 %v493
        %v1419 = vunpack.c.l.b16 %v494
        %v1420 = vunpack.c.h.b16 %v494
        %v1421 = vunpack.c.l.b16 %v495
        %v1422 = vunpack.c.h.b16 %v495
        %v1423 = vunpack.c.l.b16 %v496
        %v1424 = vunpack.c.h.b16 %v496
        %v1425 = vunpack.c.l.b16 %v497
        %v1426 = vunpack.c.h.b16 %v497
        %v1427 = vunpack.c.l.b16 %v498
        %v1428 = vunpack.c.h.b16 %v498
        %v1429 = vunpack.c.l.b16 %v499
        %v1430 = vunpack.c.h.b16 %v499
        %v1431 = vunpack.c.l.b16 %v500
        %v1432 = vunpack.c.h.b16 %v500
        %v1433 = vunpack.c.l.b16 %v501
        %v1434 = vunpack.c.h.b16 %v501
        %v1435 = vunpack.c.l.b16 %v502
        %v1436 = vunpack.c.h.b16 %v502
        %v1437 = vunpack.c.l.b16 %v503
        %v1438 = vunpack.c.h.b16 %v503
        %v1439 = vunpack.c.l.b16 %v504
        %v1440 = vunpack.c.h.b16 %v504
        %v1441 = vunpack.c.l.b16 %v505
        %v1442 = vunpack.c.h.b16 %v505
        %v1443 = vunpack.c.l.b16 %v506
        %v1444 = vunpack.c.h.b16 %v506
        %v1445 = vunpack.c.l.b16 %v507
        %v1446 = vunpack.c.h.b16 %v507
        %v1447 = vunpack.c.l.b16 %v508
        %v1448 = vunpack.c.h.b16 %v508
        %v1449 = vunpack.c.l.b16 %v509
        %v1450 = vunpack.c.h.b16 %v509
        %v1451 = vunpack.c.l.b16 %v510
        %v1452 = vunpack.c.h.b16 %v510
        %v1453 = vunpack.c.l.b16 %v511
        %v1454 = vunpack.c.h.b16 %v511
        %v1455 = vunpack.c.l.b16 %v512
        %v1456 = vunpack.c.h.b16 %v512
        %v1457 = vunpack.c.l.b16 %v513
        %v1458 = vunpack.c.h.b16 %v513
        %v1459 = vunpack.c.l.b16 %v514
        %v1460 = vunpack.c.h.b16 %v514
        %v1461 = vunpack.c.l.b16 %v515
        %v1462 = vunpack.c.h.b16 %v515
        %v1463 = vunpack.c.l.b16 %v516
        %v1464 = vunpack.c.h.b16 %v516
        %v1465 = vunpack.c.l.b16 %v517
        %v1466 = vunpack.c.h.b16 %v517
        %v1467 = vunpack.c.l.b16 %v518
        %v1468 = vunpack.c.h.b16 %v518
        %v1469 = vunpack.c.l.b16 %v519
        %v1470 = vunpack.c.h.b16 %v519
        %v1471 = vunpack.c.l.b16 %v520
        %v1472 = vunpack.c.h.b16 %v520
        %v1473 = vunpack.c.l.b16 %v521
        %v1474 = vunpack.c.h.b16 %v521
        %v1475 = vunpack.c.l.b16 %v522
        %v1476 = vunpack.c.h.b16 %v522
        %v1477 = vunpack.c.l.b16 %v523
        %v1478 = vunpack.c.h.b16 %v523
        %v1479 = vunpack.c.l.b16 %v524
        %v1480 = vunpack.c.h.b16 %v524
        %v1481 = vunpack.c.l.b16 %v525
        %v1482 = vunpack.c.h.b16 %v525
        %v1483 = vunpack.c.l.b16 %v526
        %v1484 = vunpack.c.h.b16 %v526
        %v1485 = vunpack.c.l.b16 %v527
        %v1486 = vunpack.c.h.b16 %v527
        %v1487 = vunpack.c.l.b16 %v528
        %v1488 = vunpack.c.h.b16 %v528
        %v1489 = vunpack.c.l.b16 %v529
        %v1490 = vunpack.c.h.b16 %v529
        %v1491 = vunpack.c.l.b16 %v530
        %v1492 = vunpack.c.h.b16 %v530
        %v1493 = vunpack.c.l.b16 %v531
        %v1494 = vunpack.c.h.b16 %v531
        %v1495 = vunpack.c.l.b16 %v532
        %v1496 = vunpack.c.h.b16 %v532
        %v1497 = vunpack.c.l.b16 %v533
        %v1498 = vunpack.c.h.b16 %v533
        %v1499 = vunpack.c.l.b16 %v534
        %v1500 = vunpack.c.h.b16 %v534
        %v1501 = vunpack.c.l.b16 %v535
        %v1502 = vunpack.c.h.b16 %v535
        %v1503 = vunpack.c.l.b16 %v536
        %v1504 = vunpack.c.h.b16 %v536
        %v1505 = vunpack.c.l.b16 %v537
        %v1506 = vunpack.c.h.b16 %v537
        %v1507 = vunpack.c.l.b16 %v538
        %v1508 = vunpack.c.h.b16 %v538
        %v1509 = vunpack.c.l.b16 %v539
        %v1510 = vunpack.c.h.b16 %v539
        %v1511 = vunpack.c.l.b16 %v540
        %v1512 = vunpack.c.h.b16 %v540
        %v1513 = vunpack.c.l.b16 %v541
        %v1514 = vunpack.c.h.b16 %v541
        %v1515 = vunpack.c.l.b16 %v542
        %v1516 = vunpack.c.h.b16 %v542
        %v1517 = vunpack.c.l.b16 %v543
        %v1518 = vunpack.c.h.b16 %v543
        %v1519 = vunpack.c.l.b16 %v544
        %v1520 = vunpack.c.h.b16 %v544
        %v1521 = vunpack.c.l.b16 %v545
        %v1522 = vunpack.c.h.b16 %v545
        %v1523 = vunpack.c.l.b16 %v546
        %v1524 = vunpack.c.h.b16 %v546
        %v1525 = vunpack.c.l.b16 %v547
        %v1526 = vunpack.c.h.b16 %v547
        %v1527 = vunpack.c.l.b16 %v548
        %v1528 = vunpack.c.h.b16 %v548
        %v1529 = vunpack.c.l.b16 %v549
        %v1530 = vunpack.c.h.b16 %v549
        %v1531 = vunpack.c.l.b16 %v550
        %v1532 = vunpack.c.h.b16 %v550
        %v1533 = vunpack.c.l.b16 %v551
        %v1534 = vunpack.c.h.b16 %v551
        %v1535 = vunpack.c.l.b16 %v552
        %v1536 = vunpack.c.h.b16 %v552
        %v1537 = vunpack.c.l.b16 %v553
        %v1538 = vunpack.c.h.b16 %v553
        %v1539 = vunpack.c.l.b16 %v554
        %v1540 = vunpack.c.h.b16 %v554
        %v1541 = vunpack.c.l.b16 %v555
        %v1542 = vunpack.c.h.b16 %v555
        %v1543 = vunpack.c.l.b16 %v556
        %v1544 = vunpack.c.h.b16 %v556
        %v1545 = vunpack.c.l.b16 %v557
        %v1546 = vunpack.c.h.b16 %v557
        %v1547 = vunpack.c.l.b16 %v558
        %v1548 = vunpack.c.h.b16 %v558
        %v1549 = vunpack.c.l.b16 %v559
        %v1550 = vunpack.c.h.b16 %v559
        %v1551 = vunpack.c.l.b16 %v560
        %v1552 = vunpack.c.h.b16 %v560
        %v1553 = vunpack.c.l.b16 %v561
        %v1554 = vunpack.c.h.b16 %v561
        %v1555 = vunpack.c.l.b16 %v562
        %v1556 = vunpack.c.h.b16 %v562
        %v1557 = vunpack.c.l.b16 %v563
        %v1558 = vunpack.c.h.b16 %v563
        %v1559 = vunpack.c.l.b16 %v564
        %v1560 = vunpack.c.h.b16 %v564
        %v1561 = vunpack.c.l.b16 %v565
        %v1562 = vunpack.c.h.b16 %v565
        %v1563 = vunpack.c.l.b16 %v566
        %v1564 = vunpack.c.h.b16 %v566
        %v1565 = vunpack.c.l.b16 %v567
        %v1566 = vunpack.c.h.b16 %v567
        %v1567 = vunpack.c.l.b16 %v568
        %v1568 = vunpack.c.h.b16 %v568
        %v1569 = vunpack.c.l.b16 %v569
        %v1570 = vunpack.c.h.b16 %v569
        %v1571 = vunpack.c.l.b16 %v570
        %v1572 = vunpack.c.h.b16 %v570
        %v1573 = vunpack.c.l.b16 %v571
        %v1574 = vunpack.c.h.b16 %v571
        %v1575 = vunpack.c.l.b16 %v572
        %v1576 = vunpack.c.h.b16 %v572
        %v1577 = vunpack.c.l.b16 %v573
        %v1578 = vunpack.c.h.b16 %v573
        %v1579 = vunpack.c.l.b16 %v574
        %v1580 = vunpack.c.h.b16 %v574
        %v1581 = vunpack.c.l.b16 %v575
        %v1582 = vunpack.c.h.b16 %v575
        %v1583 = vunpack.c.l.b16 %v576
        %v1584 = vunpack.c.h.b16 %v576
        %v1585 = vunpack.c.l.b16 %v577
        %v1586 = vunpack.c.h.b16 %v577
        %v1587 = vunpack.c.l.b16 %v578
        %v1588 = vunpack.c.h.b16 %v578
        %v1589 = vunpack.c.l.b16 %v579
        %v1590 = vunpack.c.h.b16 %v579
        %v1591 = vunpack.c.l.b16 %v580
        %v1592 = vunpack.c.h.b16 %v580
        %v1593 = vunpack.c.l.b16 %v581
        %v1594 = vunpack.c.h.b16 %v581
        %v1595 = vunpack.c.l.b16 %v582
        %v1596 = vunpack.c.h.b16 %v582
        %v1597 = vunpack.c.l.b16 %v583
        %v1598 = vunpack.c.h.b16 %v583
        %v1599 = vunpack.c.l.b16 %v584
        %v1600 = vunpack.c.h.b16 %v584
        %v1601 = vunpack.c.l.b16 %v585
        %v1602 = vunpack.c.h.b16 %v585
        %v1603 = vunpack.c.l.b16 %v586
        %v1604 = vunpack.c.h.b16 %v586
        %v1605 = vunpack.c.l.b16 %v587
        %v1606 = vunpack.c.h.b16 %v587
        %v1607 = vunpack.c.l.b16 %v588
        %v1608 = vunpack.c.h.b16 %v588
        %v1609 = vunpack.c.l.b16 %v589
        %v1610 = vunpack.c.h.b16 %v589
        %v1611 = vunpack.c.l.b16 %v590
        %v1612 = vunpack.c.h.b16 %v590
        %v1613 = vunpack.c.l.b16 %v591
        %v1614 = vunpack.c.h.b16 %v591
        %v1615 = vunpack.c.l.b16 %v592
        %v1616 = vunpack.c.h.b16 %v592
        %v1617 = vunpack.c.l.b16 %v593
        %v1618 = vunpack.c.h.b16 %v593
        %v1619 = vunpack.c.l.b16 %v594
        %v1620 = vunpack.c.h.b16 %v594
        %v1621 = vunpack.c.l.b16 %v595
        %v1622 = vunpack.c.h.b16 %v595
        %v1623 = vunpack.c.l.b16 %v596
        %v1624 = vunpack.c.h.b16 %v596
        %v1625 = vunpack.c.l.b16 %v597
        %v1626 = vunpack.c.h.b16 %v597
        %v1627 = vunpack.c.l.b16 %v598
        %v1628 = vunpack.c.h.b16 %v598
        %v1629 = vunpack.c.l.b16 %v599
        %v1630 = vunpack.c.h.b16 %v599
        %v1631 = vunpack.c.l.b16 %v600
        %v1632 = vunpack.c.h.b16 %v600
        %v1633 = vunpack.c.l.b16 %v601
        %v1634 = vunpack.c.h.b16 %v601
        %v1635 = vunpack.c.l.b16 %v602
        %v1636 = vunpack.c.h.b16 %v602
        %v1637 = vunpack.c.l.b16 %v603
        %v1638 = vunpack.c.h.b16 %v603
        %v1639 = vunpack.c.l.b16 %v604
        %v1640 = vunpack.c.h.b16 %v604
        %v1641 = vunpack.c.l.b16 %v605
        %v1642 = vunpack.c.h.b16 %v605
        %v1643 = vunpack.c.l.b16 %v606
        %v1644 = vunpack.c.h.b16 %v606
        %v1645 = vunpack.c.l.b16 %v607
        %v1646 = vunpack.c.h.b16 %v607
        %v1647 = vunpack.c.l.b16 %v608
        %v1648 = vunpack.c.h.b16 %v608
        %v1649 = vunpack.c.l.b16 %v609
        %v1650 = vunpack.c.h.b16 %v609
        %v1651 = vunpack.c.l.b16 %v610
        %v1652 = vunpack.c.h.b16 %v610
        %v1653 = vunpack.c.l.b16 %v611
        %v1654 = vunpack.c.h.b16 %v611
        %v1655 = vunpack.c.l.b16 %v612
        %v1656 = vunpack.c.h.b16 %v612
        %v1657 = vpack.c.b16 %v1083, %v1081
        %v1658 = vpack.c.b16 %v1084, %v1082
        %v1659 = vpack.c.b16 %v1087, %v1085
        %v1660 = vpack.c.b16 %v1088, %v1086
        %v1661 = vpack.c.b16 %v1091, %v1089
        %v1662 = vpack.c.b16 %v1092, %v1090
        %v1663 = vpack.c.b16 %v1095, %v1093
        %v1664 = vpack.c.b16 %v1096, %v1094
        %v1665 = vpack.c.b16 %v1099, %v1097
        %v1666 = vpack.c.b16 %v1100, %v1098
        %v1667 = vpack.c.b16 %v1103, %v1101
        %v1668 = vpack.c.b16 %v1104, %v1102
        %v1669 = vpack.c.b16 %v1107, %v1105
        %v1670 = vpack.c.b16 %v1108, %v1106
        %v1671 = vpack.c.b16 %v1111, %v1109
        %v1672 = vpack.c.b16 %v1112, %v1110
        %v1673 = vpack.c.b16 %v1115, %v1113
        %v1674 = vpack.c.b16 %v1116, %v1114
        %v1675 = vpack.c.b16 %v1119, %v1117
        %v1676 = vpack.c.b16 %v1120, %v1118
        %v1677 = vpack.c.b16 %v1123, %v1121
        %v1678 = vpack.c.b16 %v1124, %v1122
        %v1679 = vpack.c.b16 %v1127, %v1125
        %v1680 = vpack.c.b16 %v1128, %v1126
        %v1681 = vpack.c.b16 %v1131, %v1129
        %v1682 = vpack.c.b16 %v1132, %v1130
        %v1683 = vpack.c.b16 %v1135, %v1133
        %v1684 = vpack.c.b16 %v1136, %v1134
        %v1685 = vpack.c.b16 %v1139, %v1137
        %v1686 = vpack.c.b16 %v1140, %v1138
        %v1687 = vpack.c.b16 %v1143, %v1141
        %v1688 = vpack.c.b16 %v1144, %v1142
        %v1689 = vpack.c.b16 %v1147, %v1145
        %v1690 = vpack.c.b16 %v1148, %v1146
        %v1691 = vpack.c.b16 %v1151, %v1149
        %v1692 = vpack.c.b16 %v1152, %v1150
        %v1693 = vpack.c.b16 %v1155, %v1153
        %v1694 = vpack.c.b16 %v1156, %v1154
        %v1695 = vpack.c.b16 %v1159, %v1157
        %v1696 = vpack.c.b16 %v1160, %v1158
        %v1697 = vpack.c.b16 %v1163, %v1161
        %v1698 = vpack.c.b16 %v1164, %v1162
        %v1699 = vpack.c.b16 %v1167, %v1165
        %v1700 = vpack.c.b16 %v1168, %v1166
        %v1701 = vpack.c.b16 %v1171, %v1169
        %v1702 = vpack.c.b16 %v1172, %v1170
        %v1703 = vpack.c.b16 %v1175, %v1173
        %v1704 = vpack.c.b16 %v1176, %v1174
        %v1705 = vpack.c.b16 %v1179, %v1177
        %v1706 = vpack.c.b16 %v1180, %v1178
        %v1707 = vpack.c.b16 %v1183, %v1181
        %v1708 = vpack.c.b16 %v1184, %v1182
        %v1709 = vpack.c.b16 %v1187, %v1185
        %v1710 = vpack.c.b16 %v1188, %v1186
        %v1711 = vpack.c.b16 %v1191, %v1189
        %v1712 = vpack.c.b16 %v1192, %v1190
        %v1713 = vpack.c.b16 %v1195, %v1193
        %v1714 = vpack.c.b16 %v1196, %v1194
        %v1715 = vpack.c.b16 %v1199, %v1197
        %v1716 = vpack.c.b16 %v1200, %v1198
        %v1717 = vpack.c.b16 %v1203, %v1201
        %v1718 = vpack.c.b16 %v1204, %v1202
        %v1719 = vpack.c.b16 %v1207, %v1205
        %v1720 = vpack.c.b16 %v1208, %v1206
        %v1721 = vpack.c.b16 %v1211, %v1209
        %v1722 = vpack.c.b16 %v1212, %v1210
        %v1723 = vpack.c.b16 %v1215, %v1213
        %v1724 = vpack.c.b16 %v1216, %v1214
        %v1725 = vpack.c.b16 %v1219, %v1217
        %v1726 = vpack.c.b16 %v1220, %v1218
        %v1727 = vpack.c.b16 %v1223, %v1221
        %v1728 = vpack.c.b16 %v1224, %v1222
        %v1729 = vpack.c.b16 %v1227, %v1225
        %v1730 = vpack.c.b16 %v1228, %v1226
        %v1731 = vpack.c.b16 %v1231, %v1229
        %v1732 = vpack.c.b16 %v1232, %v1230
        %v1733 = vpack.c.b16 %v1235, %v1233
        %v1734 = vpack.c.b16 %v1236, %v1234
        %v1735 = vpack.c.b16 %v1239, %v1237
        %v1736 = vpack.c.b16 %v1240, %v1238
        %v1737 = vpack.c.b16 %v1243, %v1241
        %v1738 = vpack.c.b16 %v1244, %v1242
        %v1739 = vpack.c.b16 %v1247, %v1245
        %v1740 = vpack.c.b16 %v1248, %v1246
        %v1741 = vpack.c.b16 %v1251, %v1249
        %v1742 = vpack.c.b16 %v1252, %v1250
        %v1743 = vpack.c.b16 %v1255, %v1253
        %v1744 = vpack.c.b16 %v1256, %v1254
        %v1745 = vpack.c.b16 %v1259, %v1257
        %v1746 = vpack.c.b16 %v1260, %v1258
        %v1747 = vpack.c.b16 %v1263, %v1261
        %v1748 = vpack.c.b16 %v1264, %v1262
        %v1749 = vpack.c.b16 %v1267, %v1265
        %v1750 = vpack.c.b16 %v1268, %v1266
        %v1751 = vpack.c.b16 %v1271, %v1269
        %v1752 = vpack.c.b16 %v1272, %v1270
        %v1753 = vpack.c.b16 %v1275, %v1273
        %v1754 = vpack.c.b16 %v1276, %v1274
        %v1755 = vpack.c.b16 %v1279, %v1277
        %v1756 = vpack.c.b16 %v1280, %v1278
        %v1757 = vpack.c.b16 %v1283, %v1281
        %v1758 = vpack.c.b16 %v1284, %v1282
        %v1759 = vpack.c.b16 %v1287, %v1285
        %v1760 = vpack.c.b16 %v1288, %v1286
        %v1761 = vpack.c.b16 %v1291, %v1289
        %v1762 = vpack.c.b16 %v1292, %v1290
        %v1763 = vpack.c.b16 %v1295, %v1293
        %v1764 = vpack.c.b16 %v1296, %v1294
        %v1765 = vpack.c.b16 %v1299, %v1297
        %v1766 = vpack.c.b16 %v1300, %v1298
        %v1767 = vpack.c.b16 %v1303, %v1301
        %v1768 = vpack.c.b16 %v1304, %v1302
        %v1769 = vpack.c.b16 %v1307, %v1305
        %v1770 = vpack.c.b16 %v1308, %v1306
        %v1771 = vpack.c.b16 %v1311, %v1309
        %v1772 = vpack.c.b16 %v1312, %v1310
        %v1773 = vpack.c.b16 %v1315, %v1313
        %v1774 = vpack.c.b16 %v1316, %v1314
        %v1775 = vpack.c.b16 %v1319, %v1317
        %v1776 = vpack.c.b16 %v1320, %v1318
        %v1777 = vpack.c.b16 %v1323, %v1321
        %v1778 = vpack.c.b16 %v1324, %v1322
        %v1779 = vpack.c.b16 %v1327, %v1325
        %v1780 = vpack.c.b16 %v1328, %v1326
        %v1781 = vpack.c.b16 %v1331, %v1329
        %v1782 = vpack.c.b16 %v1332, %v1330
        %v1783 = vpack.c.b16 %v1335, %v1333
        %v1784 = vpack.c.b16 %v1336, %v1334
        %v1785 = vpack.c.b16 %v1339, %v1337
        %v1786 = vpack.c.b16 %v1340, %v1338
        %v1787 = vpack.c.b16 %v1343, %v1341
        %v1788 = vpack.c.b16 %v1344, %v1342
        %v1789 = vpack.c.b16 %v1347, %v1345
        %v1790 = vpack.c.b16 %v1348, %v1346
        %v1791 = vpack.c.b16 %v1351, %v1349
        %v1792 = vpack.c.b16 %v1352, %v1350
        %v1793 = vpack.c.b16 %v1355, %v1353
        %v1794 = vpack.c.b16 %v1356, %v1354
        %v1795 = vpack.c.b16 %v1359, %v1357
        %v1796 = vpack.c.b16 %v1360, %v1358
        %v1797 = vpack.c.b16 %v1363, %v1361
        %v1798 = vpack.c.b16 %v1364, %v1362
        %v1799 = vpack.c.b16 %v1367, %v1365
        %v1800 = vpack.c.b16 %v1368, %v1366
        %v1801 = vpack.c.b16 %v1371, %v1369
        %v1802 = vpack.c.b16 %v1372, %v1370
        %v1803 = vpack.c.b16 %v1375, %v1373
        %v1804 = vpack.c.b16 %v1376, %v1374
        %v1805 = vpack.c.b16 %v1379, %v1377
        %v1806 = vpack.c.b16 %v1380, %v1378
        %v1807 = vpack.c.b16 %v1383, %v1381
        %v1808 = vpack.c.b16 %v1384, %v1382
        %v1809 = vpack.c.b16 %v1387, %v1385
        %v1810 = vpack.c.b16 %v1388, %v1386
        %v1811 = vpack.c.b16 %v1391, %v1389
        %v1812 = vpack.c.b16 %v1392, %v1390
        %v1813 = vpack.c.b16 %v1395, %v1393
        %v1814 = vpack.c.b16 %v1396, %v1394
        %v1815 = vpack.c.b16 %v1399, %v1397
        %v1816 = vpack.c.b16 %v1400, %v1398
        %v1817 = vpack.c.b16 %v1403, %v1401
        %v1818 = vpack.c.b16 %v1404, %v1402
        %v1819 = vpack.c.b16 %v1407, %v1405
        %v1820 = vpack.c.b16 %v1408, %v1406
        %v1821 = vpack.c.b16 %v1411, %v1409
        %v1822 = vpack.c.b16 %v1412, %v1410
        %v1823 = vpack.c.b16 %v1415, %v1413
        %v1824 = vpack.c.b16 %v1416, %v1414
        %v1825 = vpack.c.b16 %v1419, %v1417
        %v1826 = vpack.c.b16 %v1420, %v1418
        %v1827 = vpack.c.b16 %v1423, %v1421
        %v1828 = vpack.c.b16 %v1424, %v1422
        %v1829 = vpack.c.b16 %v1427, %v1425
        %v1830 = vpack.c.b16 %v1428, %v1426
        %v1831 = vpack.c.b16 %v1431, %v1429
        %v1832 = vpack.c.b16 %v1432, %v1430
        %v1833 = vpack.c.b16 %v1435, %v1433
        %v1834 = vpack.c.b16 %v1436, %v1434
        %v1835 = vpack.c.b16 %v1439, %v1437
        %v1836 = vpack.c.b16 %v1440, %v1438
        %v1837 = vpack.c.b16 %v1443, %v1441
        %v1838 = vpack.c.b16 %v1444, %v1442
        %v1839 = vpack.c.b16 %v1447, %v1445
        %v1840 = vpack.c.b16 %v1448, %v1446
        %v1841 = vpack.c.b16 %v1451, %v1449
        %v1842 = vpack.c.b16 %v1452, %v1450
        %v1843 = vpack.c.b16 %v1455, %v1453
        %v1844 = vpack.c.b16 %v1456, %v1454
        %v1845 = vpack.c.b16 %v1459, %v1457
        %v1846 = vpack.c.b16 %v1460, %v1458
        %v1847 = vpack.c.b16 %v1463, %v1461
        %v1848 = vpack.c.b16 %v1464, %v1462
        %v1849 = vpack.c.b16 %v1467, %v1465
        %v1850 = vpack.c.b16 %v1468, %v1466
        %v1851 = vpack.c.b16 %v1471, %v1469
        %v1852 = vpack.c.b16 %v1472, %v1470
        %v1853 = vpack.c.b16 %v1475, %v1473
        %v1854 = vpack.c.b16 %v1476, %v1474
        %v1855 = vpack.c.b16 %v1479, %v1477
        %v1856 = vpack.c.b16 %v1480, %v1478
        %v1857 = vpack.c.b16 %v1483, %v1481
        %v1858 = vpack.c.b16 %v1484, %v1482
        %v1859 = vpack.c.b16 %v1487, %v1485
        %v1860 = vpack.c.b16 %v1488, %v1486
        %v1861 = vpack.c.b16 %v1491, %v1489
        %v1862 = vpack.c.b16 %v1492, %v1490
        %v1863 = vpack.c.b16 %v1495, %v1493
        %v1864 = vpack.c.b16 %v1496, %v1494
        %v1865 = vpack.c.b16 %v1499, %v1497
        %v1866 = vpack.c.b16 %v1500, %v1498
        %v1867 = vpack.c.b16 %v1503, %v1501
        %v1868 = vpack.c.b16 %v1504, %v1502
        %v1869 = vpack.c.b16 %v1507, %v1505
        %v1870 = vpack.c.b16 %v1508, %v1506
        %v1871 = vpack.c.b16 %v1511, %v1509
        %v1872 = vpack.c.b16 %v1512, %v1510
        %v1873 = vpack.c.b16 %v1515, %v1513
        %v1874 = vpack.c.b16 %v1516, %v1514
        %v1875 = vpack.c.b16 %v1519, %v1517
        %v1876 = vpack.c.b16 %v1520, %v1518
        %v1877 = vpack.c.b16 %v1523, %v1521
        %v1878 = vpack.c.b16 %v1524, %v1522
        %v1879 = vpack.c.b16 %v1527, %v1525
        %v1880 = vpack.c.b16 %v1528, %v1526
        %v1881 = vpack.c.b16 %v1531, %v1529
        %v1882 = vpack.c.b16 %v1532, %v1530
        %v1883 = vpack.c.b16 %v1535, %v1533
        %v1884 = vpack.c.b16 %v1536, %v1534
        %v1885 = vpack.c.b16 %v1539, %v1537
        %v1886 = vpack.c.b16 %v1540, %v1538
        %v1887 = vpack.c.b16 %v1543, %v1541
        %v1888 = vpack.c.b16 %v1544, %v1542
        %v1889 = vpack.c.b16 %v1547, %v1545
        %v1890 = vpack.c.b16 %v1548, %v1546
        %v1891 = vpack.c.b16 %v1551, %v1549
        %v1892 = vpack.c.b16 %v1552, %v1550
        %v1893 = vpack.c.b16 %v1555, %v1553
        %v1894 = vpack.c.b16 %v1556, %v1554
        %v1895 = vpack.c.b16 %v1559, %v1557
        %v1896 = vpack.c.b16 %v1560, %v1558
        %v1897 = vpack.c.b16 %v1563, %v1561
        %v1898 = vpack.c.b16 %v1564, %v1562
        %v1899 = vpack.c.b16 %v1567, %v1565
        %v1900 = vpack.c.b16 %v1568, %v1566
        %v1901 = vpack.c.b16 %v1571, %v1569
        %v1902 = vpack.c.b16 %v1572, %v1570
        %v1903 = vpack.c.b16 %v1575, %v1573
        %v1904 = vpack.c.b16 %v1576, %v1574
        %v1905 = vpack.c.b16 %v1579, %v1577
        %v1906 = vpack.c.b16 %v1580, %v1578
        %v1907 = vpack.c.b16 %v1583, %v1581
        %v1908 = vpack.c.b16 %v1584, %v1582
        %v1909 = vpack.c.b16 %v1587, %v1585
        %v1910 = vpack.c.b16 %v1588, %v1586
        %v1911 = vpack.c.b16 %v1591, %v1589
        %v1912 = vpack.c.b16 %v1592, %v1590
        %v1913 = vpack.c.b16 %v1595, %v1593
        %v1914 = vpack.c.b16 %v1596, %v1594
        %v1915 = vpack.c.b16 %v1599, %v1597
        %v1916 = vpack.c.b16 %v1600, %v1598
        %v1917 = vpack.c.b16 %v1603, %v1601
        %v1918 = vpack.c.b16 %v1604, %v1602
        %v1919 = vpack.c.b16 %v1607, %v1605
        %v1920 = vpack.c.b16 %v1608, %v1606
        %v1921 = vpack.c.b16 %v1611, %v1609
        %v1922 = vpack.c.b16 %v1612, %v1610
        %v1923 = vpack.c.b16 %v1615, %v1613
        %v1924 = vpack.c.b16 %v1616, %v1614
        %v1925 = vpack.c.b16 %v1619, %v1617
        %v1926 = vpack.c.b16 %v1620, %v1618
        %v1927 = vpack.c.b16 %v1623, %v1621
        %v1928 = vpack.c.b16 %v1624, %v1622
        %v1929 = vpack.c.b16 %v1627, %v1625
        %v1930 = vpack.c.b16 %v1628, %v1626
        %v1931 = vpack.c.b16 %v1631, %v1629
        %v1932 = vpack.c.b16 %v1632, %v1630
        %v1933 = vpack.c.b16 %v1635, %v1633
        %v1934 = vpack.c.b16 %v1636, %v1634
        %v1935 = vpack.c.b16 %v1639, %v1637
        %v1936 = vpack.c.b16 %v1640, %v1638
        %v1937 = vpack.c.b16 %v1643, %v1641
        %v1938 = vpack.c.b16 %v1644, %v1642
        %v1939 = vpack.c.b16 %v1647, %v1645
        %v1940 = vpack.c.b16 %v1648, %v1646
        %v1941 = vpack.c.b16 %v1651, %v1649
        %v1942 = vpack.c.b16 %v1652, %v1650
        %v1943 = vpack.c.b16 %v1655, %v1653
        %v1944 = vpack.c.b16 %v1656, %v1654
        %2233 = vmatprep.subr.bf16.mxu0 %v1658
        %2234 = vmatpush1.bf16.msra.mxu0 %v1657
        %2235 = vmatprep.subr.bf16.mxu0 %v1660
        %2236 = vmatpush1.bf16.msra.mxu0 %v1659
        %2237 = vmatprep.subr.bf16.mxu0 %v1662
        %2238 = vmatpush1.bf16.msra.mxu0 %v1661
        %2239 = vmatprep.subr.bf16.mxu0 %v1664
        %2240 = vmatpush1.bf16.msra.mxu0 %v1663
        %2241 = vmatprep.subr.bf16.mxu0 %v1666
        %2242 = vmatpush1.bf16.msra.mxu0 %v1665
        %2243 = vmatprep.subr.bf16.mxu0 %v1668
        %2244 = vmatpush1.bf16.msra.mxu0 %v1667
        %2245 = vmatprep.subr.bf16.mxu0 %v1670
        %2246 = vmatpush1.bf16.msra.mxu0 %v1669
        %2247 = vmatprep.subr.bf16.mxu0 %v1672
        %2248 = vmatpush1.bf16.msra.mxu0 %v1671
        %2249 = vmatprep.subr.bf16.mxu0 %v1674
        %2250 = vmatpush1.bf16.msra.mxu0 %v1673
        %2251 = vmatprep.subr.bf16.mxu0 %v1676
        %2252 = vmatpush1.bf16.msra.mxu0 %v1675
        %2253 = vmatprep.subr.bf16.mxu0 %v1678
        %2254 = vmatpush1.bf16.msra.mxu0 %v1677
        %2255 = vmatprep.subr.bf16.mxu0 %v1680
        %2256 = vmatpush1.bf16.msra.mxu0 %v1679
        %2257 = vmatprep.subr.bf16.mxu0 %v1682
        %2258 = vmatpush1.bf16.msra.mxu0 %v1681
        %2259 = vmatprep.subr.bf16.mxu0 %v1684
        %2260 = vmatpush1.bf16.msra.mxu0 %v1683
        %2261 = vmatprep.subr.bf16.mxu0 %v1686
        %2262 = vmatpush1.bf16.msra.mxu0 %v1685
        %2263 = vmatprep.subr.bf16.mxu0 %v1688
        %2264 = vmatpush1.bf16.msra.mxu0 %v1687
        %2265 = vmatprep.mubr.bf16.mxu0 %v722
        %2266 = vmatmul.mubr.bf16.gmra.mrb[0].mxu0 %v721
        %v2267 = vpop.f32.mrb[0].mxu0
        %v2268 = vadd.f32 0.0, %v2267
        %v2269 = vpop.f32.mrb[0].mxu0
        %v2270 = vadd.f32 0.0, %v2269
        %v2271 = vpop.f32.mrb[0].mxu0
        %v2272 = vadd.f32 0.0, %v2271
        %v2273 = vpop.f32.mrb[0].mxu0
        %v2274 = vadd.f32 0.0, %v2273
        %2275 = vmatprep.mubr.bf16.mxu0 %v740
        %2276 = vmatmul.mubr.bf16.gmra.mrb[0].mxu0 %v739
        %v2277 = vpop.f32.mrb[0].mxu0
        %v2278 = vadd.f32 0.0, %v2277
        %v2279 = vpop.f32.mrb[0].mxu0
        %v2280 = vadd.f32 0.0, %v2279
        %v2281 = vpop.f32.mrb[0].mxu0
        %v2282 = vadd.f32 0.0, %v2281
        %v2283 = vpop.f32.mrb[0].mxu0
        %v2284 = vadd.f32 0.0, %v2283
        %2285 = vdwg.mxu0
        %2286 = vmatprep.subr.bf16.mxu0 %v1690
        %2287 = vmatpush1.bf16.msra.mxu0 %v1689
        %2288 = vmatprep.subr.bf16.mxu0 %v1692
        %2289 = vmatpush1.bf16.msra.mxu0 %v1691
        %2290 = vmatprep.subr.bf16.mxu0 %v1694
        %2291 = vmatpush1.bf16.msra.mxu0 %v1693
        %2292 = vmatprep.subr.bf16.mxu0 %v1696
        %2293 = vmatpush1.bf16.msra.mxu0 %v1695
        %2294 = vmatprep.subr.bf16.mxu0 %v1698
        %2295 = vmatpush1.bf16.msra.mxu0 %v1697
        %2296 = vmatprep.subr.bf16.mxu0 %v1700
        %2297 = vmatpush1.bf16.msra.mxu0 %v1699
        %2298 = vmatprep.subr.bf16.mxu0 %v1702
        %2299 = vmatpush1.bf16.msra.mxu0 %v1701
        %2300 = vmatprep.subr.bf16.mxu0 %v1704
        %2301 = vmatpush1.bf16.msra.mxu0 %v1703
        %2302 = vmatprep.subr.bf16.mxu0 %v1706
        %2303 = vmatpush1.bf16.msra.mxu0 %v1705
        %2304 = vmatprep.subr.bf16.mxu0 %v1708
        %2305 = vmatpush1.bf16.msra.mxu0 %v1707
        %2306 = vmatprep.subr.bf16.mxu0 %v1710
        %2307 = vmatpush1.bf16.msra.mxu0 %v1709
        %2308 = vmatprep.subr.bf16.mxu0 %v1712
        %2309 = vmatpush1.bf16.msra.mxu0 %v1711
        %2310 = vmatprep.subr.bf16.mxu0 %v1714
        %2311 = vmatpush1.bf16.msra.mxu0 %v1713
        %2312 = vmatprep.subr.bf16.mxu0 %v1716
        %2313 = vmatpush1.bf16.msra.mxu0 %v1715
        %2314 = vmatprep.subr.bf16.mxu0 %v1718
        %2315 = vmatpush1.bf16.msra.mxu0 %v1717
        %2316 = vmatprep.subr.bf16.mxu0 %v1720
        %2317 = vmatpush1.bf16.msra.mxu0 %v1719
        %2318 = vmatprep.mubr.bf16.mxu0 %v724
        %2319 = vmatmul.mubr.bf16.gmra.mrb[0].mxu0 %v723
        %v2320 = vpop.f32.mrb[0].mxu0
        %v2321 = vadd.f32 %v2268, %v2320
        %v2322 = vpop.f32.mrb[0].mxu0
        %v2323 = vadd.f32 %v2270, %v2322
        %v2324 = vpop.f32.mrb[0].mxu0
        %v2325 = vadd.f32 %v2272, %v2324
        %v2326 = vpop.f32.mrb[0].mxu0
        %v2327 = vadd.f32 %v2274, %v2326
        %2328 = vmatprep.mubr.bf16.mxu0 %v742
        %2329 = vmatmul.mubr.bf16.gmra.mrb[0].mxu0 %v741
        %v2330 = vpop.f32.mrb[0].mxu0
        %v2331 = vadd.f32 %v2278, %v2330
        %v2332 = vpop.f32.mrb[0].mxu0
        %v2333 = vadd.f32 %v2280, %v2332
        %v2334 = vpop.f32.mrb[0].mxu0
        %v2335 = vadd.f32 %v2282, %v2334
        %v2336 = vpop.f32.mrb[0].mxu0
        %v2337 = vadd.f32 %v2284, %v2336
        %2338 = vdwg.mxu0
        %2339 = vmatprep.subr.bf16.mxu0 %v1722
        %2340 = vmatpush1.bf16.msra.mxu0 %v1721
        %2341 = vmatprep.subr.bf16.mxu0 %v1724
        %2342 = vmatpush1.bf16.msra.mxu0 %v1723
        %2343 = vmatprep.subr.bf16.mxu0 %v1726
        %2344 = vmatpush1.bf16.msra.mxu0 %v1725
        %2345 = vmatprep.subr.bf16.mxu0 %v1728
        %2346 = vmatpush1.bf16.msra.mxu0 %v1727
        %2347 = vmatprep.subr.bf16.mxu0 %v1730
        %2348 = vmatpush1.bf16.msra.mxu0 %v1729
        %2349 = vmatprep.subr.bf16.mxu0 %v1732
        %2350 = vmatpush1.bf16.msra.mxu0 %v1731
        %2351 = vmatprep.subr.bf16.mxu0 %v1734
        %2352 = vmatpush1.bf16.msra.mxu0 %v1733
        %2353 = vmatprep.subr.bf16.mxu0 %v1736
        %2354 = vmatpush1.bf16.msra.mxu0 %v1735
        %2355 = vmatprep.subr.bf16.mxu0 %v1738
        %2356 = vmatpush1.bf16.msra.mxu0 %v1737
        %2357 = vmatprep.subr.bf16.mxu0 %v1740
        %2358 = vmatpush1.bf16.msra.mxu0 %v1739
        %2359 = vmatprep.subr.bf16.mxu0 %v1742
        %2360 = vmatpush1.bf16.msra.mxu0 %v1741
        %2361 = vmatprep.subr.bf16.mxu0 %v1744
        %2362 = vmatpush1.bf16.msra.mxu0 %v1743
        %2363 = vmatprep.subr.bf16.mxu0 %v1746
        %2364 = vmatpush1.bf16.msra.mxu0 %v1745
        %2365 = vmatprep.subr.bf16.mxu0 %v1748
        %2366 = vmatpush1.bf16.msra.mxu0 %v1747
        %2367 = vmatprep.subr.bf16.mxu0 %v1750
        %2368 = vmatpush1.bf16.msra.mxu0 %v1749
        %2369 = vmatprep.subr.bf16.mxu0 %v1752
        %2370 = vmatpush1.bf16.msra.mxu0 %v1751
        %2371 = vmatprep.mubr.bf16.mxu0 %v726
        %2372 = vmatmul.mubr.bf16.gmra.mrb[0].mxu0 %v725
        %v2373 = vpop.f32.mrb[0].mxu0
        %v2374 = vadd.f32 %v2321, %v2373
        %v2375 = vpop.f32.mrb[0].mxu0
        %v2376 = vadd.f32 %v2323, %v2375
        %v2377 = vpop.f32.mrb[0].mxu0
        %v2378 = vadd.f32 %v2325, %v2377
        %v2379 = vpop.f32.mrb[0].mxu0
        %v2380 = vadd.f32 %v2327, %v2379
        %2381 = vmatprep.mubr.bf16.mxu0 %v744
        %2382 = vmatmul.mubr.bf16.gmra.mrb[0].mxu0 %v743
        %v2383 = vpop.f32.mrb[0].mxu0
        %v2384 = vadd.f32 %v2331, %v2383
        %v2385 = vpop.f32.mrb[0].mxu0
        %v2386 = vadd.f32 %v2333, %v2385
        %v2387 = vpop.f32.mrb[0].mxu0
        %v2388 = vadd.f32 %v2335, %v2387
        %v2389 = vpop.f32.mrb[0].mxu0
        %v2390 = vadd.f32 %v2337, %v2389
        %2391 = vdwg.mxu0
        %2392 = vmatprep.subr.bf16.mxu0 %v1754
        %2393 = vmatpush1.bf16.msra.mxu0 %v1753
        %2394 = vmatprep.subr.bf16.mxu0 %v1756
        %2395 = vmatpush1.bf16.msra.mxu0 %v1755
        %2396 = vmatprep.subr.bf16.mxu0 %v1758
        %2397 = vmatpush1.bf16.msra.mxu0 %v1757
        %2398 = vmatprep.subr.bf16.mxu0 %v1760
        %2399 = vmatpush1.bf16.msra.mxu0 %v1759
        %2400 = vmatprep.subr.bf16.mxu0 %v1762
        %2401 = vmatpush1.bf16.msra.mxu0 %v1761
        %2402 = vmatprep.subr.bf16.mxu0 %v1764
        %2403 = vmatpush1.bf16.msra.mxu0 %v1763
        %2404 = vmatprep.subr.bf16.mxu0 %v1766
        %2405 = vmatpush1.bf16.msra.mxu0 %v1765
        %2406 = vmatprep.subr.bf16.mxu0 %v1768
        %2407 = vmatpush1.bf16.msra.mxu0 %v1767
        %2408 = vmatprep.subr.bf16.mxu0 %v1770
        %2409 = vmatpush1.bf16.msra.mxu0 %v1769
        %2410 = vmatprep.subr.bf16.mxu0 %v1772
        %2411 = vmatpush1.bf16.msra.mxu0 %v1771
        %2412 = vmatprep.subr.bf16.mxu0 %v1774
        %2413 = vmatpush1.bf16.msra.mxu0 %v1773
        %2414 = vmatprep.subr.bf16.mxu0 %v1776
        %2415 = vmatpush1.bf16.msra.mxu0 %v1775
        %2416 = vmatprep.subr.bf16.mxu0 %v1778
        %2417 = vmatpush1.bf16.msra.mxu0 %v1777
        %2418 = vmatprep.subr.bf16.mxu0 %v1780
        %2419 = vmatpush1.bf16.msra.mxu0 %v1779
        %2420 = vmatprep.subr.bf16.mxu0 %v1782
        %2421 = vmatpush1.bf16.msra.mxu0 %v1781
        %2422 = vmatprep.subr.bf16.mxu0 %v1784
        %2423 = vmatpush1.bf16.msra.mxu0 %v1783
        %2424 = vmatprep.mubr.bf16.mxu0 %v728
        %2425 = vmatmul.mubr.bf16.gmra.mrb[0].mxu0 %v727
        %v2426 = vpop.f32.mrb[0].mxu0
        %v2427 = vadd.f32 %v2374, %v2426
        %v2428 = vpop.f32.mrb[0].mxu0
        %v2429 = vadd.f32 %v2376, %v2428
        %v2430 = vpop.f32.mrb[0].mxu0
        %v2431 = vadd.f32 %v2378, %v2430
        %v2432 = vpop.f32.mrb[0].mxu0
        %v2433 = vadd.f32 %v2380, %v2432
        %2434 = vmatprep.mubr.bf16.mxu0 %v746
        %2435 = vmatmul.mubr.bf16.gmra.mrb[0].mxu0 %v745
        %v2436 = vpop.f32.mrb[0].mxu0
        %v2437 = vadd.f32 %v2384, %v2436
        %v2438 = vpop.f32.mrb[0].mxu0
        %v2439 = vadd.f32 %v2386, %v2438
        %v2440 = vpop.f32.mrb[0].mxu0
        %v2441 = vadd.f32 %v2388, %v2440
        %v2442 = vpop.f32.mrb[0].mxu0
        %v2443 = vadd.f32 %v2390, %v2442
        %2444 = vdwg.mxu0
        %2445 = vmatprep.subr.bf16.mxu0 %v1786
        %2446 = vmatpush1.bf16.msra.mxu0 %v1785
        %2447 = vmatprep.subr.bf16.mxu0 %v1788
        %2448 = vmatpush1.bf16.msra.mxu0 %v1787
        %2449 = vmatprep.subr.bf16.mxu0 %v1790
        %2450 = vmatpush1.bf16.msra.mxu0 %v1789
        %2451 = vmatprep.subr.bf16.mxu0 %v1792
        %2452 = vmatpush1.bf16.msra.mxu0 %v1791
        %2453 = vmatprep.subr.bf16.mxu0 %v1794
        %2454 = vmatpush1.bf16.msra.mxu0 %v1793
        %2455 = vmatprep.subr.bf16.mxu0 %v1796
        %2456 = vmatpush1.bf16.msra.mxu0 %v1795
        %2457 = vmatprep.subr.bf16.mxu0 %v1798
        %2458 = vmatpush1.bf16.msra.mxu0 %v1797
        %2459 = vmatprep.subr.bf16.mxu0 %v1800
        %2460 = vmatpush1.bf16.msra.mxu0 %v1799
        %2461 = vmatprep.subr.bf16.mxu0 %v1802
        %2462 = vmatpush1.bf16.msra.mxu0 %v1801
        %2463 = vmatprep.subr.bf16.mxu0 %v1804
        %2464 = vmatpush1.bf16.msra.mxu0 %v1803
        %2465 = vmatprep.subr.bf16.mxu0 %v1806
        %2466 = vmatpush1.bf16.msra.mxu0 %v1805
        %2467 = vmatprep.subr.bf16.mxu0 %v1808
        %2468 = vmatpush1.bf16.msra.mxu0 %v1807
        %2469 = vmatprep.subr.bf16.mxu0 %v1810
        %2470 = vmatpush1.bf16.msra.mxu0 %v1809
        %2471 = vmatprep.subr.bf16.mxu0 %v1812
        %2472 = vmatpush1.bf16.msra.mxu0 %v1811
        %2473 = vmatprep.subr.bf16.mxu0 %v1814
        %2474 = vmatpush1.bf16.msra.mxu0 %v1813
        %2475 = vmatprep.subr.bf16.mxu0 %v1816
        %2476 = vmatpush1.bf16.msra.mxu0 %v1815
        %2477 = vmatprep.mubr.bf16.mxu0 %v730
        %2478 = vmatmul.mubr.bf16.gmra.mrb[0].mxu0 %v729
        %v2479 = vpop.f32.mrb[0].mxu0
        %v2480 = vadd.f32 %v2427, %v2479
        %v2481 = vpop.f32.mrb[0].mxu0
        %v2482 = vadd.f32 %v2429, %v2481
        %v2483 = vpop.f32.mrb[0].mxu0
        %v2484 = vadd.f32 %v2431, %v2483
        %v2485 = vpop.f32.mrb[0].mxu0
        %v2486 = vadd.f32 %v2433, %v2485
        %2487 = vmatprep.mubr.bf16.mxu0 %v748
        %2488 = vmatmul.mubr.bf16.gmra.mrb[0].mxu0 %v747
        %v2489 = vpop.f32.mrb[0].mxu0
        %v2490 = vadd.f32 %v2437, %v2489
        %v2491 = vpop.f32.mrb[0].mxu0
        %v2492 = vadd.f32 %v2439, %v2491
        %v2493 = vpop.f32.mrb[0].mxu0
        %v2494 = vadd.f32 %v2441, %v2493
        %v2495 = vpop.f32.mrb[0].mxu0
        %v2496 = vadd.f32 %v2443, %v2495
        %2497 = vdwg.mxu0
        %2498 = vmatprep.subr.bf16.mxu0 %v1818
        %2499 = vmatpush1.bf16.msra.mxu0 %v1817
        %2500 = vmatprep.subr.bf16.mxu0 %v1820
        %2501 = vmatpush1.bf16.msra.mxu0 %v1819
        %2502 = vmatprep.subr.bf16.mxu0 %v1822
        %2503 = vmatpush1.bf16.msra.mxu0 %v1821
        %2504 = vmatprep.subr.bf16.mxu0 %v1824
        %2505 = vmatpush1.bf16.msra.mxu0 %v1823
        %2506 = vmatprep.subr.bf16.mxu0 %v1826
        %2507 = vmatpush1.bf16.msra.mxu0 %v1825
        %2508 = vmatprep.subr.bf16.mxu0 %v1828
        %2509 = vmatpush1.bf16.msra.mxu0 %v1827
        %2510 = vmatprep.subr.bf16.mxu0 %v1830
        %2511 = vmatpush1.bf16.msra.mxu0 %v1829
        %2512 = vmatprep.subr.bf16.mxu0 %v1832
        %2513 = vmatpush1.bf16.msra.mxu0 %v1831
        %2514 = vmatprep.subr.bf16.mxu0 %v1834
        %2515 = vmatpush1.bf16.msra.mxu0 %v1833
        %2516 = vmatprep.subr.bf16.mxu0 %v1836
        %2517 = vmatpush1.bf16.msra.mxu0 %v1835
        %2518 = vmatprep.subr.bf16.mxu0 %v1838
        %2519 = vmatpush1.bf16.msra.mxu0 %v1837
        %2520 = vmatprep.subr.bf16.mxu0 %v1840
        %2521 = vmatpush1.bf16.msra.mxu0 %v1839
        %2522 = vmatprep.subr.bf16.mxu0 %v1842
        %2523 = vmatpush1.bf16.msra.mxu0 %v1841
        %2524 = vmatprep.subr.bf16.mxu0 %v1844
        %2525 = vmatpush1.bf16.msra.mxu0 %v1843
        %2526 = vmatprep.subr.bf16.mxu0 %v1846
        %2527 = vmatpush1.bf16.msra.mxu0 %v1845
        %2528 = vmatprep.subr.bf16.mxu0 %v1848
        %2529 = vmatpush1.bf16.msra.mxu0 %v1847
        %2530 = vmatprep.mubr.bf16.mxu0 %v732
        %2531 = vmatmul.mubr.bf16.gmra.mrb[0].mxu0 %v731
        %v2532 = vpop.f32.mrb[0].mxu0
        %v2533 = vadd.f32 %v2480, %v2532
        %v2534 = vpop.f32.mrb[0].mxu0
        %v2535 = vadd.f32 %v2482, %v2534
        %v2536 = vpop.f32.mrb[0].mxu0
        %v2537 = vadd.f32 %v2484, %v2536
        %v2538 = vpop.f32.mrb[0].mxu0
        %v2539 = vadd.f32 %v2486, %v2538
        %2540 = vmatprep.mubr.bf16.mxu0 %v750
        %2541 = vmatmul.mubr.bf16.gmra.mrb[0].mxu0 %v749
        %v2542 = vpop.f32.mrb[0].mxu0
        %v2543 = vadd.f32 %v2490, %v2542
        %v2544 = vpop.f32.mrb[0].mxu0
        %v2545 = vadd.f32 %v2492, %v2544
        %v2546 = vpop.f32.mrb[0].mxu0
        %v2547 = vadd.f32 %v2494, %v2546
        %v2548 = vpop.f32.mrb[0].mxu0
        %v2549 = vadd.f32 %v2496, %v2548
        %2550 = vdwg.mxu0
        %2551 = vmatprep.subr.bf16.mxu0 %v1850
        %2552 = vmatpush1.bf16.msra.mxu0 %v1849
        %2553 = vmatprep.subr.bf16.mxu0 %v1852
        %2554 = vmatpush1.bf16.msra.mxu0 %v1851
        %2555 = vmatprep.subr.bf16.mxu0 %v1854
        %2556 = vmatpush1.bf16.msra.mxu0 %v1853
        %2557 = vmatprep.subr.bf16.mxu0 %v1856
        %2558 = vmatpush1.bf16.msra.mxu0 %v1855
        %2559 = vmatprep.subr.bf16.mxu0 %v1858
        %2560 = vmatpush1.bf16.msra.mxu0 %v1857
        %2561 = vmatprep.subr.bf16.mxu0 %v1860
        %2562 = vmatpush1.bf16.msra.mxu0 %v1859
        %2563 = vmatprep.subr.bf16.mxu0 %v1862
        %2564 = vmatpush1.bf16.msra.mxu0 %v1861
        %2565 = vmatprep.subr.bf16.mxu0 %v1864
        %2566 = vmatpush1.bf16.msra.mxu0 %v1863
        %2567 = vmatprep.subr.bf16.mxu0 %v1866
        %2568 = vmatpush1.bf16.msra.mxu0 %v1865
        %2569 = vmatprep.subr.bf16.mxu0 %v1868
        %2570 = vmatpush1.bf16.msra.mxu0 %v1867
        %2571 = vmatprep.subr.bf16.mxu0 %v1870
        %2572 = vmatpush1.bf16.msra.mxu0 %v1869
        %2573 = vmatprep.subr.bf16.mxu0 %v1872
        %2574 = vmatpush1.bf16.msra.mxu0 %v1871
        %2575 = vmatprep.subr.bf16.mxu0 %v1874
        %2576 = vmatpush1.bf16.msra.mxu0 %v1873
        %2577 = vmatprep.subr.bf16.mxu0 %v1876
        %2578 = vmatpush1.bf16.msra.mxu0 %v1875
        %2579 = vmatprep.subr.bf16.mxu0 %v1878
        %2580 = vmatpush1.bf16.msra.mxu0 %v1877
        %2581 = vmatprep.subr.bf16.mxu0 %v1880
        %2582 = vmatpush1.bf16.msra.mxu0 %v1879
        %2583 = vmatprep.mubr.bf16.mxu0 %v734
        %2584 = vmatmul.mubr.bf16.gmra.mrb[0].mxu0 %v733
        %v2585 = vpop.f32.mrb[0].mxu0
        %v2586 = vadd.f32 %v2533, %v2585
        %v2587 = vpop.f32.mrb[0].mxu0
        %v2588 = vadd.f32 %v2535, %v2587
        %v2589 = vpop.f32.mrb[0].mxu0
        %v2590 = vadd.f32 %v2537, %v2589
        %v2591 = vpop.f32.mrb[0].mxu0
        %v2592 = vadd.f32 %v2539, %v2591
        %2593 = vmatprep.mubr.bf16.mxu0 %v752
        %2594 = vmatmul.mubr.bf16.gmra.mrb[0].mxu0 %v751
        %v2595 = vpop.f32.mrb[0].mxu0
        %v2596 = vadd.f32 %v2543, %v2595
        %v2597 = vpop.f32.mrb[0].mxu0
        %v2598 = vadd.f32 %v2545, %v2597
        %v2599 = vpop.f32.mrb[0].mxu0
        %v2600 = vadd.f32 %v2547, %v2599
        %v2601 = vpop.f32.mrb[0].mxu0
        %v2602 = vadd.f32 %v2549, %v2601
        %2603 = vdwg.mxu0
        %2604 = vmatprep.subr.bf16.mxu0 %v1882
        %2605 = vmatpush1.bf16.msra.mxu0 %v1881
        %2606 = vmatprep.subr.bf16.mxu0 %v1884
        %2607 = vmatpush1.bf16.msra.mxu0 %v1883
        %2608 = vmatprep.subr.bf16.mxu0 %v1886
        %2609 = vmatpush1.bf16.msra.mxu0 %v1885
        %2610 = vmatprep.subr.bf16.mxu0 %v1888
        %2611 = vmatpush1.bf16.msra.mxu0 %v1887
        %2612 = vmatprep.subr.bf16.mxu0 %v1890
        %2613 = vmatpush1.bf16.msra.mxu0 %v1889
        %2614 = vmatprep.subr.bf16.mxu0 %v1892
        %2615 = vmatpush1.bf16.msra.mxu0 %v1891
        %2616 = vmatprep.subr.bf16.mxu0 %v1894
        %2617 = vmatpush1.bf16.msra.mxu0 %v1893
        %2618 = vmatprep.subr.bf16.mxu0 %v1896
        %2619 = vmatpush1.bf16.msra.mxu0 %v1895
        %2620 = vmatprep.subr.bf16.mxu0 %v1898
        %2621 = vmatpush1.bf16.msra.mxu0 %v1897
        %2622 = vmatprep.subr.bf16.mxu0 %v1900
        %2623 = vmatpush1.bf16.msra.mxu0 %v1899
        %2624 = vmatprep.subr.bf16.mxu0 %v1902
        %2625 = vmatpush1.bf16.msra.mxu0 %v1901
        %2626 = vmatprep.subr.bf16.mxu0 %v1904
        %2627 = vmatpush1.bf16.msra.mxu0 %v1903
        %2628 = vmatprep.subr.bf16.mxu0 %v1906
        %2629 = vmatpush1.bf16.msra.mxu0 %v1905
        %2630 = vmatprep.subr.bf16.mxu0 %v1908
        %2631 = vmatpush1.bf16.msra.mxu0 %v1907
        %2632 = vmatprep.subr.bf16.mxu0 %v1910
        %2633 = vmatpush1.bf16.msra.mxu0 %v1909
        %2634 = vmatprep.subr.bf16.mxu0 %v1912
        %2635 = vmatpush1.bf16.msra.mxu0 %v1911
        %2636 = vmatprep.mubr.bf16.mxu0 %v736
        %2637 = vmatmul.mubr.bf16.gmra.mrb[0].mxu0 %v735
        %v2638 = vpop.f32.mrb[0].mxu0
        %v2639 = vadd.f32 %v2586, %v2638
        %v2640 = vpop.f32.mrb[0].mxu0
        %v2641 = vadd.f32 %v2588, %v2640
        %v2642 = vpop.f32.mrb[0].mxu0
        %v2643 = vadd.f32 %v2590, %v2642
        %v2644 = vpop.f32.mrb[0].mxu0
        %v2645 = vadd.f32 %v2592, %v2644
        %2646 = vmatprep.mubr.bf16.mxu0 %v754
        %2647 = vmatmul.mubr.bf16.gmra.mrb[0].mxu0 %v753
        %v2648 = vpop.f32.mrb[0].mxu0
        %v2649 = vadd.f32 %v2596, %v2648
        %v2650 = vpop.f32.mrb[0].mxu0
        %v2651 = vadd.f32 %v2598, %v2650
        %v2652 = vpop.f32.mrb[0].mxu0
        %v2653 = vadd.f32 %v2600, %v2652
        %v2654 = vpop.f32.mrb[0].mxu0
        %v2655 = vadd.f32 %v2602, %v2654
        %2656 = vdwg.mxu0
        %2657 = vmatprep.subr.bf16.mxu0 %v1914
        %2658 = vmatpush1.bf16.msra.mxu0 %v1913
        %2659 = vmatprep.subr.bf16.mxu0 %v1916
        %2660 = vmatpush1.bf16.msra.mxu0 %v1915
        %2661 = vmatprep.subr.bf16.mxu0 %v1918
        %2662 = vmatpush1.bf16.msra.mxu0 %v1917
        %2663 = vmatprep.subr.bf16.mxu0 %v1920
        %2664 = vmatpush1.bf16.msra.mxu0 %v1919
        %2665 = vmatprep.subr.bf16.mxu0 %v1922
        %2666 = vmatpush1.bf16.msra.mxu0 %v1921
        %2667 = vmatprep.subr.bf16.mxu0 %v1924
        %2668 = vmatpush1.bf16.msra.mxu0 %v1923
        %2669 = vmatprep.subr.bf16.mxu0 %v1926
        %2670 = vmatpush1.bf16.msra.mxu0 %v1925
        %2671 = vmatprep.subr.bf16.mxu0 %v1928
        %2672 = vmatpush1.bf16.msra.mxu0 %v1927
        %2673 = vmatprep.subr.bf16.mxu0 %v1930
        %2674 = vmatpush1.bf16.msra.mxu0 %v1929
        %2675 = vmatprep.subr.bf16.mxu0 %v1932
        %2676 = vmatpush1.bf16.msra.mxu0 %v1931
        %2677 = vmatprep.subr.bf16.mxu0 %v1934
        %2678 = vmatpush1.bf16.msra.mxu0 %v1933
        %2679 = vmatprep.subr.bf16.mxu0 %v1936
        %2680 = vmatpush1.bf16.msra.mxu0 %v1935
        %2681 = vmatprep.subr.bf16.mxu0 %v1938
        %2682 = vmatpush1.bf16.msra.mxu0 %v1937
        %2683 = vmatprep.subr.bf16.mxu0 %v1940
        %2684 = vmatpush1.bf16.msra.mxu0 %v1939
        %2685 = vmatprep.subr.bf16.mxu0 %v1942
        %2686 = vmatpush1.bf16.msra.mxu0 %v1941
        %2687 = vmatprep.subr.bf16.mxu0 %v1944
        %2688 = vmatpush1.bf16.msra.mxu0 %v1943
        %2689 = vmatprep.mubr.bf16.mxu0 %v738
        %2690 = vmatmul.mubr.bf16.gmra.mrb[0].mxu0 %v737
        %v2691 = vpop.f32.mrb[0].mxu0
        %v2692 = vadd.f32 %v2639, %v2691
        %v2693 = vpop.f32.mrb[0].mxu0
        %v2694 = vadd.f32 %v2641, %v2693
        %v2695 = vpop.f32.mrb[0].mxu0
        %v2696 = vadd.f32 %v2643, %v2695
        %v2697 = vpop.f32.mrb[0].mxu0
        %v2698 = vadd.f32 %v2645, %v2697
        %2699 = vmatprep.mubr.bf16.mxu0 %v756
        %2700 = vmatmul.mubr.bf16.gmra.mrb[0].mxu0 %v755
        %v2701 = vpop.f32.mrb[0].mxu0
        %v2702 = vadd.f32 %v2649, %v2701
        %v2703 = vpop.f32.mrb[0].mxu0
        %v2704 = vadd.f32 %v2651, %v2703
        %v2705 = vpop.f32.mrb[0].mxu0
        %v2706 = vadd.f32 %v2653, %v2705
        %v2707 = vpop.f32.mrb[0].mxu0
        %v2708 = vadd.f32 %v2655, %v2707
        %2709 = vdwg.mxu0
        %v2710 = vld [vmem:[%s242] sm:$0x3]
        %v2712 = vlaneseq
        %v2713 = vshrl.u32 %v2712, 7
        %v2714 = vsub.s32 0, %v2713
        %v2715 = vrot.slane %v2710, %v2714
        %v2716 = vlaneseq
        %v2717 = vshrl.u32 %v2716, 7
        %v2718 = vsub.s32 1, %v2717
        %v2719 = vrot.slane %v2710, %v2718
        %v2722 = vmul.f32 %v2692, %v2715
        %v2723 = vmul.f32 %v2694, %v2719
        %v2724 = vmul.f32 %v2696, %v2715
        %v2725 = vmul.f32 %v2698, %v2719
        %v2726 = vmul.f32 %v2702, %v2715
        %v2727 = vmul.f32 %v2704, %v2719
        %v2728 = vmul.f32 %v2706, %v2715
        %v2729 = vmul.f32 %v2708, %v2719
        %v2730 = vld [vmem:[%s251] sm:$0x3]
        %v2732 = vlaneseq
        %v2733 = vshrl.u32 %v2732, 7
        %v2734 = vsub.s32 0, %v2733
        %v2735 = vrot.slane %v2730, %v2734
        %v2736 = vlaneseq
        %v2737 = vshrl.u32 %v2736, 7
        %v2738 = vsub.s32 1, %v2737
        %v2739 = vrot.slane %v2730, %v2738
        %v2742 = vadd.f32 %v2722, %v2735
        %v2743 = vadd.f32 %v2723, %v2739
        %v2744 = vadd.f32 %v2724, %v2735
        %v2745 = vadd.f32 %v2725, %v2739
        %v2746 = vadd.f32 %v2726, %v2735
        %v2747 = vadd.f32 %v2727, %v2739
        %v2748 = vadd.f32 %v2728, %v2735
        %v2749 = vadd.f32 %v2729, %v2739
        %vm2750 = vcmp.gt.f32.partialorder %v2742, 0.0
        %vm2751 = vcmp.gt.f32.partialorder %v2743, 0.0
        %vm2752 = vcmp.gt.f32.partialorder %v2744, 0.0
        %vm2753 = vcmp.gt.f32.partialorder %v2745, 0.0
        %vm2754 = vcmp.gt.f32.partialorder %v2746, 0.0
        %vm2755 = vcmp.gt.f32.partialorder %v2747, 0.0
        %vm2756 = vcmp.gt.f32.partialorder %v2748, 0.0
        %vm2757 = vcmp.gt.f32.partialorder %v2749, 0.0
        %v2758 = vmul.f32 %v2742, 0.2
        %v2759 = vmul.f32 %v2743, 0.2
        %v2760 = vmul.f32 %v2744, 0.2
        %v2761 = vmul.f32 %v2745, 0.2
        %v2762 = vmul.f32 %v2746, 0.2
        %v2763 = vmul.f32 %v2747, 0.2
        %v2764 = vmul.f32 %v2748, 0.2
        %v2765 = vmul.f32 %v2749, 0.2
        %v2766 = vsel %vm2750, %v2742, %v2758
        %v2767 = vsel %vm2751, %v2743, %v2759
        %v2768 = vsel %vm2752, %v2744, %v2760
        %v2769 = vsel %vm2753, %v2745, %v2761
        %v2770 = vsel %vm2754, %v2746, %v2762
        %v2771 = vsel %vm2755, %v2747, %v2763
        %v2772 = vsel %vm2756, %v2748, %v2764
        %v2773 = vsel %vm2757, %v2749, %v2765
        %v2774 = vpack.c.bf16 %v2768, %v2766
        %v2775 = vpack.c.bf16 %v2769, %v2767
        %v2776 = vpack.c.bf16 %v2772, %v2770
        %v2777 = vpack.c.bf16 %v2773, %v2771
        %v2782 = vunpack.c.l.b16 %v2774
        %v2783 = vunpack.c.l.b16 %v2775
        %v2784 = vunpack.c.h.b16 %v2774
        %v2785 = vunpack.c.h.b16 %v2775
        %v2786 = vunpack.c.l.b16 %v2776
        %v2787 = vunpack.c.l.b16 %v2777
        %v2788 = vunpack.c.h.b16 %v2776
        %v2789 = vunpack.c.h.b16 %v2777
        %v2790 = vpack.c.b16 %v2783, %v2782
        %v2791 = vpack.c.b16 %v2785, %v2784
        %v2792 = vpack.c.b16 %v2787, %v2786
        %v2793 = vpack.c.b16 %v2789, %v2788
        %2798 = vst [vmem:[%s284] sm:$0xff] %v2790
        %2799 = vst [vmem:[%s284 + $0x8] sm:$0xff] %v2791
        %2800 = vst [vmem:[%s284 + $0x10] sm:$0xff] %v2792
        %2801 = vst [vmem:[%s284 + $0x18] sm:$0xff] %v2793
        %s2802 = sand.u32 %s128, 1
        %s2803 = sand.u32 %s128, 1
        %s2804 = smul.addr %s2803, 32
        %s2805 = scalar_lea.vmem [#allocation7], %s2804
        // Predicated region
        $region49: #{discriminator_forward.9} parent=35 // pred_check
          %p2806 = pneg %p138
        $region50: #{discriminator_forward.9} parent=35 // pred_check_branch
          %2808 = sbr.rel (%p2806) target = $region52
        $region51: #{discriminator_forward.9} parent=35 // pred_region
          %s2809 = smul.u32 2, %s21
          %s2810 = smul.addr %s2809, 4
          %s2811 = scalar_lea.vmem %s4, %s2810
          // Predicated region
          $region53: #{discriminator_forward.9} parent=51 // pred_check
            _
          $region54: #{discriminator_forward.9} parent=51 // pred_check_branch
            %2813 = sbr.rel (0) target = $region56
          $region55: #{discriminator_forward.9} parent=51 // pred_region
            // Predicated region
            $region57: #{discriminator_forward.9} parent=55 // pred_check
              _
            $region58: #{discriminator_forward.9} parent=55 // pred_check_branch
              %2815 = sbr.rel (0) target = $region60
            $region59: #{discriminator_forward.9} parent=55 // pred_region
              // Predicated region
              $region72: #{discriminator_forward.9} parent=59 // pred_check
                _
              $region73: #{discriminator_forward.9} parent=59 // pred_check_branch
                %2836 = sbr.rel (0) target = $region75
              $region74: #{discriminator_forward.9} parent=59 // pred_region
                loop: start=0, step=1, limit=1
                $region76: #{discriminator_forward.9} parent=74 // loop_pre_header
                  _
                $region77: #{discriminator_forward.9} parent=74 // loop_header
                  %s2838 = sphi 0, %s2842
                  %p2839 = scmp.ge.s32.totalorder %s2838, 1
                  %s2843 = sphi %s2805, %s2805
                  %s2844 = sphi %s2811, %s2811
                $region78: #{discriminator_forward.9} parent=74 // loop_header_branch
                  %2841 = sbr.rel (%p2839) target = $region82
                $region79: #{discriminator_forward.9} parent=74 // loop_body
                  %v2845 = vld [vmem:[%s2843] sm:$0xff]
                  %2846 = vst [vmem:[%s2844] sm:$0xff] %v2845
                  %v2847 = vld [vmem:[%s2843 + $0x8] sm:$0xff]
                  %2848 = vst [vmem:[%s2844 + $0x10] sm:$0xff] %v2847
                  %v2849 = vld [vmem:[%s2843 + $0x10] sm:$0xff]
                  %2850 = vst [vmem:[%s2844 + $0x20] sm:$0xff] %v2849
                  %v2851 = vld [vmem:[%s2843 + $0x18] sm:$0xff]
                  %2852 = vst [vmem:[%s2844 + $0x30] sm:$0xff] %v2851
                $region80: #{discriminator_forward.9} parent=74 // loop_footer
                  %s2842 = sadd.s32 1, %s2838
                $region81: #{discriminator_forward.9} parent=74 // loop_footer_branch
                  %2837 = sbr.rel target = $region77
                $region82: #{discriminator_forward.9} parent=74 // loop_exit
                  _
              $region75: #{discriminator_forward.9} parent=59 // pred_fallthru
                _
              // Predicated region
              $region83: #{discriminator_forward.9} parent=59 // pred_check
                _
              $region84: #{discriminator_forward.9} parent=59 // pred_check_branch
                %2854 = sbr.rel target = $region86
              $region85: #{discriminator_forward.9} parent=59 // pred_region
                _
              $region86: #{discriminator_forward.9} parent=59 // pred_fallthru
                _
            $region60: #{discriminator_forward.9} parent=55 // pred_fallthru
              _
            // Predicated region
            $region61: #{discriminator_forward.9} parent=55 // pred_check
              _
            $region62: #{discriminator_forward.9} parent=55 // pred_check_branch
              %2817 = sbr.rel target = $region64
            $region63: #{discriminator_forward.9} parent=55 // pred_region
              loop: start=0, step=1, limit=1
              $region65: #{discriminator_forward.9} parent=63 // loop_pre_header
                _
              $region66: #{discriminator_forward.9} parent=63 // loop_header
                %s2820 = sphi 0, %s2824
                %p2821 = scmp.ge.s32.totalorder %s2820, 1
                %s2825 = sphi %s2805, %s2805
                %s2826 = sphi %s2811, %s2811
              $region67: #{discriminator_forward.9} parent=63 // loop_header_branch
                %2823 = sbr.rel (%p2821) target = $region71
              $region68: #{discriminator_forward.9} parent=63 // loop_body
                %v2827 = vld [vmem:[%s2825] sm:$0xff]
                %2828 = vst [vmem:[%s2826] sm:$0xff] %v2827
                %v2829 = vld [vmem:[%s2825 + $0x8] sm:$0xff]
                %2830 = vst [vmem:[%s2826 + $0x10] sm:$0xff] %v2829
                %v2831 = vld [vmem:[%s2825 + $0x10] sm:$0xff]
                %2832 = vst [vmem:[%s2826 + $0x20] sm:$0xff] %v2831
                %v2833 = vld [vmem:[%s2825 + $0x18] sm:$0xff]
                %2834 = vst [vmem:[%s2826 + $0x30] sm:$0xff] %v2833
              $region69: #{discriminator_forward.9} parent=63 // loop_footer
                %s2824 = sadd.s32 1, %s2820
              $region70: #{discriminator_forward.9} parent=63 // loop_footer_branch
                %2819 = sbr.rel target = $region66
              $region71: #{discriminator_forward.9} parent=63 // loop_exit
                _
            $region64: #{discriminator_forward.9} parent=55 // pred_fallthru
              _
          $region56: #{discriminator_forward.9} parent=51 // pred_fallthru
            _
          %2855 = vnop
        $region52: #{discriminator_forward.9} parent=35 // pred_fallthru
          _
      $region36: #{discriminator_forward.9} parent=5 // pred_fallthru
        _
      %p2856 = scmp.le.s32.totalorder 2, %s16
      // Predicated region
      $region87: #{discriminator_forward.9} parent=5 // pred_check
        %p2857 = pneg %p2856
      $region88: #{discriminator_forward.9} parent=5 // pred_check_branch
        %2859 = sbr.rel (%p2857) target = $region90
      $region89: #{discriminator_forward.9} parent=5 // pred_region
        %s2860 = ssub.s32 %s16, 2
        // Predicated region
        $region91: #{discriminator_forward.9} parent=89 // pred_check
          %p2861 = pneg %p144
        $region92: #{discriminator_forward.9} parent=89 // pred_check_branch
          %2863 = sbr.rel (%p2861) target = $region94
        $region93: #{discriminator_forward.9} parent=89 // pred_region
          %s2864 = sand.u32 %s129, 1
          %s2865 = sand.u32 %s129, 1
          %s2866 = smul.addr %s2865, 32
          %s2867 = scalar_lea.vmem [#allocation7], %s2866
        $region94: #{discriminator_forward.9} parent=89 // pred_fallthru
          _
      $region90: #{discriminator_forward.9} parent=5 // pred_fallthru
        _
    $region6: #{discriminator_forward.9} parent=1 // loop_footer
      %s20 = sadd.s32 1, %s16
    $region7: #{discriminator_forward.9} parent=1 // loop_footer_branch
      %15 = sbr.rel target = $region3
    $region8: #{discriminator_forward.9} parent=1 // loop_exit
      _
    %2868 = vsyncpa [#allocation3], 1
    %s2869 = scalar_lea.sflag [#allocation3], 1
    %2870 = vsyncpa %s2869, 1
    %2871 = vsyncpa [#allocation5], 1
    %s2872 = scalar_lea.sflag [#allocation5], 1
    %2873 = vsyncpa %s2872, 1

// kernel: discriminator_forward.8
$region0: #{discriminator_forward.8}
  #allocation0 [shape = 'u32[]', space=smem, size = 0x4, offset = 0x4, fixed_abs, tag = 'smem constant byte address 0x4 - core index']
  #allocation1 [shape = 'u32[144,128]{1,0:T(1,128)}', space=vmem, size = 0x12000, scoped, tag = 'internal scratch']
  %s0 = inlined_call_operand.vmem [shape: bf16[32,2048], index: 0, kind: input, shape index: {}]
  %s1 = inlined_call_operand.hbm [shape: bf16[2048,256], index: 1, kind: input, shape index: {}]
  %s2 = inlined_call_operand.hbm [shape: f32[1,256], index: 2, kind: input, shape index: {}]
  %s3 = inlined_call_operand.hbm [shape: f32[1,256], index: 3, kind: input, shape index: {}]
  %s4 = inlined_call_operand.vmem [shape: bf16[32,256], index: 4, kind: output, shape index: {}]
  %s5 = sld [smem:[#allocation0]]
  $region38: #{discriminator_forward.8} parent=0
    _
  %s7 = ssub.s32 1, %s5
  %s8 = scalar_select 0, %s7, %s5
  $region1: #{discriminator_forward.8} parent=0
    #allocation2 [shape = 'u8[1048576]{0}', space=vmem, size = 0x100000, scoped, tag = 'input window, operand 1, single buffered']
    #allocation3 [shape = 's32[1]{0}', space=sflag, size = 0x4, scoped, tag = 'scoped memory for discriminator_forward.8']
    #allocation4 [shape = 'u8[1024]{0}', space=vmem, size = 0x400, scoped, tag = 'input window, operand 2, single buffered']
    #allocation5 [shape = 's32[1]{0}', space=sflag, size = 0x4, scoped, tag = 'scoped memory for discriminator_forward.8']
    #allocation6 [shape = 'u8[1024]{0}', space=vmem, size = 0x400, scoped, tag = 'input window, operand 3, single buffered']
    %9 = vsyncpa [#allocation3], 0
    %10 = vsyncpa [#allocation5], 0
    // Predicated region
    $region2: #{discriminator_forward.8} parent=1 // pred_check
      _
    $region3: #{discriminator_forward.8} parent=1 // pred_check_branch
      %12 = sbr.rel (0) target = $region5
    $region4: #{discriminator_forward.8} parent=1 // pred_region
      _
    $region5: #{discriminator_forward.8} parent=1 // pred_fallthru
      _
    // Predicated region
    $region6: #{discriminator_forward.8} parent=1 // pred_check
      _
    $region7: #{discriminator_forward.8} parent=1 // pred_check_branch
      %14 = sbr.rel (0) target = $region9
    $region8: #{discriminator_forward.8} parent=1 // pred_region
      %s16 = ssub.s32 32768, 32768
      %17 = vsyncadd [#allocation3], %s16
      %s18 = sshll.u32 [#allocation2], 4
      %s19 = int_to_ptr.vmem [resolvable:$true] %s18
      %24 = dma.hbm_to_vmem [thread:$0]  %s1, 32768, %s19, [#allocation3], 128, 128, 8
    $region9: #{discriminator_forward.8} parent=1 // pred_fallthru
      _
    // Predicated region
    $region10: #{discriminator_forward.8} parent=1 // pred_check
      _
    $region11: #{discriminator_forward.8} parent=1 // pred_check_branch
      %26 = sbr.rel (0) target = $region13
    $region12: #{discriminator_forward.8} parent=1 // pred_region
      %s28 = ssub.s32 32, 32
      %29 = vsyncadd [#allocation5], %s28
      %s31 = sshll.u32 [#allocation4], 4
      %s32 = int_to_ptr.vmem [resolvable:$true] %s31
      %34 = dma.hbm_to_vmem [thread:$0]  %s2, 32, %s32, [#allocation5]
    $region13: #{discriminator_forward.8} parent=1 // pred_fallthru
      _
    // Predicated region
    $region14: #{discriminator_forward.8} parent=1 // pred_check
      _
    $region15: #{discriminator_forward.8} parent=1 // pred_check_branch
      %36 = sbr.rel (0) target = $region17
    $region16: #{discriminator_forward.8} parent=1 // pred_region
      %s38 = ssub.s32 32, 32
      %39 = vsyncadd [#allocation5], %s38
      %s41 = sshll.u32 [#allocation6], 4
      %s42 = int_to_ptr.vmem [resolvable:$true] %s41
      %44 = dma.hbm_to_vmem [thread:$0]  %s3, 32, %s42, [#allocation5]
    $region17: #{discriminator_forward.8} parent=1 // pred_fallthru
      _
    // Predicated region
    $region18: #{discriminator_forward.8} parent=1 // pred_check
      _
    $region19: #{discriminator_forward.8} parent=1 // pred_check_branch
      %46 = sbr.rel (0) target = $region21
    $region20: #{discriminator_forward.8} parent=1 // pred_region
      %47 = dma.done [#allocation3], 32768
    $region21: #{discriminator_forward.8} parent=1 // pred_fallthru
      _
    // Predicated region
    $region22: #{discriminator_forward.8} parent=1 // pred_check
      _
    $region23: #{discriminator_forward.8} parent=1 // pred_check_branch
      %49 = sbr.rel (0) target = $region25
    $region24: #{discriminator_forward.8} parent=1 // pred_region
      %50 = dma.done [#allocation5], 32
    $region25: #{discriminator_forward.8} parent=1 // pred_fallthru
      _
    // Predicated region
    $region26: #{discriminator_forward.8} parent=1 // pred_check
      _
    $region27: #{discriminator_forward.8} parent=1 // pred_check_branch
      %52 = sbr.rel (0) target = $region29
    $region28: #{discriminator_forward.8} parent=1 // pred_region
      %53 = dma.done [#allocation5], 32
    $region29: #{discriminator_forward.8} parent=1 // pred_fallthru
      _
    %v54 = vld [vmem:[%s0] sm:$0xff]
    %v55 = vld [vmem:[%s0 + $0x8] sm:$0xff]
    %v56 = vld [vmem:[%s0 + $0x10] sm:$0xff]
    %v57 = vld [vmem:[%s0 + $0x18] sm:$0xff]
    %v58 = vld [vmem:[%s0 + $0x20] sm:$0xff]
    %v59 = vld [vmem:[%s0 + $0x28] sm:$0xff]
    %v60 = vld [vmem:[%s0 + $0x30] sm:$0xff]
    %v61 = vld [vmem:[%s0 + $0x38] sm:$0xff]
    %v62 = vld [vmem:[%s0 + $0x40] sm:$0xff]
    %v63 = vld [vmem:[%s0 + $0x48] sm:$0xff]
    %v64 = vld [vmem:[%s0 + $0x50] sm:$0xff]
    %v65 = vld [vmem:[%s0 + $0x58] sm:$0xff]
    %v66 = vld [vmem:[%s0 + $0x60] sm:$0xff]
    %v67 = vld [vmem:[%s0 + $0x68] sm:$0xff]
    %v68 = vld [vmem:[%s0 + $0x70] sm:$0xff]
    %v69 = vld [vmem:[%s0 + $0x78] sm:$0xff]
    %v70 = vld [vmem:[%s0 + $0x80] sm:$0xff]
    %v71 = vld [vmem:[%s0 + $0x88] sm:$0xff]
    %v72 = vld [vmem:[%s0 + $0x90] sm:$0xff]
    %v73 = vld [vmem:[%s0 + $0x98] sm:$0xff]
    %v74 = vld [vmem:[%s0 + $0xa0] sm:$0xff]
    %v75 = vld [vmem:[%s0 + $0xa8] sm:$0xff]
    %v76 = vld [vmem:[%s0 + $0xb0] sm:$0xff]
    %v77 = vld [vmem:[%s0 + $0xb8] sm:$0xff]
    %v78 = vld [vmem:[%s0 + $0xc0] sm:$0xff]
    %v79 = vld [vmem:[%s0 + $0xc8] sm:$0xff]
    %v80 = vld [vmem:[%s0 + $0xd0] sm:$0xff]
    %v81 = vld [vmem:[%s0 + $0xd8] sm:$0xff]
    %v82 = vld [vmem:[%s0 + $0xe0] sm:$0xff]
    %v83 = vld [vmem:[%s0 + $0xe8] sm:$0xff]
    %v84 = vld [vmem:[%s0 + $0xf0] sm:$0xff]
    %v85 = vld [vmem:[%s0 + $0xf8] sm:$0xff]
    %v86 = vld [vmem:[#allocation2] sm:$0xff]
    %v87 = vld [vmem:[#allocation2 + $0x8] sm:$0xff]
    %v88 = vld [vmem:[#allocation2 + $0x10] sm:$0xff]
    %v89 = vld [vmem:[#allocation2 + $0x18] sm:$0xff]
    %v90 = vld [vmem:[#allocation2 + $0x20] sm:$0xff]
    %v91 = vld [vmem:[#allocation2 + $0x28] sm:$0xff]
    %v92 = vld [vmem:[#allocation2 + $0x30] sm:$0xff]
    %v93 = vld [vmem:[#allocation2 + $0x38] sm:$0xff]
    %v94 = vld [vmem:[#allocation2 + $0x40] sm:$0xff]
    %v95 = vld [vmem:[#allocation2 + $0x48] sm:$0xff]
    %v96 = vld [vmem:[#allocation2 + $0x50] sm:$0xff]
    %v97 = vld [vmem:[#allocation2 + $0x58] sm:$0xff]
    %v98 = vld [vmem:[#allocation2 + $0x60] sm:$0xff]
    %v99 = vld [vmem:[#allocation2 + $0x68] sm:$0xff]
    %v100 = vld [vmem:[#allocation2 + $0x70] sm:$0xff]
    %v101 = vld [vmem:[#allocation2 + $0x78] sm:$0xff]
    %v102 = vld [vmem:[#allocation2 + $0x80] sm:$0xff]
    %v103 = vld [vmem:[#allocation2 + $0x88] sm:$0xff]
    %v104 = vld [vmem:[#allocation2 + $0x90] sm:$0xff]
    %v105 = vld [vmem:[#allocation2 + $0x98] sm:$0xff]
    %v106 = vld [vmem:[#allocation2 + $0xa0] sm:$0xff]
    %v107 = vld [vmem:[#allocation2 + $0xa8] sm:$0xff]
    %v108 = vld [vmem:[#allocation2 + $0xb0] sm:$0xff]
    %v109 = vld [vmem:[#allocation2 + $0xb8] sm:$0xff]
    %v110 = vld [vmem:[#allocation2 + $0xc0] sm:$0xff]
    %v111 = vld [vmem:[#allocation2 + $0xc8] sm:$0xff]
    %v112 = vld [vmem:[#allocation2 + $0xd0] sm:$0xff]
    %v113 = vld [vmem:[#allocation2 + $0xd8] sm:$0xff]
    %v114 = vld [vmem:[#allocation2 + $0xe0] sm:$0xff]
    %v115 = vld [vmem:[#allocation2 + $0xe8] sm:$0xff]
    %v116 = vld [vmem:[#allocation2 + $0xf0] sm:$0xff]
    %v117 = vld [vmem:[#allocation2 + $0xf8] sm:$0xff]
    %v118 = vld [vmem:[#allocation2 + $0x100] sm:$0xff]
    %v119 = vld [vmem:[#allocation2 + $0x108] sm:$0xff]
    %v120 = vld [vmem:[#allocation2 + $0x110] sm:$0xff]
    %v121 = vld [vmem:[#allocation2 + $0x118] sm:$0xff]
    %v122 = vld [vmem:[#allocation2 + $0x120] sm:$0xff]
    %v123 = vld [vmem:[#allocation2 + $0x128] sm:$0xff]
    %v124 = vld [vmem:[#allocation2 + $0x130] sm:$0xff]
    %v125 = vld [vmem:[#allocation2 + $0x138] sm:$0xff]
    %v126 = vld [vmem:[#allocation2 + $0x140] sm:$0xff]
    %v127 = vld [vmem:[#allocation2 + $0x148] sm:$0xff]
    %v128 = vld [vmem:[#allocation2 + $0x150] sm:$0xff]
    %v129 = vld [vmem:[#allocation2 + $0x158] sm:$0xff]
    %v130 = vld [vmem:[#allocation2 + $0x160] sm:$0xff]
    %v131 = vld [vmem:[#allocation2 + $0x168] sm:$0xff]
    %v132 = vld [vmem:[#allocation2 + $0x170] sm:$0xff]
    %v133 = vld [vmem:[#allocation2 + $0x178] sm:$0xff]
    %v134 = vld [vmem:[#allocation2 + $0x180] sm:$0xff]
    %v135 = vld [vmem:[#allocation2 + $0x188] sm:$0xff]
    %v136 = vld [vmem:[#allocation2 + $0x190] sm:$0xff]
    %v137 = vld [vmem:[#allocation2 + $0x198] sm:$0xff]
    %v138 = vld [vmem:[#allocation2 + $0x1a0] sm:$0xff]
    %v139 = vld [vmem:[#allocation2 + $0x1a8] sm:$0xff]
    %v140 = vld [vmem:[#allocation2 + $0x1b0] sm:$0xff]
    %v141 = vld [vmem:[#allocation2 + $0x1b8] sm:$0xff]
    %v142 = vld [vmem:[#allocation2 + $0x1c0] sm:$0xff]
    %v143 = vld [vmem:[#allocation2 + $0x1c8] sm:$0xff]
    %v144 = vld [vmem:[#allocation2 + $0x1d0] sm:$0xff]
    %v145 = vld [vmem:[#allocation2 + $0x1d8] sm:$0xff]
    %v146 = vld [vmem:[#allocation2 + $0x1e0] sm:$0xff]
    %v147 = vld [vmem:[#allocation2 + $0x1e8] sm:$0xff]
    %v148 = vld [vmem:[#allocation2 + $0x1f0] sm:$0xff]
    %v149 = vld [vmem:[#allocation2 + $0x1f8] sm:$0xff]
    %v150 = vld [vmem:[#allocation2 + $0x200] sm:$0xff]
    %v151 = vld [vmem:[#allocation2 + $0x208] sm:$0xff]
    %v152 = vld [vmem:[#allocation2 + $0x210] sm:$0xff]
    %v153 = vld [vmem:[#allocation2 + $0x218] sm:$0xff]
    %v154 = vld [vmem:[#allocation2 + $0x220] sm:$0xff]
    %v155 = vld [vmem:[#allocation2 + $0x228] sm:$0xff]
    %v156 = vld [vmem:[#allocation2 + $0x230] sm:$0xff]
    %v157 = vld [vmem:[#allocation2 + $0x238] sm:$0xff]
    %v158 = vld [vmem:[#allocation2 + $0x240] sm:$0xff]
    %v159 = vld [vmem:[#allocation2 + $0x248] sm:$0xff]
    %v160 = vld [vmem:[#allocation2 + $0x250] sm:$0xff]
    %v161 = vld [vmem:[#allocation2 + $0x258] sm:$0xff]
    %v162 = vld [vmem:[#allocation2 + $0x260] sm:$0xff]
    %v163 = vld [vmem:[#allocation2 + $0x268] sm:$0xff]
    %v164 = vld [vmem:[#allocation2 + $0x270] sm:$0xff]
    %v165 = vld [vmem:[#allocation2 + $0x278] sm:$0xff]
    %v166 = vld [vmem:[#allocation2 + $0x280] sm:$0xff]
    %v167 = vld [vmem:[#allocation2 + $0x288] sm:$0xff]
    %v168 = vld [vmem:[#allocation2 + $0x290] sm:$0xff]
    %v169 = vld [vmem:[#allocation2 + $0x298] sm:$0xff]
    %v170 = vld [vmem:[#allocation2 + $0x2a0] sm:$0xff]
    %v171 = vld [vmem:[#allocation2 + $0x2a8] sm:$0xff]
    %v172 = vld [vmem:[#allocation2 + $0x2b0] sm:$0xff]
    %v173 = vld [vmem:[#allocation2 + $0x2b8] sm:$0xff]
    %v174 = vld [vmem:[#allocation2 + $0x2c0] sm:$0xff]
    %v175 = vld [vmem:[#allocation2 + $0x2c8] sm:$0xff]
    %v176 = vld [vmem:[#allocation2 + $0x2d0] sm:$0xff]
    %v177 = vld [vmem:[#allocation2 + $0x2d8] sm:$0xff]
    %v178 = vld [vmem:[#allocation2 + $0x2e0] sm:$0xff]
    %v179 = vld [vmem:[#allocation2 + $0x2e8] sm:$0xff]
    %v180 = vld [vmem:[#allocation2 + $0x2f0] sm:$0xff]
    %v181 = vld [vmem:[#allocation2 + $0x2f8] sm:$0xff]
    %v182 = vld [vmem:[#allocation2 + $0x300] sm:$0xff]
    %v183 = vld [vmem:[#allocation2 + $0x308] sm:$0xff]
    %v184 = vld [vmem:[#allocation2 + $0x310] sm:$0xff]
    %v185 = vld [vmem:[#allocation2 + $0x318] sm:$0xff]
    %v186 = vld [vmem:[#allocation2 + $0x320] sm:$0xff]
    %v187 = vld [vmem:[#allocation2 + $0x328] sm:$0xff]
    %v188 = vld [vmem:[#allocation2 + $0x330] sm:$0xff]
    %v189 = vld [vmem:[#allocation2 + $0x338] sm:$0xff]
    %v190 = vld [vmem:[#allocation2 + $0x340] sm:$0xff]
    %v191 = vld [vmem:[#allocation2 + $0x348] sm:$0xff]
    %v192 = vld [vmem:[#allocation2 + $0x350] sm:$0xff]
    %v193 = vld [vmem:[#allocation2 + $0x358] sm:$0xff]
    %v194 = vld [vmem:[#allocation2 + $0x360] sm:$0xff]
    %v195 = vld [vmem:[#allocation2 + $0x368] sm:$0xff]
    %v196 = vld [vmem:[#allocation2 + $0x370] sm:$0xff]
    %v197 = vld [vmem:[#allocation2 + $0x378] sm:$0xff]
    %v198 = vld [vmem:[#allocation2 + $0x380] sm:$0xff]
    %v199 = vld [vmem:[#allocation2 + $0x388] sm:$0xff]
    %v200 = vld [vmem:[#allocation2 + $0x390] sm:$0xff]
    %v201 = vld [vmem:[#allocation2 + $0x398] sm:$0xff]
    %v202 = vld [vmem:[#allocation2 + $0x3a0] sm:$0xff]
    %v203 = vld [vmem:[#allocation2 + $0x3a8] sm:$0xff]
    %v204 = vld [vmem:[#allocation2 + $0x3b0] sm:$0xff]
    %v205 = vld [vmem:[#allocation2 + $0x3b8] sm:$0xff]
    %v206 = vld [vmem:[#allocation2 + $0x3c0] sm:$0xff]
    %v207 = vld [vmem:[#allocation2 + $0x3c8] sm:$0xff]
    %v208 = vld [vmem:[#allocation2 + $0x3d0] sm:$0xff]
    %v209 = vld [vmem:[#allocation2 + $0x3d8] sm:$0xff]
    %v210 = vld [vmem:[#allocation2 + $0x3e0] sm:$0xff]
    %v211 = vld [vmem:[#allocation2 + $0x3e8] sm:$0xff]
    %v212 = vld [vmem:[#allocation2 + $0x3f0] sm:$0xff]
    %v213 = vld [vmem:[#allocation2 + $0x3f8] sm:$0xff]
    %v214 = vld [vmem:[#allocation2 + $0x400] sm:$0xff]
    %v215 = vld [vmem:[#allocation2 + $0x408] sm:$0xff]
    %v216 = vld [vmem:[#allocation2 + $0x410] sm:$0xff]
    %v217 = vld [vmem:[#allocation2 + $0x418] sm:$0xff]
    %v218 = vld [vmem:[#allocation2 + $0x420] sm:$0xff]
    %v219 = vld [vmem:[#allocation2 + $0x428] sm:$0xff]
    %v220 = vld [vmem:[#allocation2 + $0x430] sm:$0xff]
    %v221 = vld [vmem:[#allocation2 + $0x438] sm:$0xff]
    %v222 = vld [vmem:[#allocation2 + $0x440] sm:$0xff]
    %v223 = vld [vmem:[#allocation2 + $0x448] sm:$0xff]
    %v224 = vld [vmem:[#allocation2 + $0x450] sm:$0xff]
    %v225 = vld [vmem:[#allocation2 + $0x458] sm:$0xff]
    %v226 = vld [vmem:[#allocation2 + $0x460] sm:$0xff]
    %v227 = vld [vmem:[#allocation2 + $0x468] sm:$0xff]
    %v228 = vld [vmem:[#allocation2 + $0x470] sm:$0xff]
    %v229 = vld [vmem:[#allocation2 + $0x478] sm:$0xff]
    %v230 = vld [vmem:[#allocation2 + $0x480] sm:$0xff]
    %v231 = vld [vmem:[#allocation2 + $0x488] sm:$0xff]
    %v232 = vld [vmem:[#allocation2 + $0x490] sm:$0xff]
    %v233 = vld [vmem:[#allocation2 + $0x498] sm:$0xff]
    %v234 = vld [vmem:[#allocation2 + $0x4a0] sm:$0xff]
    %v235 = vld [vmem:[#allocation2 + $0x4a8] sm:$0xff]
    %v236 = vld [vmem:[#allocation2 + $0x4b0] sm:$0xff]
    %v237 = vld [vmem:[#allocation2 + $0x4b8] sm:$0xff]
    %v238 = vld [vmem:[#allocation2 + $0x4c0] sm:$0xff]
    %v239 = vld [vmem:[#allocation2 + $0x4c8] sm:$0xff]
    %v240 = vld [vmem:[#allocation2 + $0x4d0] sm:$0xff]
    %v241 = vld [vmem:[#allocation2 + $0x4d8] sm:$0xff]
    %v242 = vld [vmem:[#allocation2 + $0x4e0] sm:$0xff]
    %v243 = vld [vmem:[#allocation2 + $0x4e8] sm:$0xff]
    %v244 = vld [vmem:[#allocation2 + $0x4f0] sm:$0xff]
    %v245 = vld [vmem:[#allocation2 + $0x4f8] sm:$0xff]
    %v246 = vld [vmem:[#allocation2 + $0x500] sm:$0xff]
    %v247 = vld [vmem:[#allocation2 + $0x508] sm:$0xff]
    %v248 = vld [vmem:[#allocation2 + $0x510] sm:$0xff]
    %v249 = vld [vmem:[#allocation2 + $0x518] sm:$0xff]
    %v250 = vld [vmem:[#allocation2 + $0x520] sm:$0xff]
    %v251 = vld [vmem:[#allocation2 + $0x528] sm:$0xff]
    %v252 = vld [vmem:[#allocation2 + $0x530] sm:$0xff]
    %v253 = vld [vmem:[#allocation2 + $0x538] sm:$0xff]
    %v254 = vld [vmem:[#allocation2 + $0x540] sm:$0xff]
    %v255 = vld [vmem:[#allocation2 + $0x548] sm:$0xff]
    %v256 = vld [vmem:[#allocation2 + $0x550] sm:$0xff]
    %v257 = vld [vmem:[#allocation2 + $0x558] sm:$0xff]
    %v258 = vld [vmem:[#allocation2 + $0x560] sm:$0xff]
    %v259 = vld [vmem:[#allocation2 + $0x568] sm:$0xff]
    %v260 = vld [vmem:[#allocation2 + $0x570] sm:$0xff]
    %v261 = vld [vmem:[#allocation2 + $0x578] sm:$0xff]
    %v262 = vld [vmem:[#allocation2 + $0x580] sm:$0xff]
    %v263 = vld [vmem:[#allocation2 + $0x588] sm:$0xff]
    %v264 = vld [vmem:[#allocation2 + $0x590] sm:$0xff]
    %v265 = vld [vmem:[#allocation2 + $0x598] sm:$0xff]
    %v266 = vld [vmem:[#allocation2 + $0x5a0] sm:$0xff]
    %v267 = vld [vmem:[#allocation2 + $0x5a8] sm:$0xff]
    %v268 = vld [vmem:[#allocation2 + $0x5b0] sm:$0xff]
    %v269 = vld [vmem:[#allocation2 + $0x5b8] sm:$0xff]
    %v270 = vld [vmem:[#allocation2 + $0x5c0] sm:$0xff]
    %v271 = vld [vmem:[#allocation2 + $0x5c8] sm:$0xff]
    %v272 = vld [vmem:[#allocation2 + $0x5d0] sm:$0xff]
    %v273 = vld [vmem:[#allocation2 + $0x5d8] sm:$0xff]
    %v274 = vld [vmem:[#allocation2 + $0x5e0] sm:$0xff]
    %v275 = vld [vmem:[#allocation2 + $0x5e8] sm:$0xff]
    %v276 = vld [vmem:[#allocation2 + $0x5f0] sm:$0xff]
    %v277 = vld [vmem:[#allocation2 + $0x5f8] sm:$0xff]
    %v278 = vld [vmem:[#allocation2 + $0x600] sm:$0xff]
    %v279 = vld [vmem:[#allocation2 + $0x608] sm:$0xff]
    %v280 = vld [vmem:[#allocation2 + $0x610] sm:$0xff]
    %v281 = vld [vmem:[#allocation2 + $0x618] sm:$0xff]
    %v282 = vld [vmem:[#allocation2 + $0x620] sm:$0xff]
    %v283 = vld [vmem:[#allocation2 + $0x628] sm:$0xff]
    %v284 = vld [vmem:[#allocation2 + $0x630] sm:$0xff]
    %v285 = vld [vmem:[#allocation2 + $0x638] sm:$0xff]
    %v286 = vld [vmem:[#allocation2 + $0x640] sm:$0xff]
    %v287 = vld [vmem:[#allocation2 + $0x648] sm:$0xff]
    %v288 = vld [vmem:[#allocation2 + $0x650] sm:$0xff]
    %v289 = vld [vmem:[#allocation2 + $0x658] sm:$0xff]
    %v290 = vld [vmem:[#allocation2 + $0x660] sm:$0xff]
    %v291 = vld [vmem:[#allocation2 + $0x668] sm:$0xff]
    %v292 = vld [vmem:[#allocation2 + $0x670] sm:$0xff]
    %v293 = vld [vmem:[#allocation2 + $0x678] sm:$0xff]
    %v294 = vld [vmem:[#allocation2 + $0x680] sm:$0xff]
    %v295 = vld [vmem:[#allocation2 + $0x688] sm:$0xff]
    %v296 = vld [vmem:[#allocation2 + $0x690] sm:$0xff]
    %v297 = vld [vmem:[#allocation2 + $0x698] sm:$0xff]
    %v298 = vld [vmem:[#allocation2 + $0x6a0] sm:$0xff]
    %v299 = vld [vmem:[#allocation2 + $0x6a8] sm:$0xff]
    %v300 = vld [vmem:[#allocation2 + $0x6b0] sm:$0xff]
    %v301 = vld [vmem:[#allocation2 + $0x6b8] sm:$0xff]
    %v302 = vld [vmem:[#allocation2 + $0x6c0] sm:$0xff]
    %v303 = vld [vmem:[#allocation2 + $0x6c8] sm:$0xff]
    %v304 = vld [vmem:[#allocation2 + $0x6d0] sm:$0xff]
    %v305 = vld [vmem:[#allocation2 + $0x6d8] sm:$0xff]
    %v306 = vld [vmem:[#allocation2 + $0x6e0] sm:$0xff]
    %v307 = vld [vmem:[#allocation2 + $0x6e8] sm:$0xff]
    %v308 = vld [vmem:[#allocation2 + $0x6f0] sm:$0xff]
    %v309 = vld [vmem:[#allocation2 + $0x6f8] sm:$0xff]
    %v310 = vld [vmem:[#allocation2 + $0x700] sm:$0xff]
    %v311 = vld [vmem:[#allocation2 + $0x708] sm:$0xff]
    %v312 = vld [vmem:[#allocation2 + $0x710] sm:$0xff]
    %v313 = vld [vmem:[#allocation2 + $0x718] sm:$0xff]
    %v314 = vld [vmem:[#allocation2 + $0x720] sm:$0xff]
    %v315 = vld [vmem:[#allocation2 + $0x728] sm:$0xff]
    %v316 = vld [vmem:[#allocation2 + $0x730] sm:$0xff]
    %v317 = vld [vmem:[#allocation2 + $0x738] sm:$0xff]
    %v318 = vld [vmem:[#allocation2 + $0x740] sm:$0xff]
    %v319 = vld [vmem:[#allocation2 + $0x748] sm:$0xff]
    %v320 = vld [vmem:[#allocation2 + $0x750] sm:$0xff]
    %v321 = vld [vmem:[#allocation2 + $0x758] sm:$0xff]
    %v322 = vld [vmem:[#allocation2 + $0x760] sm:$0xff]
    %v323 = vld [vmem:[#allocation2 + $0x768] sm:$0xff]
    %v324 = vld [vmem:[#allocation2 + $0x770] sm:$0xff]
    %v325 = vld [vmem:[#allocation2 + $0x778] sm:$0xff]
    %v326 = vld [vmem:[#allocation2 + $0x780] sm:$0xff]
    %v327 = vld [vmem:[#allocation2 + $0x788] sm:$0xff]
    %v328 = vld [vmem:[#allocation2 + $0x790] sm:$0xff]
    %v329 = vld [vmem:[#allocation2 + $0x798] sm:$0xff]
    %v330 = vld [vmem:[#allocation2 + $0x7a0] sm:$0xff]
    %v331 = vld [vmem:[#allocation2 + $0x7a8] sm:$0xff]
    %v332 = vld [vmem:[#allocation2 + $0x7b0] sm:$0xff]
    %v333 = vld [vmem:[#allocation2 + $0x7b8] sm:$0xff]
    %v334 = vld [vmem:[#allocation2 + $0x7c0] sm:$0xff]
    %v335 = vld [vmem:[#allocation2 + $0x7c8] sm:$0xff]
    %v336 = vld [vmem:[#allocation2 + $0x7d0] sm:$0xff]
    %v337 = vld [vmem:[#allocation2 + $0x7d8] sm:$0xff]
    %v338 = vld [vmem:[#allocation2 + $0x7e0] sm:$0xff]
    %v339 = vld [vmem:[#allocation2 + $0x7e8] sm:$0xff]
    %v340 = vld [vmem:[#allocation2 + $0x7f0] sm:$0xff]
    %v341 = vld [vmem:[#allocation2 + $0x7f8] sm:$0xff]
    %v374 = vunpack.c.l.b16 %v54
    %v375 = vunpack.c.h.b16 %v54
    %v376 = vunpack.c.l.b16 %v55
    %v377 = vunpack.c.h.b16 %v55
    %v378 = vunpack.c.l.b16 %v56
    %v379 = vunpack.c.h.b16 %v56
    %v380 = vunpack.c.l.b16 %v57
    %v381 = vunpack.c.h.b16 %v57
    %v382 = vunpack.c.l.b16 %v58
    %v383 = vunpack.c.h.b16 %v58
    %v384 = vunpack.c.l.b16 %v59
    %v385 = vunpack.c.h.b16 %v59
    %v386 = vunpack.c.l.b16 %v60
    %v387 = vunpack.c.h.b16 %v60
    %v388 = vunpack.c.l.b16 %v61
    %v389 = vunpack.c.h.b16 %v61
    %v390 = vunpack.c.l.b16 %v62
    %v391 = vunpack.c.h.b16 %v62
    %v392 = vunpack.c.l.b16 %v63
    %v393 = vunpack.c.h.b16 %v63
    %v394 = vunpack.c.l.b16 %v64
    %v395 = vunpack.c.h.b16 %v64
    %v396 = vunpack.c.l.b16 %v65
    %v397 = vunpack.c.h.b16 %v65
    %v398 = vunpack.c.l.b16 %v66
    %v399 = vunpack.c.h.b16 %v66
    %v400 = vunpack.c.l.b16 %v67
    %v401 = vunpack.c.h.b16 %v67
    %v402 = vunpack.c.l.b16 %v68
    %v403 = vunpack.c.h.b16 %v68
    %v404 = vunpack.c.l.b16 %v69
    %v405 = vunpack.c.h.b16 %v69
    %v406 = vunpack.c.l.b16 %v70
    %v407 = vunpack.c.h.b16 %v70
    %v408 = vunpack.c.l.b16 %v71
    %v409 = vunpack.c.h.b16 %v71
    %v410 = vunpack.c.l.b16 %v72
    %v411 = vunpack.c.h.b16 %v72
    %v412 = vunpack.c.l.b16 %v73
    %v413 = vunpack.c.h.b16 %v73
    %v414 = vunpack.c.l.b16 %v74
    %v415 = vunpack.c.h.b16 %v74
    %v416 = vunpack.c.l.b16 %v75
    %v417 = vunpack.c.h.b16 %v75
    %v418 = vunpack.c.l.b16 %v76
    %v419 = vunpack.c.h.b16 %v76
    %v420 = vunpack.c.l.b16 %v77
    %v421 = vunpack.c.h.b16 %v77
    %v422 = vunpack.c.l.b16 %v78
    %v423 = vunpack.c.h.b16 %v78
    %v424 = vunpack.c.l.b16 %v79
    %v425 = vunpack.c.h.b16 %v79
    %v426 = vunpack.c.l.b16 %v80
    %v427 = vunpack.c.h.b16 %v80
    %v428 = vunpack.c.l.b16 %v81
    %v429 = vunpack.c.h.b16 %v81
    %v430 = vunpack.c.l.b16 %v82
    %v431 = vunpack.c.h.b16 %v82
    %v432 = vunpack.c.l.b16 %v83
    %v433 = vunpack.c.h.b16 %v83
    %v434 = vunpack.c.l.b16 %v84
    %v435 = vunpack.c.h.b16 %v84
    %v436 = vunpack.c.l.b16 %v85
    %v437 = vunpack.c.h.b16 %v85
    %v438 = vpack.c.b16 %v390, %v374
    %v439 = vpack.c.b16 %v391, %v375
    %v440 = vpack.c.b16 %v392, %v376
    %v441 = vpack.c.b16 %v393, %v377
    %v442 = vpack.c.b16 %v394, %v378
    %v443 = vpack.c.b16 %v395, %v379
    %v444 = vpack.c.b16 %v396, %v380
    %v445 = vpack.c.b16 %v397, %v381
    %v446 = vpack.c.b16 %v398, %v382
    %v447 = vpack.c.b16 %v399, %v383
    %v448 = vpack.c.b16 %v400, %v384
    %v449 = vpack.c.b16 %v401, %v385
    %v450 = vpack.c.b16 %v402, %v386
    %v451 = vpack.c.b16 %v403, %v387
    %v452 = vpack.c.b16 %v404, %v388
    %v453 = vpack.c.b16 %v405, %v389
    %v454 = vpack.c.b16 %v422, %v406
    %v455 = vpack.c.b16 %v423, %v407
    %v456 = vpack.c.b16 %v424, %v408
    %v457 = vpack.c.b16 %v425, %v409
    %v458 = vpack.c.b16 %v426, %v410
    %v459 = vpack.c.b16 %v427, %v411
    %v460 = vpack.c.b16 %v428, %v412
    %v461 = vpack.c.b16 %v429, %v413
    %v462 = vpack.c.b16 %v430, %v414
    %v463 = vpack.c.b16 %v431, %v415
    %v464 = vpack.c.b16 %v432, %v416
    %v465 = vpack.c.b16 %v433, %v417
    %v466 = vpack.c.b16 %v434, %v418
    %v467 = vpack.c.b16 %v435, %v419
    %v468 = vpack.c.b16 %v436, %v420
    %v469 = vpack.c.b16 %v437, %v421
    %v758 = vunpack.c.l.b16 %v86
    %v759 = vunpack.c.h.b16 %v86
    %v760 = vunpack.c.l.b16 %v87
    %v761 = vunpack.c.h.b16 %v87
    %v762 = vunpack.c.l.b16 %v88
    %v763 = vunpack.c.h.b16 %v88
    %v764 = vunpack.c.l.b16 %v89
    %v765 = vunpack.c.h.b16 %v89
    %v766 = vunpack.c.l.b16 %v90
    %v767 = vunpack.c.h.b16 %v90
    %v768 = vunpack.c.l.b16 %v91
    %v769 = vunpack.c.h.b16 %v91
    %v770 = vunpack.c.l.b16 %v92
    %v771 = vunpack.c.h.b16 %v92
    %v772 = vunpack.c.l.b16 %v93
    %v773 = vunpack.c.h.b16 %v93
    %v774 = vunpack.c.l.b16 %v94
    %v775 = vunpack.c.h.b16 %v94
    %v776 = vunpack.c.l.b16 %v95
    %v777 = vunpack.c.h.b16 %v95
    %v778 = vunpack.c.l.b16 %v96
    %v779 = vunpack.c.h.b16 %v96
    %v780 = vunpack.c.l.b16 %v97
    %v781 = vunpack.c.h.b16 %v97
    %v782 = vunpack.c.l.b16 %v98
    %v783 = vunpack.c.h.b16 %v98
    %v784 = vunpack.c.l.b16 %v99
    %v785 = vunpack.c.h.b16 %v99
    %v786 = vunpack.c.l.b16 %v100
    %v787 = vunpack.c.h.b16 %v100
    %v788 = vunpack.c.l.b16 %v101
    %v789 = vunpack.c.h.b16 %v101
    %v790 = vunpack.c.l.b16 %v102
    %v791 = vunpack.c.h.b16 %v102
    %v792 = vunpack.c.l.b16 %v103
    %v793 = vunpack.c.h.b16 %v103
    %v794 = vunpack.c.l.b16 %v104
    %v795 = vunpack.c.h.b16 %v104
    %v796 = vunpack.c.l.b16 %v105
    %v797 = vunpack.c.h.b16 %v105
    %v798 = vunpack.c.l.b16 %v106
    %v799 = vunpack.c.h.b16 %v106
    %v800 = vunpack.c.l.b16 %v107
    %v801 = vunpack.c.h.b16 %v107
    %v802 = vunpack.c.l.b16 %v108
    %v803 = vunpack.c.h.b16 %v108
    %v804 = vunpack.c.l.b16 %v109
    %v805 = vunpack.c.h.b16 %v109
    %v806 = vunpack.c.l.b16 %v110
    %v807 = vunpack.c.h.b16 %v110
    %v808 = vunpack.c.l.b16 %v111
    %v809 = vunpack.c.h.b16 %v111
    %v810 = vunpack.c.l.b16 %v112
    %v811 = vunpack.c.h.b16 %v112
    %v812 = vunpack.c.l.b16 %v113
    %v813 = vunpack.c.h.b16 %v113
    %v814 = vunpack.c.l.b16 %v114
    %v815 = vunpack.c.h.b16 %v114
    %v816 = vunpack.c.l.b16 %v115
    %v817 = vunpack.c.h.b16 %v115
    %v818 = vunpack.c.l.b16 %v116
    %v819 = vunpack.c.h.b16 %v116
    %v820 = vunpack.c.l.b16 %v117
    %v821 = vunpack.c.h.b16 %v117
    %v822 = vunpack.c.l.b16 %v118
    %v823 = vunpack.c.h.b16 %v118
    %v824 = vunpack.c.l.b16 %v119
    %v825 = vunpack.c.h.b16 %v119
    %v826 = vunpack.c.l.b16 %v120
    %v827 = vunpack.c.h.b16 %v120
    %v828 = vunpack.c.l.b16 %v121
    %v829 = vunpack.c.h.b16 %v121
    %v830 = vunpack.c.l.b16 %v122
    %v831 = vunpack.c.h.b16 %v122
    %v832 = vunpack.c.l.b16 %v123
    %v833 = vunpack.c.h.b16 %v123
    %v834 = vunpack.c.l.b16 %v124
    %v835 = vunpack.c.h.b16 %v124
    %v836 = vunpack.c.l.b16 %v125
    %v837 = vunpack.c.h.b16 %v125
    %v838 = vunpack.c.l.b16 %v126
    %v839 = vunpack.c.h.b16 %v126
    %v840 = vunpack.c.l.b16 %v127
    %v841 = vunpack.c.h.b16 %v127
    %v842 = vunpack.c.l.b16 %v128
    %v843 = vunpack.c.h.b16 %v128
    %v844 = vunpack.c.l.b16 %v129
    %v845 = vunpack.c.h.b16 %v129
    %v846 = vunpack.c.l.b16 %v130
    %v847 = vunpack.c.h.b16 %v130
    %v848 = vunpack.c.l.b16 %v131
    %v849 = vunpack.c.h.b16 %v131
    %v850 = vunpack.c.l.b16 %v132
    %v851 = vunpack.c.h.b16 %v132
    %v852 = vunpack.c.l.b16 %v133
    %v853 = vunpack.c.h.b16 %v133
    %v854 = vunpack.c.l.b16 %v134
    %v855 = vunpack.c.h.b16 %v134
    %v856 = vunpack.c.l.b16 %v135
    %v857 = vunpack.c.h.b16 %v135
    %v858 = vunpack.c.l.b16 %v136
    %v859 = vunpack.c.h.b16 %v136
    %v860 = vunpack.c.l.b16 %v137
    %v861 = vunpack.c.h.b16 %v137
    %v862 = vunpack.c.l.b16 %v138
    %v863 = vunpack.c.h.b16 %v138
    %v864 = vunpack.c.l.b16 %v139
    %v865 = vunpack.c.h.b16 %v139
    %v866 = vunpack.c.l.b16 %v140
    %v867 = vunpack.c.h.b16 %v140
    %v868 = vunpack.c.l.b16 %v141
    %v869 = vunpack.c.h.b16 %v141
    %v870 = vunpack.c.l.b16 %v142
    %v871 = vunpack.c.h.b16 %v142
    %v872 = vunpack.c.l.b16 %v143
    %v873 = vunpack.c.h.b16 %v143
    %v874 = vunpack.c.l.b16 %v144
    %v875 = vunpack.c.h.b16 %v144
    %v876 = vunpack.c.l.b16 %v145
    %v877 = vunpack.c.h.b16 %v145
    %v878 = vunpack.c.l.b16 %v146
    %v879 = vunpack.c.h.b16 %v146
    %v880 = vunpack.c.l.b16 %v147
    %v881 = vunpack.c.h.b16 %v147
    %v882 = vunpack.c.l.b16 %v148
    %v883 = vunpack.c.h.b16 %v148
    %v884 = vunpack.c.l.b16 %v149
    %v885 = vunpack.c.h.b16 %v149
    %v886 = vunpack.c.l.b16 %v150
    %v887 = vunpack.c.h.b16 %v150
    %v888 = vunpack.c.l.b16 %v151
    %v889 = vunpack.c.h.b16 %v151
    %v890 = vunpack.c.l.b16 %v152
    %v891 = vunpack.c.h.b16 %v152
    %v892 = vunpack.c.l.b16 %v153
    %v893 = vunpack.c.h.b16 %v153
    %v894 = vunpack.c.l.b16 %v154
    %v895 = vunpack.c.h.b16 %v154
    %v896 = vunpack.c.l.b16 %v155
    %v897 = vunpack.c.h.b16 %v155
    %v898 = vunpack.c.l.b16 %v156
    %v899 = vunpack.c.h.b16 %v156
    %v900 = vunpack.c.l.b16 %v157
    %v901 = vunpack.c.h.b16 %v157
    %v902 = vunpack.c.l.b16 %v158
    %v903 = vunpack.c.h.b16 %v158
    %v904 = vunpack.c.l.b16 %v159
    %v905 = vunpack.c.h.b16 %v159
    %v906 = vunpack.c.l.b16 %v160
    %v907 = vunpack.c.h.b16 %v160
    %v908 = vunpack.c.l.b16 %v161
    %v909 = vunpack.c.h.b16 %v161
    %v910 = vunpack.c.l.b16 %v162
    %v911 = vunpack.c.h.b16 %v162
    %v912 = vunpack.c.l.b16 %v163
    %v913 = vunpack.c.h.b16 %v163
    %v914 = vunpack.c.l.b16 %v164
    %v915 = vunpack.c.h.b16 %v164
    %v916 = vunpack.c.l.b16 %v165
    %v917 = vunpack.c.h.b16 %v165
    %v918 = vunpack.c.l.b16 %v166
    %v919 = vunpack.c.h.b16 %v166
    %v920 = vunpack.c.l.b16 %v167
    %v921 = vunpack.c.h.b16 %v167
    %v922 = vunpack.c.l.b16 %v168
    %v923 = vunpack.c.h.b16 %v168
    %v924 = vunpack.c.l.b16 %v169
    %v925 = vunpack.c.h.b16 %v169
    %v926 = vunpack.c.l.b16 %v170
    %v927 = vunpack.c.h.b16 %v170
    %v928 = vunpack.c.l.b16 %v171
    %v929 = vunpack.c.h.b16 %v171
    %v930 = vunpack.c.l.b16 %v172
    %v931 = vunpack.c.h.b16 %v172
    %v932 = vunpack.c.l.b16 %v173
    %v933 = vunpack.c.h.b16 %v173
    %v934 = vunpack.c.l.b16 %v174
    %v935 = vunpack.c.h.b16 %v174
    %v936 = vunpack.c.l.b16 %v175
    %v937 = vunpack.c.h.b16 %v175
    %v938 = vunpack.c.l.b16 %v176
    %v939 = vunpack.c.h.b16 %v176
    %v940 = vunpack.c.l.b16 %v177
    %v941 = vunpack.c.h.b16 %v177
    %v942 = vunpack.c.l.b16 %v178
    %v943 = vunpack.c.h.b16 %v178
    %v944 = vunpack.c.l.b16 %v179
    %v945 = vunpack.c.h.b16 %v179
    %v946 = vunpack.c.l.b16 %v180
    %v947 = vunpack.c.h.b16 %v180
    %v948 = vunpack.c.l.b16 %v181
    %v949 = vunpack.c.h.b16 %v181
    %v950 = vunpack.c.l.b16 %v182
    %v951 = vunpack.c.h.b16 %v182
    %v952 = vunpack.c.l.b16 %v183
    %v953 = vunpack.c.h.b16 %v183
    %v954 = vunpack.c.l.b16 %v184
    %v955 = vunpack.c.h.b16 %v184
    %v956 = vunpack.c.l.b16 %v185
    %v957 = vunpack.c.h.b16 %v185
    %v958 = vunpack.c.l.b16 %v186
    %v959 = vunpack.c.h.b16 %v186
    %v960 = vunpack.c.l.b16 %v187
    %v961 = vunpack.c.h.b16 %v187
    %v962 = vunpack.c.l.b16 %v188
    %v963 = vunpack.c.h.b16 %v188
    %v964 = vunpack.c.l.b16 %v189
    %v965 = vunpack.c.h.b16 %v189
    %v966 = vunpack.c.l.b16 %v190
    %v967 = vunpack.c.h.b16 %v190
    %v968 = vunpack.c.l.b16 %v191
    %v969 = vunpack.c.h.b16 %v191
    %v970 = vunpack.c.l.b16 %v192
    %v971 = vunpack.c.h.b16 %v192
    %v972 = vunpack.c.l.b16 %v193
    %v973 = vunpack.c.h.b16 %v193
    %v974 = vunpack.c.l.b16 %v194
    %v975 = vunpack.c.h.b16 %v194
    %v976 = vunpack.c.l.b16 %v195
    %v977 = vunpack.c.h.b16 %v195
    %v978 = vunpack.c.l.b16 %v196
    %v979 = vunpack.c.h.b16 %v196
    %v980 = vunpack.c.l.b16 %v197
    %v981 = vunpack.c.h.b16 %v197
    %v982 = vunpack.c.l.b16 %v198
    %v983 = vunpack.c.h.b16 %v198
    %v984 = vunpack.c.l.b16 %v199
    %v985 = vunpack.c.h.b16 %v199
    %v986 = vunpack.c.l.b16 %v200
    %v987 = vunpack.c.h.b16 %v200
    %v988 = vunpack.c.l.b16 %v201
    %v989 = vunpack.c.h.b16 %v201
    %v990 = vunpack.c.l.b16 %v202
    %v991 = vunpack.c.h.b16 %v202
    %v992 = vunpack.c.l.b16 %v203
    %v993 = vunpack.c.h.b16 %v203
    %v994 = vunpack.c.l.b16 %v204
    %v995 = vunpack.c.h.b16 %v204
    %v996 = vunpack.c.l.b16 %v205
    %v997 = vunpack.c.h.b16 %v205
    %v998 = vunpack.c.l.b16 %v206
    %v999 = vunpack.c.h.b16 %v206
    %v1000 = vunpack.c.l.b16 %v207
    %v1001 = vunpack.c.h.b16 %v207
    %v1002 = vunpack.c.l.b16 %v208
    %v1003 = vunpack.c.h.b16 %v208
    %v1004 = vunpack.c.l.b16 %v209
    %v1005 = vunpack.c.h.b16 %v209
    %v1006 = vunpack.c.l.b16 %v210
    %v1007 = vunpack.c.h.b16 %v210
    %v1008 = vunpack.c.l.b16 %v211
    %v1009 = vunpack.c.h.b16 %v211
    %v1010 = vunpack.c.l.b16 %v212
    %v1011 = vunpack.c.h.b16 %v212
    %v1012 = vunpack.c.l.b16 %v213
    %v1013 = vunpack.c.h.b16 %v213
    %v1014 = vunpack.c.l.b16 %v214
    %v1015 = vunpack.c.h.b16 %v214
    %v1016 = vunpack.c.l.b16 %v215
    %v1017 = vunpack.c.h.b16 %v215
    %v1018 = vunpack.c.l.b16 %v216
    %v1019 = vunpack.c.h.b16 %v216
    %v1020 = vunpack.c.l.b16 %v217
    %v1021 = vunpack.c.h.b16 %v217
    %v1022 = vunpack.c.l.b16 %v218
    %v1023 = vunpack.c.h.b16 %v218
    %v1024 = vunpack.c.l.b16 %v219
    %v1025 = vunpack.c.h.b16 %v219
    %v1026 = vunpack.c.l.b16 %v220
    %v1027 = vunpack.c.h.b16 %v220
    %v1028 = vunpack.c.l.b16 %v221
    %v1029 = vunpack.c.h.b16 %v221
    %v1030 = vunpack.c.l.b16 %v222
    %v1031 = vunpack.c.h.b16 %v222
    %v1032 = vunpack.c.l.b16 %v223
    %v1033 = vunpack.c.h.b16 %v223
    %v1034 = vunpack.c.l.b16 %v224
    %v1035 = vunpack.c.h.b16 %v224
    %v1036 = vunpack.c.l.b16 %v225
    %v1037 = vunpack.c.h.b16 %v225
    %v1038 = vunpack.c.l.b16 %v226
    %v1039 = vunpack.c.h.b16 %v226
    %v1040 = vunpack.c.l.b16 %v227
    %v1041 = vunpack.c.h.b16 %v227
    %v1042 = vunpack.c.l.b16 %v228
    %v1043 = vunpack.c.h.b16 %v228
    %v1044 = vunpack.c.l.b16 %v229
    %v1045 = vunpack.c.h.b16 %v229
    %v1046 = vunpack.c.l.b16 %v230
    %v1047 = vunpack.c.h.b16 %v230
    %v1048 = vunpack.c.l.b16 %v231
    %v1049 = vunpack.c.h.b16 %v231
    %v1050 = vunpack.c.l.b16 %v232
    %v1051 = vunpack.c.h.b16 %v232
    %v1052 = vunpack.c.l.b16 %v233
    %v1053 = vunpack.c.h.b16 %v233
    %v1054 = vunpack.c.l.b16 %v234
    %v1055 = vunpack.c.h.b16 %v234
    %v1056 = vunpack.c.l.b16 %v235
    %v1057 = vunpack.c.h.b16 %v235
    %v1058 = vunpack.c.l.b16 %v236
    %v1059 = vunpack.c.h.b16 %v236
    %v1060 = vunpack.c.l.b16 %v237
    %v1061 = vunpack.c.h.b16 %v237
    %v1062 = vunpack.c.l.b16 %v238
    %v1063 = vunpack.c.h.b16 %v238
    %v1064 = vunpack.c.l.b16 %v239
    %v1065 = vunpack.c.h.b16 %v239
    %v1066 = vunpack.c.l.b16 %v240
    %v1067 = vunpack.c.h.b16 %v240
    %v1068 = vunpack.c.l.b16 %v241
    %v1069 = vunpack.c.h.b16 %v241
    %v1070 = vunpack.c.l.b16 %v242
    %v1071 = vunpack.c.h.b16 %v242
    %v1072 = vunpack.c.l.b16 %v243
    %v1073 = vunpack.c.h.b16 %v243
    %v1074 = vunpack.c.l.b16 %v244
    %v1075 = vunpack.c.h.b16 %v244
    %v1076 = vunpack.c.l.b16 %v245
    %v1077 = vunpack.c.h.b16 %v245
    %v1078 = vunpack.c.l.b16 %v246
    %v1079 = vunpack.c.h.b16 %v246
    %v1080 = vunpack.c.l.b16 %v247
    %v1081 = vunpack.c.h.b16 %v247
    %v1082 = vunpack.c.l.b16 %v248
    %v1083 = vunpack.c.h.b16 %v248
    %v1084 = vunpack.c.l.b16 %v249
    %v1085 = vunpack.c.h.b16 %v249
    %v1086 = vunpack.c.l.b16 %v250
    %v1087 = vunpack.c.h.b16 %v250
    %v1088 = vunpack.c.l.b16 %v251
    %v1089 = vunpack.c.h.b16 %v251
    %v1090 = vunpack.c.l.b16 %v252
    %v1091 = vunpack.c.h.b16 %v252
    %v1092 = vunpack.c.l.b16 %v253
    %v1093 = vunpack.c.h.b16 %v253
    %v1094 = vunpack.c.l.b16 %v254
    %v1095 = vunpack.c.h.b16 %v254
    %v1096 = vunpack.c.l.b16 %v255
    %v1097 = vunpack.c.h.b16 %v255
    %v1098 = vunpack.c.l.b16 %v256
    %v1099 = vunpack.c.h.b16 %v256
    %v1100 = vunpack.c.l.b16 %v257
    %v1101 = vunpack.c.h.b16 %v257
    %v1102 = vunpack.c.l.b16 %v258
    %v1103 = vunpack.c.h.b16 %v258
    %v1104 = vunpack.c.l.b16 %v259
    %v1105 = vunpack.c.h.b16 %v259
    %v1106 = vunpack.c.l.b16 %v260
    %v1107 = vunpack.c.h.b16 %v260
    %v1108 = vunpack.c.l.b16 %v261
    %v1109 = vunpack.c.h.b16 %v261
    %v1110 = vunpack.c.l.b16 %v262
    %v1111 = vunpack.c.h.b16 %v262
    %v1112 = vunpack.c.l.b16 %v263
    %v1113 = vunpack.c.h.b16 %v263
    %v1114 = vunpack.c.l.b16 %v264
    %v1115 = vunpack.c.h.b16 %v264
    %v1116 = vunpack.c.l.b16 %v265
    %v1117 = vunpack.c.h.b16 %v265
    %v1118 = vunpack.c.l.b16 %v266
    %v1119 = vunpack.c.h.b16 %v266
    %v1120 = vunpack.c.l.b16 %v267
    %v1121 = vunpack.c.h.b16 %v267
    %v1122 = vunpack.c.l.b16 %v268
    %v1123 = vunpack.c.h.b16 %v268
    %v1124 = vunpack.c.l.b16 %v269
    %v1125 = vunpack.c.h.b16 %v269
    %v1126 = vunpack.c.l.b16 %v270
    %v1127 = vunpack.c.h.b16 %v270
    %v1128 = vunpack.c.l.b16 %v271
    %v1129 = vunpack.c.h.b16 %v271
    %v1130 = vunpack.c.l.b16 %v272
    %v1131 = vunpack.c.h.b16 %v272
    %v1132 = vunpack.c.l.b16 %v273
    %v1133 = vunpack.c.h.b16 %v273
    %v1134 = vunpack.c.l.b16 %v274
    %v1135 = vunpack.c.h.b16 %v274
    %v1136 = vunpack.c.l.b16 %v275
    %v1137 = vunpack.c.h.b16 %v275
    %v1138 = vunpack.c.l.b16 %v276
    %v1139 = vunpack.c.h.b16 %v276
    %v1140 = vunpack.c.l.b16 %v277
    %v1141 = vunpack.c.h.b16 %v277
    %v1142 = vunpack.c.l.b16 %v278
    %v1143 = vunpack.c.h.b16 %v278
    %v1144 = vunpack.c.l.b16 %v279
    %v1145 = vunpack.c.h.b16 %v279
    %v1146 = vunpack.c.l.b16 %v280
    %v1147 = vunpack.c.h.b16 %v280
    %v1148 = vunpack.c.l.b16 %v281
    %v1149 = vunpack.c.h.b16 %v281
    %v1150 = vunpack.c.l.b16 %v282
    %v1151 = vunpack.c.h.b16 %v282
    %v1152 = vunpack.c.l.b16 %v283
    %v1153 = vunpack.c.h.b16 %v283
    %v1154 = vunpack.c.l.b16 %v284
    %v1155 = vunpack.c.h.b16 %v284
    %v1156 = vunpack.c.l.b16 %v285
    %v1157 = vunpack.c.h.b16 %v285
    %v1158 = vunpack.c.l.b16 %v286
    %v1159 = vunpack.c.h.b16 %v286
    %v1160 = vunpack.c.l.b16 %v287
    %v1161 = vunpack.c.h.b16 %v287
    %v1162 = vunpack.c.l.b16 %v288
    %v1163 = vunpack.c.h.b16 %v288
    %v1164 = vunpack.c.l.b16 %v289
    %v1165 = vunpack.c.h.b16 %v289
    %v1166 = vunpack.c.l.b16 %v290
    %v1167 = vunpack.c.h.b16 %v290
    %v1168 = vunpack.c.l.b16 %v291
    %v1169 = vunpack.c.h.b16 %v291
    %v1170 = vunpack.c.l.b16 %v292
    %v1171 = vunpack.c.h.b16 %v292
    %v1172 = vunpack.c.l.b16 %v293
    %v1173 = vunpack.c.h.b16 %v293
    %v1174 = vunpack.c.l.b16 %v294
    %v1175 = vunpack.c.h.b16 %v294
    %v1176 = vunpack.c.l.b16 %v295
    %v1177 = vunpack.c.h.b16 %v295
    %v1178 = vunpack.c.l.b16 %v296
    %v1179 = vunpack.c.h.b16 %v296
    %v1180 = vunpack.c.l.b16 %v297
    %v1181 = vunpack.c.h.b16 %v297
    %v1182 = vunpack.c.l.b16 %v298
    %v1183 = vunpack.c.h.b16 %v298
    %v1184 = vunpack.c.l.b16 %v299
    %v1185 = vunpack.c.h.b16 %v299
    %v1186 = vunpack.c.l.b16 %v300
    %v1187 = vunpack.c.h.b16 %v300
    %v1188 = vunpack.c.l.b16 %v301
    %v1189 = vunpack.c.h.b16 %v301
    %v1190 = vunpack.c.l.b16 %v302
    %v1191 = vunpack.c.h.b16 %v302
    %v1192 = vunpack.c.l.b16 %v303
    %v1193 = vunpack.c.h.b16 %v303
    %v1194 = vunpack.c.l.b16 %v304
    %v1195 = vunpack.c.h.b16 %v304
    %v1196 = vunpack.c.l.b16 %v305
    %v1197 = vunpack.c.h.b16 %v305
    %v1198 = vunpack.c.l.b16 %v306
    %v1199 = vunpack.c.h.b16 %v306
    %v1200 = vunpack.c.l.b16 %v307
    %v1201 = vunpack.c.h.b16 %v307
    %v1202 = vunpack.c.l.b16 %v308
    %v1203 = vunpack.c.h.b16 %v308
    %v1204 = vunpack.c.l.b16 %v309
    %v1205 = vunpack.c.h.b16 %v309
    %v1206 = vunpack.c.l.b16 %v310
    %v1207 = vunpack.c.h.b16 %v310
    %v1208 = vunpack.c.l.b16 %v311
    %v1209 = vunpack.c.h.b16 %v311
    %v1210 = vunpack.c.l.b16 %v312
    %v1211 = vunpack.c.h.b16 %v312
    %v1212 = vunpack.c.l.b16 %v313
    %v1213 = vunpack.c.h.b16 %v313
    %v1214 = vunpack.c.l.b16 %v314
    %v1215 = vunpack.c.h.b16 %v314
    %v1216 = vunpack.c.l.b16 %v315
    %v1217 = vunpack.c.h.b16 %v315
    %v1218 = vunpack.c.l.b16 %v316
    %v1219 = vunpack.c.h.b16 %v316
    %v1220 = vunpack.c.l.b16 %v317
    %v1221 = vunpack.c.h.b16 %v317
    %v1222 = vunpack.c.l.b16 %v318
    %v1223 = vunpack.c.h.b16 %v318
    %v1224 = vunpack.c.l.b16 %v319
    %v1225 = vunpack.c.h.b16 %v319
    %v1226 = vunpack.c.l.b16 %v320
    %v1227 = vunpack.c.h.b16 %v320
    %v1228 = vunpack.c.l.b16 %v321
    %v1229 = vunpack.c.h.b16 %v321
    %v1230 = vunpack.c.l.b16 %v322
    %v1231 = vunpack.c.h.b16 %v322
    %v1232 = vunpack.c.l.b16 %v323
    %v1233 = vunpack.c.h.b16 %v323
    %v1234 = vunpack.c.l.b16 %v324
    %v1235 = vunpack.c.h.b16 %v324
    %v1236 = vunpack.c.l.b16 %v325
    %v1237 = vunpack.c.h.b16 %v325
    %v1238 = vunpack.c.l.b16 %v326
    %v1239 = vunpack.c.h.b16 %v326
    %v1240 = vunpack.c.l.b16 %v327
    %v1241 = vunpack.c.h.b16 %v327
    %v1242 = vunpack.c.l.b16 %v328
    %v1243 = vunpack.c.h.b16 %v328
    %v1244 = vunpack.c.l.b16 %v329
    %v1245 = vunpack.c.h.b16 %v329
    %v1246 = vunpack.c.l.b16 %v330
    %v1247 = vunpack.c.h.b16 %v330
    %v1248 = vunpack.c.l.b16 %v331
    %v1249 = vunpack.c.h.b16 %v331
    %v1250 = vunpack.c.l.b16 %v332
    %v1251 = vunpack.c.h.b16 %v332
    %v1252 = vunpack.c.l.b16 %v333
    %v1253 = vunpack.c.h.b16 %v333
    %v1254 = vunpack.c.l.b16 %v334
    %v1255 = vunpack.c.h.b16 %v334
    %v1256 = vunpack.c.l.b16 %v335
    %v1257 = vunpack.c.h.b16 %v335
    %v1258 = vunpack.c.l.b16 %v336
    %v1259 = vunpack.c.h.b16 %v336
    %v1260 = vunpack.c.l.b16 %v337
    %v1261 = vunpack.c.h.b16 %v337
    %v1262 = vunpack.c.l.b16 %v338
    %v1263 = vunpack.c.h.b16 %v338
    %v1264 = vunpack.c.l.b16 %v339
    %v1265 = vunpack.c.h.b16 %v339
    %v1266 = vunpack.c.l.b16 %v340
    %v1267 = vunpack.c.h.b16 %v340
    %v1268 = vunpack.c.l.b16 %v341
    %v1269 = vunpack.c.h.b16 %v341
    %v1270 = vpack.c.b16 %v760, %v758
    %v1271 = vpack.c.b16 %v761, %v759
    %v1272 = vpack.c.b16 %v764, %v762
    %v1273 = vpack.c.b16 %v765, %v763
    %v1274 = vpack.c.b16 %v768, %v766
    %v1275 = vpack.c.b16 %v769, %v767
    %v1276 = vpack.c.b16 %v772, %v770
    %v1277 = vpack.c.b16 %v773, %v771
    %v1278 = vpack.c.b16 %v776, %v774
    %v1279 = vpack.c.b16 %v777, %v775
    %v1280 = vpack.c.b16 %v780, %v778
    %v1281 = vpack.c.b16 %v781, %v779
    %v1282 = vpack.c.b16 %v784, %v782
    %v1283 = vpack.c.b16 %v785, %v783
    %v1284 = vpack.c.b16 %v788, %v786
    %v1285 = vpack.c.b16 %v789, %v787
    %v1286 = vpack.c.b16 %v792, %v790
    %v1287 = vpack.c.b16 %v793, %v791
    %v1288 = vpack.c.b16 %v796, %v794
    %v1289 = vpack.c.b16 %v797, %v795
    %v1290 = vpack.c.b16 %v800, %v798
    %v1291 = vpack.c.b16 %v801, %v799
    %v1292 = vpack.c.b16 %v804, %v802
    %v1293 = vpack.c.b16 %v805, %v803
    %v1294 = vpack.c.b16 %v808, %v806
    %v1295 = vpack.c.b16 %v809, %v807
    %v1296 = vpack.c.b16 %v812, %v810
    %v1297 = vpack.c.b16 %v813, %v811
    %v1298 = vpack.c.b16 %v816, %v814
    %v1299 = vpack.c.b16 %v817, %v815
    %v1300 = vpack.c.b16 %v820, %v818
    %v1301 = vpack.c.b16 %v821, %v819
    %v1302 = vpack.c.b16 %v824, %v822
    %v1303 = vpack.c.b16 %v825, %v823
    %v1304 = vpack.c.b16 %v828, %v826
    %v1305 = vpack.c.b16 %v829, %v827
    %v1306 = vpack.c.b16 %v832, %v830
    %v1307 = vpack.c.b16 %v833, %v831
    %v1308 = vpack.c.b16 %v836, %v834
    %v1309 = vpack.c.b16 %v837, %v835
    %v1310 = vpack.c.b16 %v840, %v838
    %v1311 = vpack.c.b16 %v841, %v839
    %v1312 = vpack.c.b16 %v844, %v842
    %v1313 = vpack.c.b16 %v845, %v843
    %v1314 = vpack.c.b16 %v848, %v846
    %v1315 = vpack.c.b16 %v849, %v847
    %v1316 = vpack.c.b16 %v852, %v850
    %v1317 = vpack.c.b16 %v853, %v851
    %v1318 = vpack.c.b16 %v856, %v854
    %v1319 = vpack.c.b16 %v857, %v855
    %v1320 = vpack.c.b16 %v860, %v858
    %v1321 = vpack.c.b16 %v861, %v859
    %v1322 = vpack.c.b16 %v864, %v862
    %v1323 = vpack.c.b16 %v865, %v863
    %v1324 = vpack.c.b16 %v868, %v866
    %v1325 = vpack.c.b16 %v869, %v867
    %v1326 = vpack.c.b16 %v872, %v870
    %v1327 = vpack.c.b16 %v873, %v871
    %v1328 = vpack.c.b16 %v876, %v874
    %v1329 = vpack.c.b16 %v877, %v875
    %v1330 = vpack.c.b16 %v880, %v878
    %v1331 = vpack.c.b16 %v881, %v879
    %v1332 = vpack.c.b16 %v884, %v882
    %v1333 = vpack.c.b16 %v885, %v883
    %v1334 = vpack.c.b16 %v888, %v886
    %v1335 = vpack.c.b16 %v889, %v887
    %v1336 = vpack.c.b16 %v892, %v890
    %v1337 = vpack.c.b16 %v893, %v891
    %v1338 = vpack.c.b16 %v896, %v894
    %v1339 = vpack.c.b16 %v897, %v895
    %v1340 = vpack.c.b16 %v900, %v898
    %v1341 = vpack.c.b16 %v901, %v899
    %v1342 = vpack.c.b16 %v904, %v902
    %v1343 = vpack.c.b16 %v905, %v903
    %v1344 = vpack.c.b16 %v908, %v906
    %v1345 = vpack.c.b16 %v909, %v907
    %v1346 = vpack.c.b16 %v912, %v910
    %v1347 = vpack.c.b16 %v913, %v911
    %v1348 = vpack.c.b16 %v916, %v914
    %v1349 = vpack.c.b16 %v917, %v915
    %v1350 = vpack.c.b16 %v920, %v918
    %v1351 = vpack.c.b16 %v921, %v919
    %v1352 = vpack.c.b16 %v924, %v922
    %v1353 = vpack.c.b16 %v925, %v923
    %v1354 = vpack.c.b16 %v928, %v926
    %v1355 = vpack.c.b16 %v929, %v927
    %v1356 = vpack.c.b16 %v932, %v930
    %v1357 = vpack.c.b16 %v933, %v931
    %v1358 = vpack.c.b16 %v936, %v934
    %v1359 = vpack.c.b16 %v937, %v935
    %v1360 = vpack.c.b16 %v940, %v938
    %v1361 = vpack.c.b16 %v941, %v939
    %v1362 = vpack.c.b16 %v944, %v942
    %v1363 = vpack.c.b16 %v945, %v943
    %v1364 = vpack.c.b16 %v948, %v946
    %v1365 = vpack.c.b16 %v949, %v947
    %v1366 = vpack.c.b16 %v952, %v950
    %v1367 = vpack.c.b16 %v953, %v951
    %v1368 = vpack.c.b16 %v956, %v954
    %v1369 = vpack.c.b16 %v957, %v955
    %v1370 = vpack.c.b16 %v960, %v958
    %v1371 = vpack.c.b16 %v961, %v959
    %v1372 = vpack.c.b16 %v964, %v962
    %v1373 = vpack.c.b16 %v965, %v963
    %v1374 = vpack.c.b16 %v968, %v966
    %v1375 = vpack.c.b16 %v969, %v967
    %v1376 = vpack.c.b16 %v972, %v970
    %v1377 = vpack.c.b16 %v973, %v971
    %v1378 = vpack.c.b16 %v976, %v974
    %v1379 = vpack.c.b16 %v977, %v975
    %v1380 = vpack.c.b16 %v980, %v978
    %v1381 = vpack.c.b16 %v981, %v979
    %v1382 = vpack.c.b16 %v984, %v982
    %v1383 = vpack.c.b16 %v985, %v983
    %v1384 = vpack.c.b16 %v988, %v986
    %v1385 = vpack.c.b16 %v989, %v987
    %v1386 = vpack.c.b16 %v992, %v990
    %v1387 = vpack.c.b16 %v993, %v991
    %v1388 = vpack.c.b16 %v996, %v994
    %v1389 = vpack.c.b16 %v997, %v995
    %v1390 = vpack.c.b16 %v1000, %v998
    %v1391 = vpack.c.b16 %v1001, %v999
    %v1392 = vpack.c.b16 %v1004, %v1002
    %v1393 = vpack.c.b16 %v1005, %v1003
    %v1394 = vpack.c.b16 %v1008, %v1006
    %v1395 = vpack.c.b16 %v1009, %v1007
    %v1396 = vpack.c.b16 %v1012, %v1010
    %v1397 = vpack.c.b16 %v1013, %v1011
    %v1398 = vpack.c.b16 %v1016, %v1014
    %v1399 = vpack.c.b16 %v1017, %v1015
    %v1400 = vpack.c.b16 %v1020, %v1018
    %v1401 = vpack.c.b16 %v1021, %v1019
    %v1402 = vpack.c.b16 %v1024, %v1022
    %v1403 = vpack.c.b16 %v1025, %v1023
    %v1404 = vpack.c.b16 %v1028, %v1026
    %v1405 = vpack.c.b16 %v1029, %v1027
    %v1406 = vpack.c.b16 %v1032, %v1030
    %v1407 = vpack.c.b16 %v1033, %v1031
    %v1408 = vpack.c.b16 %v1036, %v1034
    %v1409 = vpack.c.b16 %v1037, %v1035
    %v1410 = vpack.c.b16 %v1040, %v1038
    %v1411 = vpack.c.b16 %v1041, %v1039
    %v1412 = vpack.c.b16 %v1044, %v1042
    %v1413 = vpack.c.b16 %v1045, %v1043
    %v1414 = vpack.c.b16 %v1048, %v1046
    %v1415 = vpack.c.b16 %v1049, %v1047
    %v1416 = vpack.c.b16 %v1052, %v1050
    %v1417 = vpack.c.b16 %v1053, %v1051
    %v1418 = vpack.c.b16 %v1056, %v1054
    %v1419 = vpack.c.b16 %v1057, %v1055
    %v1420 = vpack.c.b16 %v1060, %v1058
    %v1421 = vpack.c.b16 %v1061, %v1059
    %v1422 = vpack.c.b16 %v1064, %v1062
    %v1423 = vpack.c.b16 %v1065, %v1063
    %v1424 = vpack.c.b16 %v1068, %v1066
    %v1425 = vpack.c.b16 %v1069, %v1067
    %v1426 = vpack.c.b16 %v1072, %v1070
    %v1427 = vpack.c.b16 %v1073, %v1071
    %v1428 = vpack.c.b16 %v1076, %v1074
    %v1429 = vpack.c.b16 %v1077, %v1075
    %v1430 = vpack.c.b16 %v1080, %v1078
    %v1431 = vpack.c.b16 %v1081, %v1079
    %v1432 = vpack.c.b16 %v1084, %v1082
    %v1433 = vpack.c.b16 %v1085, %v1083
    %v1434 = vpack.c.b16 %v1088, %v1086
    %v1435 = vpack.c.b16 %v1089, %v1087
    %v1436 = vpack.c.b16 %v1092, %v1090
    %v1437 = vpack.c.b16 %v1093, %v1091
    %v1438 = vpack.c.b16 %v1096, %v1094
    %v1439 = vpack.c.b16 %v1097, %v1095
    %v1440 = vpack.c.b16 %v1100, %v1098
    %v1441 = vpack.c.b16 %v1101, %v1099
    %v1442 = vpack.c.b16 %v1104, %v1102
    %v1443 = vpack.c.b16 %v1105, %v1103
    %v1444 = vpack.c.b16 %v1108, %v1106
    %v1445 = vpack.c.b16 %v1109, %v1107
    %v1446 = vpack.c.b16 %v1112, %v1110
    %v1447 = vpack.c.b16 %v1113, %v1111
    %v1448 = vpack.c.b16 %v1116, %v1114
    %v1449 = vpack.c.b16 %v1117, %v1115
    %v1450 = vpack.c.b16 %v1120, %v1118
    %v1451 = vpack.c.b16 %v1121, %v1119
    %v1452 = vpack.c.b16 %v1124, %v1122
    %v1453 = vpack.c.b16 %v1125, %v1123
    %v1454 = vpack.c.b16 %v1128, %v1126
    %v1455 = vpack.c.b16 %v1129, %v1127
    %v1456 = vpack.c.b16 %v1132, %v1130
    %v1457 = vpack.c.b16 %v1133, %v1131
    %v1458 = vpack.c.b16 %v1136, %v1134
    %v1459 = vpack.c.b16 %v1137, %v1135
    %v1460 = vpack.c.b16 %v1140, %v1138
    %v1461 = vpack.c.b16 %v1141, %v1139
    %v1462 = vpack.c.b16 %v1144, %v1142
    %v1463 = vpack.c.b16 %v1145, %v1143
    %v1464 = vpack.c.b16 %v1148, %v1146
    %v1465 = vpack.c.b16 %v1149, %v1147
    %v1466 = vpack.c.b16 %v1152, %v1150
    %v1467 = vpack.c.b16 %v1153, %v1151
    %v1468 = vpack.c.b16 %v1156, %v1154
    %v1469 = vpack.c.b16 %v1157, %v1155
    %v1470 = vpack.c.b16 %v1160, %v1158
    %v1471 = vpack.c.b16 %v1161, %v1159
    %v1472 = vpack.c.b16 %v1164, %v1162
    %v1473 = vpack.c.b16 %v1165, %v1163
    %v1474 = vpack.c.b16 %v1168, %v1166
    %v1475 = vpack.c.b16 %v1169, %v1167
    %v1476 = vpack.c.b16 %v1172, %v1170
    %v1477 = vpack.c.b16 %v1173, %v1171
    %v1478 = vpack.c.b16 %v1176, %v1174
    %v1479 = vpack.c.b16 %v1177, %v1175
    %v1480 = vpack.c.b16 %v1180, %v1178
    %v1481 = vpack.c.b16 %v1181, %v1179
    %v1482 = vpack.c.b16 %v1184, %v1182
    %v1483 = vpack.c.b16 %v1185, %v1183
    %v1484 = vpack.c.b16 %v1188, %v1186
    %v1485 = vpack.c.b16 %v1189, %v1187
    %v1486 = vpack.c.b16 %v1192, %v1190
    %v1487 = vpack.c.b16 %v1193, %v1191
    %v1488 = vpack.c.b16 %v1196, %v1194
    %v1489 = vpack.c.b16 %v1197, %v1195
    %v1490 = vpack.c.b16 %v1200, %v1198
    %v1491 = vpack.c.b16 %v1201, %v1199
    %v1492 = vpack.c.b16 %v1204, %v1202
    %v1493 = vpack.c.b16 %v1205, %v1203
    %v1494 = vpack.c.b16 %v1208, %v1206
    %v1495 = vpack.c.b16 %v1209, %v1207
    %v1496 = vpack.c.b16 %v1212, %v1210
    %v1497 = vpack.c.b16 %v1213, %v1211
    %v1498 = vpack.c.b16 %v1216, %v1214
    %v1499 = vpack.c.b16 %v1217, %v1215
    %v1500 = vpack.c.b16 %v1220, %v1218
    %v1501 = vpack.c.b16 %v1221, %v1219
    %v1502 = vpack.c.b16 %v1224, %v1222
    %v1503 = vpack.c.b16 %v1225, %v1223
    %v1504 = vpack.c.b16 %v1228, %v1226
    %v1505 = vpack.c.b16 %v1229, %v1227
    %v1506 = vpack.c.b16 %v1232, %v1230
    %v1507 = vpack.c.b16 %v1233, %v1231
    %v1508 = vpack.c.b16 %v1236, %v1234
    %v1509 = vpack.c.b16 %v1237, %v1235
    %v1510 = vpack.c.b16 %v1240, %v1238
    %v1511 = vpack.c.b16 %v1241, %v1239
    %v1512 = vpack.c.b16 %v1244, %v1242
    %v1513 = vpack.c.b16 %v1245, %v1243
    %v1514 = vpack.c.b16 %v1248, %v1246
    %v1515 = vpack.c.b16 %v1249, %v1247
    %v1516 = vpack.c.b16 %v1252, %v1250
    %v1517 = vpack.c.b16 %v1253, %v1251
    %v1518 = vpack.c.b16 %v1256, %v1254
    %v1519 = vpack.c.b16 %v1257, %v1255
    %v1520 = vpack.c.b16 %v1260, %v1258
    %v1521 = vpack.c.b16 %v1261, %v1259
    %v1522 = vpack.c.b16 %v1264, %v1262
    %v1523 = vpack.c.b16 %v1265, %v1263
    %v1524 = vpack.c.b16 %v1268, %v1266
    %v1525 = vpack.c.b16 %v1269, %v1267
    %1782 = vmatprep.subr.bf16.mxu0 %v1271
    %1783 = vmatpush1.bf16.msra.mxu0 %v1270
    %1784 = vmatprep.subr.bf16.mxu0 %v1273
    %1785 = vmatpush1.bf16.msra.mxu0 %v1272
    %1786 = vmatprep.subr.bf16.mxu0 %v1275
    %1787 = vmatpush1.bf16.msra.mxu0 %v1274
    %1788 = vmatprep.subr.bf16.mxu0 %v1277
    %1789 = vmatpush1.bf16.msra.mxu0 %v1276
    %1790 = vmatprep.subr.bf16.mxu0 %v1279
    %1791 = vmatpush1.bf16.msra.mxu0 %v1278
    %1792 = vmatprep.subr.bf16.mxu0 %v1281
    %1793 = vmatpush1.bf16.msra.mxu0 %v1280
    %1794 = vmatprep.subr.bf16.mxu0 %v1283
    %1795 = vmatpush1.bf16.msra.mxu0 %v1282
    %1796 = vmatprep.subr.bf16.mxu0 %v1285
    %1797 = vmatpush1.bf16.msra.mxu0 %v1284
    %1798 = vmatprep.subr.bf16.mxu0 %v1287
    %1799 = vmatpush1.bf16.msra.mxu0 %v1286
    %1800 = vmatprep.subr.bf16.mxu0 %v1289
    %1801 = vmatpush1.bf16.msra.mxu0 %v1288
    %1802 = vmatprep.subr.bf16.mxu0 %v1291
    %1803 = vmatpush1.bf16.msra.mxu0 %v1290
    %1804 = vmatprep.subr.bf16.mxu0 %v1293
    %1805 = vmatpush1.bf16.msra.mxu0 %v1292
    %1806 = vmatprep.subr.bf16.mxu0 %v1295
    %1807 = vmatpush1.bf16.msra.mxu0 %v1294
    %1808 = vmatprep.subr.bf16.mxu0 %v1297
    %1809 = vmatpush1.bf16.msra.mxu0 %v1296
    %1810 = vmatprep.subr.bf16.mxu0 %v1299
    %1811 = vmatpush1.bf16.msra.mxu0 %v1298
    %1812 = vmatprep.subr.bf16.mxu0 %v1301
    %1813 = vmatpush1.bf16.msra.mxu0 %v1300
    %1814 = vmatprep.mubr.bf16.mxu0 %v439
    %1815 = vmatmul.mubr.bf16.gmra.mrb[0].mxu0 %v438
    %v1816 = vpop.f32.mrb[0].mxu0
    %v1817 = vadd.f32 0.0, %v1816
    %v1818 = vpop.f32.mrb[0].mxu0
    %v1819 = vadd.f32 0.0, %v1818
    %v1820 = vpop.f32.mrb[0].mxu0
    %v1821 = vadd.f32 0.0, %v1820
    %v1822 = vpop.f32.mrb[0].mxu0
    %v1823 = vadd.f32 0.0, %v1822
    %1824 = vmatprep.mubr.bf16.mxu0 %v455
    %1825 = vmatmul.mubr.bf16.gmra.mrb[0].mxu0 %v454
    %v1826 = vpop.f32.mrb[0].mxu0
    %v1827 = vadd.f32 0.0, %v1826
    %v1828 = vpop.f32.mrb[0].mxu0
    %v1829 = vadd.f32 0.0, %v1828
    %v1830 = vpop.f32.mrb[0].mxu0
    %v1831 = vadd.f32 0.0, %v1830
    %v1832 = vpop.f32.mrb[0].mxu0
    %v1833 = vadd.f32 0.0, %v1832
    %1834 = vdwg.mxu0
    %1835 = vmatprep.subr.bf16.mxu0 %v1303
    %1836 = vmatpush1.bf16.msra.mxu0 %v1302
    %1837 = vmatprep.subr.bf16.mxu0 %v1305
    %1838 = vmatpush1.bf16.msra.mxu0 %v1304
    %1839 = vmatprep.subr.bf16.mxu0 %v1307
    %1840 = vmatpush1.bf16.msra.mxu0 %v1306
    %1841 = vmatprep.subr.bf16.mxu0 %v1309
    %1842 = vmatpush1.bf16.msra.mxu0 %v1308
    %1843 = vmatprep.subr.bf16.mxu0 %v1311
    %1844 = vmatpush1.bf16.msra.mxu0 %v1310
    %1845 = vmatprep.subr.bf16.mxu0 %v1313
    %1846 = vmatpush1.bf16.msra.mxu0 %v1312
    %1847 = vmatprep.subr.bf16.mxu0 %v1315
    %1848 = vmatpush1.bf16.msra.mxu0 %v1314
    %1849 = vmatprep.subr.bf16.mxu0 %v1317
    %1850 = vmatpush1.bf16.msra.mxu0 %v1316
    %1851 = vmatprep.subr.bf16.mxu0 %v1319
    %1852 = vmatpush1.bf16.msra.mxu0 %v1318
    %1853 = vmatprep.subr.bf16.mxu0 %v1321
    %1854 = vmatpush1.bf16.msra.mxu0 %v1320
    %1855 = vmatprep.subr.bf16.mxu0 %v1323
    %1856 = vmatpush1.bf16.msra.mxu0 %v1322
    %1857 = vmatprep.subr.bf16.mxu0 %v1325
    %1858 = vmatpush1.bf16.msra.mxu0 %v1324
    %1859 = vmatprep.subr.bf16.mxu0 %v1327
    %1860 = vmatpush1.bf16.msra.mxu0 %v1326
    %1861 = vmatprep.subr.bf16.mxu0 %v1329
    %1862 = vmatpush1.bf16.msra.mxu0 %v1328
    %1863 = vmatprep.subr.bf16.mxu0 %v1331
    %1864 = vmatpush1.bf16.msra.mxu0 %v1330
    %1865 = vmatprep.subr.bf16.mxu0 %v1333
    %1866 = vmatpush1.bf16.msra.mxu0 %v1332
    %1867 = vmatprep.mubr.bf16.mxu0 %v441
    %1868 = vmatmul.mubr.bf16.gmra.mrb[0].mxu0 %v440
    %v1869 = vpop.f32.mrb[0].mxu0
    %v1870 = vadd.f32 %v1817, %v1869
    %v1871 = vpop.f32.mrb[0].mxu0
    %v1872 = vadd.f32 %v1819, %v1871
    %v1873 = vpop.f32.mrb[0].mxu0
    %v1874 = vadd.f32 %v1821, %v1873
    %v1875 = vpop.f32.mrb[0].mxu0
    %v1876 = vadd.f32 %v1823, %v1875
    %1877 = vmatprep.mubr.bf16.mxu0 %v457
    %1878 = vmatmul.mubr.bf16.gmra.mrb[0].mxu0 %v456
    %v1879 = vpop.f32.mrb[0].mxu0
    %v1880 = vadd.f32 %v1827, %v1879
    %v1881 = vpop.f32.mrb[0].mxu0
    %v1882 = vadd.f32 %v1829, %v1881
    %v1883 = vpop.f32.mrb[0].mxu0
    %v1884 = vadd.f32 %v1831, %v1883
    %v1885 = vpop.f32.mrb[0].mxu0
    %v1886 = vadd.f32 %v1833, %v1885
    %1887 = vdwg.mxu0
    %1888 = vmatprep.subr.bf16.mxu0 %v1335
    %1889 = vmatpush1.bf16.msra.mxu0 %v1334
    %1890 = vmatprep.subr.bf16.mxu0 %v1337
    %1891 = vmatpush1.bf16.msra.mxu0 %v1336
    %1892 = vmatprep.subr.bf16.mxu0 %v1339
    %1893 = vmatpush1.bf16.msra.mxu0 %v1338
    %1894 = vmatprep.subr.bf16.mxu0 %v1341
    %1895 = vmatpush1.bf16.msra.mxu0 %v1340
    %1896 = vmatprep.subr.bf16.mxu0 %v1343
    %1897 = vmatpush1.bf16.msra.mxu0 %v1342
    %1898 = vmatprep.subr.bf16.mxu0 %v1345
    %1899 = vmatpush1.bf16.msra.mxu0 %v1344
    %1900 = vmatprep.subr.bf16.mxu0 %v1347
    %1901 = vmatpush1.bf16.msra.mxu0 %v1346
    %1902 = vmatprep.subr.bf16.mxu0 %v1349
    %1903 = vmatpush1.bf16.msra.mxu0 %v1348
    %1904 = vmatprep.subr.bf16.mxu0 %v1351
    %1905 = vmatpush1.bf16.msra.mxu0 %v1350
    %1906 = vmatprep.subr.bf16.mxu0 %v1353
    %1907 = vmatpush1.bf16.msra.mxu0 %v1352
    %1908 = vmatprep.subr.bf16.mxu0 %v1355
    %1909 = vmatpush1.bf16.msra.mxu0 %v1354
    %1910 = vmatprep.subr.bf16.mxu0 %v1357
    %1911 = vmatpush1.bf16.msra.mxu0 %v1356
    %1912 = vmatprep.subr.bf16.mxu0 %v1359
    %1913 = vmatpush1.bf16.msra.mxu0 %v1358
    %1914 = vmatprep.subr.bf16.mxu0 %v1361
    %1915 = vmatpush1.bf16.msra.mxu0 %v1360
    %1916 = vmatprep.subr.bf16.mxu0 %v1363
    %1917 = vmatpush1.bf16.msra.mxu0 %v1362
    %1918 = vmatprep.subr.bf16.mxu0 %v1365
    %1919 = vmatpush1.bf16.msra.mxu0 %v1364
    %1920 = vmatprep.mubr.bf16.mxu0 %v443
    %1921 = vmatmul.mubr.bf16.gmra.mrb[0].mxu0 %v442
    %v1922 = vpop.f32.mrb[0].mxu0
    %v1923 = vadd.f32 %v1870, %v1922
    %v1924 = vpop.f32.mrb[0].mxu0
    %v1925 = vadd.f32 %v1872, %v1924
    %v1926 = vpop.f32.mrb[0].mxu0
    %v1927 = vadd.f32 %v1874, %v1926
    %v1928 = vpop.f32.mrb[0].mxu0
    %v1929 = vadd.f32 %v1876, %v1928
    %1930 = vmatprep.mubr.bf16.mxu0 %v459
    %1931 = vmatmul.mubr.bf16.gmra.mrb[0].mxu0 %v458
    %v1932 = vpop.f32.mrb[0].mxu0
    %v1933 = vadd.f32 %v1880, %v1932
    %v1934 = vpop.f32.mrb[0].mxu0
    %v1935 = vadd.f32 %v1882, %v1934
    %v1936 = vpop.f32.mrb[0].mxu0
    %v1937 = vadd.f32 %v1884, %v1936
    %v1938 = vpop.f32.mrb[0].mxu0
    %v1939 = vadd.f32 %v1886, %v1938
    %1940 = vdwg.mxu0
    %1941 = vmatprep.subr.bf16.mxu0 %v1367
    %1942 = vmatpush1.bf16.msra.mxu0 %v1366
    %1943 = vmatprep.subr.bf16.mxu0 %v1369
    %1944 = vmatpush1.bf16.msra.mxu0 %v1368
    %1945 = vmatprep.subr.bf16.mxu0 %v1371
    %1946 = vmatpush1.bf16.msra.mxu0 %v1370
    %1947 = vmatprep.subr.bf16.mxu0 %v1373
    %1948 = vmatpush1.bf16.msra.mxu0 %v1372
    %1949 = vmatprep.subr.bf16.mxu0 %v1375
    %1950 = vmatpush1.bf16.msra.mxu0 %v1374
    %1951 = vmatprep.subr.bf16.mxu0 %v1377
    %1952 = vmatpush1.bf16.msra.mxu0 %v1376
    %1953 = vmatprep.subr.bf16.mxu0 %v1379
    %1954 = vmatpush1.bf16.msra.mxu0 %v1378
    %1955 = vmatprep.subr.bf16.mxu0 %v1381
    %1956 = vmatpush1.bf16.msra.mxu0 %v1380
    %1957 = vmatprep.subr.bf16.mxu0 %v1383
    %1958 = vmatpush1.bf16.msra.mxu0 %v1382
    %1959 = vmatprep.subr.bf16.mxu0 %v1385
    %1960 = vmatpush1.bf16.msra.mxu0 %v1384
    %1961 = vmatprep.subr.bf16.mxu0 %v1387
    %1962 = vmatpush1.bf16.msra.mxu0 %v1386
    %1963 = vmatprep.subr.bf16.mxu0 %v1389
    %1964 = vmatpush1.bf16.msra.mxu0 %v1388
    %1965 = vmatprep.subr.bf16.mxu0 %v1391
    %1966 = vmatpush1.bf16.msra.mxu0 %v1390
    %1967 = vmatprep.subr.bf16.mxu0 %v1393
    %1968 = vmatpush1.bf16.msra.mxu0 %v1392
    %1969 = vmatprep.subr.bf16.mxu0 %v1395
    %1970 = vmatpush1.bf16.msra.mxu0 %v1394
    %1971 = vmatprep.subr.bf16.mxu0 %v1397
    %1972 = vmatpush1.bf16.msra.mxu0 %v1396
    %1973 = vmatprep.mubr.bf16.mxu0 %v445
    %1974 = vmatmul.mubr.bf16.gmra.mrb[0].mxu0 %v444
    %v1975 = vpop.f32.mrb[0].mxu0
    %v1976 = vadd.f32 %v1923, %v1975
    %v1977 = vpop.f32.mrb[0].mxu0
    %v1978 = vadd.f32 %v1925, %v1977
    %v1979 = vpop.f32.mrb[0].mxu0
    %v1980 = vadd.f32 %v1927, %v1979
    %v1981 = vpop.f32.mrb[0].mxu0
    %v1982 = vadd.f32 %v1929, %v1981
    %1983 = vmatprep.mubr.bf16.mxu0 %v461
    %1984 = vmatmul.mubr.bf16.gmra.mrb[0].mxu0 %v460
    %v1985 = vpop.f32.mrb[0].mxu0
    %v1986 = vadd.f32 %v1933, %v1985
    %v1987 = vpop.f32.mrb[0].mxu0
    %v1988 = vadd.f32 %v1935, %v1987
    %v1989 = vpop.f32.mrb[0].mxu0
    %v1990 = vadd.f32 %v1937, %v1989
    %v1991 = vpop.f32.mrb[0].mxu0
    %v1992 = vadd.f32 %v1939, %v1991
    %1993 = vdwg.mxu0
    %1994 = vmatprep.subr.bf16.mxu0 %v1399
    %1995 = vmatpush1.bf16.msra.mxu0 %v1398
    %1996 = vmatprep.subr.bf16.mxu0 %v1401
    %1997 = vmatpush1.bf16.msra.mxu0 %v1400
    %1998 = vmatprep.subr.bf16.mxu0 %v1403
    %1999 = vmatpush1.bf16.msra.mxu0 %v1402
    %2000 = vmatprep.subr.bf16.mxu0 %v1405
    %2001 = vmatpush1.bf16.msra.mxu0 %v1404
    %2002 = vmatprep.subr.bf16.mxu0 %v1407
    %2003 = vmatpush1.bf16.msra.mxu0 %v1406
    %2004 = vmatprep.subr.bf16.mxu0 %v1409
    %2005 = vmatpush1.bf16.msra.mxu0 %v1408
    %2006 = vmatprep.subr.bf16.mxu0 %v1411
    %2007 = vmatpush1.bf16.msra.mxu0 %v1410
    %2008 = vmatprep.subr.bf16.mxu0 %v1413
    %2009 = vmatpush1.bf16.msra.mxu0 %v1412
    %2010 = vmatprep.subr.bf16.mxu0 %v1415
    %2011 = vmatpush1.bf16.msra.mxu0 %v1414
    %2012 = vmatprep.subr.bf16.mxu0 %v1417
    %2013 = vmatpush1.bf16.msra.mxu0 %v1416
    %2014 = vmatprep.subr.bf16.mxu0 %v1419
    %2015 = vmatpush1.bf16.msra.mxu0 %v1418
    %2016 = vmatprep.subr.bf16.mxu0 %v1421
    %2017 = vmatpush1.bf16.msra.mxu0 %v1420
    %2018 = vmatprep.subr.bf16.mxu0 %v1423
    %2019 = vmatpush1.bf16.msra.mxu0 %v1422
    %2020 = vmatprep.subr.bf16.mxu0 %v1425
    %2021 = vmatpush1.bf16.msra.mxu0 %v1424
    %2022 = vmatprep.subr.bf16.mxu0 %v1427
    %2023 = vmatpush1.bf16.msra.mxu0 %v1426
    %2024 = vmatprep.subr.bf16.mxu0 %v1429
    %2025 = vmatpush1.bf16.msra.mxu0 %v1428
    %2026 = vmatprep.mubr.bf16.mxu0 %v447
    %2027 = vmatmul.mubr.bf16.gmra.mrb[0].mxu0 %v446
    %v2028 = vpop.f32.mrb[0].mxu0
    %v2029 = vadd.f32 %v1976, %v2028
    %v2030 = vpop.f32.mrb[0].mxu0
    %v2031 = vadd.f32 %v1978, %v2030
    %v2032 = vpop.f32.mrb[0].mxu0
    %v2033 = vadd.f32 %v1980, %v2032
    %v2034 = vpop.f32.mrb[0].mxu0
    %v2035 = vadd.f32 %v1982, %v2034
    %2036 = vmatprep.mubr.bf16.mxu0 %v463
    %2037 = vmatmul.mubr.bf16.gmra.mrb[0].mxu0 %v462
    %v2038 = vpop.f32.mrb[0].mxu0
    %v2039 = vadd.f32 %v1986, %v2038
    %v2040 = vpop.f32.mrb[0].mxu0
    %v2041 = vadd.f32 %v1988, %v2040
    %v2042 = vpop.f32.mrb[0].mxu0
    %v2043 = vadd.f32 %v1990, %v2042
    %v2044 = vpop.f32.mrb[0].mxu0
    %v2045 = vadd.f32 %v1992, %v2044
    %2046 = vdwg.mxu0
    %2047 = vmatprep.subr.bf16.mxu0 %v1431
    %2048 = vmatpush1.bf16.msra.mxu0 %v1430
    %2049 = vmatprep.subr.bf16.mxu0 %v1433
    %2050 = vmatpush1.bf16.msra.mxu0 %v1432
    %2051 = vmatprep.subr.bf16.mxu0 %v1435
    %2052 = vmatpush1.bf16.msra.mxu0 %v1434
    %2053 = vmatprep.subr.bf16.mxu0 %v1437
    %2054 = vmatpush1.bf16.msra.mxu0 %v1436
    %2055 = vmatprep.subr.bf16.mxu0 %v1439
    %2056 = vmatpush1.bf16.msra.mxu0 %v1438
    %2057 = vmatprep.subr.bf16.mxu0 %v1441
    %2058 = vmatpush1.bf16.msra.mxu0 %v1440
    %2059 = vmatprep.subr.bf16.mxu0 %v1443
    %2060 = vmatpush1.bf16.msra.mxu0 %v1442
    %2061 = vmatprep.subr.bf16.mxu0 %v1445
    %2062 = vmatpush1.bf16.msra.mxu0 %v1444
    %2063 = vmatprep.subr.bf16.mxu0 %v1447
    %2064 = vmatpush1.bf16.msra.mxu0 %v1446
    %2065 = vmatprep.subr.bf16.mxu0 %v1449
    %2066 = vmatpush1.bf16.msra.mxu0 %v1448
    %2067 = vmatprep.subr.bf16.mxu0 %v1451
    %2068 = vmatpush1.bf16.msra.mxu0 %v1450
    %2069 = vmatprep.subr.bf16.mxu0 %v1453
    %2070 = vmatpush1.bf16.msra.mxu0 %v1452
    %2071 = vmatprep.subr.bf16.mxu0 %v1455
    %2072 = vmatpush1.bf16.msra.mxu0 %v1454
    %2073 = vmatprep.subr.bf16.mxu0 %v1457
    %2074 = vmatpush1.bf16.msra.mxu0 %v1456
    %2075 = vmatprep.subr.bf16.mxu0 %v1459
    %2076 = vmatpush1.bf16.msra.mxu0 %v1458
    %2077 = vmatprep.subr.bf16.mxu0 %v1461
    %2078 = vmatpush1.bf16.msra.mxu0 %v1460
    %2079 = vmatprep.mubr.bf16.mxu0 %v449
    %2080 = vmatmul.mubr.bf16.gmra.mrb[0].mxu0 %v448
    %v2081 = vpop.f32.mrb[0].mxu0
    %v2082 = vadd.f32 %v2029, %v2081
    %v2083 = vpop.f32.mrb[0].mxu0
    %v2084 = vadd.f32 %v2031, %v2083
    %v2085 = vpop.f32.mrb[0].mxu0
    %v2086 = vadd.f32 %v2033, %v2085
    %v2087 = vpop.f32.mrb[0].mxu0
    %v2088 = vadd.f32 %v2035, %v2087
    %2089 = vmatprep.mubr.bf16.mxu0 %v465
    %2090 = vmatmul.mubr.bf16.gmra.mrb[0].mxu0 %v464
    %v2091 = vpop.f32.mrb[0].mxu0
    %v2092 = vadd.f32 %v2039, %v2091
    %v2093 = vpop.f32.mrb[0].mxu0
    %v2094 = vadd.f32 %v2041, %v2093
    %v2095 = vpop.f32.mrb[0].mxu0
    %v2096 = vadd.f32 %v2043, %v2095
    %v2097 = vpop.f32.mrb[0].mxu0
    %v2098 = vadd.f32 %v2045, %v2097
    %2099 = vdwg.mxu0
    %2100 = vmatprep.subr.bf16.mxu0 %v1463
    %2101 = vmatpush1.bf16.msra.mxu0 %v1462
    %2102 = vmatprep.subr.bf16.mxu0 %v1465
    %2103 = vmatpush1.bf16.msra.mxu0 %v1464
    %2104 = vmatprep.subr.bf16.mxu0 %v1467
    %2105 = vmatpush1.bf16.msra.mxu0 %v1466
    %2106 = vmatprep.subr.bf16.mxu0 %v1469
    %2107 = vmatpush1.bf16.msra.mxu0 %v1468
    %2108 = vmatprep.subr.bf16.mxu0 %v1471
    %2109 = vmatpush1.bf16.msra.mxu0 %v1470
    %2110 = vmatprep.subr.bf16.mxu0 %v1473
    %2111 = vmatpush1.bf16.msra.mxu0 %v1472
    %2112 = vmatprep.subr.bf16.mxu0 %v1475
    %2113 = vmatpush1.bf16.msra.mxu0 %v1474
    %2114 = vmatprep.subr.bf16.mxu0 %v1477
    %2115 = vmatpush1.bf16.msra.mxu0 %v1476
    %2116 = vmatprep.subr.bf16.mxu0 %v1479
    %2117 = vmatpush1.bf16.msra.mxu0 %v1478
    %2118 = vmatprep.subr.bf16.mxu0 %v1481
    %2119 = vmatpush1.bf16.msra.mxu0 %v1480
    %2120 = vmatprep.subr.bf16.mxu0 %v1483
    %2121 = vmatpush1.bf16.msra.mxu0 %v1482
    %2122 = vmatprep.subr.bf16.mxu0 %v1485
    %2123 = vmatpush1.bf16.msra.mxu0 %v1484
    %2124 = vmatprep.subr.bf16.mxu0 %v1487
    %2125 = vmatpush1.bf16.msra.mxu0 %v1486
    %2126 = vmatprep.subr.bf16.mxu0 %v1489
    %2127 = vmatpush1.bf16.msra.mxu0 %v1488
    %2128 = vmatprep.subr.bf16.mxu0 %v1491
    %2129 = vmatpush1.bf16.msra.mxu0 %v1490
    %2130 = vmatprep.subr.bf16.mxu0 %v1493
    %2131 = vmatpush1.bf16.msra.mxu0 %v1492
    %2132 = vmatprep.mubr.bf16.mxu0 %v451
    %2133 = vmatmul.mubr.bf16.gmra.mrb[0].mxu0 %v450
    %v2134 = vpop.f32.mrb[0].mxu0
    %v2135 = vadd.f32 %v2082, %v2134
    %v2136 = vpop.f32.mrb[0].mxu0
    %v2137 = vadd.f32 %v2084, %v2136
    %v2138 = vpop.f32.mrb[0].mxu0
    %v2139 = vadd.f32 %v2086, %v2138
    %v2140 = vpop.f32.mrb[0].mxu0
    %v2141 = vadd.f32 %v2088, %v2140
    %2142 = vmatprep.mubr.bf16.mxu0 %v467
    %2143 = vmatmul.mubr.bf16.gmra.mrb[0].mxu0 %v466
    %v2144 = vpop.f32.mrb[0].mxu0
    %v2145 = vadd.f32 %v2092, %v2144
    %v2146 = vpop.f32.mrb[0].mxu0
    %v2147 = vadd.f32 %v2094, %v2146
    %v2148 = vpop.f32.mrb[0].mxu0
    %v2149 = vadd.f32 %v2096, %v2148
    %v2150 = vpop.f32.mrb[0].mxu0
    %v2151 = vadd.f32 %v2098, %v2150
    %2152 = vdwg.mxu0
    %2153 = vmatprep.subr.bf16.mxu0 %v1495
    %2154 = vmatpush1.bf16.msra.mxu0 %v1494
    %2155 = vmatprep.subr.bf16.mxu0 %v1497
    %2156 = vmatpush1.bf16.msra.mxu0 %v1496
    %2157 = vmatprep.subr.bf16.mxu0 %v1499
    %2158 = vmatpush1.bf16.msra.mxu0 %v1498
    %2159 = vmatprep.subr.bf16.mxu0 %v1501
    %2160 = vmatpush1.bf16.msra.mxu0 %v1500
    %2161 = vmatprep.subr.bf16.mxu0 %v1503
    %2162 = vmatpush1.bf16.msra.mxu0 %v1502
    %2163 = vmatprep.subr.bf16.mxu0 %v1505
    %2164 = vmatpush1.bf16.msra.mxu0 %v1504
    %2165 = vmatprep.subr.bf16.mxu0 %v1507
    %2166 = vmatpush1.bf16.msra.mxu0 %v1506
    %2167 = vmatprep.subr.bf16.mxu0 %v1509
    %2168 = vmatpush1.bf16.msra.mxu0 %v1508
    %2169 = vmatprep.subr.bf16.mxu0 %v1511
    %2170 = vmatpush1.bf16.msra.mxu0 %v1510
    %2171 = vmatprep.subr.bf16.mxu0 %v1513
    %2172 = vmatpush1.bf16.msra.mxu0 %v1512
    %2173 = vmatprep.subr.bf16.mxu0 %v1515
    %2174 = vmatpush1.bf16.msra.mxu0 %v1514
    %2175 = vmatprep.subr.bf16.mxu0 %v1517
    %2176 = vmatpush1.bf16.msra.mxu0 %v1516
    %2177 = vmatprep.subr.bf16.mxu0 %v1519
    %2178 = vmatpush1.bf16.msra.mxu0 %v1518
    %2179 = vmatprep.subr.bf16.mxu0 %v1521
    %2180 = vmatpush1.bf16.msra.mxu0 %v1520
    %2181 = vmatprep.subr.bf16.mxu0 %v1523
    %2182 = vmatpush1.bf16.msra.mxu0 %v1522
    %2183 = vmatprep.subr.bf16.mxu0 %v1525
    %2184 = vmatpush1.bf16.msra.mxu0 %v1524
    %2185 = vmatprep.mubr.bf16.mxu0 %v453
    %2186 = vmatmul.mubr.bf16.gmra.mrb[0].mxu0 %v452
    %v2187 = vpop.f32.mrb[0].mxu0
    %v2188 = vadd.f32 %v2135, %v2187
    %v2189 = vpop.f32.mrb[0].mxu0
    %v2190 = vadd.f32 %v2137, %v2189
    %v2191 = vpop.f32.mrb[0].mxu0
    %v2192 = vadd.f32 %v2139, %v2191
    %v2193 = vpop.f32.mrb[0].mxu0
    %v2194 = vadd.f32 %v2141, %v2193
    %2195 = vmatprep.mubr.bf16.mxu0 %v469
    %2196 = vmatmul.mubr.bf16.gmra.mrb[0].mxu0 %v468
    %v2197 = vpop.f32.mrb[0].mxu0
    %v2198 = vadd.f32 %v2145, %v2197
    %v2199 = vpop.f32.mrb[0].mxu0
    %v2200 = vadd.f32 %v2147, %v2199
    %v2201 = vpop.f32.mrb[0].mxu0
    %v2202 = vadd.f32 %v2149, %v2201
    %v2203 = vpop.f32.mrb[0].mxu0
    %v2204 = vadd.f32 %v2151, %v2203
    %2205 = vdwg.mxu0
    %v2206 = vld [vmem:[#allocation4] sm:$0x3]
    %v2208 = vlaneseq
    %v2209 = vshrl.u32 %v2208, 7
    %v2210 = vsub.s32 0, %v2209
    %v2211 = vrot.slane %v2206, %v2210
    %v2212 = vlaneseq
    %v2213 = vshrl.u32 %v2212, 7
    %v2214 = vsub.s32 1, %v2213
    %v2215 = vrot.slane %v2206, %v2214
    %v2218 = vmul.f32 %v2188, %v2211
    %v2219 = vmul.f32 %v2190, %v2215
    %v2220 = vmul.f32 %v2192, %v2211
    %v2221 = vmul.f32 %v2194, %v2215
    %v2222 = vmul.f32 %v2198, %v2211
    %v2223 = vmul.f32 %v2200, %v2215
    %v2224 = vmul.f32 %v2202, %v2211
    %v2225 = vmul.f32 %v2204, %v2215
    %v2226 = vld [vmem:[#allocation6] sm:$0x3]
    %v2228 = vlaneseq
    %v2229 = vshrl.u32 %v2228, 7
    %v2230 = vsub.s32 0, %v2229
    %v2231 = vrot.slane %v2226, %v2230
    %v2232 = vlaneseq
    %v2233 = vshrl.u32 %v2232, 7
    %v2234 = vsub.s32 1, %v2233
    %v2235 = vrot.slane %v2226, %v2234
    %v2238 = vadd.f32 %v2218, %v2231
    %v2239 = vadd.f32 %v2219, %v2235
    %v2240 = vadd.f32 %v2220, %v2231
    %v2241 = vadd.f32 %v2221, %v2235
    %v2242 = vadd.f32 %v2222, %v2231
    %v2243 = vadd.f32 %v2223, %v2235
    %v2244 = vadd.f32 %v2224, %v2231
    %v2245 = vadd.f32 %v2225, %v2235
    %vm2246 = vcmp.gt.f32.partialorder %v2238, 0.0
    %vm2247 = vcmp.gt.f32.partialorder %v2239, 0.0
    %vm2248 = vcmp.gt.f32.partialorder %v2240, 0.0
    %vm2249 = vcmp.gt.f32.partialorder %v2241, 0.0
    %vm2250 = vcmp.gt.f32.partialorder %v2242, 0.0
    %vm2251 = vcmp.gt.f32.partialorder %v2243, 0.0
    %vm2252 = vcmp.gt.f32.partialorder %v2244, 0.0
    %vm2253 = vcmp.gt.f32.partialorder %v2245, 0.0
    %v2254 = vmul.f32 %v2238, 0.2
    %v2255 = vmul.f32 %v2239, 0.2
    %v2256 = vmul.f32 %v2240, 0.2
    %v2257 = vmul.f32 %v2241, 0.2
    %v2258 = vmul.f32 %v2242, 0.2
    %v2259 = vmul.f32 %v2243, 0.2
    %v2260 = vmul.f32 %v2244, 0.2
    %v2261 = vmul.f32 %v2245, 0.2
    %v2262 = vsel %vm2246, %v2238, %v2254
    %v2263 = vsel %vm2247, %v2239, %v2255
    %v2264 = vsel %vm2248, %v2240, %v2256
    %v2265 = vsel %vm2249, %v2241, %v2257
    %v2266 = vsel %vm2250, %v2242, %v2258
    %v2267 = vsel %vm2251, %v2243, %v2259
    %v2268 = vsel %vm2252, %v2244, %v2260
    %v2269 = vsel %vm2253, %v2245, %v2261
    %v2270 = vpack.c.bf16 %v2264, %v2262
    %v2271 = vpack.c.bf16 %v2265, %v2263
    %v2272 = vpack.c.bf16 %v2268, %v2266
    %v2273 = vpack.c.bf16 %v2269, %v2267
    %v2278 = vunpack.c.l.b16 %v2270
    %v2279 = vunpack.c.l.b16 %v2271
    %v2280 = vunpack.c.h.b16 %v2270
    %v2281 = vunpack.c.h.b16 %v2271
    %v2282 = vunpack.c.l.b16 %v2272
    %v2283 = vunpack.c.l.b16 %v2273
    %v2284 = vunpack.c.h.b16 %v2272
    %v2285 = vunpack.c.h.b16 %v2273
    %v2286 = vpack.c.b16 %v2279, %v2278
    %v2287 = vpack.c.b16 %v2281, %v2280
    %v2288 = vpack.c.b16 %v2283, %v2282
    %v2289 = vpack.c.b16 %v2285, %v2284
    %2294 = vst [vmem:[%s4] sm:$0xff] %v2286
    %2295 = vst [vmem:[%s4 + $0x8] sm:$0xff] %v2287
    %2296 = vst [vmem:[%s4 + $0x10] sm:$0xff] %v2288
    %2297 = vst [vmem:[%s4 + $0x18] sm:$0xff] %v2289
    // Predicated region
    $region30: #{discriminator_forward.8} parent=1 // pred_check
      _
    $region31: #{discriminator_forward.8} parent=1 // pred_check_branch
      %2299 = sbr.rel (0) target = $region33
    $region32: #{discriminator_forward.8} parent=1 // pred_region
      _
    $region33: #{discriminator_forward.8} parent=1 // pred_fallthru
      _
    // Predicated region
    $region34: #{discriminator_forward.8} parent=1 // pred_check
      _
    $region35: #{discriminator_forward.8} parent=1 // pred_check_branch
      %2301 = sbr.rel (0) target = $region37
    $region36: #{discriminator_forward.8} parent=1 // pred_region
      _
    $region37: #{discriminator_forward.8} parent=1 // pred_fallthru
      _
    %2302 = vsyncpa [#allocation3], 1
    %2303 = vsyncpa [#allocation5], 1

// kernel: discriminator_forward.11
$region0: #{discriminator_forward.11}
  #allocation0 [shape = 'u32[]', space=smem, size = 0x4, offset = 0x4, fixed_abs, tag = 'smem constant byte address 0x4 - core index']
  #allocation1 [shape = 'u32[144,128]{1,0:T(1,128)}', space=vmem, size = 0x12000, scoped, tag = 'internal scratch']
  %s0 = inlined_call_operand.vmem [shape: bf16[8,1024], index: 0, kind: input, shape index: {}]
  %s1 = inlined_call_operand.vmem [shape: bf16[1024,128], index: 1, kind: input, shape index: {}]
  %s2 = inlined_call_operand.vmem [shape: f32[1,128], index: 2, kind: input, shape index: {}]
  %s3 = inlined_call_operand.vmem [shape: f32[1,128], index: 3, kind: input, shape index: {}]
  %s4 = inlined_call_operand.vmem [shape: f32[8,128], index: 4, kind: output, shape index: {}]
  %s5 = sld [smem:[#allocation0]]
  $region26: #{discriminator_forward.11} parent=0
    _
  %s7 = ssub.s32 1, %s5
  %s8 = scalar_select 0, %s7, %s5
  // Predicated region
  $region2: #{discriminator_forward.11} parent=0 // pred_check
    _
  $region3: #{discriminator_forward.11} parent=0 // pred_check_branch
    %10 = sbr.rel (0) target = $region5
  $region4: #{discriminator_forward.11} parent=0 // pred_region
    _
  $region5: #{discriminator_forward.11} parent=0 // pred_fallthru
    _
  // Predicated region
  $region6: #{discriminator_forward.11} parent=0 // pred_check
    _
  $region7: #{discriminator_forward.11} parent=0 // pred_check_branch
    %12 = sbr.rel (0) target = $region9
  $region8: #{discriminator_forward.11} parent=0 // pred_region
    _
  $region9: #{discriminator_forward.11} parent=0 // pred_fallthru
    _
  // Predicated region
  $region10: #{discriminator_forward.11} parent=0 // pred_check
    _
  $region11: #{discriminator_forward.11} parent=0 // pred_check_branch
    %14 = sbr.rel (0) target = $region13
  $region12: #{discriminator_forward.11} parent=0 // pred_region
    _
  $region13: #{discriminator_forward.11} parent=0 // pred_fallthru
    _
  // Predicated region
  $region14: #{discriminator_forward.11} parent=0 // pred_check
    _
  $region15: #{discriminator_forward.11} parent=0 // pred_check_branch
    %16 = sbr.rel (0) target = $region17
  $region16: #{discriminator_forward.11} parent=0 // pred_region
    _
  $region17: #{discriminator_forward.11} parent=0 // pred_fallthru
    _
  %v18 = vld [vmem:[%s0] sm:$0xff]
  %v19 = vld [vmem:[%s0 + $0x8] sm:$0xff]
  %v20 = vld [vmem:[%s0 + $0x10] sm:$0xff]
  %v21 = vld [vmem:[%s0 + $0x18] sm:$0xff]
  %v22 = vld [vmem:[%s1] sm:$0xf]
  %v23 = vld [vmem:[%s1 + $0x4] sm:$0xf]
  %v24 = vld [vmem:[%s1 + $0x8] sm:$0xf]
  %v25 = vld [vmem:[%s1 + $0xc] sm:$0xf]
  %v26 = vld [vmem:[%s1 + $0x10] sm:$0xf]
  %v27 = vld [vmem:[%s1 + $0x14] sm:$0xf]
  %v28 = vld [vmem:[%s1 + $0x18] sm:$0xf]
  %v29 = vld [vmem:[%s1 + $0x1c] sm:$0xf]
  %v30 = vld [vmem:[%s1 + $0x20] sm:$0xf]
  %v31 = vld [vmem:[%s1 + $0x24] sm:$0xf]
  %v32 = vld [vmem:[%s1 + $0x28] sm:$0xf]
  %v33 = vld [vmem:[%s1 + $0x2c] sm:$0xf]
  %v34 = vld [vmem:[%s1 + $0x30] sm:$0xf]
  %v35 = vld [vmem:[%s1 + $0x34] sm:$0xf]
  %v36 = vld [vmem:[%s1 + $0x38] sm:$0xf]
  %v37 = vld [vmem:[%s1 + $0x3c] sm:$0xf]
  %v38 = vld [vmem:[%s1 + $0x40] sm:$0xf]
  %v39 = vld [vmem:[%s1 + $0x44] sm:$0xf]
  %v40 = vld [vmem:[%s1 + $0x48] sm:$0xf]
  %v41 = vld [vmem:[%s1 + $0x4c] sm:$0xf]
  %v42 = vld [vmem:[%s1 + $0x50] sm:$0xf]
  %v43 = vld [vmem:[%s1 + $0x54] sm:$0xf]
  %v44 = vld [vmem:[%s1 + $0x58] sm:$0xf]
  %v45 = vld [vmem:[%s1 + $0x5c] sm:$0xf]
  %v46 = vld [vmem:[%s1 + $0x60] sm:$0xf]
  %v47 = vld [vmem:[%s1 + $0x64] sm:$0xf]
  %v48 = vld [vmem:[%s1 + $0x68] sm:$0xf]
  %v49 = vld [vmem:[%s1 + $0x6c] sm:$0xf]
  %v50 = vld [vmem:[%s1 + $0x70] sm:$0xf]
  %v51 = vld [vmem:[%s1 + $0x74] sm:$0xf]
  %v52 = vld [vmem:[%s1 + $0x78] sm:$0xf]
  %v53 = vld [vmem:[%s1 + $0x7c] sm:$0xf]
  %v54 = vld [vmem:[%s1 + $0x80] sm:$0xf]
  %v55 = vld [vmem:[%s1 + $0x84] sm:$0xf]
  %v56 = vld [vmem:[%s1 + $0x88] sm:$0xf]
  %v57 = vld [vmem:[%s1 + $0x8c] sm:$0xf]
  %v58 = vld [vmem:[%s1 + $0x90] sm:$0xf]
  %v59 = vld [vmem:[%s1 + $0x94] sm:$0xf]
  %v60 = vld [vmem:[%s1 + $0x98] sm:$0xf]
  %v61 = vld [vmem:[%s1 + $0x9c] sm:$0xf]
  %v62 = vld [vmem:[%s1 + $0xa0] sm:$0xf]
  %v63 = vld [vmem:[%s1 + $0xa4] sm:$0xf]
  %v64 = vld [vmem:[%s1 + $0xa8] sm:$0xf]
  %v65 = vld [vmem:[%s1 + $0xac] sm:$0xf]
  %v66 = vld [vmem:[%s1 + $0xb0] sm:$0xf]
  %v67 = vld [vmem:[%s1 + $0xb4] sm:$0xf]
  %v68 = vld [vmem:[%s1 + $0xb8] sm:$0xf]
  %v69 = vld [vmem:[%s1 + $0xbc] sm:$0xf]
  %v70 = vld [vmem:[%s1 + $0xc0] sm:$0xf]
  %v71 = vld [vmem:[%s1 + $0xc4] sm:$0xf]
  %v72 = vld [vmem:[%s1 + $0xc8] sm:$0xf]
  %v73 = vld [vmem:[%s1 + $0xcc] sm:$0xf]
  %v74 = vld [vmem:[%s1 + $0xd0] sm:$0xf]
  %v75 = vld [vmem:[%s1 + $0xd4] sm:$0xf]
  %v76 = vld [vmem:[%s1 + $0xd8] sm:$0xf]
  %v77 = vld [vmem:[%s1 + $0xdc] sm:$0xf]
  %v78 = vld [vmem:[%s1 + $0xe0] sm:$0xf]
  %v79 = vld [vmem:[%s1 + $0xe4] sm:$0xf]
  %v80 = vld [vmem:[%s1 + $0xe8] sm:$0xf]
  %v81 = vld [vmem:[%s1 + $0xec] sm:$0xf]
  %v82 = vld [vmem:[%s1 + $0xf0] sm:$0xf]
  %v83 = vld [vmem:[%s1 + $0xf4] sm:$0xf]
  %v84 = vld [vmem:[%s1 + $0xf8] sm:$0xf]
  %v85 = vld [vmem:[%s1 + $0xfc] sm:$0xf]
  %v86 = vld [vmem:[%s1 + $0x100] sm:$0xf]
  %v87 = vld [vmem:[%s1 + $0x104] sm:$0xf]
  %v88 = vld [vmem:[%s1 + $0x108] sm:$0xf]
  %v89 = vld [vmem:[%s1 + $0x10c] sm:$0xf]
  %v90 = vld [vmem:[%s1 + $0x110] sm:$0xf]
  %v91 = vld [vmem:[%s1 + $0x114] sm:$0xf]
  %v92 = vld [vmem:[%s1 + $0x118] sm:$0xf]
  %v93 = vld [vmem:[%s1 + $0x11c] sm:$0xf]
  %v94 = vld [vmem:[%s1 + $0x120] sm:$0xf]
  %v95 = vld [vmem:[%s1 + $0x124] sm:$0xf]
  %v96 = vld [vmem:[%s1 + $0x128] sm:$0xf]
  %v97 = vld [vmem:[%s1 + $0x12c] sm:$0xf]
  %v98 = vld [vmem:[%s1 + $0x130] sm:$0xf]
  %v99 = vld [vmem:[%s1 + $0x134] sm:$0xf]
  %v100 = vld [vmem:[%s1 + $0x138] sm:$0xf]
  %v101 = vld [vmem:[%s1 + $0x13c] sm:$0xf]
  %v102 = vld [vmem:[%s1 + $0x140] sm:$0xf]
  %v103 = vld [vmem:[%s1 + $0x144] sm:$0xf]
  %v104 = vld [vmem:[%s1 + $0x148] sm:$0xf]
  %v105 = vld [vmem:[%s1 + $0x14c] sm:$0xf]
  %v106 = vld [vmem:[%s1 + $0x150] sm:$0xf]
  %v107 = vld [vmem:[%s1 + $0x154] sm:$0xf]
  %v108 = vld [vmem:[%s1 + $0x158] sm:$0xf]
  %v109 = vld [vmem:[%s1 + $0x15c] sm:$0xf]
  %v110 = vld [vmem:[%s1 + $0x160] sm:$0xf]
  %v111 = vld [vmem:[%s1 + $0x164] sm:$0xf]
  %v112 = vld [vmem:[%s1 + $0x168] sm:$0xf]
  %v113 = vld [vmem:[%s1 + $0x16c] sm:$0xf]
  %v114 = vld [vmem:[%s1 + $0x170] sm:$0xf]
  %v115 = vld [vmem:[%s1 + $0x174] sm:$0xf]
  %v116 = vld [vmem:[%s1 + $0x178] sm:$0xf]
  %v117 = vld [vmem:[%s1 + $0x17c] sm:$0xf]
  %v118 = vld [vmem:[%s1 + $0x180] sm:$0xf]
  %v119 = vld [vmem:[%s1 + $0x184] sm:$0xf]
  %v120 = vld [vmem:[%s1 + $0x188] sm:$0xf]
  %v121 = vld [vmem:[%s1 + $0x18c] sm:$0xf]
  %v122 = vld [vmem:[%s1 + $0x190] sm:$0xf]
  %v123 = vld [vmem:[%s1 + $0x194] sm:$0xf]
  %v124 = vld [vmem:[%s1 + $0x198] sm:$0xf]
  %v125 = vld [vmem:[%s1 + $0x19c] sm:$0xf]
  %v126 = vld [vmem:[%s1 + $0x1a0] sm:$0xf]
  %v127 = vld [vmem:[%s1 + $0x1a4] sm:$0xf]
  %v128 = vld [vmem:[%s1 + $0x1a8] sm:$0xf]
  %v129 = vld [vmem:[%s1 + $0x1ac] sm:$0xf]
  %v130 = vld [vmem:[%s1 + $0x1b0] sm:$0xf]
  %v131 = vld [vmem:[%s1 + $0x1b4] sm:$0xf]
  %v132 = vld [vmem:[%s1 + $0x1b8] sm:$0xf]
  %v133 = vld [vmem:[%s1 + $0x1bc] sm:$0xf]
  %v134 = vld [vmem:[%s1 + $0x1c0] sm:$0xf]
  %v135 = vld [vmem:[%s1 + $0x1c4] sm:$0xf]
  %v136 = vld [vmem:[%s1 + $0x1c8] sm:$0xf]
  %v137 = vld [vmem:[%s1 + $0x1cc] sm:$0xf]
  %v138 = vld [vmem:[%s1 + $0x1d0] sm:$0xf]
  %v139 = vld [vmem:[%s1 + $0x1d4] sm:$0xf]
  %v140 = vld [vmem:[%s1 + $0x1d8] sm:$0xf]
  %v141 = vld [vmem:[%s1 + $0x1dc] sm:$0xf]
  %v142 = vld [vmem:[%s1 + $0x1e0] sm:$0xf]
  %v143 = vld [vmem:[%s1 + $0x1e4] sm:$0xf]
  %v144 = vld [vmem:[%s1 + $0x1e8] sm:$0xf]
  %v145 = vld [vmem:[%s1 + $0x1ec] sm:$0xf]
  %v146 = vld [vmem:[%s1 + $0x1f0] sm:$0xf]
  %v147 = vld [vmem:[%s1 + $0x1f4] sm:$0xf]
  %v148 = vld [vmem:[%s1 + $0x1f8] sm:$0xf]
  %v149 = vld [vmem:[%s1 + $0x1fc] sm:$0xf]
  %v154 = vunpack.c.l.b16 %v18
  %v155 = vunpack.c.h.b16 %v18
  %v156 = vunpack.c.l.b16 %v19
  %v157 = vunpack.c.h.b16 %v19
  %v158 = vunpack.c.l.b16 %v20
  %v159 = vunpack.c.h.b16 %v20
  %v160 = vunpack.c.l.b16 %v21
  %v161 = vunpack.c.h.b16 %v21
  %v162 = vpack.c.b16 %v154, %v154
  %v163 = vpack.c.b16 %v155, %v155
  %v164 = vpack.c.b16 %v156, %v156
  %v165 = vpack.c.b16 %v157, %v157
  %v166 = vpack.c.b16 %v158, %v158
  %v167 = vpack.c.b16 %v159, %v159
  %v168 = vpack.c.b16 %v160, %v160
  %v169 = vpack.c.b16 %v161, %v161
  %v306 = vunpack.c.l.b16 %v22
  %v307 = vunpack.c.l.b16 %v23
  %v308 = vunpack.c.l.b16 %v24
  %v309 = vunpack.c.l.b16 %v25
  %v310 = vunpack.c.l.b16 %v26
  %v311 = vunpack.c.l.b16 %v27
  %v312 = vunpack.c.l.b16 %v28
  %v313 = vunpack.c.l.b16 %v29
  %v314 = vunpack.c.l.b16 %v30
  %v315 = vunpack.c.l.b16 %v31
  %v316 = vunpack.c.l.b16 %v32
  %v317 = vunpack.c.l.b16 %v33
  %v318 = vunpack.c.l.b16 %v34
  %v319 = vunpack.c.l.b16 %v35
  %v320 = vunpack.c.l.b16 %v36
  %v321 = vunpack.c.l.b16 %v37
  %v322 = vunpack.c.l.b16 %v38
  %v323 = vunpack.c.l.b16 %v39
  %v324 = vunpack.c.l.b16 %v40
  %v325 = vunpack.c.l.b16 %v41
  %v326 = vunpack.c.l.b16 %v42
  %v327 = vunpack.c.l.b16 %v43
  %v328 = vunpack.c.l.b16 %v44
  %v329 = vunpack.c.l.b16 %v45
  %v330 = vunpack.c.l.b16 %v46
  %v331 = vunpack.c.l.b16 %v47
  %v332 = vunpack.c.l.b16 %v48
  %v333 = vunpack.c.l.b16 %v49
  %v334 = vunpack.c.l.b16 %v50
  %v335 = vunpack.c.l.b16 %v51
  %v336 = vunpack.c.l.b16 %v52
  %v337 = vunpack.c.l.b16 %v53
  %v338 = vunpack.c.l.b16 %v54
  %v339 = vunpack.c.l.b16 %v55
  %v340 = vunpack.c.l.b16 %v56
  %v341 = vunpack.c.l.b16 %v57
  %v342 = vunpack.c.l.b16 %v58
  %v343 = vunpack.c.l.b16 %v59
  %v344 = vunpack.c.l.b16 %v60
  %v345 = vunpack.c.l.b16 %v61
  %v346 = vunpack.c.l.b16 %v62
  %v347 = vunpack.c.l.b16 %v63
  %v348 = vunpack.c.l.b16 %v64
  %v349 = vunpack.c.l.b16 %v65
  %v350 = vunpack.c.l.b16 %v66
  %v351 = vunpack.c.l.b16 %v67
  %v352 = vunpack.c.l.b16 %v68
  %v353 = vunpack.c.l.b16 %v69
  %v354 = vunpack.c.l.b16 %v70
  %v355 = vunpack.c.l.b16 %v71
  %v356 = vunpack.c.l.b16 %v72
  %v357 = vunpack.c.l.b16 %v73
  %v358 = vunpack.c.l.b16 %v74
  %v359 = vunpack.c.l.b16 %v75
  %v360 = vunpack.c.l.b16 %v76
  %v361 = vunpack.c.l.b16 %v77
  %v362 = vunpack.c.l.b16 %v78
  %v363 = vunpack.c.l.b16 %v79
  %v364 = vunpack.c.l.b16 %v80
  %v365 = vunpack.c.l.b16 %v81
  %v366 = vunpack.c.l.b16 %v82
  %v367 = vunpack.c.l.b16 %v83
  %v368 = vunpack.c.l.b16 %v84
  %v369 = vunpack.c.l.b16 %v85
  %v370 = vunpack.c.l.b16 %v86
  %v371 = vunpack.c.l.b16 %v87
  %v372 = vunpack.c.l.b16 %v88
  %v373 = vunpack.c.l.b16 %v89
  %v374 = vunpack.c.l.b16 %v90
  %v375 = vunpack.c.l.b16 %v91
  %v376 = vunpack.c.l.b16 %v92
  %v377 = vunpack.c.l.b16 %v93
  %v378 = vunpack.c.l.b16 %v94
  %v379 = vunpack.c.l.b16 %v95
  %v380 = vunpack.c.l.b16 %v96
  %v381 = vunpack.c.l.b16 %v97
  %v382 = vunpack.c.l.b16 %v98
  %v383 = vunpack.c.l.b16 %v99
  %v384 = vunpack.c.l.b16 %v100
  %v385 = vunpack.c.l.b16 %v101
  %v386 = vunpack.c.l.b16 %v102
  %v387 = vunpack.c.l.b16 %v103
  %v388 = vunpack.c.l.b16 %v104
  %v389 = vunpack.c.l.b16 %v105
  %v390 = vunpack.c.l.b16 %v106
  %v391 = vunpack.c.l.b16 %v107
  %v392 = vunpack.c.l.b16 %v108
  %v393 = vunpack.c.l.b16 %v109
  %v394 = vunpack.c.l.b16 %v110
  %v395 = vunpack.c.l.b16 %v111
  %v396 = vunpack.c.l.b16 %v112
  %v397 = vunpack.c.l.b16 %v113
  %v398 = vunpack.c.l.b16 %v114
  %v399 = vunpack.c.l.b16 %v115
  %v400 = vunpack.c.l.b16 %v116
  %v401 = vunpack.c.l.b16 %v117
  %v402 = vunpack.c.l.b16 %v118
  %v403 = vunpack.c.l.b16 %v119
  %v404 = vunpack.c.l.b16 %v120
  %v405 = vunpack.c.l.b16 %v121
  %v406 = vunpack.c.l.b16 %v122
  %v407 = vunpack.c.l.b16 %v123
  %v408 = vunpack.c.l.b16 %v124
  %v409 = vunpack.c.l.b16 %v125
  %v410 = vunpack.c.l.b16 %v126
  %v411 = vunpack.c.l.b16 %v127
  %v412 = vunpack.c.l.b16 %v128
  %v413 = vunpack.c.l.b16 %v129
  %v414 = vunpack.c.l.b16 %v130
  %v415 = vunpack.c.l.b16 %v131
  %v416 = vunpack.c.l.b16 %v132
  %v417 = vunpack.c.l.b16 %v133
  %v418 = vunpack.c.l.b16 %v134
  %v419 = vunpack.c.l.b16 %v135
  %v420 = vunpack.c.l.b16 %v136
  %v421 = vunpack.c.l.b16 %v137
  %v422 = vunpack.c.l.b16 %v138
  %v423 = vunpack.c.l.b16 %v139
  %v424 = vunpack.c.l.b16 %v140
  %v425 = vunpack.c.l.b16 %v141
  %v426 = vunpack.c.l.b16 %v142
  %v427 = vunpack.c.l.b16 %v143
  %v428 = vunpack.c.l.b16 %v144
  %v429 = vunpack.c.l.b16 %v145
  %v430 = vunpack.c.l.b16 %v146
  %v431 = vunpack.c.l.b16 %v147
  %v432 = vunpack.c.l.b16 %v148
  %v433 = vunpack.c.l.b16 %v149
  %v434 = vpack.c.b16 %v307, %v306
  %v435 = vpack.c.b16 %v309, %v308
  %v436 = vpack.c.b16 %v311, %v310
  %v437 = vpack.c.b16 %v313, %v312
  %v438 = vpack.c.b16 %v315, %v314
  %v439 = vpack.c.b16 %v317, %v316
  %v440 = vpack.c.b16 %v319, %v318
  %v441 = vpack.c.b16 %v321, %v320
  %v442 = vpack.c.b16 %v323, %v322
  %v443 = vpack.c.b16 %v325, %v324
  %v444 = vpack.c.b16 %v327, %v326
  %v445 = vpack.c.b16 %v329, %v328
  %v446 = vpack.c.b16 %v331, %v330
  %v447 = vpack.c.b16 %v333, %v332
  %v448 = vpack.c.b16 %v335, %v334
  %v449 = vpack.c.b16 %v337, %v336
  %v450 = vpack.c.b16 %v339, %v338
  %v451 = vpack.c.b16 %v341, %v340
  %v452 = vpack.c.b16 %v343, %v342
  %v453 = vpack.c.b16 %v345, %v344
  %v454 = vpack.c.b16 %v347, %v346
  %v455 = vpack.c.b16 %v349, %v348
  %v456 = vpack.c.b16 %v351, %v350
  %v457 = vpack.c.b16 %v353, %v352
  %v458 = vpack.c.b16 %v355, %v354
  %v459 = vpack.c.b16 %v357, %v356
  %v460 = vpack.c.b16 %v359, %v358
  %v461 = vpack.c.b16 %v361, %v360
  %v462 = vpack.c.b16 %v363, %v362
  %v463 = vpack.c.b16 %v365, %v364
  %v464 = vpack.c.b16 %v367, %v366
  %v465 = vpack.c.b16 %v369, %v368
  %v466 = vpack.c.b16 %v371, %v370
  %v467 = vpack.c.b16 %v373, %v372
  %v468 = vpack.c.b16 %v375, %v374
  %v469 = vpack.c.b16 %v377, %v376
  %v470 = vpack.c.b16 %v379, %v378
  %v471 = vpack.c.b16 %v381, %v380
  %v472 = vpack.c.b16 %v383, %v382
  %v473 = vpack.c.b16 %v385, %v384
  %v474 = vpack.c.b16 %v387, %v386
  %v475 = vpack.c.b16 %v389, %v388
  %v476 = vpack.c.b16 %v391, %v390
  %v477 = vpack.c.b16 %v393, %v392
  %v478 = vpack.c.b16 %v395, %v394
  %v479 = vpack.c.b16 %v397, %v396
  %v480 = vpack.c.b16 %v399, %v398
  %v481 = vpack.c.b16 %v401, %v400
  %v482 = vpack.c.b16 %v403, %v402
  %v483 = vpack.c.b16 %v405, %v404
  %v484 = vpack.c.b16 %v407, %v406
  %v485 = vpack.c.b16 %v409, %v408
  %v486 = vpack.c.b16 %v411, %v410
  %v487 = vpack.c.b16 %v413, %v412
  %v488 = vpack.c.b16 %v415, %v414
  %v489 = vpack.c.b16 %v417, %v416
  %v490 = vpack.c.b16 %v419, %v418
  %v491 = vpack.c.b16 %v421, %v420
  %v492 = vpack.c.b16 %v423, %v422
  %v493 = vpack.c.b16 %v425, %v424
  %v494 = vpack.c.b16 %v427, %v426
  %v495 = vpack.c.b16 %v429, %v428
  %v496 = vpack.c.b16 %v431, %v430
  %v497 = vpack.c.b16 %v433, %v432
  %562 = vmatprep.subr.bf16.mxu0 0
  %563 = vmatpush1.bf16.msra.mxu0 %v434
  %564 = vmatprep.subr.bf16.mxu0 0
  %565 = vmatpush1.bf16.msra.mxu0 %v435
  %566 = vmatprep.subr.bf16.mxu0 0
  %567 = vmatpush1.bf16.msra.mxu0 %v436
  %568 = vmatprep.subr.bf16.mxu0 0
  %569 = vmatpush1.bf16.msra.mxu0 %v437
  %570 = vmatprep.subr.bf16.mxu0 0
  %571 = vmatpush1.bf16.msra.mxu0 %v438
  %572 = vmatprep.subr.bf16.mxu0 0
  %573 = vmatpush1.bf16.msra.mxu0 %v439
  %574 = vmatprep.subr.bf16.mxu0 0
  %575 = vmatpush1.bf16.msra.mxu0 %v440
  %576 = vmatprep.subr.bf16.mxu0 0
  %577 = vmatpush1.bf16.msra.mxu0 %v441
  %578 = vmatprep.subr.bf16.mxu0 0
  %579 = vmatpush1.bf16.msra.mxu0 %v442
  %580 = vmatprep.subr.bf16.mxu0 0
  %581 = vmatpush1.bf16.msra.mxu0 %v443
  %582 = vmatprep.subr.bf16.mxu0 0
  %583 = vmatpush1.bf16.msra.mxu0 %v444
  %584 = vmatprep.subr.bf16.mxu0 0
  %585 = vmatpush1.bf16.msra.mxu0 %v445
  %586 = vmatprep.subr.bf16.mxu0 0
  %587 = vmatpush1.bf16.msra.mxu0 %v446
  %588 = vmatprep.subr.bf16.mxu0 0
  %589 = vmatpush1.bf16.msra.mxu0 %v447
  %590 = vmatprep.subr.bf16.mxu0 0
  %591 = vmatpush1.bf16.msra.mxu0 %v448
  %592 = vmatprep.subr.bf16.mxu0 0
  %593 = vmatpush1.bf16.msra.mxu0 %v449
  %594 = vmatprep.mubr.bf16.mxu0 %v163
  %595 = vmatmul.mubr.bf16.gmra.mrb[0].mxu0 %v162
  %v596 = vpop.f32.mrb[0].mxu0
  %v597 = vadd.f32 0.0, %v596
  %v598 = vpop.f32.mrb[0].mxu0
  %v599 = vpop.f32.mrb[0].mxu0
  %v600 = vpop.f32.mrb[0].mxu0
  %601 = vdwg.mxu0
  %602 = vmatprep.subr.bf16.mxu0 0
  %603 = vmatpush1.bf16.msra.mxu0 %v450
  %604 = vmatprep.subr.bf16.mxu0 0
  %605 = vmatpush1.bf16.msra.mxu0 %v451
  %606 = vmatprep.subr.bf16.mxu0 0
  %607 = vmatpush1.bf16.msra.mxu0 %v452
  %608 = vmatprep.subr.bf16.mxu0 0
  %609 = vmatpush1.bf16.msra.mxu0 %v453
  %610 = vmatprep.subr.bf16.mxu0 0
  %611 = vmatpush1.bf16.msra.mxu0 %v454
  %612 = vmatprep.subr.bf16.mxu0 0
  %613 = vmatpush1.bf16.msra.mxu0 %v455
  %614 = vmatprep.subr.bf16.mxu0 0
  %615 = vmatpush1.bf16.msra.mxu0 %v456
  %616 = vmatprep.subr.bf16.mxu0 0
  %617 = vmatpush1.bf16.msra.mxu0 %v457
  %618 = vmatprep.subr.bf16.mxu0 0
  %619 = vmatpush1.bf16.msra.mxu0 %v458
  %620 = vmatprep.subr.bf16.mxu0 0
  %621 = vmatpush1.bf16.msra.mxu0 %v459
  %622 = vmatprep.subr.bf16.mxu0 0
  %623 = vmatpush1.bf16.msra.mxu0 %v460
  %624 = vmatprep.subr.bf16.mxu0 0
  %625 = vmatpush1.bf16.msra.mxu0 %v461
  %626 = vmatprep.subr.bf16.mxu0 0
  %627 = vmatpush1.bf16.msra.mxu0 %v462
  %628 = vmatprep.subr.bf16.mxu0 0
  %629 = vmatpush1.bf16.msra.mxu0 %v463
  %630 = vmatprep.subr.bf16.mxu0 0
  %631 = vmatpush1.bf16.msra.mxu0 %v464
  %632 = vmatprep.subr.bf16.mxu0 0
  %633 = vmatpush1.bf16.msra.mxu0 %v465
  %634 = vmatprep.mubr.bf16.mxu0 %v165
  %635 = vmatmul.mubr.bf16.gmra.mrb[0].mxu0 %v164
  %v636 = vpop.f32.mrb[0].mxu0
  %v637 = vadd.f32 %v597, %v636
  %v638 = vpop.f32.mrb[0].mxu0
  %v639 = vpop.f32.mrb[0].mxu0
  %v640 = vpop.f32.mrb[0].mxu0
  %641 = vdwg.mxu0
  %642 = vmatprep.subr.bf16.mxu0 0
  %643 = vmatpush1.bf16.msra.mxu0 %v466
  %644 = vmatprep.subr.bf16.mxu0 0
  %645 = vmatpush1.bf16.msra.mxu0 %v467
  %646 = vmatprep.subr.bf16.mxu0 0
  %647 = vmatpush1.bf16.msra.mxu0 %v468
  %648 = vmatprep.subr.bf16.mxu0 0
  %649 = vmatpush1.bf16.msra.mxu0 %v469
  %650 = vmatprep.subr.bf16.mxu0 0
  %651 = vmatpush1.bf16.msra.mxu0 %v470
  %652 = vmatprep.subr.bf16.mxu0 0
  %653 = vmatpush1.bf16.msra.mxu0 %v471
  %654 = vmatprep.subr.bf16.mxu0 0
  %655 = vmatpush1.bf16.msra.mxu0 %v472
  %656 = vmatprep.subr.bf16.mxu0 0
  %657 = vmatpush1.bf16.msra.mxu0 %v473
  %658 = vmatprep.subr.bf16.mxu0 0
  %659 = vmatpush1.bf16.msra.mxu0 %v474
  %660 = vmatprep.subr.bf16.mxu0 0
  %661 = vmatpush1.bf16.msra.mxu0 %v475
  %662 = vmatprep.subr.bf16.mxu0 0
  %663 = vmatpush1.bf16.msra.mxu0 %v476
  %664 = vmatprep.subr.bf16.mxu0 0
  %665 = vmatpush1.bf16.msra.mxu0 %v477
  %666 = vmatprep.subr.bf16.mxu0 0
  %667 = vmatpush1.bf16.msra.mxu0 %v478
  %668 = vmatprep.subr.bf16.mxu0 0
  %669 = vmatpush1.bf16.msra.mxu0 %v479
  %670 = vmatprep.subr.bf16.mxu0 0
  %671 = vmatpush1.bf16.msra.mxu0 %v480
  %672 = vmatprep.subr.bf16.mxu0 0
  %673 = vmatpush1.bf16.msra.mxu0 %v481
  %674 = vmatprep.mubr.bf16.mxu0 %v167
  %675 = vmatmul.mubr.bf16.gmra.mrb[0].mxu0 %v166
  %v676 = vpop.f32.mrb[0].mxu0
  %v677 = vadd.f32 %v637, %v676
  %v678 = vpop.f32.mrb[0].mxu0
  %v679 = vpop.f32.mrb[0].mxu0
  %v680 = vpop.f32.mrb[0].mxu0
  %681 = vdwg.mxu0
  %682 = vmatprep.subr.bf16.mxu0 0
  %683 = vmatpush1.bf16.msra.mxu0 %v482
  %684 = vmatprep.subr.bf16.mxu0 0
  %685 = vmatpush1.bf16.msra.mxu0 %v483
  %686 = vmatprep.subr.bf16.mxu0 0
  %687 = vmatpush1.bf16.msra.mxu0 %v484
  %688 = vmatprep.subr.bf16.mxu0 0
  %689 = vmatpush1.bf16.msra.mxu0 %v485
  %690 = vmatprep.subr.bf16.mxu0 0
  %691 = vmatpush1.bf16.msra.mxu0 %v486
  %692 = vmatprep.subr.bf16.mxu0 0
  %693 = vmatpush1.bf16.msra.mxu0 %v487
  %694 = vmatprep.subr.bf16.mxu0 0
  %695 = vmatpush1.bf16.msra.mxu0 %v488
  %696 = vmatprep.subr.bf16.mxu0 0
  %697 = vmatpush1.bf16.msra.mxu0 %v489
  %698 = vmatprep.subr.bf16.mxu0 0
  %699 = vmatpush1.bf16.msra.mxu0 %v490
  %700 = vmatprep.subr.bf16.mxu0 0
  %701 = vmatpush1.bf16.msra.mxu0 %v491
  %702 = vmatprep.subr.bf16.mxu0 0
  %703 = vmatpush1.bf16.msra.mxu0 %v492
  %704 = vmatprep.subr.bf16.mxu0 0
  %705 = vmatpush1.bf16.msra.mxu0 %v493
  %706 = vmatprep.subr.bf16.mxu0 0
  %707 = vmatpush1.bf16.msra.mxu0 %v494
  %708 = vmatprep.subr.bf16.mxu0 0
  %709 = vmatpush1.bf16.msra.mxu0 %v495
  %710 = vmatprep.subr.bf16.mxu0 0
  %711 = vmatpush1.bf16.msra.mxu0 %v496
  %712 = vmatprep.subr.bf16.mxu0 0
  %713 = vmatpush1.bf16.msra.mxu0 %v497
  %714 = vmatprep.mubr.bf16.mxu0 %v169
  %715 = vmatmul.mubr.bf16.gmra.mrb[0].mxu0 %v168
  %v716 = vpop.f32.mrb[0].mxu0
  %v717 = vadd.f32 %v677, %v716
  %v718 = vpop.f32.mrb[0].mxu0
  %v719 = vpop.f32.mrb[0].mxu0
  %v720 = vpop.f32.mrb[0].mxu0
  %721 = vdwg.mxu0
  %v722 = vld [vmem:[%s2] sm:$0x1]
  %v724 = vlaneseq
  %v725 = vshrl.u32 %v724, 7
  %v726 = vsub.s32 0, %v725
  %v727 = vrot.slane %v722, %v726
  %v729 = vmul.f32 %v717, %v727
  %v730 = vld [vmem:[%s3] sm:$0x1]
  %v732 = vlaneseq
  %v733 = vshrl.u32 %v732, 7
  %v734 = vsub.s32 0, %v733
  %v735 = vrot.slane %v730, %v734
  %v737 = vadd.f32 %v729, %v735
  %738 = vst [vmem:[%s4] sm:$0xff] %v737
  // Predicated region
  $region18: #{discriminator_forward.11} parent=0 // pred_check
    _
  $region19: #{discriminator_forward.11} parent=0 // pred_check_branch
    %740 = sbr.rel (0) target = $region21
  $region20: #{discriminator_forward.11} parent=0 // pred_region
    _
  $region21: #{discriminator_forward.11} parent=0 // pred_fallthru
    _
  // Predicated region
  $region22: #{discriminator_forward.11} parent=0 // pred_check
    _
  $region23: #{discriminator_forward.11} parent=0 // pred_check_branch
    %742 = sbr.rel (0) target = $region25
  $region24: #{discriminator_forward.11} parent=0 // pred_region
    _
  $region25: #{discriminator_forward.11} parent=0 // pred_fallthru
    _

// kernel: discriminator_forward.10
$region0: #{discriminator_forward.10}
  #allocation0 [shape = 'u32[]', space=smem, size = 0x4, offset = 0x4, fixed_abs, tag = 'smem constant byte address 0x4 - core index']
  #allocation1 [shape = 'u32[144,128]{1,0:T(1,128)}', space=vmem, size = 0x12000, scoped, tag = 'internal scratch']
  #allocation2 [shape = 'f32[8,256]{1,0:T(8,128)}', space=vmem, size = 0x2000, scoped, tag = 'scratch operand']
  %s0 = inlined_call_operand.vmem [shape: bf16[8,8192], index: 0, kind: input, shape index: {}]
  %s1 = inlined_call_operand.hbm [shape: bf16[8192,1024], index: 1, kind: input, shape index: {}]
  %s2 = inlined_call_operand.hbm [shape: f32[1,1024], index: 2, kind: input, shape index: {}]
  %s3 = inlined_call_operand.hbm [shape: f32[1,1024], index: 3, kind: input, shape index: {}]
  %s4 = inlined_call_operand.vmem [shape: bf16[8,1024], index: 4, kind: output, shape index: {}]
  %s5 = sld [smem:[#allocation0]]
  $region69: #{discriminator_forward.10} parent=0
    _
  %s7 = ssub.s32 1, %s5
  %s8 = scalar_select 0, %s7, %s5
  $region1: #{discriminator_forward.10} parent=0
    #allocation3 [shape = 'u8[4194304]{0}', space=vmem, size = 0x400000, scoped, tag = 'input window, operand 1']
    #allocation4 [shape = 's32[2]{0}', space=sflag, size = 0x8, scoped, tag = 'scoped memory for discriminator_forward.10']
    #allocation5 [shape = 'u8[2048]{0}', space=vmem, size = 0x800, scoped, tag = 'input window, operand 2']
    #allocation6 [shape = 's32[2]{0}', space=sflag, size = 0x8, scoped, tag = 'scoped memory for discriminator_forward.10']
    #allocation7 [shape = 'u8[2048]{0}', space=vmem, size = 0x800, scoped, tag = 'input window, operand 3']
    %9 = vsyncpa [#allocation4], 0
    %s10 = scalar_lea.sflag [#allocation4], 1
    %11 = vsyncpa %s10, 0
    %12 = vsyncpa [#allocation6], 0
    %s13 = scalar_lea.sflag [#allocation6], 1
    %14 = vsyncpa %s13, 0
    loop: start=0, step=1, limit=10
    $region2: #{discriminator_forward.10} parent=1 // loop_pre_header
      _
    $region3: #{discriminator_forward.10} parent=1 // loop_header
      %s16 = sphi 0, %s20
      %p17 = scmp.ge.s32.totalorder %s16, 10
      %s23 = sphi 0, %s35
      %s24 = sphi 0, %s31
      %s25 = sphi 0, %s23
      %s26 = sphi 0, %s24
      %s27 = sphi 0, %s25
      %s28 = sphi 0, %s26
      %s38 = sphi 0, %s40
      %s41 = sphi 0, %s38
      %s42 = sphi 0, %s41
      %s58 = sphi 0, %s42
      %s66 = sphi 0, %s68
      %s69 = sphi 0, %s66
      %s70 = sphi 0, %s69
      %s86 = sphi 0, %s70
      %s92 = sphi 0, %s94
      %s95 = sphi 0, %s92
      %s96 = sphi 0, %s95
      %s112 = sphi 0, %s96
      %s118 = sphi 0, %s120
      %s121 = sphi 0, %s118
      %s122 = sphi 0, %s121
      %s138 = sphi 0, %s122
      %s144 = sphi 0, %s146
      %s147 = sphi 0, %s144
      %s148 = sphi 0, %s147
      %s164 = sphi 0, %s148
    $region4: #{discriminator_forward.10} parent=1 // loop_header_branch
      %19 = sbr.rel (%p17) target = $region8
    $region5: #{discriminator_forward.10} parent=1 // loop_body
      %s21 = ssub.s32 %s16, 1
      %s22 = ssub.s32 %s16, 2
      %s29 = sadd.s32 1, %s24
      %p30 = scmp.ge.s32.totalorder %s29, 2
      %s31 = scalar_select %p30, 0, %s29
      %s32 = sadd.s32 1, %s23
      %s33 = scalar_select %p30, %s32, %s23
      %p34 = scmp.ge.s32.totalorder %s33, 4
      %s35 = scalar_select %p34, 0, %s33
      %s36 = ssub.s32 %s24, %s31
      %p37 = scmp.eq.s32.totalorder %s36, 0
      %s39 = sadd.s32 %s38, 1
      %s40 = scalar_select %p37, %s38, %s39
      %p43 = pneg %p37
      %p44 = scmp.eq.s32.totalorder %s16, 7
      %p45 = por %p43, %p44
      %p46 = scmp.ne.s32.totalorder %s38, %s41
      %p47 = scmp.eq.s32.totalorder %s16, 0
      %p48 = por %p46, %p47
      %p49 = scmp.ne.s32.totalorder %s38, %s41
      %p50 = scmp.eq.s32.totalorder %s21, 7
      %p51 = por %p49, %p50
      %p52 = scmp.ne.s32.totalorder %s41, %s42
      %p53 = scmp.eq.s32.totalorder %s21, 0
      %p54 = por %p52, %p53
      %p55 = scmp.ne.s32.totalorder %s41, %s42
      %p56 = scmp.eq.s32.totalorder %s22, 7
      %p57 = por %p55, %p56
      %p59 = scmp.ne.s32.totalorder %s42, %s58
      %p60 = scmp.eq.s32.totalorder %s22, 0
      %p61 = por %p59, %p60
      %s62 = ssub.s32 %s24, %s31
      %s63 = ssub.s32 %s23, %s35
      %s64 = sor.u32 %s62, %s63
      %p65 = scmp.eq.s32.totalorder %s64, 0
      %s67 = sadd.s32 %s66, 1
      %s68 = scalar_select %p65, %s66, %s67
      %p71 = pneg %p65
      %p72 = scmp.eq.s32.totalorder %s16, 7
      %p73 = por %p71, %p72
      %p74 = scmp.ne.s32.totalorder %s66, %s69
      %p75 = scmp.eq.s32.totalorder %s16, 0
      %p76 = por %p74, %p75
      %p77 = scmp.ne.s32.totalorder %s66, %s69
      %p78 = scmp.eq.s32.totalorder %s21, 7
      %p79 = por %p77, %p78
      %p80 = scmp.ne.s32.totalorder %s69, %s70
      %p81 = scmp.eq.s32.totalorder %s21, 0
      %p82 = por %p80, %p81
      %p83 = scmp.ne.s32.totalorder %s69, %s70
      %p84 = scmp.eq.s32.totalorder %s22, 7
      %p85 = por %p83, %p84
      %p87 = scmp.ne.s32.totalorder %s70, %s86
      %p88 = scmp.eq.s32.totalorder %s22, 0
      %p89 = por %p87, %p88
      %s90 = ssub.s32 %s23, %s35
      %p91 = scmp.eq.s32.totalorder %s90, 0
      %s93 = sadd.s32 %s92, 1
      %s94 = scalar_select %p91, %s92, %s93
      %p97 = pneg %p91
      %p98 = scmp.eq.s32.totalorder %s16, 7
      %p99 = por %p97, %p98
      %p100 = scmp.ne.s32.totalorder %s92, %s95
      %p101 = scmp.eq.s32.totalorder %s16, 0
      %p102 = por %p100, %p101
      %p103 = scmp.ne.s32.totalorder %s92, %s95
      %p104 = scmp.eq.s32.totalorder %s21, 7
      %p105 = por %p103, %p104
      %p106 = scmp.ne.s32.totalorder %s95, %s96
      %p107 = scmp.eq.s32.totalorder %s21, 0
      %p108 = por %p106, %p107
      %p109 = scmp.ne.s32.totalorder %s95, %s96
      %p110 = scmp.eq.s32.totalorder %s22, 7
      %p111 = por %p109, %p110
      %p113 = scmp.ne.s32.totalorder %s96, %s112
      %p114 = scmp.eq.s32.totalorder %s22, 0
      %p115 = por %p113, %p114
      %s116 = ssub.s32 %s23, %s35
      %p117 = scmp.eq.s32.totalorder %s116, 0
      %s119 = sadd.s32 %s118, 1
      %s120 = scalar_select %p117, %s118, %s119
      %p123 = pneg %p117
      %p124 = scmp.eq.s32.totalorder %s16, 7
      %p125 = por %p123, %p124
      %p126 = scmp.ne.s32.totalorder %s118, %s121
      %p127 = scmp.eq.s32.totalorder %s16, 0
      %p128 = por %p126, %p127
      %p129 = scmp.ne.s32.totalorder %s118, %s121
      %p130 = scmp.eq.s32.totalorder %s21, 7
      %p131 = por %p129, %p130
      %p132 = scmp.ne.s32.totalorder %s121, %s122
      %p133 = scmp.eq.s32.totalorder %s21, 0
      %p134 = por %p132, %p133
      %p135 = scmp.ne.s32.totalorder %s121, %s122
      %p136 = scmp.eq.s32.totalorder %s22, 7
      %p137 = por %p135, %p136
      %p139 = scmp.ne.s32.totalorder %s122, %s138
      %p140 = scmp.eq.s32.totalorder %s22, 0
      %p141 = por %p139, %p140
      %s142 = ssub.s32 %s23, %s35
      %p143 = scmp.eq.s32.totalorder %s142, 0
      %s145 = sadd.s32 %s144, 1
      %s146 = scalar_select %p143, %s144, %s145
      %p149 = pneg %p143
      %p150 = scmp.eq.s32.totalorder %s16, 7
      %p151 = por %p149, %p150
      %p152 = scmp.ne.s32.totalorder %s144, %s147
      %p153 = scmp.eq.s32.totalorder %s16, 0
      %p154 = por %p152, %p153
      %p155 = scmp.ne.s32.totalorder %s144, %s147
      %p156 = scmp.eq.s32.totalorder %s21, 7
      %p157 = por %p155, %p156
      %p158 = scmp.ne.s32.totalorder %s147, %s148
      %p159 = scmp.eq.s32.totalorder %s21, 0
      %p160 = por %p158, %p159
      %p161 = scmp.ne.s32.totalorder %s147, %s148
      %p162 = scmp.eq.s32.totalorder %s22, 7
      %p163 = por %p161, %p162
      %p165 = scmp.ne.s32.totalorder %s148, %s164
      %p166 = scmp.eq.s32.totalorder %s22, 0
      %p167 = por %p165, %p166
      %p168 = scmp.le.s32.totalorder 1, %s16
      %p169 = scmp.lt.s32.totalorder %s16, 9
      %p170 = pnand %p168, %p169
      %p171 = pneg %p170
      // Predicated region
      $region9: #{discriminator_forward.10} parent=5 // pred_check
        _
      $region10: #{discriminator_forward.10} parent=5 // pred_check_branch
        %173 = sbr.rel (%p170) target = $region12
      $region11: #{discriminator_forward.10} parent=5 // pred_region
        %s174 = ssub.s32 %s16, 1
      $region12: #{discriminator_forward.10} parent=5 // pred_fallthru
        _
      %p175 = scmp.lt.s32.totalorder %s16, 8
      // Predicated region
      $region13: #{discriminator_forward.10} parent=5 // pred_check
        %p176 = pneg %p175
      $region14: #{discriminator_forward.10} parent=5 // pred_check_branch
        %178 = sbr.rel (%p176) target = $region16
      $region15: #{discriminator_forward.10} parent=5 // pred_region
        // Predicated region
        $region17: #{discriminator_forward.10} parent=15 // pred_check
          %p179 = pneg %p48
        $region18: #{discriminator_forward.10} parent=15 // pred_check_branch
          %181 = sbr.rel (%p179) target = $region20
        $region19: #{discriminator_forward.10} parent=15 // pred_region
          %s182 = smul.u32 32, %s24
          %p183 = scmp.lt.s32.totalorder %s182, 63
          %s184 = scalar_select %p183, %s182, 63
          %s185 = smul.addr %s184, 4
          %s186 = scalar_lea.vmem %s0, %s185
          %s187 = smul.u32 32, %s24
        $region20: #{discriminator_forward.10} parent=15 // pred_fallthru
          _
        // Predicated region
        $region21: #{discriminator_forward.10} parent=15 // pred_check
          %p188 = pneg %p76
        $region22: #{discriminator_forward.10} parent=15 // pred_check_branch
          %190 = sbr.rel (%p188) target = $region24
        $region23: #{discriminator_forward.10} parent=15 // pred_region
          %s191 = sand.u32 %s66, 1
          %s192 = scalar_lea.sflag [#allocation4], %s191
          %s193 = sand.u32 %s66, 1
          %s194 = smul.addr %s193, 4096
          %s195 = scalar_lea.vmem [#allocation3], %s194
          %s196 = smul.u32 512, %s24
          %s197 = smul.u32 2, %s23
          %s199 = ssub.s32 65536, 65536
          %200 = vsyncadd %s192, %s199
          %s201 = smul.addr %s196, 8
          %s202 = sadd.s32 %s197, %s201
          %s203 = smul.addr %s202, 64
          %s204 = scalar_lea.hbm %s1, %s203
          %s205 = sshll.u32 %s195, 4
          %s206 = int_to_ptr.vmem [resolvable:$true] %s205
          %211 = dma.hbm_to_vmem [thread:$0]  %s204, 65536, %s206, %s192, 512, 128, 8
        $region24: #{discriminator_forward.10} parent=15 // pred_fallthru
          _
        // Predicated region
        $region25: #{discriminator_forward.10} parent=15 // pred_check
          %p212 = pneg %p102
        $region26: #{discriminator_forward.10} parent=15 // pred_check_branch
          %214 = sbr.rel (%p212) target = $region28
        $region27: #{discriminator_forward.10} parent=15 // pred_region
          %s215 = sand.u32 %s16, 1
          %s216 = scalar_lea.sflag [#allocation6], %s215
          %s217 = sand.u32 %s92, 1
          %s218 = smul.addr %s217, 2
          %s219 = scalar_lea.vmem [#allocation5], %s218
          %s220 = smul.u32 2, %s23
          %s222 = ssub.s32 32, 32
          %223 = vsyncadd %s216, %s222
          %s224 = smul.addr %s220, 16
          %s225 = scalar_lea.hbm %s2, %s224
          %s227 = sshll.u32 %s219, 4
          %s228 = int_to_ptr.vmem [resolvable:$true] %s227
          %230 = dma.hbm_to_vmem [thread:$0]  %s225, 32, %s228, %s216
        $region28: #{discriminator_forward.10} parent=15 // pred_fallthru
          _
        // Predicated region
        $region29: #{discriminator_forward.10} parent=15 // pred_check
          %p231 = pneg %p128
        $region30: #{discriminator_forward.10} parent=15 // pred_check_branch
          %233 = sbr.rel (%p231) target = $region32
        $region31: #{discriminator_forward.10} parent=15 // pred_region
          %s234 = sand.u32 %s16, 1
          %s235 = scalar_lea.sflag [#allocation6], %s234
          %s236 = sand.u32 %s118, 1
          %s237 = smul.addr %s236, 2
          %s238 = scalar_lea.vmem [#allocation7], %s237
          %s239 = smul.u32 2, %s23
          %s241 = ssub.s32 32, 32
          %242 = vsyncadd %s235, %s241
          %s243 = smul.addr %s239, 16
          %s244 = scalar_lea.hbm %s3, %s243
          %s246 = sshll.u32 %s238, 4
          %s247 = int_to_ptr.vmem [resolvable:$true] %s246
          %249 = dma.hbm_to_vmem [thread:$0]  %s244, 32, %s247, %s235
        $region32: #{discriminator_forward.10} parent=15 // pred_fallthru
          _
      $region16: #{discriminator_forward.10} parent=5 // pred_fallthru
        _
      %p250 = scmp.le.s32.totalorder 1, %s16
      %p251 = scmp.lt.s32.totalorder %s16, 9
      %p252 = pnand %p250, %p251
      %p253 = pneg %p252
      // Predicated region
      $region33: #{discriminator_forward.10} parent=5 // pred_check
        _
      $region34: #{discriminator_forward.10} parent=5 // pred_check_branch
        %255 = sbr.rel (%p252) target = $region36
      $region35: #{discriminator_forward.10} parent=5 // pred_region
        %s256 = ssub.s32 %s16, 1
        %s257 = sand.u32 %s69, 1
        %s258 = scalar_lea.sflag [#allocation4], %s257
        %s259 = sand.u32 %s69, 1
        %s260 = smul.addr %s259, 4096
        %s261 = scalar_lea.vmem [#allocation3], %s260
        // Predicated region
        $region37: #{discriminator_forward.10} parent=35 // pred_check
          %p262 = pneg %p82
        $region38: #{discriminator_forward.10} parent=35 // pred_check_branch
          %264 = sbr.rel (%p262) target = $region40
        $region39: #{discriminator_forward.10} parent=35 // pred_region
          %265 = dma.done %s258, 65536
        $region40: #{discriminator_forward.10} parent=35 // pred_fallthru
          _
        %s266 = sand.u32 %s21, 1
        %s267 = scalar_lea.sflag [#allocation6], %s266
        %s268 = sand.u32 %s95, 1
        %s269 = smul.addr %s268, 2
        %s270 = scalar_lea.vmem [#allocation5], %s269
        // Predicated region
        $region41: #{discriminator_forward.10} parent=35 // pred_check
          %p271 = pneg %p108
        $region42: #{discriminator_forward.10} parent=35 // pred_check_branch
          %273 = sbr.rel (%p271) target = $region44
        $region43: #{discriminator_forward.10} parent=35 // pred_region
          %274 = dma.done %s267, 32
        $region44: #{discriminator_forward.10} parent=35 // pred_fallthru
          _
        %s275 = sand.u32 %s21, 1
        %s276 = scalar_lea.sflag [#allocation6], %s275
        %s277 = sand.u32 %s121, 1
        %s278 = smul.addr %s277, 2
        %s279 = scalar_lea.vmem [#allocation7], %s278
        // Predicated region
        $region45: #{discriminator_forward.10} parent=35 // pred_check
          %p280 = pneg %p134
        $region46: #{discriminator_forward.10} parent=35 // pred_check_branch
          %282 = sbr.rel (%p280) target = $region48
        $region47: #{discriminator_forward.10} parent=35 // pred_region
          %283 = dma.done %s276, 32
        $region48: #{discriminator_forward.10} parent=35 // pred_fallthru
          _
        %s284 = smul.u32 32, %s26
        %p285 = scmp.lt.s32.totalorder %s284, 63
        %s286 = scalar_select %p285, %s284, 63
        %s287 = smul.addr %s286, 4
        %s288 = scalar_lea.vmem %s0, %s287
        %p289 = pneg %p54
        %p290 = pneg %p51
        %s291 = sand.u32 %s69, 1
        %s292 = scalar_lea.sflag [#allocation4], %s291
        %s293 = sand.u32 %s69, 1
        %s294 = smul.addr %s293, 4096
        %s295 = scalar_lea.vmem [#allocation3], %s294
        %p296 = pneg %p82
        %p297 = pneg %p79
        %s298 = sand.u32 %s21, 1
        %s299 = scalar_lea.sflag [#allocation6], %s298
        %s300 = sand.u32 %s95, 1
        %s301 = smul.addr %s300, 2
        %s302 = scalar_lea.vmem [#allocation5], %s301
        %p303 = pneg %p108
        %p304 = pneg %p105
        %s305 = sand.u32 %s21, 1
        %s306 = scalar_lea.sflag [#allocation6], %s305
        %s307 = sand.u32 %s121, 1
        %s308 = smul.addr %s307, 2
        %s309 = scalar_lea.vmem [#allocation7], %s308
        %p310 = pneg %p134
        %p311 = pneg %p131
        %p312 = pneg %p160
        %p313 = pneg %p157
        %s314 = smul.u32 2, %s25
        %p315 = scmp.lt.s32.totalorder %s314, 7
        %s316 = scalar_select %p315, %s314, 7
        %s317 = smul.addr %s316, 4
        %s318 = scalar_lea.vmem %s4, %s317
        %s319 = smul.u32 32, %s26
        %p320 = scmp.lt.s32.totalorder %s319, 63
        %s321 = scalar_select %p320, %s319, 63
        %s322 = smul.addr %s321, 4
        %s323 = scalar_lea.vmem %s0, %s322
        %s324 = smul.u32 32, %s26
        %s325 = smul.u32 512, %s26
        %s326 = smul.u32 2, %s25
        %s327 = smul.u32 2, %s25
        %s328 = smul.u32 2, %s25
        %s329 = smul.u32 2, %s25
        %p330 = scmp.lt.s32.totalorder %s329, 7
        %s331 = scalar_select %p330, %s329, 7
        %s332 = smul.addr %s331, 4
        %s333 = scalar_lea.vmem %s4, %s332
        %s334 = smul.u32 2, %s25
        %p335 = scmp.eq.s32.totalorder %s26, 0
        // Predicated region
        $region49: #{discriminator_forward.10} parent=35 // pred_check
          %p336 = pneg %p335
        $region50: #{discriminator_forward.10} parent=35 // pred_check_branch
          %338 = sbr.rel (%p336) target = $region52
        $region51: #{discriminator_forward.10} parent=35 // pred_region
          %339 = vst [vmem:[#allocation2] sm:$0xff] 0.0
          %340 = vst [vmem:[#allocation2 + $0x8] sm:$0xff] 0.0
        $region52: #{discriminator_forward.10} parent=35 // pred_fallthru
          _
        %v341 = vld [vmem:[#allocation2] sm:$0xff]
        %v342 = vld [vmem:[#allocation2 + $0x8] sm:$0xff]
        %v343 = vld [vmem:[%s323] sm:$0xff]
        %v344 = vld [vmem:[%s323 + $0x8] sm:$0xff]
        %v345 = vld [vmem:[%s323 + $0x10] sm:$0xff]
        %v346 = vld [vmem:[%s323 + $0x18] sm:$0xff]
        %v347 = vld [vmem:[%s323 + $0x20] sm:$0xff]
        %v348 = vld [vmem:[%s323 + $0x28] sm:$0xff]
        %v349 = vld [vmem:[%s323 + $0x30] sm:$0xff]
        %v350 = vld [vmem:[%s323 + $0x38] sm:$0xff]
        %v351 = vld [vmem:[%s323 + $0x40] sm:$0xff]
        %v352 = vld [vmem:[%s323 + $0x48] sm:$0xff]
        %v353 = vld [vmem:[%s323 + $0x50] sm:$0xff]
        %v354 = vld [vmem:[%s323 + $0x58] sm:$0xff]
        %v355 = vld [vmem:[%s323 + $0x60] sm:$0xff]
        %v356 = vld [vmem:[%s323 + $0x68] sm:$0xff]
        %v357 = vld [vmem:[%s323 + $0x70] sm:$0xff]
        %v358 = vld [vmem:[%s323 + $0x78] sm:$0xff]
        %v359 = vld [vmem:[%s261] sm:$0xff]
        %v360 = vld [vmem:[%s261 + $0x8] sm:$0xff]
        %v361 = vld [vmem:[%s261 + $0x10] sm:$0xff]
        %v362 = vld [vmem:[%s261 + $0x18] sm:$0xff]
        %v363 = vld [vmem:[%s261 + $0x20] sm:$0xff]
        %v364 = vld [vmem:[%s261 + $0x28] sm:$0xff]
        %v365 = vld [vmem:[%s261 + $0x30] sm:$0xff]
        %v366 = vld [vmem:[%s261 + $0x38] sm:$0xff]
        %v367 = vld [vmem:[%s261 + $0x40] sm:$0xff]
        %v368 = vld [vmem:[%s261 + $0x48] sm:$0xff]
        %v369 = vld [vmem:[%s261 + $0x50] sm:$0xff]
        %v370 = vld [vmem:[%s261 + $0x58] sm:$0xff]
        %v371 = vld [vmem:[%s261 + $0x60] sm:$0xff]
        %v372 = vld [vmem:[%s261 + $0x68] sm:$0xff]
        %v373 = vld [vmem:[%s261 + $0x70] sm:$0xff]
        %v374 = vld [vmem:[%s261 + $0x78] sm:$0xff]
        %v375 = vld [vmem:[%s261 + $0x80] sm:$0xff]
        %v376 = vld [vmem:[%s261 + $0x88] sm:$0xff]
        %v377 = vld [vmem:[%s261 + $0x90] sm:$0xff]
        %v378 = vld [vmem:[%s261 + $0x98] sm:$0xff]
        %v379 = vld [vmem:[%s261 + $0xa0] sm:$0xff]
        %v380 = vld [vmem:[%s261 + $0xa8] sm:$0xff]
        %v381 = vld [vmem:[%s261 + $0xb0] sm:$0xff]
        %v382 = vld [vmem:[%s261 + $0xb8] sm:$0xff]
        %v383 = vld [vmem:[%s261 + $0xc0] sm:$0xff]
        %v384 = vld [vmem:[%s261 + $0xc8] sm:$0xff]
        %v385 = vld [vmem:[%s261 + $0xd0] sm:$0xff]
        %v386 = vld [vmem:[%s261 + $0xd8] sm:$0xff]
        %v387 = vld [vmem:[%s261 + $0xe0] sm:$0xff]
        %v388 = vld [vmem:[%s261 + $0xe8] sm:$0xff]
        %v389 = vld [vmem:[%s261 + $0xf0] sm:$0xff]
        %v390 = vld [vmem:[%s261 + $0xf8] sm:$0xff]
        %v391 = vld [vmem:[%s261 + $0x100] sm:$0xff]
        %v392 = vld [vmem:[%s261 + $0x108] sm:$0xff]
        %v393 = vld [vmem:[%s261 + $0x110] sm:$0xff]
        %v394 = vld [vmem:[%s261 + $0x118] sm:$0xff]
        %v395 = vld [vmem:[%s261 + $0x120] sm:$0xff]
        %v396 = vld [vmem:[%s261 + $0x128] sm:$0xff]
        %v397 = vld [vmem:[%s261 + $0x130] sm:$0xff]
        %v398 = vld [vmem:[%s261 + $0x138] sm:$0xff]
        %v399 = vld [vmem:[%s261 + $0x140] sm:$0xff]
        %v400 = vld [vmem:[%s261 + $0x148] sm:$0xff]
        %v401 = vld [vmem:[%s261 + $0x150] sm:$0xff]
        %v402 = vld [vmem:[%s261 + $0x158] sm:$0xff]
        %v403 = vld [vmem:[%s261 + $0x160] sm:$0xff]
        %v404 = vld [vmem:[%s261 + $0x168] sm:$0xff]
        %v405 = vld [vmem:[%s261 + $0x170] sm:$0xff]
        %v406 = vld [vmem:[%s261 + $0x178] sm:$0xff]
        %v407 = vld [vmem:[%s261 + $0x180] sm:$0xff]
        %v408 = vld [vmem:[%s261 + $0x188] sm:$0xff]
        %v409 = vld [vmem:[%s261 + $0x190] sm:$0xff]
        %v410 = vld [vmem:[%s261 + $0x198] sm:$0xff]
        %v411 = vld [vmem:[%s261 + $0x1a0] sm:$0xff]
        %v412 = vld [vmem:[%s261 + $0x1a8] sm:$0xff]
        %v413 = vld [vmem:[%s261 + $0x1b0] sm:$0xff]
        %v414 = vld [vmem:[%s261 + $0x1b8] sm:$0xff]
        %v415 = vld [vmem:[%s261 + $0x1c0] sm:$0xff]
        %v416 = vld [vmem:[%s261 + $0x1c8] sm:$0xff]
        %v417 = vld [vmem:[%s261 + $0x1d0] sm:$0xff]
        %v418 = vld [vmem:[%s261 + $0x1d8] sm:$0xff]
        %v419 = vld [vmem:[%s261 + $0x1e0] sm:$0xff]
        %v420 = vld [vmem:[%s261 + $0x1e8] sm:$0xff]
        %v421 = vld [vmem:[%s261 + $0x1f0] sm:$0xff]
        %v422 = vld [vmem:[%s261 + $0x1f8] sm:$0xff]
        %v423 = vld [vmem:[%s261 + $0x200] sm:$0xff]
        %v424 = vld [vmem:[%s261 + $0x208] sm:$0xff]
        %v425 = vld [vmem:[%s261 + $0x210] sm:$0xff]
        %v426 = vld [vmem:[%s261 + $0x218] sm:$0xff]
        %v427 = vld [vmem:[%s261 + $0x220] sm:$0xff]
        %v428 = vld [vmem:[%s261 + $0x228] sm:$0xff]
        %v429 = vld [vmem:[%s261 + $0x230] sm:$0xff]
        %v430 = vld [vmem:[%s261 + $0x238] sm:$0xff]
        %v431 = vld [vmem:[%s261 + $0x240] sm:$0xff]
        %v432 = vld [vmem:[%s261 + $0x248] sm:$0xff]
        %v433 = vld [vmem:[%s261 + $0x250] sm:$0xff]
        %v434 = vld [vmem:[%s261 + $0x258] sm:$0xff]
        %v435 = vld [vmem:[%s261 + $0x260] sm:$0xff]
        %v436 = vld [vmem:[%s261 + $0x268] sm:$0xff]
        %v437 = vld [vmem:[%s261 + $0x270] sm:$0xff]
        %v438 = vld [vmem:[%s261 + $0x278] sm:$0xff]
        %v439 = vld [vmem:[%s261 + $0x280] sm:$0xff]
        %v440 = vld [vmem:[%s261 + $0x288] sm:$0xff]
        %v441 = vld [vmem:[%s261 + $0x290] sm:$0xff]
        %v442 = vld [vmem:[%s261 + $0x298] sm:$0xff]
        %v443 = vld [vmem:[%s261 + $0x2a0] sm:$0xff]
        %v444 = vld [vmem:[%s261 + $0x2a8] sm:$0xff]
        %v445 = vld [vmem:[%s261 + $0x2b0] sm:$0xff]
        %v446 = vld [vmem:[%s261 + $0x2b8] sm:$0xff]
        %v447 = vld [vmem:[%s261 + $0x2c0] sm:$0xff]
        %v448 = vld [vmem:[%s261 + $0x2c8] sm:$0xff]
        %v449 = vld [vmem:[%s261 + $0x2d0] sm:$0xff]
        %v450 = vld [vmem:[%s261 + $0x2d8] sm:$0xff]
        %v451 = vld [vmem:[%s261 + $0x2e0] sm:$0xff]
        %v452 = vld [vmem:[%s261 + $0x2e8] sm:$0xff]
        %v453 = vld [vmem:[%s261 + $0x2f0] sm:$0xff]
        %v454 = vld [vmem:[%s261 + $0x2f8] sm:$0xff]
        %v455 = vld [vmem:[%s261 + $0x300] sm:$0xff]
        %v456 = vld [vmem:[%s261 + $0x308] sm:$0xff]
        %v457 = vld [vmem:[%s261 + $0x310] sm:$0xff]
        %v458 = vld [vmem:[%s261 + $0x318] sm:$0xff]
        %v459 = vld [vmem:[%s261 + $0x320] sm:$0xff]
        %v460 = vld [vmem:[%s261 + $0x328] sm:$0xff]
        %v461 = vld [vmem:[%s261 + $0x330] sm:$0xff]
        %v462 = vld [vmem:[%s261 + $0x338] sm:$0xff]
        %v463 = vld [vmem:[%s261 + $0x340] sm:$0xff]
        %v464 = vld [vmem:[%s261 + $0x348] sm:$0xff]
        %v465 = vld [vmem:[%s261 + $0x350] sm:$0xff]
        %v466 = vld [vmem:[%s261 + $0x358] sm:$0xff]
        %v467 = vld [vmem:[%s261 + $0x360] sm:$0xff]
        %v468 = vld [vmem:[%s261 + $0x368] sm:$0xff]
        %v469 = vld [vmem:[%s261 + $0x370] sm:$0xff]
        %v470 = vld [vmem:[%s261 + $0x378] sm:$0xff]
        %v471 = vld [vmem:[%s261 + $0x380] sm:$0xff]
        %v472 = vld [vmem:[%s261 + $0x388] sm:$0xff]
        %v473 = vld [vmem:[%s261 + $0x390] sm:$0xff]
        %v474 = vld [vmem:[%s261 + $0x398] sm:$0xff]
        %v475 = vld [vmem:[%s261 + $0x3a0] sm:$0xff]
        %v476 = vld [vmem:[%s261 + $0x3a8] sm:$0xff]
        %v477 = vld [vmem:[%s261 + $0x3b0] sm:$0xff]
        %v478 = vld [vmem:[%s261 + $0x3b8] sm:$0xff]
        %v479 = vld [vmem:[%s261 + $0x3c0] sm:$0xff]
        %v480 = vld [vmem:[%s261 + $0x3c8] sm:$0xff]
        %v481 = vld [vmem:[%s261 + $0x3d0] sm:$0xff]
        %v482 = vld [vmem:[%s261 + $0x3d8] sm:$0xff]
        %v483 = vld [vmem:[%s261 + $0x3e0] sm:$0xff]
        %v484 = vld [vmem:[%s261 + $0x3e8] sm:$0xff]
        %v485 = vld [vmem:[%s261 + $0x3f0] sm:$0xff]
        %v486 = vld [vmem:[%s261 + $0x3f8] sm:$0xff]
        %v487 = vld [vmem:[%s261 + $0x400] sm:$0xff]
        %v488 = vld [vmem:[%s261 + $0x408] sm:$0xff]
        %v489 = vld [vmem:[%s261 + $0x410] sm:$0xff]
        %v490 = vld [vmem:[%s261 + $0x418] sm:$0xff]
        %v491 = vld [vmem:[%s261 + $0x420] sm:$0xff]
        %v492 = vld [vmem:[%s261 + $0x428] sm:$0xff]
        %v493 = vld [vmem:[%s261 + $0x430] sm:$0xff]
        %v494 = vld [vmem:[%s261 + $0x438] sm:$0xff]
        %v495 = vld [vmem:[%s261 + $0x440] sm:$0xff]
        %v496 = vld [vmem:[%s261 + $0x448] sm:$0xff]
        %v497 = vld [vmem:[%s261 + $0x450] sm:$0xff]
        %v498 = vld [vmem:[%s261 + $0x458] sm:$0xff]
        %v499 = vld [vmem:[%s261 + $0x460] sm:$0xff]
        %v500 = vld [vmem:[%s261 + $0x468] sm:$0xff]
        %v501 = vld [vmem:[%s261 + $0x470] sm:$0xff]
        %v502 = vld [vmem:[%s261 + $0x478] sm:$0xff]
        %v503 = vld [vmem:[%s261 + $0x480] sm:$0xff]
        %v504 = vld [vmem:[%s261 + $0x488] sm:$0xff]
        %v505 = vld [vmem:[%s261 + $0x490] sm:$0xff]
        %v506 = vld [vmem:[%s261 + $0x498] sm:$0xff]
        %v507 = vld [vmem:[%s261 + $0x4a0] sm:$0xff]
        %v508 = vld [vmem:[%s261 + $0x4a8] sm:$0xff]
        %v509 = vld [vmem:[%s261 + $0x4b0] sm:$0xff]
        %v510 = vld [vmem:[%s261 + $0x4b8] sm:$0xff]
        %v511 = vld [vmem:[%s261 + $0x4c0] sm:$0xff]
        %v512 = vld [vmem:[%s261 + $0x4c8] sm:$0xff]
        %v513 = vld [vmem:[%s261 + $0x4d0] sm:$0xff]
        %v514 = vld [vmem:[%s261 + $0x4d8] sm:$0xff]
        %v515 = vld [vmem:[%s261 + $0x4e0] sm:$0xff]
        %v516 = vld [vmem:[%s261 + $0x4e8] sm:$0xff]
        %v517 = vld [vmem:[%s261 + $0x4f0] sm:$0xff]
        %v518 = vld [vmem:[%s261 + $0x4f8] sm:$0xff]
        %v519 = vld [vmem:[%s261 + $0x500] sm:$0xff]
        %v520 = vld [vmem:[%s261 + $0x508] sm:$0xff]
        %v521 = vld [vmem:[%s261 + $0x510] sm:$0xff]
        %v522 = vld [vmem:[%s261 + $0x518] sm:$0xff]
        %v523 = vld [vmem:[%s261 + $0x520] sm:$0xff]
        %v524 = vld [vmem:[%s261 + $0x528] sm:$0xff]
        %v525 = vld [vmem:[%s261 + $0x530] sm:$0xff]
        %v526 = vld [vmem:[%s261 + $0x538] sm:$0xff]
        %v527 = vld [vmem:[%s261 + $0x540] sm:$0xff]
        %v528 = vld [vmem:[%s261 + $0x548] sm:$0xff]
        %v529 = vld [vmem:[%s261 + $0x550] sm:$0xff]
        %v530 = vld [vmem:[%s261 + $0x558] sm:$0xff]
        %v531 = vld [vmem:[%s261 + $0x560] sm:$0xff]
        %v532 = vld [vmem:[%s261 + $0x568] sm:$0xff]
        %v533 = vld [vmem:[%s261 + $0x570] sm:$0xff]
        %v534 = vld [vmem:[%s261 + $0x578] sm:$0xff]
        %v535 = vld [vmem:[%s261 + $0x580] sm:$0xff]
        %v536 = vld [vmem:[%s261 + $0x588] sm:$0xff]
        %v537 = vld [vmem:[%s261 + $0x590] sm:$0xff]
        %v538 = vld [vmem:[%s261 + $0x598] sm:$0xff]
        %v539 = vld [vmem:[%s261 + $0x5a0] sm:$0xff]
        %v540 = vld [vmem:[%s261 + $0x5a8] sm:$0xff]
        %v541 = vld [vmem:[%s261 + $0x5b0] sm:$0xff]
        %v542 = vld [vmem:[%s261 + $0x5b8] sm:$0xff]
        %v543 = vld [vmem:[%s261 + $0x5c0] sm:$0xff]
        %v544 = vld [vmem:[%s261 + $0x5c8] sm:$0xff]
        %v545 = vld [vmem:[%s261 + $0x5d0] sm:$0xff]
        %v546 = vld [vmem:[%s261 + $0x5d8] sm:$0xff]
        %v547 = vld [vmem:[%s261 + $0x5e0] sm:$0xff]
        %v548 = vld [vmem:[%s261 + $0x5e8] sm:$0xff]
        %v549 = vld [vmem:[%s261 + $0x5f0] sm:$0xff]
        %v550 = vld [vmem:[%s261 + $0x5f8] sm:$0xff]
        %v551 = vld [vmem:[%s261 + $0x600] sm:$0xff]
        %v552 = vld [vmem:[%s261 + $0x608] sm:$0xff]
        %v553 = vld [vmem:[%s261 + $0x610] sm:$0xff]
        %v554 = vld [vmem:[%s261 + $0x618] sm:$0xff]
        %v555 = vld [vmem:[%s261 + $0x620] sm:$0xff]
        %v556 = vld [vmem:[%s261 + $0x628] sm:$0xff]
        %v557 = vld [vmem:[%s261 + $0x630] sm:$0xff]
        %v558 = vld [vmem:[%s261 + $0x638] sm:$0xff]
        %v559 = vld [vmem:[%s261 + $0x640] sm:$0xff]
        %v560 = vld [vmem:[%s261 + $0x648] sm:$0xff]
        %v561 = vld [vmem:[%s261 + $0x650] sm:$0xff]
        %v562 = vld [vmem:[%s261 + $0x658] sm:$0xff]
        %v563 = vld [vmem:[%s261 + $0x660] sm:$0xff]
        %v564 = vld [vmem:[%s261 + $0x668] sm:$0xff]
        %v565 = vld [vmem:[%s261 + $0x670] sm:$0xff]
        %v566 = vld [vmem:[%s261 + $0x678] sm:$0xff]
        %v567 = vld [vmem:[%s261 + $0x680] sm:$0xff]
        %v568 = vld [vmem:[%s261 + $0x688] sm:$0xff]
        %v569 = vld [vmem:[%s261 + $0x690] sm:$0xff]
        %v570 = vld [vmem:[%s261 + $0x698] sm:$0xff]
        %v571 = vld [vmem:[%s261 + $0x6a0] sm:$0xff]
        %v572 = vld [vmem:[%s261 + $0x6a8] sm:$0xff]
        %v573 = vld [vmem:[%s261 + $0x6b0] sm:$0xff]
        %v574 = vld [vmem:[%s261 + $0x6b8] sm:$0xff]
        %v575 = vld [vmem:[%s261 + $0x6c0] sm:$0xff]
        %v576 = vld [vmem:[%s261 + $0x6c8] sm:$0xff]
        %v577 = vld [vmem:[%s261 + $0x6d0] sm:$0xff]
        %v578 = vld [vmem:[%s261 + $0x6d8] sm:$0xff]
        %v579 = vld [vmem:[%s261 + $0x6e0] sm:$0xff]
        %v580 = vld [vmem:[%s261 + $0x6e8] sm:$0xff]
        %v581 = vld [vmem:[%s261 + $0x6f0] sm:$0xff]
        %v582 = vld [vmem:[%s261 + $0x6f8] sm:$0xff]
        %v583 = vld [vmem:[%s261 + $0x700] sm:$0xff]
        %v584 = vld [vmem:[%s261 + $0x708] sm:$0xff]
        %v585 = vld [vmem:[%s261 + $0x710] sm:$0xff]
        %v586 = vld [vmem:[%s261 + $0x718] sm:$0xff]
        %v587 = vld [vmem:[%s261 + $0x720] sm:$0xff]
        %v588 = vld [vmem:[%s261 + $0x728] sm:$0xff]
        %v589 = vld [vmem:[%s261 + $0x730] sm:$0xff]
        %v590 = vld [vmem:[%s261 + $0x738] sm:$0xff]
        %v591 = vld [vmem:[%s261 + $0x740] sm:$0xff]
        %v592 = vld [vmem:[%s261 + $0x748] sm:$0xff]
        %v593 = vld [vmem:[%s261 + $0x750] sm:$0xff]
        %v594 = vld [vmem:[%s261 + $0x758] sm:$0xff]
        %v595 = vld [vmem:[%s261 + $0x760] sm:$0xff]
        %v596 = vld [vmem:[%s261 + $0x768] sm:$0xff]
        %v597 = vld [vmem:[%s261 + $0x770] sm:$0xff]
        %v598 = vld [vmem:[%s261 + $0x778] sm:$0xff]
        %v599 = vld [vmem:[%s261 + $0x780] sm:$0xff]
        %v600 = vld [vmem:[%s261 + $0x788] sm:$0xff]
        %v601 = vld [vmem:[%s261 + $0x790] sm:$0xff]
        %v602 = vld [vmem:[%s261 + $0x798] sm:$0xff]
        %v603 = vld [vmem:[%s261 + $0x7a0] sm:$0xff]
        %v604 = vld [vmem:[%s261 + $0x7a8] sm:$0xff]
        %v605 = vld [vmem:[%s261 + $0x7b0] sm:$0xff]
        %v606 = vld [vmem:[%s261 + $0x7b8] sm:$0xff]
        %v607 = vld [vmem:[%s261 + $0x7c0] sm:$0xff]
        %v608 = vld [vmem:[%s261 + $0x7c8] sm:$0xff]
        %v609 = vld [vmem:[%s261 + $0x7d0] sm:$0xff]
        %v610 = vld [vmem:[%s261 + $0x7d8] sm:$0xff]
        %v611 = vld [vmem:[%s261 + $0x7e0] sm:$0xff]
        %v612 = vld [vmem:[%s261 + $0x7e8] sm:$0xff]
        %v613 = vld [vmem:[%s261 + $0x7f0] sm:$0xff]
        %v614 = vld [vmem:[%s261 + $0x7f8] sm:$0xff]
        %v615 = vld [vmem:[%s261 + $0x800] sm:$0xff]
        %v616 = vld [vmem:[%s261 + $0x808] sm:$0xff]
        %v617 = vld [vmem:[%s261 + $0x810] sm:$0xff]
        %v618 = vld [vmem:[%s261 + $0x818] sm:$0xff]
        %v619 = vld [vmem:[%s261 + $0x820] sm:$0xff]
        %v620 = vld [vmem:[%s261 + $0x828] sm:$0xff]
        %v621 = vld [vmem:[%s261 + $0x830] sm:$0xff]
        %v622 = vld [vmem:[%s261 + $0x838] sm:$0xff]
        %v623 = vld [vmem:[%s261 + $0x840] sm:$0xff]
        %v624 = vld [vmem:[%s261 + $0x848] sm:$0xff]
        %v625 = vld [vmem:[%s261 + $0x850] sm:$0xff]
        %v626 = vld [vmem:[%s261 + $0x858] sm:$0xff]
        %v627 = vld [vmem:[%s261 + $0x860] sm:$0xff]
        %v628 = vld [vmem:[%s261 + $0x868] sm:$0xff]
        %v629 = vld [vmem:[%s261 + $0x870] sm:$0xff]
        %v630 = vld [vmem:[%s261 + $0x878] sm:$0xff]
        %v631 = vld [vmem:[%s261 + $0x880] sm:$0xff]
        %v632 = vld [vmem:[%s261 + $0x888] sm:$0xff]
        %v633 = vld [vmem:[%s261 + $0x890] sm:$0xff]
        %v634 = vld [vmem:[%s261 + $0x898] sm:$0xff]
        %v635 = vld [vmem:[%s261 + $0x8a0] sm:$0xff]
        %v636 = vld [vmem:[%s261 + $0x8a8] sm:$0xff]
        %v637 = vld [vmem:[%s261 + $0x8b0] sm:$0xff]
        %v638 = vld [vmem:[%s261 + $0x8b8] sm:$0xff]
        %v639 = vld [vmem:[%s261 + $0x8c0] sm:$0xff]
        %v640 = vld [vmem:[%s261 + $0x8c8] sm:$0xff]
        %v641 = vld [vmem:[%s261 + $0x8d0] sm:$0xff]
        %v642 = vld [vmem:[%s261 + $0x8d8] sm:$0xff]
        %v643 = vld [vmem:[%s261 + $0x8e0] sm:$0xff]
        %v644 = vld [vmem:[%s261 + $0x8e8] sm:$0xff]
        %v645 = vld [vmem:[%s261 + $0x8f0] sm:$0xff]
        %v646 = vld [vmem:[%s261 + $0x8f8] sm:$0xff]
        %v647 = vld [vmem:[%s261 + $0x900] sm:$0xff]
        %v648 = vld [vmem:[%s261 + $0x908] sm:$0xff]
        %v649 = vld [vmem:[%s261 + $0x910] sm:$0xff]
        %v650 = vld [vmem:[%s261 + $0x918] sm:$0xff]
        %v651 = vld [vmem:[%s261 + $0x920] sm:$0xff]
        %v652 = vld [vmem:[%s261 + $0x928] sm:$0xff]
        %v653 = vld [vmem:[%s261 + $0x930] sm:$0xff]
        %v654 = vld [vmem:[%s261 + $0x938] sm:$0xff]
        %v655 = vld [vmem:[%s261 + $0x940] sm:$0xff]
        %v656 = vld [vmem:[%s261 + $0x948] sm:$0xff]
        %v657 = vld [vmem:[%s261 + $0x950] sm:$0xff]
        %v658 = vld [vmem:[%s261 + $0x958] sm:$0xff]
        %v659 = vld [vmem:[%s261 + $0x960] sm:$0xff]
        %v660 = vld [vmem:[%s261 + $0x968] sm:$0xff]
        %v661 = vld [vmem:[%s261 + $0x970] sm:$0xff]
        %v662 = vld [vmem:[%s261 + $0x978] sm:$0xff]
        %v663 = vld [vmem:[%s261 + $0x980] sm:$0xff]
        %v664 = vld [vmem:[%s261 + $0x988] sm:$0xff]
        %v665 = vld [vmem:[%s261 + $0x990] sm:$0xff]
        %v666 = vld [vmem:[%s261 + $0x998] sm:$0xff]
        %v667 = vld [vmem:[%s261 + $0x9a0] sm:$0xff]
        %v668 = vld [vmem:[%s261 + $0x9a8] sm:$0xff]
        %v669 = vld [vmem:[%s261 + $0x9b0] sm:$0xff]
        %v670 = vld [vmem:[%s261 + $0x9b8] sm:$0xff]
        %v671 = vld [vmem:[%s261 + $0x9c0] sm:$0xff]
        %v672 = vld [vmem:[%s261 + $0x9c8] sm:$0xff]
        %v673 = vld [vmem:[%s261 + $0x9d0] sm:$0xff]
        %v674 = vld [vmem:[%s261 + $0x9d8] sm:$0xff]
        %v675 = vld [vmem:[%s261 + $0x9e0] sm:$0xff]
        %v676 = vld [vmem:[%s261 + $0x9e8] sm:$0xff]
        %v677 = vld [vmem:[%s261 + $0x9f0] sm:$0xff]
        %v678 = vld [vmem:[%s261 + $0x9f8] sm:$0xff]
        %v679 = vld [vmem:[%s261 + $0xa00] sm:$0xff]
        %v680 = vld [vmem:[%s261 + $0xa08] sm:$0xff]
        %v681 = vld [vmem:[%s261 + $0xa10] sm:$0xff]
        %v682 = vld [vmem:[%s261 + $0xa18] sm:$0xff]
        %v683 = vld [vmem:[%s261 + $0xa20] sm:$0xff]
        %v684 = vld [vmem:[%s261 + $0xa28] sm:$0xff]
        %v685 = vld [vmem:[%s261 + $0xa30] sm:$0xff]
        %v686 = vld [vmem:[%s261 + $0xa38] sm:$0xff]
        %v687 = vld [vmem:[%s261 + $0xa40] sm:$0xff]
        %v688 = vld [vmem:[%s261 + $0xa48] sm:$0xff]
        %v689 = vld [vmem:[%s261 + $0xa50] sm:$0xff]
        %v690 = vld [vmem:[%s261 + $0xa58] sm:$0xff]
        %v691 = vld [vmem:[%s261 + $0xa60] sm:$0xff]
        %v692 = vld [vmem:[%s261 + $0xa68] sm:$0xff]
        %v693 = vld [vmem:[%s261 + $0xa70] sm:$0xff]
        %v694 = vld [vmem:[%s261 + $0xa78] sm:$0xff]
        %v695 = vld [vmem:[%s261 + $0xa80] sm:$0xff]
        %v696 = vld [vmem:[%s261 + $0xa88] sm:$0xff]
        %v697 = vld [vmem:[%s261 + $0xa90] sm:$0xff]
        %v698 = vld [vmem:[%s261 + $0xa98] sm:$0xff]
        %v699 = vld [vmem:[%s261 + $0xaa0] sm:$0xff]
        %v700 = vld [vmem:[%s261 + $0xaa8] sm:$0xff]
        %v701 = vld [vmem:[%s261 + $0xab0] sm:$0xff]
        %v702 = vld [vmem:[%s261 + $0xab8] sm:$0xff]
        %v703 = vld [vmem:[%s261 + $0xac0] sm:$0xff]
        %v704 = vld [vmem:[%s261 + $0xac8] sm:$0xff]
        %v705 = vld [vmem:[%s261 + $0xad0] sm:$0xff]
        %v706 = vld [vmem:[%s261 + $0xad8] sm:$0xff]
        %v707 = vld [vmem:[%s261 + $0xae0] sm:$0xff]
        %v708 = vld [vmem:[%s261 + $0xae8] sm:$0xff]
        %v709 = vld [vmem:[%s261 + $0xaf0] sm:$0xff]
        %v710 = vld [vmem:[%s261 + $0xaf8] sm:$0xff]
        %v711 = vld [vmem:[%s261 + $0xb00] sm:$0xff]
        %v712 = vld [vmem:[%s261 + $0xb08] sm:$0xff]
        %v713 = vld [vmem:[%s261 + $0xb10] sm:$0xff]
        %v714 = vld [vmem:[%s261 + $0xb18] sm:$0xff]
        %v715 = vld [vmem:[%s261 + $0xb20] sm:$0xff]
        %v716 = vld [vmem:[%s261 + $0xb28] sm:$0xff]
        %v717 = vld [vmem:[%s261 + $0xb30] sm:$0xff]
        %v718 = vld [vmem:[%s261 + $0xb38] sm:$0xff]
        %v719 = vld [vmem:[%s261 + $0xb40] sm:$0xff]
        %v720 = vld [vmem:[%s261 + $0xb48] sm:$0xff]
        %v721 = vld [vmem:[%s261 + $0xb50] sm:$0xff]
        %v722 = vld [vmem:[%s261 + $0xb58] sm:$0xff]
        %v723 = vld [vmem:[%s261 + $0xb60] sm:$0xff]
        %v724 = vld [vmem:[%s261 + $0xb68] sm:$0xff]
        %v725 = vld [vmem:[%s261 + $0xb70] sm:$0xff]
        %v726 = vld [vmem:[%s261 + $0xb78] sm:$0xff]
        %v727 = vld [vmem:[%s261 + $0xb80] sm:$0xff]
        %v728 = vld [vmem:[%s261 + $0xb88] sm:$0xff]
        %v729 = vld [vmem:[%s261 + $0xb90] sm:$0xff]
        %v730 = vld [vmem:[%s261 + $0xb98] sm:$0xff]
        %v731 = vld [vmem:[%s261 + $0xba0] sm:$0xff]
        %v732 = vld [vmem:[%s261 + $0xba8] sm:$0xff]
        %v733 = vld [vmem:[%s261 + $0xbb0] sm:$0xff]
        %v734 = vld [vmem:[%s261 + $0xbb8] sm:$0xff]
        %v735 = vld [vmem:[%s261 + $0xbc0] sm:$0xff]
        %v736 = vld [vmem:[%s261 + $0xbc8] sm:$0xff]
        %v737 = vld [vmem:[%s261 + $0xbd0] sm:$0xff]
        %v738 = vld [vmem:[%s261 + $0xbd8] sm:$0xff]
        %v739 = vld [vmem:[%s261 + $0xbe0] sm:$0xff]
        %v740 = vld [vmem:[%s261 + $0xbe8] sm:$0xff]
        %v741 = vld [vmem:[%s261 + $0xbf0] sm:$0xff]
        %v742 = vld [vmem:[%s261 + $0xbf8] sm:$0xff]
        %v743 = vld [vmem:[%s261 + $0xc00] sm:$0xff]
        %v744 = vld [vmem:[%s261 + $0xc08] sm:$0xff]
        %v745 = vld [vmem:[%s261 + $0xc10] sm:$0xff]
        %v746 = vld [vmem:[%s261 + $0xc18] sm:$0xff]
        %v747 = vld [vmem:[%s261 + $0xc20] sm:$0xff]
        %v748 = vld [vmem:[%s261 + $0xc28] sm:$0xff]
        %v749 = vld [vmem:[%s261 + $0xc30] sm:$0xff]
        %v750 = vld [vmem:[%s261 + $0xc38] sm:$0xff]
        %v751 = vld [vmem:[%s261 + $0xc40] sm:$0xff]
        %v752 = vld [vmem:[%s261 + $0xc48] sm:$0xff]
        %v753 = vld [vmem:[%s261 + $0xc50] sm:$0xff]
        %v754 = vld [vmem:[%s261 + $0xc58] sm:$0xff]
        %v755 = vld [vmem:[%s261 + $0xc60] sm:$0xff]
        %v756 = vld [vmem:[%s261 + $0xc68] sm:$0xff]
        %v757 = vld [vmem:[%s261 + $0xc70] sm:$0xff]
        %v758 = vld [vmem:[%s261 + $0xc78] sm:$0xff]
        %v759 = vld [vmem:[%s261 + $0xc80] sm:$0xff]
        %v760 = vld [vmem:[%s261 + $0xc88] sm:$0xff]
        %v761 = vld [vmem:[%s261 + $0xc90] sm:$0xff]
        %v762 = vld [vmem:[%s261 + $0xc98] sm:$0xff]
        %v763 = vld [vmem:[%s261 + $0xca0] sm:$0xff]
        %v764 = vld [vmem:[%s261 + $0xca8] sm:$0xff]
        %v765 = vld [vmem:[%s261 + $0xcb0] sm:$0xff]
        %v766 = vld [vmem:[%s261 + $0xcb8] sm:$0xff]
        %v767 = vld [vmem:[%s261 + $0xcc0] sm:$0xff]
        %v768 = vld [vmem:[%s261 + $0xcc8] sm:$0xff]
        %v769 = vld [vmem:[%s261 + $0xcd0] sm:$0xff]
        %v770 = vld [vmem:[%s261 + $0xcd8] sm:$0xff]
        %v771 = vld [vmem:[%s261 + $0xce0] sm:$0xff]
        %v772 = vld [vmem:[%s261 + $0xce8] sm:$0xff]
        %v773 = vld [vmem:[%s261 + $0xcf0] sm:$0xff]
        %v774 = vld [vmem:[%s261 + $0xcf8] sm:$0xff]
        %v775 = vld [vmem:[%s261 + $0xd00] sm:$0xff]
        %v776 = vld [vmem:[%s261 + $0xd08] sm:$0xff]
        %v777 = vld [vmem:[%s261 + $0xd10] sm:$0xff]
        %v778 = vld [vmem:[%s261 + $0xd18] sm:$0xff]
        %v779 = vld [vmem:[%s261 + $0xd20] sm:$0xff]
        %v780 = vld [vmem:[%s261 + $0xd28] sm:$0xff]
        %v781 = vld [vmem:[%s261 + $0xd30] sm:$0xff]
        %v782 = vld [vmem:[%s261 + $0xd38] sm:$0xff]
        %v783 = vld [vmem:[%s261 + $0xd40] sm:$0xff]
        %v784 = vld [vmem:[%s261 + $0xd48] sm:$0xff]
        %v785 = vld [vmem:[%s261 + $0xd50] sm:$0xff]
        %v786 = vld [vmem:[%s261 + $0xd58] sm:$0xff]
        %v787 = vld [vmem:[%s261 + $0xd60] sm:$0xff]
        %v788 = vld [vmem:[%s261 + $0xd68] sm:$0xff]
        %v789 = vld [vmem:[%s261 + $0xd70] sm:$0xff]
        %v790 = vld [vmem:[%s261 + $0xd78] sm:$0xff]
        %v791 = vld [vmem:[%s261 + $0xd80] sm:$0xff]
        %v792 = vld [vmem:[%s261 + $0xd88] sm:$0xff]
        %v793 = vld [vmem:[%s261 + $0xd90] sm:$0xff]
        %v794 = vld [vmem:[%s261 + $0xd98] sm:$0xff]
        %v795 = vld [vmem:[%s261 + $0xda0] sm:$0xff]
        %v796 = vld [vmem:[%s261 + $0xda8] sm:$0xff]
        %v797 = vld [vmem:[%s261 + $0xdb0] sm:$0xff]
        %v798 = vld [vmem:[%s261 + $0xdb8] sm:$0xff]
        %v799 = vld [vmem:[%s261 + $0xdc0] sm:$0xff]
        %v800 = vld [vmem:[%s261 + $0xdc8] sm:$0xff]
        %v801 = vld [vmem:[%s261 + $0xdd0] sm:$0xff]
        %v802 = vld [vmem:[%s261 + $0xdd8] sm:$0xff]
        %v803 = vld [vmem:[%s261 + $0xde0] sm:$0xff]
        %v804 = vld [vmem:[%s261 + $0xde8] sm:$0xff]
        %v805 = vld [vmem:[%s261 + $0xdf0] sm:$0xff]
        %v806 = vld [vmem:[%s261 + $0xdf8] sm:$0xff]
        %v807 = vld [vmem:[%s261 + $0xe00] sm:$0xff]
        %v808 = vld [vmem:[%s261 + $0xe08] sm:$0xff]
        %v809 = vld [vmem:[%s261 + $0xe10] sm:$0xff]
        %v810 = vld [vmem:[%s261 + $0xe18] sm:$0xff]
        %v811 = vld [vmem:[%s261 + $0xe20] sm:$0xff]
        %v812 = vld [vmem:[%s261 + $0xe28] sm:$0xff]
        %v813 = vld [vmem:[%s261 + $0xe30] sm:$0xff]
        %v814 = vld [vmem:[%s261 + $0xe38] sm:$0xff]
        %v815 = vld [vmem:[%s261 + $0xe40] sm:$0xff]
        %v816 = vld [vmem:[%s261 + $0xe48] sm:$0xff]
        %v817 = vld [vmem:[%s261 + $0xe50] sm:$0xff]
        %v818 = vld [vmem:[%s261 + $0xe58] sm:$0xff]
        %v819 = vld [vmem:[%s261 + $0xe60] sm:$0xff]
        %v820 = vld [vmem:[%s261 + $0xe68] sm:$0xff]
        %v821 = vld [vmem:[%s261 + $0xe70] sm:$0xff]
        %v822 = vld [vmem:[%s261 + $0xe78] sm:$0xff]
        %v823 = vld [vmem:[%s261 + $0xe80] sm:$0xff]
        %v824 = vld [vmem:[%s261 + $0xe88] sm:$0xff]
        %v825 = vld [vmem:[%s261 + $0xe90] sm:$0xff]
        %v826 = vld [vmem:[%s261 + $0xe98] sm:$0xff]
        %v827 = vld [vmem:[%s261 + $0xea0] sm:$0xff]
        %v828 = vld [vmem:[%s261 + $0xea8] sm:$0xff]
        %v829 = vld [vmem:[%s261 + $0xeb0] sm:$0xff]
        %v830 = vld [vmem:[%s261 + $0xeb8] sm:$0xff]
        %v831 = vld [vmem:[%s261 + $0xec0] sm:$0xff]
        %v832 = vld [vmem:[%s261 + $0xec8] sm:$0xff]
        %v833 = vld [vmem:[%s261 + $0xed0] sm:$0xff]
        %v834 = vld [vmem:[%s261 + $0xed8] sm:$0xff]
        %v835 = vld [vmem:[%s261 + $0xee0] sm:$0xff]
        %v836 = vld [vmem:[%s261 + $0xee8] sm:$0xff]
        %v837 = vld [vmem:[%s261 + $0xef0] sm:$0xff]
        %v838 = vld [vmem:[%s261 + $0xef8] sm:$0xff]
        %v839 = vld [vmem:[%s261 + $0xf00] sm:$0xff]
        %v840 = vld [vmem:[%s261 + $0xf08] sm:$0xff]
        %v841 = vld [vmem:[%s261 + $0xf10] sm:$0xff]
        %v842 = vld [vmem:[%s261 + $0xf18] sm:$0xff]
        %v843 = vld [vmem:[%s261 + $0xf20] sm:$0xff]
        %v844 = vld [vmem:[%s261 + $0xf28] sm:$0xff]
        %v845 = vld [vmem:[%s261 + $0xf30] sm:$0xff]
        %v846 = vld [vmem:[%s261 + $0xf38] sm:$0xff]
        %v847 = vld [vmem:[%s261 + $0xf40] sm:$0xff]
        %v848 = vld [vmem:[%s261 + $0xf48] sm:$0xff]
        %v849 = vld [vmem:[%s261 + $0xf50] sm:$0xff]
        %v850 = vld [vmem:[%s261 + $0xf58] sm:$0xff]
        %v851 = vld [vmem:[%s261 + $0xf60] sm:$0xff]
        %v852 = vld [vmem:[%s261 + $0xf68] sm:$0xff]
        %v853 = vld [vmem:[%s261 + $0xf70] sm:$0xff]
        %v854 = vld [vmem:[%s261 + $0xf78] sm:$0xff]
        %v855 = vld [vmem:[%s261 + $0xf80] sm:$0xff]
        %v856 = vld [vmem:[%s261 + $0xf88] sm:$0xff]
        %v857 = vld [vmem:[%s261 + $0xf90] sm:$0xff]
        %v858 = vld [vmem:[%s261 + $0xf98] sm:$0xff]
        %v859 = vld [vmem:[%s261 + $0xfa0] sm:$0xff]
        %v860 = vld [vmem:[%s261 + $0xfa8] sm:$0xff]
        %v861 = vld [vmem:[%s261 + $0xfb0] sm:$0xff]
        %v862 = vld [vmem:[%s261 + $0xfb8] sm:$0xff]
        %v863 = vld [vmem:[%s261 + $0xfc0] sm:$0xff]
        %v864 = vld [vmem:[%s261 + $0xfc8] sm:$0xff]
        %v865 = vld [vmem:[%s261 + $0xfd0] sm:$0xff]
        %v866 = vld [vmem:[%s261 + $0xfd8] sm:$0xff]
        %v867 = vld [vmem:[%s261 + $0xfe0] sm:$0xff]
        %v868 = vld [vmem:[%s261 + $0xfe8] sm:$0xff]
        %v869 = vld [vmem:[%s261 + $0xff0] sm:$0xff]
        %v870 = vld [vmem:[%s261 + $0xff8] sm:$0xff]
        %v887 = vunpack.c.l.b16 %v343
        %v888 = vunpack.c.h.b16 %v343
        %v889 = vunpack.c.l.b16 %v344
        %v890 = vunpack.c.h.b16 %v344
        %v891 = vunpack.c.l.b16 %v345
        %v892 = vunpack.c.h.b16 %v345
        %v893 = vunpack.c.l.b16 %v346
        %v894 = vunpack.c.h.b16 %v346
        %v895 = vunpack.c.l.b16 %v347
        %v896 = vunpack.c.h.b16 %v347
        %v897 = vunpack.c.l.b16 %v348
        %v898 = vunpack.c.h.b16 %v348
        %v899 = vunpack.c.l.b16 %v349
        %v900 = vunpack.c.h.b16 %v349
        %v901 = vunpack.c.l.b16 %v350
        %v902 = vunpack.c.h.b16 %v350
        %v903 = vunpack.c.l.b16 %v351
        %v904 = vunpack.c.h.b16 %v351
        %v905 = vunpack.c.l.b16 %v352
        %v906 = vunpack.c.h.b16 %v352
        %v907 = vunpack.c.l.b16 %v353
        %v908 = vunpack.c.h.b16 %v353
        %v909 = vunpack.c.l.b16 %v354
        %v910 = vunpack.c.h.b16 %v354
        %v911 = vunpack.c.l.b16 %v355
        %v912 = vunpack.c.h.b16 %v355
        %v913 = vunpack.c.l.b16 %v356
        %v914 = vunpack.c.h.b16 %v356
        %v915 = vunpack.c.l.b16 %v357
        %v916 = vunpack.c.h.b16 %v357
        %v917 = vunpack.c.l.b16 %v358
        %v918 = vunpack.c.h.b16 %v358
        %v919 = vpack.c.b16 %v887, %v887
        %v920 = vpack.c.b16 %v888, %v888
        %v921 = vpack.c.b16 %v889, %v889
        %v922 = vpack.c.b16 %v890, %v890
        %v923 = vpack.c.b16 %v891, %v891
        %v924 = vpack.c.b16 %v892, %v892
        %v925 = vpack.c.b16 %v893, %v893
        %v926 = vpack.c.b16 %v894, %v894
        %v927 = vpack.c.b16 %v895, %v895
        %v928 = vpack.c.b16 %v896, %v896
        %v929 = vpack.c.b16 %v897, %v897
        %v930 = vpack.c.b16 %v898, %v898
        %v931 = vpack.c.b16 %v899, %v899
        %v932 = vpack.c.b16 %v900, %v900
        %v933 = vpack.c.b16 %v901, %v901
        %v934 = vpack.c.b16 %v902, %v902
        %v935 = vpack.c.b16 %v903, %v903
        %v936 = vpack.c.b16 %v904, %v904
        %v937 = vpack.c.b16 %v905, %v905
        %v938 = vpack.c.b16 %v906, %v906
        %v939 = vpack.c.b16 %v907, %v907
        %v940 = vpack.c.b16 %v908, %v908
        %v941 = vpack.c.b16 %v909, %v909
        %v942 = vpack.c.b16 %v910, %v910
        %v943 = vpack.c.b16 %v911, %v911
        %v944 = vpack.c.b16 %v912, %v912
        %v945 = vpack.c.b16 %v913, %v913
        %v946 = vpack.c.b16 %v914, %v914
        %v947 = vpack.c.b16 %v915, %v915
        %v948 = vpack.c.b16 %v916, %v916
        %v949 = vpack.c.b16 %v917, %v917
        %v950 = vpack.c.b16 %v918, %v918
        %v1495 = vunpack.c.l.b16 %v359
        %v1496 = vunpack.c.h.b16 %v359
        %v1497 = vunpack.c.l.b16 %v360
        %v1498 = vunpack.c.h.b16 %v360
        %v1499 = vunpack.c.l.b16 %v361
        %v1500 = vunpack.c.h.b16 %v361
        %v1501 = vunpack.c.l.b16 %v362
        %v1502 = vunpack.c.h.b16 %v362
        %v1503 = vunpack.c.l.b16 %v363
        %v1504 = vunpack.c.h.b16 %v363
        %v1505 = vunpack.c.l.b16 %v364
        %v1506 = vunpack.c.h.b16 %v364
        %v1507 = vunpack.c.l.b16 %v365
        %v1508 = vunpack.c.h.b16 %v365
        %v1509 = vunpack.c.l.b16 %v366
        %v1510 = vunpack.c.h.b16 %v366
        %v1511 = vunpack.c.l.b16 %v367
        %v1512 = vunpack.c.h.b16 %v367
        %v1513 = vunpack.c.l.b16 %v368
        %v1514 = vunpack.c.h.b16 %v368
        %v1515 = vunpack.c.l.b16 %v369
        %v1516 = vunpack.c.h.b16 %v369
        %v1517 = vunpack.c.l.b16 %v370
        %v1518 = vunpack.c.h.b16 %v370
        %v1519 = vunpack.c.l.b16 %v371
        %v1520 = vunpack.c.h.b16 %v371
        %v1521 = vunpack.c.l.b16 %v372
        %v1522 = vunpack.c.h.b16 %v372
        %v1523 = vunpack.c.l.b16 %v373
        %v1524 = vunpack.c.h.b16 %v373
        %v1525 = vunpack.c.l.b16 %v374
        %v1526 = vunpack.c.h.b16 %v374
        %v1527 = vunpack.c.l.b16 %v375
        %v1528 = vunpack.c.h.b16 %v375
        %v1529 = vunpack.c.l.b16 %v376
        %v1530 = vunpack.c.h.b16 %v376
        %v1531 = vunpack.c.l.b16 %v377
        %v1532 = vunpack.c.h.b16 %v377
        %v1533 = vunpack.c.l.b16 %v378
        %v1534 = vunpack.c.h.b16 %v378
        %v1535 = vunpack.c.l.b16 %v379
        %v1536 = vunpack.c.h.b16 %v379
        %v1537 = vunpack.c.l.b16 %v380
        %v1538 = vunpack.c.h.b16 %v380
        %v1539 = vunpack.c.l.b16 %v381
        %v1540 = vunpack.c.h.b16 %v381
        %v1541 = vunpack.c.l.b16 %v382
        %v1542 = vunpack.c.h.b16 %v382
        %v1543 = vunpack.c.l.b16 %v383
        %v1544 = vunpack.c.h.b16 %v383
        %v1545 = vunpack.c.l.b16 %v384
        %v1546 = vunpack.c.h.b16 %v384
        %v1547 = vunpack.c.l.b16 %v385
        %v1548 = vunpack.c.h.b16 %v385
        %v1549 = vunpack.c.l.b16 %v386
        %v1550 = vunpack.c.h.b16 %v386
        %v1551 = vunpack.c.l.b16 %v387
        %v1552 = vunpack.c.h.b16 %v387
        %v1553 = vunpack.c.l.b16 %v388
        %v1554 = vunpack.c.h.b16 %v388
        %v1555 = vunpack.c.l.b16 %v389
        %v1556 = vunpack.c.h.b16 %v389
        %v1557 = vunpack.c.l.b16 %v390
        %v1558 = vunpack.c.h.b16 %v390
        %v1559 = vunpack.c.l.b16 %v391
        %v1560 = vunpack.c.h.b16 %v391
        %v1561 = vunpack.c.l.b16 %v392
        %v1562 = vunpack.c.h.b16 %v392
        %v1563 = vunpack.c.l.b16 %v393
        %v1564 = vunpack.c.h.b16 %v393
        %v1565 = vunpack.c.l.b16 %v394
        %v1566 = vunpack.c.h.b16 %v394
        %v1567 = vunpack.c.l.b16 %v395
        %v1568 = vunpack.c.h.b16 %v395
        %v1569 = vunpack.c.l.b16 %v396
        %v1570 = vunpack.c.h.b16 %v396
        %v1571 = vunpack.c.l.b16 %v397
        %v1572 = vunpack.c.h.b16 %v397
        %v1573 = vunpack.c.l.b16 %v398
        %v1574 = vunpack.c.h.b16 %v398
        %v1575 = vunpack.c.l.b16 %v399
        %v1576 = vunpack.c.h.b16 %v399
        %v1577 = vunpack.c.l.b16 %v400
        %v1578 = vunpack.c.h.b16 %v400
        %v1579 = vunpack.c.l.b16 %v401
        %v1580 = vunpack.c.h.b16 %v401
        %v1581 = vunpack.c.l.b16 %v402
        %v1582 = vunpack.c.h.b16 %v402
        %v1583 = vunpack.c.l.b16 %v403
        %v1584 = vunpack.c.h.b16 %v403
        %v1585 = vunpack.c.l.b16 %v404
        %v1586 = vunpack.c.h.b16 %v404
        %v1587 = vunpack.c.l.b16 %v405
        %v1588 = vunpack.c.h.b16 %v405
        %v1589 = vunpack.c.l.b16 %v406
        %v1590 = vunpack.c.h.b16 %v406
        %v1591 = vunpack.c.l.b16 %v407
        %v1592 = vunpack.c.h.b16 %v407
        %v1593 = vunpack.c.l.b16 %v408
        %v1594 = vunpack.c.h.b16 %v408
        %v1595 = vunpack.c.l.b16 %v409
        %v1596 = vunpack.c.h.b16 %v409
        %v1597 = vunpack.c.l.b16 %v410
        %v1598 = vunpack.c.h.b16 %v410
        %v1599 = vunpack.c.l.b16 %v411
        %v1600 = vunpack.c.h.b16 %v411
        %v1601 = vunpack.c.l.b16 %v412
        %v1602 = vunpack.c.h.b16 %v412
        %v1603 = vunpack.c.l.b16 %v413
        %v1604 = vunpack.c.h.b16 %v413
        %v1605 = vunpack.c.l.b16 %v414
        %v1606 = vunpack.c.h.b16 %v414
        %v1607 = vunpack.c.l.b16 %v415
        %v1608 = vunpack.c.h.b16 %v415
        %v1609 = vunpack.c.l.b16 %v416
        %v1610 = vunpack.c.h.b16 %v416
        %v1611 = vunpack.c.l.b16 %v417
        %v1612 = vunpack.c.h.b16 %v417
        %v1613 = vunpack.c.l.b16 %v418
        %v1614 = vunpack.c.h.b16 %v418
        %v1615 = vunpack.c.l.b16 %v419
        %v1616 = vunpack.c.h.b16 %v419
        %v1617 = vunpack.c.l.b16 %v420
        %v1618 = vunpack.c.h.b16 %v420
        %v1619 = vunpack.c.l.b16 %v421
        %v1620 = vunpack.c.h.b16 %v421
        %v1621 = vunpack.c.l.b16 %v422
        %v1622 = vunpack.c.h.b16 %v422
        %v1623 = vunpack.c.l.b16 %v423
        %v1624 = vunpack.c.h.b16 %v423
        %v1625 = vunpack.c.l.b16 %v424
        %v1626 = vunpack.c.h.b16 %v424
        %v1627 = vunpack.c.l.b16 %v425
        %v1628 = vunpack.c.h.b16 %v425
        %v1629 = vunpack.c.l.b16 %v426
        %v1630 = vunpack.c.h.b16 %v426
        %v1631 = vunpack.c.l.b16 %v427
        %v1632 = vunpack.c.h.b16 %v427
        %v1633 = vunpack.c.l.b16 %v428
        %v1634 = vunpack.c.h.b16 %v428
        %v1635 = vunpack.c.l.b16 %v429
        %v1636 = vunpack.c.h.b16 %v429
        %v1637 = vunpack.c.l.b16 %v430
        %v1638 = vunpack.c.h.b16 %v430
        %v1639 = vunpack.c.l.b16 %v431
        %v1640 = vunpack.c.h.b16 %v431
        %v1641 = vunpack.c.l.b16 %v432
        %v1642 = vunpack.c.h.b16 %v432
        %v1643 = vunpack.c.l.b16 %v433
        %v1644 = vunpack.c.h.b16 %v433
        %v1645 = vunpack.c.l.b16 %v434
        %v1646 = vunpack.c.h.b16 %v434
        %v1647 = vunpack.c.l.b16 %v435
        %v1648 = vunpack.c.h.b16 %v435
        %v1649 = vunpack.c.l.b16 %v436
        %v1650 = vunpack.c.h.b16 %v436
        %v1651 = vunpack.c.l.b16 %v437
        %v1652 = vunpack.c.h.b16 %v437
        %v1653 = vunpack.c.l.b16 %v438
        %v1654 = vunpack.c.h.b16 %v438
        %v1655 = vunpack.c.l.b16 %v439
        %v1656 = vunpack.c.h.b16 %v439
        %v1657 = vunpack.c.l.b16 %v440
        %v1658 = vunpack.c.h.b16 %v440
        %v1659 = vunpack.c.l.b16 %v441
        %v1660 = vunpack.c.h.b16 %v441
        %v1661 = vunpack.c.l.b16 %v442
        %v1662 = vunpack.c.h.b16 %v442
        %v1663 = vunpack.c.l.b16 %v443
        %v1664 = vunpack.c.h.b16 %v443
        %v1665 = vunpack.c.l.b16 %v444
        %v1666 = vunpack.c.h.b16 %v444
        %v1667 = vunpack.c.l.b16 %v445
        %v1668 = vunpack.c.h.b16 %v445
        %v1669 = vunpack.c.l.b16 %v446
        %v1670 = vunpack.c.h.b16 %v446
        %v1671 = vunpack.c.l.b16 %v447
        %v1672 = vunpack.c.h.b16 %v447
        %v1673 = vunpack.c.l.b16 %v448
        %v1674 = vunpack.c.h.b16 %v448
        %v1675 = vunpack.c.l.b16 %v449
        %v1676 = vunpack.c.h.b16 %v449
        %v1677 = vunpack.c.l.b16 %v450
        %v1678 = vunpack.c.h.b16 %v450
        %v1679 = vunpack.c.l.b16 %v451
        %v1680 = vunpack.c.h.b16 %v451
        %v1681 = vunpack.c.l.b16 %v452
        %v1682 = vunpack.c.h.b16 %v452
        %v1683 = vunpack.c.l.b16 %v453
        %v1684 = vunpack.c.h.b16 %v453
        %v1685 = vunpack.c.l.b16 %v454
        %v1686 = vunpack.c.h.b16 %v454
        %v1687 = vunpack.c.l.b16 %v455
        %v1688 = vunpack.c.h.b16 %v455
        %v1689 = vunpack.c.l.b16 %v456
        %v1690 = vunpack.c.h.b16 %v456
        %v1691 = vunpack.c.l.b16 %v457
        %v1692 = vunpack.c.h.b16 %v457
        %v1693 = vunpack.c.l.b16 %v458
        %v1694 = vunpack.c.h.b16 %v458
        %v1695 = vunpack.c.l.b16 %v459
        %v1696 = vunpack.c.h.b16 %v459
        %v1697 = vunpack.c.l.b16 %v460
        %v1698 = vunpack.c.h.b16 %v460
        %v1699 = vunpack.c.l.b16 %v461
        %v1700 = vunpack.c.h.b16 %v461
        %v1701 = vunpack.c.l.b16 %v462
        %v1702 = vunpack.c.h.b16 %v462
        %v1703 = vunpack.c.l.b16 %v463
        %v1704 = vunpack.c.h.b16 %v463
        %v1705 = vunpack.c.l.b16 %v464
        %v1706 = vunpack.c.h.b16 %v464
        %v1707 = vunpack.c.l.b16 %v465
        %v1708 = vunpack.c.h.b16 %v465
        %v1709 = vunpack.c.l.b16 %v466
        %v1710 = vunpack.c.h.b16 %v466
        %v1711 = vunpack.c.l.b16 %v467
        %v1712 = vunpack.c.h.b16 %v467
        %v1713 = vunpack.c.l.b16 %v468
        %v1714 = vunpack.c.h.b16 %v468
        %v1715 = vunpack.c.l.b16 %v469
        %v1716 = vunpack.c.h.b16 %v469
        %v1717 = vunpack.c.l.b16 %v470
        %v1718 = vunpack.c.h.b16 %v470
        %v1719 = vunpack.c.l.b16 %v471
        %v1720 = vunpack.c.h.b16 %v471
        %v1721 = vunpack.c.l.b16 %v472
        %v1722 = vunpack.c.h.b16 %v472
        %v1723 = vunpack.c.l.b16 %v473
        %v1724 = vunpack.c.h.b16 %v473
        %v1725 = vunpack.c.l.b16 %v474
        %v1726 = vunpack.c.h.b16 %v474
        %v1727 = vunpack.c.l.b16 %v475
        %v1728 = vunpack.c.h.b16 %v475
        %v1729 = vunpack.c.l.b16 %v476
        %v1730 = vunpack.c.h.b16 %v476
        %v1731 = vunpack.c.l.b16 %v477
        %v1732 = vunpack.c.h.b16 %v477
        %v1733 = vunpack.c.l.b16 %v478
        %v1734 = vunpack.c.h.b16 %v478
        %v1735 = vunpack.c.l.b16 %v479
        %v1736 = vunpack.c.h.b16 %v479
        %v1737 = vunpack.c.l.b16 %v480
        %v1738 = vunpack.c.h.b16 %v480
        %v1739 = vunpack.c.l.b16 %v481
        %v1740 = vunpack.c.h.b16 %v481
        %v1741 = vunpack.c.l.b16 %v482
        %v1742 = vunpack.c.h.b16 %v482
        %v1743 = vunpack.c.l.b16 %v483
        %v1744 = vunpack.c.h.b16 %v483
        %v1745 = vunpack.c.l.b16 %v484
        %v1746 = vunpack.c.h.b16 %v484
        %v1747 = vunpack.c.l.b16 %v485
        %v1748 = vunpack.c.h.b16 %v485
        %v1749 = vunpack.c.l.b16 %v486
        %v1750 = vunpack.c.h.b16 %v486
        %v1751 = vunpack.c.l.b16 %v487
        %v1752 = vunpack.c.h.b16 %v487
        %v1753 = vunpack.c.l.b16 %v488
        %v1754 = vunpack.c.h.b16 %v488
        %v1755 = vunpack.c.l.b16 %v489
        %v1756 = vunpack.c.h.b16 %v489
        %v1757 = vunpack.c.l.b16 %v490
        %v1758 = vunpack.c.h.b16 %v490
        %v1759 = vunpack.c.l.b16 %v491
        %v1760 = vunpack.c.h.b16 %v491
        %v1761 = vunpack.c.l.b16 %v492
        %v1762 = vunpack.c.h.b16 %v492
        %v1763 = vunpack.c.l.b16 %v493
        %v1764 = vunpack.c.h.b16 %v493
        %v1765 = vunpack.c.l.b16 %v494
        %v1766 = vunpack.c.h.b16 %v494
        %v1767 = vunpack.c.l.b16 %v495
        %v1768 = vunpack.c.h.b16 %v495
        %v1769 = vunpack.c.l.b16 %v496
        %v1770 = vunpack.c.h.b16 %v496
        %v1771 = vunpack.c.l.b16 %v497
        %v1772 = vunpack.c.h.b16 %v497
        %v1773 = vunpack.c.l.b16 %v498
        %v1774 = vunpack.c.h.b16 %v498
        %v1775 = vunpack.c.l.b16 %v499
        %v1776 = vunpack.c.h.b16 %v499
        %v1777 = vunpack.c.l.b16 %v500
        %v1778 = vunpack.c.h.b16 %v500
        %v1779 = vunpack.c.l.b16 %v501
        %v1780 = vunpack.c.h.b16 %v501
        %v1781 = vunpack.c.l.b16 %v502
        %v1782 = vunpack.c.h.b16 %v502
        %v1783 = vunpack.c.l.b16 %v503
        %v1784 = vunpack.c.h.b16 %v503
        %v1785 = vunpack.c.l.b16 %v504
        %v1786 = vunpack.c.h.b16 %v504
        %v1787 = vunpack.c.l.b16 %v505
        %v1788 = vunpack.c.h.b16 %v505
        %v1789 = vunpack.c.l.b16 %v506
        %v1790 = vunpack.c.h.b16 %v506
        %v1791 = vunpack.c.l.b16 %v507
        %v1792 = vunpack.c.h.b16 %v507
        %v1793 = vunpack.c.l.b16 %v508
        %v1794 = vunpack.c.h.b16 %v508
        %v1795 = vunpack.c.l.b16 %v509
        %v1796 = vunpack.c.h.b16 %v509
        %v1797 = vunpack.c.l.b16 %v510
        %v1798 = vunpack.c.h.b16 %v510
        %v1799 = vunpack.c.l.b16 %v511
        %v1800 = vunpack.c.h.b16 %v511
        %v1801 = vunpack.c.l.b16 %v512
        %v1802 = vunpack.c.h.b16 %v512
        %v1803 = vunpack.c.l.b16 %v513
        %v1804 = vunpack.c.h.b16 %v513
        %v1805 = vunpack.c.l.b16 %v514
        %v1806 = vunpack.c.h.b16 %v514
        %v1807 = vunpack.c.l.b16 %v515
        %v1808 = vunpack.c.h.b16 %v515
        %v1809 = vunpack.c.l.b16 %v516
        %v1810 = vunpack.c.h.b16 %v516
        %v1811 = vunpack.c.l.b16 %v517
        %v1812 = vunpack.c.h.b16 %v517
        %v1813 = vunpack.c.l.b16 %v518
        %v1814 = vunpack.c.h.b16 %v518
        %v1815 = vunpack.c.l.b16 %v519
        %v1816 = vunpack.c.h.b16 %v519
        %v1817 = vunpack.c.l.b16 %v520
        %v1818 = vunpack.c.h.b16 %v520
        %v1819 = vunpack.c.l.b16 %v521
        %v1820 = vunpack.c.h.b16 %v521
        %v1821 = vunpack.c.l.b16 %v522
        %v1822 = vunpack.c.h.b16 %v522
        %v1823 = vunpack.c.l.b16 %v523
        %v1824 = vunpack.c.h.b16 %v523
        %v1825 = vunpack.c.l.b16 %v524
        %v1826 = vunpack.c.h.b16 %v524
        %v1827 = vunpack.c.l.b16 %v525
        %v1828 = vunpack.c.h.b16 %v525
        %v1829 = vunpack.c.l.b16 %v526
        %v1830 = vunpack.c.h.b16 %v526
        %v1831 = vunpack.c.l.b16 %v527
        %v1832 = vunpack.c.h.b16 %v527
        %v1833 = vunpack.c.l.b16 %v528
        %v1834 = vunpack.c.h.b16 %v528
        %v1835 = vunpack.c.l.b16 %v529
        %v1836 = vunpack.c.h.b16 %v529
        %v1837 = vunpack.c.l.b16 %v530
        %v1838 = vunpack.c.h.b16 %v530
        %v1839 = vunpack.c.l.b16 %v531
        %v1840 = vunpack.c.h.b16 %v531
        %v1841 = vunpack.c.l.b16 %v532
        %v1842 = vunpack.c.h.b16 %v532
        %v1843 = vunpack.c.l.b16 %v533
        %v1844 = vunpack.c.h.b16 %v533
        %v1845 = vunpack.c.l.b16 %v534
        %v1846 = vunpack.c.h.b16 %v534
        %v1847 = vunpack.c.l.b16 %v535
        %v1848 = vunpack.c.h.b16 %v535
        %v1849 = vunpack.c.l.b16 %v536
        %v1850 = vunpack.c.h.b16 %v536
        %v1851 = vunpack.c.l.b16 %v537
        %v1852 = vunpack.c.h.b16 %v537
        %v1853 = vunpack.c.l.b16 %v538
        %v1854 = vunpack.c.h.b16 %v538
        %v1855 = vunpack.c.l.b16 %v539
        %v1856 = vunpack.c.h.b16 %v539
        %v1857 = vunpack.c.l.b16 %v540
        %v1858 = vunpack.c.h.b16 %v540
        %v1859 = vunpack.c.l.b16 %v541
        %v1860 = vunpack.c.h.b16 %v541
        %v1861 = vunpack.c.l.b16 %v542
        %v1862 = vunpack.c.h.b16 %v542
        %v1863 = vunpack.c.l.b16 %v543
        %v1864 = vunpack.c.h.b16 %v543
        %v1865 = vunpack.c.l.b16 %v544
        %v1866 = vunpack.c.h.b16 %v544
        %v1867 = vunpack.c.l.b16 %v545
        %v1868 = vunpack.c.h.b16 %v545
        %v1869 = vunpack.c.l.b16 %v546
        %v1870 = vunpack.c.h.b16 %v546
        %v1871 = vunpack.c.l.b16 %v547
        %v1872 = vunpack.c.h.b16 %v547
        %v1873 = vunpack.c.l.b16 %v548
        %v1874 = vunpack.c.h.b16 %v548
        %v1875 = vunpack.c.l.b16 %v549
        %v1876 = vunpack.c.h.b16 %v549
        %v1877 = vunpack.c.l.b16 %v550
        %v1878 = vunpack.c.h.b16 %v550
        %v1879 = vunpack.c.l.b16 %v551
        %v1880 = vunpack.c.h.b16 %v551
        %v1881 = vunpack.c.l.b16 %v552
        %v1882 = vunpack.c.h.b16 %v552
        %v1883 = vunpack.c.l.b16 %v553
        %v1884 = vunpack.c.h.b16 %v553
        %v1885 = vunpack.c.l.b16 %v554
        %v1886 = vunpack.c.h.b16 %v554
        %v1887 = vunpack.c.l.b16 %v555
        %v1888 = vunpack.c.h.b16 %v555
        %v1889 = vunpack.c.l.b16 %v556
        %v1890 = vunpack.c.h.b16 %v556
        %v1891 = vunpack.c.l.b16 %v557
        %v1892 = vunpack.c.h.b16 %v557
        %v1893 = vunpack.c.l.b16 %v558
        %v1894 = vunpack.c.h.b16 %v558
        %v1895 = vunpack.c.l.b16 %v559
        %v1896 = vunpack.c.h.b16 %v559
        %v1897 = vunpack.c.l.b16 %v560
        %v1898 = vunpack.c.h.b16 %v560
        %v1899 = vunpack.c.l.b16 %v561
        %v1900 = vunpack.c.h.b16 %v561
        %v1901 = vunpack.c.l.b16 %v562
        %v1902 = vunpack.c.h.b16 %v562
        %v1903 = vunpack.c.l.b16 %v563
        %v1904 = vunpack.c.h.b16 %v563
        %v1905 = vunpack.c.l.b16 %v564
        %v1906 = vunpack.c.h.b16 %v564
        %v1907 = vunpack.c.l.b16 %v565
        %v1908 = vunpack.c.h.b16 %v565
        %v1909 = vunpack.c.l.b16 %v566
        %v1910 = vunpack.c.h.b16 %v566
        %v1911 = vunpack.c.l.b16 %v567
        %v1912 = vunpack.c.h.b16 %v567
        %v1913 = vunpack.c.l.b16 %v568
        %v1914 = vunpack.c.h.b16 %v568
        %v1915 = vunpack.c.l.b16 %v569
        %v1916 = vunpack.c.h.b16 %v569
        %v1917 = vunpack.c.l.b16 %v570
        %v1918 = vunpack.c.h.b16 %v570
        %v1919 = vunpack.c.l.b16 %v571
        %v1920 = vunpack.c.h.b16 %v571
        %v1921 = vunpack.c.l.b16 %v572
        %v1922 = vunpack.c.h.b16 %v572
        %v1923 = vunpack.c.l.b16 %v573
        %v1924 = vunpack.c.h.b16 %v573
        %v1925 = vunpack.c.l.b16 %v574
        %v1926 = vunpack.c.h.b16 %v574
        %v1927 = vunpack.c.l.b16 %v575
        %v1928 = vunpack.c.h.b16 %v575
        %v1929 = vunpack.c.l.b16 %v576
        %v1930 = vunpack.c.h.b16 %v576
        %v1931 = vunpack.c.l.b16 %v577
        %v1932 = vunpack.c.h.b16 %v577
        %v1933 = vunpack.c.l.b16 %v578
        %v1934 = vunpack.c.h.b16 %v578
        %v1935 = vunpack.c.l.b16 %v579
        %v1936 = vunpack.c.h.b16 %v579
        %v1937 = vunpack.c.l.b16 %v580
        %v1938 = vunpack.c.h.b16 %v580
        %v1939 = vunpack.c.l.b16 %v581
        %v1940 = vunpack.c.h.b16 %v581
        %v1941 = vunpack.c.l.b16 %v582
        %v1942 = vunpack.c.h.b16 %v582
        %v1943 = vunpack.c.l.b16 %v583
        %v1944 = vunpack.c.h.b16 %v583
        %v1945 = vunpack.c.l.b16 %v584
        %v1946 = vunpack.c.h.b16 %v584
        %v1947 = vunpack.c.l.b16 %v585
        %v1948 = vunpack.c.h.b16 %v585
        %v1949 = vunpack.c.l.b16 %v586
        %v1950 = vunpack.c.h.b16 %v586
        %v1951 = vunpack.c.l.b16 %v587
        %v1952 = vunpack.c.h.b16 %v587
        %v1953 = vunpack.c.l.b16 %v588
        %v1954 = vunpack.c.h.b16 %v588
        %v1955 = vunpack.c.l.b16 %v589
        %v1956 = vunpack.c.h.b16 %v589
        %v1957 = vunpack.c.l.b16 %v590
        %v1958 = vunpack.c.h.b16 %v590
        %v1959 = vunpack.c.l.b16 %v591
        %v1960 = vunpack.c.h.b16 %v591
        %v1961 = vunpack.c.l.b16 %v592
        %v1962 = vunpack.c.h.b16 %v592
        %v1963 = vunpack.c.l.b16 %v593
        %v1964 = vunpack.c.h.b16 %v593
        %v1965 = vunpack.c.l.b16 %v594
        %v1966 = vunpack.c.h.b16 %v594
        %v1967 = vunpack.c.l.b16 %v595
        %v1968 = vunpack.c.h.b16 %v595
        %v1969 = vunpack.c.l.b16 %v596
        %v1970 = vunpack.c.h.b16 %v596
        %v1971 = vunpack.c.l.b16 %v597
        %v1972 = vunpack.c.h.b16 %v597
        %v1973 = vunpack.c.l.b16 %v598
        %v1974 = vunpack.c.h.b16 %v598
        %v1975 = vunpack.c.l.b16 %v599
        %v1976 = vunpack.c.h.b16 %v599
        %v1977 = vunpack.c.l.b16 %v600
        %v1978 = vunpack.c.h.b16 %v600
        %v1979 = vunpack.c.l.b16 %v601
        %v1980 = vunpack.c.h.b16 %v601
        %v1981 = vunpack.c.l.b16 %v602
        %v1982 = vunpack.c.h.b16 %v602
        %v1983 = vunpack.c.l.b16 %v603
        %v1984 = vunpack.c.h.b16 %v603
        %v1985 = vunpack.c.l.b16 %v604
        %v1986 = vunpack.c.h.b16 %v604
        %v1987 = vunpack.c.l.b16 %v605
        %v1988 = vunpack.c.h.b16 %v605
        %v1989 = vunpack.c.l.b16 %v606
        %v1990 = vunpack.c.h.b16 %v606
        %v1991 = vunpack.c.l.b16 %v607
        %v1992 = vunpack.c.h.b16 %v607
        %v1993 = vunpack.c.l.b16 %v608
        %v1994 = vunpack.c.h.b16 %v608
        %v1995 = vunpack.c.l.b16 %v609
        %v1996 = vunpack.c.h.b16 %v609
        %v1997 = vunpack.c.l.b16 %v610
        %v1998 = vunpack.c.h.b16 %v610
        %v1999 = vunpack.c.l.b16 %v611
        %v2000 = vunpack.c.h.b16 %v611
        %v2001 = vunpack.c.l.b16 %v612
        %v2002 = vunpack.c.h.b16 %v612
        %v2003 = vunpack.c.l.b16 %v613
        %v2004 = vunpack.c.h.b16 %v613
        %v2005 = vunpack.c.l.b16 %v614
        %v2006 = vunpack.c.h.b16 %v614
        %v2007 = vunpack.c.l.b16 %v615
        %v2008 = vunpack.c.h.b16 %v615
        %v2009 = vunpack.c.l.b16 %v616
        %v2010 = vunpack.c.h.b16 %v616
        %v2011 = vunpack.c.l.b16 %v617
        %v2012 = vunpack.c.h.b16 %v617
        %v2013 = vunpack.c.l.b16 %v618
        %v2014 = vunpack.c.h.b16 %v618
        %v2015 = vunpack.c.l.b16 %v619
        %v2016 = vunpack.c.h.b16 %v619
        %v2017 = vunpack.c.l.b16 %v620
        %v2018 = vunpack.c.h.b16 %v620
        %v2019 = vunpack.c.l.b16 %v621
        %v2020 = vunpack.c.h.b16 %v621
        %v2021 = vunpack.c.l.b16 %v622
        %v2022 = vunpack.c.h.b16 %v622
        %v2023 = vunpack.c.l.b16 %v623
        %v2024 = vunpack.c.h.b16 %v623
        %v2025 = vunpack.c.l.b16 %v624
        %v2026 = vunpack.c.h.b16 %v624
        %v2027 = vunpack.c.l.b16 %v625
        %v2028 = vunpack.c.h.b16 %v625
        %v2029 = vunpack.c.l.b16 %v626
        %v2030 = vunpack.c.h.b16 %v626
        %v2031 = vunpack.c.l.b16 %v627
        %v2032 = vunpack.c.h.b16 %v627
        %v2033 = vunpack.c.l.b16 %v628
        %v2034 = vunpack.c.h.b16 %v628
        %v2035 = vunpack.c.l.b16 %v629
        %v2036 = vunpack.c.h.b16 %v629
        %v2037 = vunpack.c.l.b16 %v630
        %v2038 = vunpack.c.h.b16 %v630
        %v2039 = vunpack.c.l.b16 %v631
        %v2040 = vunpack.c.h.b16 %v631
        %v2041 = vunpack.c.l.b16 %v632
        %v2042 = vunpack.c.h.b16 %v632
        %v2043 = vunpack.c.l.b16 %v633
        %v2044 = vunpack.c.h.b16 %v633
        %v2045 = vunpack.c.l.b16 %v634
        %v2046 = vunpack.c.h.b16 %v634
        %v2047 = vunpack.c.l.b16 %v635
        %v2048 = vunpack.c.h.b16 %v635
        %v2049 = vunpack.c.l.b16 %v636
        %v2050 = vunpack.c.h.b16 %v636
        %v2051 = vunpack.c.l.b16 %v637
        %v2052 = vunpack.c.h.b16 %v637
        %v2053 = vunpack.c.l.b16 %v638
        %v2054 = vunpack.c.h.b16 %v638
        %v2055 = vunpack.c.l.b16 %v639
        %v2056 = vunpack.c.h.b16 %v639
        %v2057 = vunpack.c.l.b16 %v640
        %v2058 = vunpack.c.h.b16 %v640
        %v2059 = vunpack.c.l.b16 %v641
        %v2060 = vunpack.c.h.b16 %v641
        %v2061 = vunpack.c.l.b16 %v642
        %v2062 = vunpack.c.h.b16 %v642
        %v2063 = vunpack.c.l.b16 %v643
        %v2064 = vunpack.c.h.b16 %v643
        %v2065 = vunpack.c.l.b16 %v644
        %v2066 = vunpack.c.h.b16 %v644
        %v2067 = vunpack.c.l.b16 %v645
        %v2068 = vunpack.c.h.b16 %v645
        %v2069 = vunpack.c.l.b16 %v646
        %v2070 = vunpack.c.h.b16 %v646
        %v2071 = vunpack.c.l.b16 %v647
        %v2072 = vunpack.c.h.b16 %v647
        %v2073 = vunpack.c.l.b16 %v648
        %v2074 = vunpack.c.h.b16 %v648
        %v2075 = vunpack.c.l.b16 %v649
        %v2076 = vunpack.c.h.b16 %v649
        %v2077 = vunpack.c.l.b16 %v650
        %v2078 = vunpack.c.h.b16 %v650
        %v2079 = vunpack.c.l.b16 %v651
        %v2080 = vunpack.c.h.b16 %v651
        %v2081 = vunpack.c.l.b16 %v652
        %v2082 = vunpack.c.h.b16 %v652
        %v2083 = vunpack.c.l.b16 %v653
        %v2084 = vunpack.c.h.b16 %v653
        %v2085 = vunpack.c.l.b16 %v654
        %v2086 = vunpack.c.h.b16 %v654
        %v2087 = vunpack.c.l.b16 %v655
        %v2088 = vunpack.c.h.b16 %v655
        %v2089 = vunpack.c.l.b16 %v656
        %v2090 = vunpack.c.h.b16 %v656
        %v2091 = vunpack.c.l.b16 %v657
        %v2092 = vunpack.c.h.b16 %v657
        %v2093 = vunpack.c.l.b16 %v658
        %v2094 = vunpack.c.h.b16 %v658
        %v2095 = vunpack.c.l.b16 %v659
        %v2096 = vunpack.c.h.b16 %v659
        %v2097 = vunpack.c.l.b16 %v660
        %v2098 = vunpack.c.h.b16 %v660
        %v2099 = vunpack.c.l.b16 %v661
        %v2100 = vunpack.c.h.b16 %v661
        %v2101 = vunpack.c.l.b16 %v662
        %v2102 = vunpack.c.h.b16 %v662
        %v2103 = vunpack.c.l.b16 %v663
        %v2104 = vunpack.c.h.b16 %v663
        %v2105 = vunpack.c.l.b16 %v664
        %v2106 = vunpack.c.h.b16 %v664
        %v2107 = vunpack.c.l.b16 %v665
        %v2108 = vunpack.c.h.b16 %v665
        %v2109 = vunpack.c.l.b16 %v666
        %v2110 = vunpack.c.h.b16 %v666
        %v2111 = vunpack.c.l.b16 %v667
        %v2112 = vunpack.c.h.b16 %v667
        %v2113 = vunpack.c.l.b16 %v668
        %v2114 = vunpack.c.h.b16 %v668
        %v2115 = vunpack.c.l.b16 %v669
        %v2116 = vunpack.c.h.b16 %v669
        %v2117 = vunpack.c.l.b16 %v670
        %v2118 = vunpack.c.h.b16 %v670
        %v2119 = vunpack.c.l.b16 %v671
        %v2120 = vunpack.c.h.b16 %v671
        %v2121 = vunpack.c.l.b16 %v672
        %v2122 = vunpack.c.h.b16 %v672
        %v2123 = vunpack.c.l.b16 %v673
        %v2124 = vunpack.c.h.b16 %v673
        %v2125 = vunpack.c.l.b16 %v674
        %v2126 = vunpack.c.h.b16 %v674
        %v2127 = vunpack.c.l.b16 %v675
        %v2128 = vunpack.c.h.b16 %v675
        %v2129 = vunpack.c.l.b16 %v676
        %v2130 = vunpack.c.h.b16 %v676
        %v2131 = vunpack.c.l.b16 %v677
        %v2132 = vunpack.c.h.b16 %v677
        %v2133 = vunpack.c.l.b16 %v678
        %v2134 = vunpack.c.h.b16 %v678
        %v2135 = vunpack.c.l.b16 %v679
        %v2136 = vunpack.c.h.b16 %v679
        %v2137 = vunpack.c.l.b16 %v680
        %v2138 = vunpack.c.h.b16 %v680
        %v2139 = vunpack.c.l.b16 %v681
        %v2140 = vunpack.c.h.b16 %v681
        %v2141 = vunpack.c.l.b16 %v682
        %v2142 = vunpack.c.h.b16 %v682
        %v2143 = vunpack.c.l.b16 %v683
        %v2144 = vunpack.c.h.b16 %v683
        %v2145 = vunpack.c.l.b16 %v684
        %v2146 = vunpack.c.h.b16 %v684
        %v2147 = vunpack.c.l.b16 %v685
        %v2148 = vunpack.c.h.b16 %v685
        %v2149 = vunpack.c.l.b16 %v686
        %v2150 = vunpack.c.h.b16 %v686
        %v2151 = vunpack.c.l.b16 %v687
        %v2152 = vunpack.c.h.b16 %v687
        %v2153 = vunpack.c.l.b16 %v688
        %v2154 = vunpack.c.h.b16 %v688
        %v2155 = vunpack.c.l.b16 %v689
        %v2156 = vunpack.c.h.b16 %v689
        %v2157 = vunpack.c.l.b16 %v690
        %v2158 = vunpack.c.h.b16 %v690
        %v2159 = vunpack.c.l.b16 %v691
        %v2160 = vunpack.c.h.b16 %v691
        %v2161 = vunpack.c.l.b16 %v692
        %v2162 = vunpack.c.h.b16 %v692
        %v2163 = vunpack.c.l.b16 %v693
        %v2164 = vunpack.c.h.b16 %v693
        %v2165 = vunpack.c.l.b16 %v694
        %v2166 = vunpack.c.h.b16 %v694
        %v2167 = vunpack.c.l.b16 %v695
        %v2168 = vunpack.c.h.b16 %v695
        %v2169 = vunpack.c.l.b16 %v696
        %v2170 = vunpack.c.h.b16 %v696
        %v2171 = vunpack.c.l.b16 %v697
        %v2172 = vunpack.c.h.b16 %v697
        %v2173 = vunpack.c.l.b16 %v698
        %v2174 = vunpack.c.h.b16 %v698
        %v2175 = vunpack.c.l.b16 %v699
        %v2176 = vunpack.c.h.b16 %v699
        %v2177 = vunpack.c.l.b16 %v700
        %v2178 = vunpack.c.h.b16 %v700
        %v2179 = vunpack.c.l.b16 %v701
        %v2180 = vunpack.c.h.b16 %v701
        %v2181 = vunpack.c.l.b16 %v702
        %v2182 = vunpack.c.h.b16 %v702
        %v2183 = vunpack.c.l.b16 %v703
        %v2184 = vunpack.c.h.b16 %v703
        %v2185 = vunpack.c.l.b16 %v704
        %v2186 = vunpack.c.h.b16 %v704
        %v2187 = vunpack.c.l.b16 %v705
        %v2188 = vunpack.c.h.b16 %v705
        %v2189 = vunpack.c.l.b16 %v706
        %v2190 = vunpack.c.h.b16 %v706
        %v2191 = vunpack.c.l.b16 %v707
        %v2192 = vunpack.c.h.b16 %v707
        %v2193 = vunpack.c.l.b16 %v708
        %v2194 = vunpack.c.h.b16 %v708
        %v2195 = vunpack.c.l.b16 %v709
        %v2196 = vunpack.c.h.b16 %v709
        %v2197 = vunpack.c.l.b16 %v710
        %v2198 = vunpack.c.h.b16 %v710
        %v2199 = vunpack.c.l.b16 %v711
        %v2200 = vunpack.c.h.b16 %v711
        %v2201 = vunpack.c.l.b16 %v712
        %v2202 = vunpack.c.h.b16 %v712
        %v2203 = vunpack.c.l.b16 %v713
        %v2204 = vunpack.c.h.b16 %v713
        %v2205 = vunpack.c.l.b16 %v714
        %v2206 = vunpack.c.h.b16 %v714
        %v2207 = vunpack.c.l.b16 %v715
        %v2208 = vunpack.c.h.b16 %v715
        %v2209 = vunpack.c.l.b16 %v716
        %v2210 = vunpack.c.h.b16 %v716
        %v2211 = vunpack.c.l.b16 %v717
        %v2212 = vunpack.c.h.b16 %v717
        %v2213 = vunpack.c.l.b16 %v718
        %v2214 = vunpack.c.h.b16 %v718
        %v2215 = vunpack.c.l.b16 %v719
        %v2216 = vunpack.c.h.b16 %v719
        %v2217 = vunpack.c.l.b16 %v720
        %v2218 = vunpack.c.h.b16 %v720
        %v2219 = vunpack.c.l.b16 %v721
        %v2220 = vunpack.c.h.b16 %v721
        %v2221 = vunpack.c.l.b16 %v722
        %v2222 = vunpack.c.h.b16 %v722
        %v2223 = vunpack.c.l.b16 %v723
        %v2224 = vunpack.c.h.b16 %v723
        %v2225 = vunpack.c.l.b16 %v724
        %v2226 = vunpack.c.h.b16 %v724
        %v2227 = vunpack.c.l.b16 %v725
        %v2228 = vunpack.c.h.b16 %v725
        %v2229 = vunpack.c.l.b16 %v726
        %v2230 = vunpack.c.h.b16 %v726
        %v2231 = vunpack.c.l.b16 %v727
        %v2232 = vunpack.c.h.b16 %v727
        %v2233 = vunpack.c.l.b16 %v728
        %v2234 = vunpack.c.h.b16 %v728
        %v2235 = vunpack.c.l.b16 %v729
        %v2236 = vunpack.c.h.b16 %v729
        %v2237 = vunpack.c.l.b16 %v730
        %v2238 = vunpack.c.h.b16 %v730
        %v2239 = vunpack.c.l.b16 %v731
        %v2240 = vunpack.c.h.b16 %v731
        %v2241 = vunpack.c.l.b16 %v732
        %v2242 = vunpack.c.h.b16 %v732
        %v2243 = vunpack.c.l.b16 %v733
        %v2244 = vunpack.c.h.b16 %v733
        %v2245 = vunpack.c.l.b16 %v734
        %v2246 = vunpack.c.h.b16 %v734
        %v2247 = vunpack.c.l.b16 %v735
        %v2248 = vunpack.c.h.b16 %v735
        %v2249 = vunpack.c.l.b16 %v736
        %v2250 = vunpack.c.h.b16 %v736
        %v2251 = vunpack.c.l.b16 %v737
        %v2252 = vunpack.c.h.b16 %v737
        %v2253 = vunpack.c.l.b16 %v738
        %v2254 = vunpack.c.h.b16 %v738
        %v2255 = vunpack.c.l.b16 %v739
        %v2256 = vunpack.c.h.b16 %v739
        %v2257 = vunpack.c.l.b16 %v740
        %v2258 = vunpack.c.h.b16 %v740
        %v2259 = vunpack.c.l.b16 %v741
        %v2260 = vunpack.c.h.b16 %v741
        %v2261 = vunpack.c.l.b16 %v742
        %v2262 = vunpack.c.h.b16 %v742
        %v2263 = vunpack.c.l.b16 %v743
        %v2264 = vunpack.c.h.b16 %v743
        %v2265 = vunpack.c.l.b16 %v744
        %v2266 = vunpack.c.h.b16 %v744
        %v2267 = vunpack.c.l.b16 %v745
        %v2268 = vunpack.c.h.b16 %v745
        %v2269 = vunpack.c.l.b16 %v746
        %v2270 = vunpack.c.h.b16 %v746
        %v2271 = vunpack.c.l.b16 %v747
        %v2272 = vunpack.c.h.b16 %v747
        %v2273 = vunpack.c.l.b16 %v748
        %v2274 = vunpack.c.h.b16 %v748
        %v2275 = vunpack.c.l.b16 %v749
        %v2276 = vunpack.c.h.b16 %v749
        %v2277 = vunpack.c.l.b16 %v750
        %v2278 = vunpack.c.h.b16 %v750
        %v2279 = vunpack.c.l.b16 %v751
        %v2280 = vunpack.c.h.b16 %v751
        %v2281 = vunpack.c.l.b16 %v752
        %v2282 = vunpack.c.h.b16 %v752
        %v2283 = vunpack.c.l.b16 %v753
        %v2284 = vunpack.c.h.b16 %v753
        %v2285 = vunpack.c.l.b16 %v754
        %v2286 = vunpack.c.h.b16 %v754
        %v2287 = vunpack.c.l.b16 %v755
        %v2288 = vunpack.c.h.b16 %v755
        %v2289 = vunpack.c.l.b16 %v756
        %v2290 = vunpack.c.h.b16 %v756
        %v2291 = vunpack.c.l.b16 %v757
        %v2292 = vunpack.c.h.b16 %v757
        %v2293 = vunpack.c.l.b16 %v758
        %v2294 = vunpack.c.h.b16 %v758
        %v2295 = vunpack.c.l.b16 %v759
        %v2296 = vunpack.c.h.b16 %v759
        %v2297 = vunpack.c.l.b16 %v760
        %v2298 = vunpack.c.h.b16 %v760
        %v2299 = vunpack.c.l.b16 %v761
        %v2300 = vunpack.c.h.b16 %v761
        %v2301 = vunpack.c.l.b16 %v762
        %v2302 = vunpack.c.h.b16 %v762
        %v2303 = vunpack.c.l.b16 %v763
        %v2304 = vunpack.c.h.b16 %v763
        %v2305 = vunpack.c.l.b16 %v764
        %v2306 = vunpack.c.h.b16 %v764
        %v2307 = vunpack.c.l.b16 %v765
        %v2308 = vunpack.c.h.b16 %v765
        %v2309 = vunpack.c.l.b16 %v766
        %v2310 = vunpack.c.h.b16 %v766
        %v2311 = vunpack.c.l.b16 %v767
        %v2312 = vunpack.c.h.b16 %v767
        %v2313 = vunpack.c.l.b16 %v768
        %v2314 = vunpack.c.h.b16 %v768
        %v2315 = vunpack.c.l.b16 %v769
        %v2316 = vunpack.c.h.b16 %v769
        %v2317 = vunpack.c.l.b16 %v770
        %v2318 = vunpack.c.h.b16 %v770
        %v2319 = vunpack.c.l.b16 %v771
        %v2320 = vunpack.c.h.b16 %v771
        %v2321 = vunpack.c.l.b16 %v772
        %v2322 = vunpack.c.h.b16 %v772
        %v2323 = vunpack.c.l.b16 %v773
        %v2324 = vunpack.c.h.b16 %v773
        %v2325 = vunpack.c.l.b16 %v774
        %v2326 = vunpack.c.h.b16 %v774
        %v2327 = vunpack.c.l.b16 %v775
        %v2328 = vunpack.c.h.b16 %v775
        %v2329 = vunpack.c.l.b16 %v776
        %v2330 = vunpack.c.h.b16 %v776
        %v2331 = vunpack.c.l.b16 %v777
        %v2332 = vunpack.c.h.b16 %v777
        %v2333 = vunpack.c.l.b16 %v778
        %v2334 = vunpack.c.h.b16 %v778
        %v2335 = vunpack.c.l.b16 %v779
        %v2336 = vunpack.c.h.b16 %v779
        %v2337 = vunpack.c.l.b16 %v780
        %v2338 = vunpack.c.h.b16 %v780
        %v2339 = vunpack.c.l.b16 %v781
        %v2340 = vunpack.c.h.b16 %v781
        %v2341 = vunpack.c.l.b16 %v782
        %v2342 = vunpack.c.h.b16 %v782
        %v2343 = vunpack.c.l.b16 %v783
        %v2344 = vunpack.c.h.b16 %v783
        %v2345 = vunpack.c.l.b16 %v784
        %v2346 = vunpack.c.h.b16 %v784
        %v2347 = vunpack.c.l.b16 %v785
        %v2348 = vunpack.c.h.b16 %v785
        %v2349 = vunpack.c.l.b16 %v786
        %v2350 = vunpack.c.h.b16 %v786
        %v2351 = vunpack.c.l.b16 %v787
        %v2352 = vunpack.c.h.b16 %v787
        %v2353 = vunpack.c.l.b16 %v788
        %v2354 = vunpack.c.h.b16 %v788
        %v2355 = vunpack.c.l.b16 %v789
        %v2356 = vunpack.c.h.b16 %v789
        %v2357 = vunpack.c.l.b16 %v790
        %v2358 = vunpack.c.h.b16 %v790
        %v2359 = vunpack.c.l.b16 %v791
        %v2360 = vunpack.c.h.b16 %v791
        %v2361 = vunpack.c.l.b16 %v792
        %v2362 = vunpack.c.h.b16 %v792
        %v2363 = vunpack.c.l.b16 %v793
        %v2364 = vunpack.c.h.b16 %v793
        %v2365 = vunpack.c.l.b16 %v794
        %v2366 = vunpack.c.h.b16 %v794
        %v2367 = vunpack.c.l.b16 %v795
        %v2368 = vunpack.c.h.b16 %v795
        %v2369 = vunpack.c.l.b16 %v796
        %v2370 = vunpack.c.h.b16 %v796
        %v2371 = vunpack.c.l.b16 %v797
        %v2372 = vunpack.c.h.b16 %v797
        %v2373 = vunpack.c.l.b16 %v798
        %v2374 = vunpack.c.h.b16 %v798
        %v2375 = vunpack.c.l.b16 %v799
        %v2376 = vunpack.c.h.b16 %v799
        %v2377 = vunpack.c.l.b16 %v800
        %v2378 = vunpack.c.h.b16 %v800
        %v2379 = vunpack.c.l.b16 %v801
        %v2380 = vunpack.c.h.b16 %v801
        %v2381 = vunpack.c.l.b16 %v802
        %v2382 = vunpack.c.h.b16 %v802
        %v2383 = vunpack.c.l.b16 %v803
        %v2384 = vunpack.c.h.b16 %v803
        %v2385 = vunpack.c.l.b16 %v804
        %v2386 = vunpack.c.h.b16 %v804
        %v2387 = vunpack.c.l.b16 %v805
        %v2388 = vunpack.c.h.b16 %v805
        %v2389 = vunpack.c.l.b16 %v806
        %v2390 = vunpack.c.h.b16 %v806
        %v2391 = vunpack.c.l.b16 %v807
        %v2392 = vunpack.c.h.b16 %v807
        %v2393 = vunpack.c.l.b16 %v808
        %v2394 = vunpack.c.h.b16 %v808
        %v2395 = vunpack.c.l.b16 %v809
        %v2396 = vunpack.c.h.b16 %v809
        %v2397 = vunpack.c.l.b16 %v810
        %v2398 = vunpack.c.h.b16 %v810
        %v2399 = vunpack.c.l.b16 %v811
        %v2400 = vunpack.c.h.b16 %v811
        %v2401 = vunpack.c.l.b16 %v812
        %v2402 = vunpack.c.h.b16 %v812
        %v2403 = vunpack.c.l.b16 %v813
        %v2404 = vunpack.c.h.b16 %v813
        %v2405 = vunpack.c.l.b16 %v814
        %v2406 = vunpack.c.h.b16 %v814
        %v2407 = vunpack.c.l.b16 %v815
        %v2408 = vunpack.c.h.b16 %v815
        %v2409 = vunpack.c.l.b16 %v816
        %v2410 = vunpack.c.h.b16 %v816
        %v2411 = vunpack.c.l.b16 %v817
        %v2412 = vunpack.c.h.b16 %v817
        %v2413 = vunpack.c.l.b16 %v818
        %v2414 = vunpack.c.h.b16 %v818
        %v2415 = vunpack.c.l.b16 %v819
        %v2416 = vunpack.c.h.b16 %v819
        %v2417 = vunpack.c.l.b16 %v820
        %v2418 = vunpack.c.h.b16 %v820
        %v2419 = vunpack.c.l.b16 %v821
        %v2420 = vunpack.c.h.b16 %v821
        %v2421 = vunpack.c.l.b16 %v822
        %v2422 = vunpack.c.h.b16 %v822
        %v2423 = vunpack.c.l.b16 %v823
        %v2424 = vunpack.c.h.b16 %v823
        %v2425 = vunpack.c.l.b16 %v824
        %v2426 = vunpack.c.h.b16 %v824
        %v2427 = vunpack.c.l.b16 %v825
        %v2428 = vunpack.c.h.b16 %v825
        %v2429 = vunpack.c.l.b16 %v826
        %v2430 = vunpack.c.h.b16 %v826
        %v2431 = vunpack.c.l.b16 %v827
        %v2432 = vunpack.c.h.b16 %v827
        %v2433 = vunpack.c.l.b16 %v828
        %v2434 = vunpack.c.h.b16 %v828
        %v2435 = vunpack.c.l.b16 %v829
        %v2436 = vunpack.c.h.b16 %v829
        %v2437 = vunpack.c.l.b16 %v830
        %v2438 = vunpack.c.h.b16 %v830
        %v2439 = vunpack.c.l.b16 %v831
        %v2440 = vunpack.c.h.b16 %v831
        %v2441 = vunpack.c.l.b16 %v832
        %v2442 = vunpack.c.h.b16 %v832
        %v2443 = vunpack.c.l.b16 %v833
        %v2444 = vunpack.c.h.b16 %v833
        %v2445 = vunpack.c.l.b16 %v834
        %v2446 = vunpack.c.h.b16 %v834
        %v2447 = vunpack.c.l.b16 %v835
        %v2448 = vunpack.c.h.b16 %v835
        %v2449 = vunpack.c.l.b16 %v836
        %v2450 = vunpack.c.h.b16 %v836
        %v2451 = vunpack.c.l.b16 %v837
        %v2452 = vunpack.c.h.b16 %v837
        %v2453 = vunpack.c.l.b16 %v838
        %v2454 = vunpack.c.h.b16 %v838
        %v2455 = vunpack.c.l.b16 %v839
        %v2456 = vunpack.c.h.b16 %v839
        %v2457 = vunpack.c.l.b16 %v840
        %v2458 = vunpack.c.h.b16 %v840
        %v2459 = vunpack.c.l.b16 %v841
        %v2460 = vunpack.c.h.b16 %v841
        %v2461 = vunpack.c.l.b16 %v842
        %v2462 = vunpack.c.h.b16 %v842
        %v2463 = vunpack.c.l.b16 %v843
        %v2464 = vunpack.c.h.b16 %v843
        %v2465 = vunpack.c.l.b16 %v844
        %v2466 = vunpack.c.h.b16 %v844
        %v2467 = vunpack.c.l.b16 %v845
        %v2468 = vunpack.c.h.b16 %v845
        %v2469 = vunpack.c.l.b16 %v846
        %v2470 = vunpack.c.h.b16 %v846
        %v2471 = vunpack.c.l.b16 %v847
        %v2472 = vunpack.c.h.b16 %v847
        %v2473 = vunpack.c.l.b16 %v848
        %v2474 = vunpack.c.h.b16 %v848
        %v2475 = vunpack.c.l.b16 %v849
        %v2476 = vunpack.c.h.b16 %v849
        %v2477 = vunpack.c.l.b16 %v850
        %v2478 = vunpack.c.h.b16 %v850
        %v2479 = vunpack.c.l.b16 %v851
        %v2480 = vunpack.c.h.b16 %v851
        %v2481 = vunpack.c.l.b16 %v852
        %v2482 = vunpack.c.h.b16 %v852
        %v2483 = vunpack.c.l.b16 %v853
        %v2484 = vunpack.c.h.b16 %v853
        %v2485 = vunpack.c.l.b16 %v854
        %v2486 = vunpack.c.h.b16 %v854
        %v2487 = vunpack.c.l.b16 %v855
        %v2488 = vunpack.c.h.b16 %v855
        %v2489 = vunpack.c.l.b16 %v856
        %v2490 = vunpack.c.h.b16 %v856
        %v2491 = vunpack.c.l.b16 %v857
        %v2492 = vunpack.c.h.b16 %v857
        %v2493 = vunpack.c.l.b16 %v858
        %v2494 = vunpack.c.h.b16 %v858
        %v2495 = vunpack.c.l.b16 %v859
        %v2496 = vunpack.c.h.b16 %v859
        %v2497 = vunpack.c.l.b16 %v860
        %v2498 = vunpack.c.h.b16 %v860
        %v2499 = vunpack.c.l.b16 %v861
        %v2500 = vunpack.c.h.b16 %v861
        %v2501 = vunpack.c.l.b16 %v862
        %v2502 = vunpack.c.h.b16 %v862
        %v2503 = vunpack.c.l.b16 %v863
        %v2504 = vunpack.c.h.b16 %v863
        %v2505 = vunpack.c.l.b16 %v864
        %v2506 = vunpack.c.h.b16 %v864
        %v2507 = vunpack.c.l.b16 %v865
        %v2508 = vunpack.c.h.b16 %v865
        %v2509 = vunpack.c.l.b16 %v866
        %v2510 = vunpack.c.h.b16 %v866
        %v2511 = vunpack.c.l.b16 %v867
        %v2512 = vunpack.c.h.b16 %v867
        %v2513 = vunpack.c.l.b16 %v868
        %v2514 = vunpack.c.h.b16 %v868
        %v2515 = vunpack.c.l.b16 %v869
        %v2516 = vunpack.c.h.b16 %v869
        %v2517 = vunpack.c.l.b16 %v870
        %v2518 = vunpack.c.h.b16 %v870
        %v2519 = vpack.c.b16 %v1497, %v1495
        %v2520 = vpack.c.b16 %v1498, %v1496
        %v2521 = vpack.c.b16 %v1501, %v1499
        %v2522 = vpack.c.b16 %v1502, %v1500
        %v2523 = vpack.c.b16 %v1505, %v1503
        %v2524 = vpack.c.b16 %v1506, %v1504
        %v2525 = vpack.c.b16 %v1509, %v1507
        %v2526 = vpack.c.b16 %v1510, %v1508
        %v2527 = vpack.c.b16 %v1513, %v1511
        %v2528 = vpack.c.b16 %v1514, %v1512
        %v2529 = vpack.c.b16 %v1517, %v1515
        %v2530 = vpack.c.b16 %v1518, %v1516
        %v2531 = vpack.c.b16 %v1521, %v1519
        %v2532 = vpack.c.b16 %v1522, %v1520
        %v2533 = vpack.c.b16 %v1525, %v1523
        %v2534 = vpack.c.b16 %v1526, %v1524
        %v2535 = vpack.c.b16 %v1529, %v1527
        %v2536 = vpack.c.b16 %v1530, %v1528
        %v2537 = vpack.c.b16 %v1533, %v1531
        %v2538 = vpack.c.b16 %v1534, %v1532
        %v2539 = vpack.c.b16 %v1537, %v1535
        %v2540 = vpack.c.b16 %v1538, %v1536
        %v2541 = vpack.c.b16 %v1541, %v1539
        %v2542 = vpack.c.b16 %v1542, %v1540
        %v2543 = vpack.c.b16 %v1545, %v1543
        %v2544 = vpack.c.b16 %v1546, %v1544
        %v2545 = vpack.c.b16 %v1549, %v1547
        %v2546 = vpack.c.b16 %v1550, %v1548
        %v2547 = vpack.c.b16 %v1553, %v1551
        %v2548 = vpack.c.b16 %v1554, %v1552
        %v2549 = vpack.c.b16 %v1557, %v1555
        %v2550 = vpack.c.b16 %v1558, %v1556
        %v2551 = vpack.c.b16 %v1561, %v1559
        %v2552 = vpack.c.b16 %v1562, %v1560
        %v2553 = vpack.c.b16 %v1565, %v1563
        %v2554 = vpack.c.b16 %v1566, %v1564
        %v2555 = vpack.c.b16 %v1569, %v1567
        %v2556 = vpack.c.b16 %v1570, %v1568
        %v2557 = vpack.c.b16 %v1573, %v1571
        %v2558 = vpack.c.b16 %v1574, %v1572
        %v2559 = vpack.c.b16 %v1577, %v1575
        %v2560 = vpack.c.b16 %v1578, %v1576
        %v2561 = vpack.c.b16 %v1581, %v1579
        %v2562 = vpack.c.b16 %v1582, %v1580
        %v2563 = vpack.c.b16 %v1585, %v1583
        %v2564 = vpack.c.b16 %v1586, %v1584
        %v2565 = vpack.c.b16 %v1589, %v1587
        %v2566 = vpack.c.b16 %v1590, %v1588
        %v2567 = vpack.c.b16 %v1593, %v1591
        %v2568 = vpack.c.b16 %v1594, %v1592
        %v2569 = vpack.c.b16 %v1597, %v1595
        %v2570 = vpack.c.b16 %v1598, %v1596
        %v2571 = vpack.c.b16 %v1601, %v1599
        %v2572 = vpack.c.b16 %v1602, %v1600
        %v2573 = vpack.c.b16 %v1605, %v1603
        %v2574 = vpack.c.b16 %v1606, %v1604
        %v2575 = vpack.c.b16 %v1609, %v1607
        %v2576 = vpack.c.b16 %v1610, %v1608
        %v2577 = vpack.c.b16 %v1613, %v1611
        %v2578 = vpack.c.b16 %v1614, %v1612
        %v2579 = vpack.c.b16 %v1617, %v1615
        %v2580 = vpack.c.b16 %v1618, %v1616
        %v2581 = vpack.c.b16 %v1621, %v1619
        %v2582 = vpack.c.b16 %v1622, %v1620
        %v2583 = vpack.c.b16 %v1625, %v1623
        %v2584 = vpack.c.b16 %v1626, %v1624
        %v2585 = vpack.c.b16 %v1629, %v1627
        %v2586 = vpack.c.b16 %v1630, %v1628
        %v2587 = vpack.c.b16 %v1633, %v1631
        %v2588 = vpack.c.b16 %v1634, %v1632
        %v2589 = vpack.c.b16 %v1637, %v1635
        %v2590 = vpack.c.b16 %v1638, %v1636
        %v2591 = vpack.c.b16 %v1641, %v1639
        %v2592 = vpack.c.b16 %v1642, %v1640
        %v2593 = vpack.c.b16 %v1645, %v1643
        %v2594 = vpack.c.b16 %v1646, %v1644
        %v2595 = vpack.c.b16 %v1649, %v1647
        %v2596 = vpack.c.b16 %v1650, %v1648
        %v2597 = vpack.c.b16 %v1653, %v1651
        %v2598 = vpack.c.b16 %v1654, %v1652
        %v2599 = vpack.c.b16 %v1657, %v1655
        %v2600 = vpack.c.b16 %v1658, %v1656
        %v2601 = vpack.c.b16 %v1661, %v1659
        %v2602 = vpack.c.b16 %v1662, %v1660
        %v2603 = vpack.c.b16 %v1665, %v1663
        %v2604 = vpack.c.b16 %v1666, %v1664
        %v2605 = vpack.c.b16 %v1669, %v1667
        %v2606 = vpack.c.b16 %v1670, %v1668
        %v2607 = vpack.c.b16 %v1673, %v1671
        %v2608 = vpack.c.b16 %v1674, %v1672
        %v2609 = vpack.c.b16 %v1677, %v1675
        %v2610 = vpack.c.b16 %v1678, %v1676
        %v2611 = vpack.c.b16 %v1681, %v1679
        %v2612 = vpack.c.b16 %v1682, %v1680
        %v2613 = vpack.c.b16 %v1685, %v1683
        %v2614 = vpack.c.b16 %v1686, %v1684
        %v2615 = vpack.c.b16 %v1689, %v1687
        %v2616 = vpack.c.b16 %v1690, %v1688
        %v2617 = vpack.c.b16 %v1693, %v1691
        %v2618 = vpack.c.b16 %v1694, %v1692
        %v2619 = vpack.c.b16 %v1697, %v1695
        %v2620 = vpack.c.b16 %v1698, %v1696
        %v2621 = vpack.c.b16 %v1701, %v1699
        %v2622 = vpack.c.b16 %v1702, %v1700
        %v2623 = vpack.c.b16 %v1705, %v1703
        %v2624 = vpack.c.b16 %v1706, %v1704
        %v2625 = vpack.c.b16 %v1709, %v1707
        %v2626 = vpack.c.b16 %v1710, %v1708
        %v2627 = vpack.c.b16 %v1713, %v1711
        %v2628 = vpack.c.b16 %v1714, %v1712
        %v2629 = vpack.c.b16 %v1717, %v1715
        %v2630 = vpack.c.b16 %v1718, %v1716
        %v2631 = vpack.c.b16 %v1721, %v1719
        %v2632 = vpack.c.b16 %v1722, %v1720
        %v2633 = vpack.c.b16 %v1725, %v1723
        %v2634 = vpack.c.b16 %v1726, %v1724
        %v2635 = vpack.c.b16 %v1729, %v1727
        %v2636 = vpack.c.b16 %v1730, %v1728
        %v2637 = vpack.c.b16 %v1733, %v1731
        %v2638 = vpack.c.b16 %v1734, %v1732
        %v2639 = vpack.c.b16 %v1737, %v1735
        %v2640 = vpack.c.b16 %v1738, %v1736
        %v2641 = vpack.c.b16 %v1741, %v1739
        %v2642 = vpack.c.b16 %v1742, %v1740
        %v2643 = vpack.c.b16 %v1745, %v1743
        %v2644 = vpack.c.b16 %v1746, %v1744
        %v2645 = vpack.c.b16 %v1749, %v1747
        %v2646 = vpack.c.b16 %v1750, %v1748
        %v2647 = vpack.c.b16 %v1753, %v1751
        %v2648 = vpack.c.b16 %v1754, %v1752
        %v2649 = vpack.c.b16 %v1757, %v1755
        %v2650 = vpack.c.b16 %v1758, %v1756
        %v2651 = vpack.c.b16 %v1761, %v1759
        %v2652 = vpack.c.b16 %v1762, %v1760
        %v2653 = vpack.c.b16 %v1765, %v1763
        %v2654 = vpack.c.b16 %v1766, %v1764
        %v2655 = vpack.c.b16 %v1769, %v1767
        %v2656 = vpack.c.b16 %v1770, %v1768
        %v2657 = vpack.c.b16 %v1773, %v1771
        %v2658 = vpack.c.b16 %v1774, %v1772
        %v2659 = vpack.c.b16 %v1777, %v1775
        %v2660 = vpack.c.b16 %v1778, %v1776
        %v2661 = vpack.c.b16 %v1781, %v1779
        %v2662 = vpack.c.b16 %v1782, %v1780
        %v2663 = vpack.c.b16 %v1785, %v1783
        %v2664 = vpack.c.b16 %v1786, %v1784
        %v2665 = vpack.c.b16 %v1789, %v1787
        %v2666 = vpack.c.b16 %v1790, %v1788
        %v2667 = vpack.c.b16 %v1793, %v1791
        %v2668 = vpack.c.b16 %v1794, %v1792
        %v2669 = vpack.c.b16 %v1797, %v1795
        %v2670 = vpack.c.b16 %v1798, %v1796
        %v2671 = vpack.c.b16 %v1801, %v1799
        %v2672 = vpack.c.b16 %v1802, %v1800
        %v2673 = vpack.c.b16 %v1805, %v1803
        %v2674 = vpack.c.b16 %v1806, %v1804
        %v2675 = vpack.c.b16 %v1809, %v1807
        %v2676 = vpack.c.b16 %v1810, %v1808
        %v2677 = vpack.c.b16 %v1813, %v1811
        %v2678 = vpack.c.b16 %v1814, %v1812
        %v2679 = vpack.c.b16 %v1817, %v1815
        %v2680 = vpack.c.b16 %v1818, %v1816
        %v2681 = vpack.c.b16 %v1821, %v1819
        %v2682 = vpack.c.b16 %v1822, %v1820
        %v2683 = vpack.c.b16 %v1825, %v1823
        %v2684 = vpack.c.b16 %v1826, %v1824
        %v2685 = vpack.c.b16 %v1829, %v1827
        %v2686 = vpack.c.b16 %v1830, %v1828
        %v2687 = vpack.c.b16 %v1833, %v1831
        %v2688 = vpack.c.b16 %v1834, %v1832
        %v2689 = vpack.c.b16 %v1837, %v1835
        %v2690 = vpack.c.b16 %v1838, %v1836
        %v2691 = vpack.c.b16 %v1841, %v1839
        %v2692 = vpack.c.b16 %v1842, %v1840
        %v2693 = vpack.c.b16 %v1845, %v1843
        %v2694 = vpack.c.b16 %v1846, %v1844
        %v2695 = vpack.c.b16 %v1849, %v1847
        %v2696 = vpack.c.b16 %v1850, %v1848
        %v2697 = vpack.c.b16 %v1853, %v1851
        %v2698 = vpack.c.b16 %v1854, %v1852
        %v2699 = vpack.c.b16 %v1857, %v1855
        %v2700 = vpack.c.b16 %v1858, %v1856
        %v2701 = vpack.c.b16 %v1861, %v1859
        %v2702 = vpack.c.b16 %v1862, %v1860
        %v2703 = vpack.c.b16 %v1865, %v1863
        %v2704 = vpack.c.b16 %v1866, %v1864
        %v2705 = vpack.c.b16 %v1869, %v1867
        %v2706 = vpack.c.b16 %v1870, %v1868
        %v2707 = vpack.c.b16 %v1873, %v1871
        %v2708 = vpack.c.b16 %v1874, %v1872
        %v2709 = vpack.c.b16 %v1877, %v1875
        %v2710 = vpack.c.b16 %v1878, %v1876
        %v2711 = vpack.c.b16 %v1881, %v1879
        %v2712 = vpack.c.b16 %v1882, %v1880
        %v2713 = vpack.c.b16 %v1885, %v1883
        %v2714 = vpack.c.b16 %v1886, %v1884
        %v2715 = vpack.c.b16 %v1889, %v1887
        %v2716 = vpack.c.b16 %v1890, %v1888
        %v2717 = vpack.c.b16 %v1893, %v1891
        %v2718 = vpack.c.b16 %v1894, %v1892
        %v2719 = vpack.c.b16 %v1897, %v1895
        %v2720 = vpack.c.b16 %v1898, %v1896
        %v2721 = vpack.c.b16 %v1901, %v1899
        %v2722 = vpack.c.b16 %v1902, %v1900
        %v2723 = vpack.c.b16 %v1905, %v1903
        %v2724 = vpack.c.b16 %v1906, %v1904
        %v2725 = vpack.c.b16 %v1909, %v1907
        %v2726 = vpack.c.b16 %v1910, %v1908
        %v2727 = vpack.c.b16 %v1913, %v1911
        %v2728 = vpack.c.b16 %v1914, %v1912
        %v2729 = vpack.c.b16 %v1917, %v1915
        %v2730 = vpack.c.b16 %v1918, %v1916
        %v2731 = vpack.c.b16 %v1921, %v1919
        %v2732 = vpack.c.b16 %v1922, %v1920
        %v2733 = vpack.c.b16 %v1925, %v1923
        %v2734 = vpack.c.b16 %v1926, %v1924
        %v2735 = vpack.c.b16 %v1929, %v1927
        %v2736 = vpack.c.b16 %v1930, %v1928
        %v2737 = vpack.c.b16 %v1933, %v1931
        %v2738 = vpack.c.b16 %v1934, %v1932
        %v2739 = vpack.c.b16 %v1937, %v1935
        %v2740 = vpack.c.b16 %v1938, %v1936
        %v2741 = vpack.c.b16 %v1941, %v1939
        %v2742 = vpack.c.b16 %v1942, %v1940
        %v2743 = vpack.c.b16 %v1945, %v1943
        %v2744 = vpack.c.b16 %v1946, %v1944
        %v2745 = vpack.c.b16 %v1949, %v1947
        %v2746 = vpack.c.b16 %v1950, %v1948
        %v2747 = vpack.c.b16 %v1953, %v1951
        %v2748 = vpack.c.b16 %v1954, %v1952
        %v2749 = vpack.c.b16 %v1957, %v1955
        %v2750 = vpack.c.b16 %v1958, %v1956
        %v2751 = vpack.c.b16 %v1961, %v1959
        %v2752 = vpack.c.b16 %v1962, %v1960
        %v2753 = vpack.c.b16 %v1965, %v1963
        %v2754 = vpack.c.b16 %v1966, %v1964
        %v2755 = vpack.c.b16 %v1969, %v1967
        %v2756 = vpack.c.b16 %v1970, %v1968
        %v2757 = vpack.c.b16 %v1973, %v1971
        %v2758 = vpack.c.b16 %v1974, %v1972
        %v2759 = vpack.c.b16 %v1977, %v1975
        %v2760 = vpack.c.b16 %v1978, %v1976
        %v2761 = vpack.c.b16 %v1981, %v1979
        %v2762 = vpack.c.b16 %v1982, %v1980
        %v2763 = vpack.c.b16 %v1985, %v1983
        %v2764 = vpack.c.b16 %v1986, %v1984
        %v2765 = vpack.c.b16 %v1989, %v1987
        %v2766 = vpack.c.b16 %v1990, %v1988
        %v2767 = vpack.c.b16 %v1993, %v1991
        %v2768 = vpack.c.b16 %v1994, %v1992
        %v2769 = vpack.c.b16 %v1997, %v1995
        %v2770 = vpack.c.b16 %v1998, %v1996
        %v2771 = vpack.c.b16 %v2001, %v1999
        %v2772 = vpack.c.b16 %v2002, %v2000
        %v2773 = vpack.c.b16 %v2005, %v2003
        %v2774 = vpack.c.b16 %v2006, %v2004
        %v2775 = vpack.c.b16 %v2009, %v2007
        %v2776 = vpack.c.b16 %v2010, %v2008
        %v2777 = vpack.c.b16 %v2013, %v2011
        %v2778 = vpack.c.b16 %v2014, %v2012
        %v2779 = vpack.c.b16 %v2017, %v2015
        %v2780 = vpack.c.b16 %v2018, %v2016
        %v2781 = vpack.c.b16 %v2021, %v2019
        %v2782 = vpack.c.b16 %v2022, %v2020
        %v2783 = vpack.c.b16 %v2025, %v2023
        %v2784 = vpack.c.b16 %v2026, %v2024
        %v2785 = vpack.c.b16 %v2029, %v2027
        %v2786 = vpack.c.b16 %v2030, %v2028
        %v2787 = vpack.c.b16 %v2033, %v2031
        %v2788 = vpack.c.b16 %v2034, %v2032
        %v2789 = vpack.c.b16 %v2037, %v2035
        %v2790 = vpack.c.b16 %v2038, %v2036
        %v2791 = vpack.c.b16 %v2041, %v2039
        %v2792 = vpack.c.b16 %v2042, %v2040
        %v2793 = vpack.c.b16 %v2045, %v2043
        %v2794 = vpack.c.b16 %v2046, %v2044
        %v2795 = vpack.c.b16 %v2049, %v2047
        %v2796 = vpack.c.b16 %v2050, %v2048
        %v2797 = vpack.c.b16 %v2053, %v2051
        %v2798 = vpack.c.b16 %v2054, %v2052
        %v2799 = vpack.c.b16 %v2057, %v2055
        %v2800 = vpack.c.b16 %v2058, %v2056
        %v2801 = vpack.c.b16 %v2061, %v2059
        %v2802 = vpack.c.b16 %v2062, %v2060
        %v2803 = vpack.c.b16 %v2065, %v2063
        %v2804 = vpack.c.b16 %v2066, %v2064
        %v2805 = vpack.c.b16 %v2069, %v2067
        %v2806 = vpack.c.b16 %v2070, %v2068
        %v2807 = vpack.c.b16 %v2073, %v2071
        %v2808 = vpack.c.b16 %v2074, %v2072
        %v2809 = vpack.c.b16 %v2077, %v2075
        %v2810 = vpack.c.b16 %v2078, %v2076
        %v2811 = vpack.c.b16 %v2081, %v2079
        %v2812 = vpack.c.b16 %v2082, %v2080
        %v2813 = vpack.c.b16 %v2085, %v2083
        %v2814 = vpack.c.b16 %v2086, %v2084
        %v2815 = vpack.c.b16 %v2089, %v2087
        %v2816 = vpack.c.b16 %v2090, %v2088
        %v2817 = vpack.c.b16 %v2093, %v2091
        %v2818 = vpack.c.b16 %v2094, %v2092
        %v2819 = vpack.c.b16 %v2097, %v2095
        %v2820 = vpack.c.b16 %v2098, %v2096
        %v2821 = vpack.c.b16 %v2101, %v2099
        %v2822 = vpack.c.b16 %v2102, %v2100
        %v2823 = vpack.c.b16 %v2105, %v2103
        %v2824 = vpack.c.b16 %v2106, %v2104
        %v2825 = vpack.c.b16 %v2109, %v2107
        %v2826 = vpack.c.b16 %v2110, %v2108
        %v2827 = vpack.c.b16 %v2113, %v2111
        %v2828 = vpack.c.b16 %v2114, %v2112
        %v2829 = vpack.c.b16 %v2117, %v2115
        %v2830 = vpack.c.b16 %v2118, %v2116
        %v2831 = vpack.c.b16 %v2121, %v2119
        %v2832 = vpack.c.b16 %v2122, %v2120
        %v2833 = vpack.c.b16 %v2125, %v2123
        %v2834 = vpack.c.b16 %v2126, %v2124
        %v2835 = vpack.c.b16 %v2129, %v2127
        %v2836 = vpack.c.b16 %v2130, %v2128
        %v2837 = vpack.c.b16 %v2133, %v2131
        %v2838 = vpack.c.b16 %v2134, %v2132
        %v2839 = vpack.c.b16 %v2137, %v2135
        %v2840 = vpack.c.b16 %v2138, %v2136
        %v2841 = vpack.c.b16 %v2141, %v2139
        %v2842 = vpack.c.b16 %v2142, %v2140
        %v2843 = vpack.c.b16 %v2145, %v2143
        %v2844 = vpack.c.b16 %v2146, %v2144
        %v2845 = vpack.c.b16 %v2149, %v2147
        %v2846 = vpack.c.b16 %v2150, %v2148
        %v2847 = vpack.c.b16 %v2153, %v2151
        %v2848 = vpack.c.b16 %v2154, %v2152
        %v2849 = vpack.c.b16 %v2157, %v2155
        %v2850 = vpack.c.b16 %v2158, %v2156
        %v2851 = vpack.c.b16 %v2161, %v2159
        %v2852 = vpack.c.b16 %v2162, %v2160
        %v2853 = vpack.c.b16 %v2165, %v2163
        %v2854 = vpack.c.b16 %v2166, %v2164
        %v2855 = vpack.c.b16 %v2169, %v2167
        %v2856 = vpack.c.b16 %v2170, %v2168
        %v2857 = vpack.c.b16 %v2173, %v2171
        %v2858 = vpack.c.b16 %v2174, %v2172
        %v2859 = vpack.c.b16 %v2177, %v2175
        %v2860 = vpack.c.b16 %v2178, %v2176
        %v2861 = vpack.c.b16 %v2181, %v2179
        %v2862 = vpack.c.b16 %v2182, %v2180
        %v2863 = vpack.c.b16 %v2185, %v2183
        %v2864 = vpack.c.b16 %v2186, %v2184
        %v2865 = vpack.c.b16 %v2189, %v2187
        %v2866 = vpack.c.b16 %v2190, %v2188
        %v2867 = vpack.c.b16 %v2193, %v2191
        %v2868 = vpack.c.b16 %v2194, %v2192
        %v2869 = vpack.c.b16 %v2197, %v2195
        %v2870 = vpack.c.b16 %v2198, %v2196
        %v2871 = vpack.c.b16 %v2201, %v2199
        %v2872 = vpack.c.b16 %v2202, %v2200
        %v2873 = vpack.c.b16 %v2205, %v2203
        %v2874 = vpack.c.b16 %v2206, %v2204
        %v2875 = vpack.c.b16 %v2209, %v2207
        %v2876 = vpack.c.b16 %v2210, %v2208
        %v2877 = vpack.c.b16 %v2213, %v2211
        %v2878 = vpack.c.b16 %v2214, %v2212
        %v2879 = vpack.c.b16 %v2217, %v2215
        %v2880 = vpack.c.b16 %v2218, %v2216
        %v2881 = vpack.c.b16 %v2221, %v2219
        %v2882 = vpack.c.b16 %v2222, %v2220
        %v2883 = vpack.c.b16 %v2225, %v2223
        %v2884 = vpack.c.b16 %v2226, %v2224
        %v2885 = vpack.c.b16 %v2229, %v2227
        %v2886 = vpack.c.b16 %v2230, %v2228
        %v2887 = vpack.c.b16 %v2233, %v2231
        %v2888 = vpack.c.b16 %v2234, %v2232
        %v2889 = vpack.c.b16 %v2237, %v2235
        %v2890 = vpack.c.b16 %v2238, %v2236
        %v2891 = vpack.c.b16 %v2241, %v2239
        %v2892 = vpack.c.b16 %v2242, %v2240
        %v2893 = vpack.c.b16 %v2245, %v2243
        %v2894 = vpack.c.b16 %v2246, %v2244
        %v2895 = vpack.c.b16 %v2249, %v2247
        %v2896 = vpack.c.b16 %v2250, %v2248
        %v2897 = vpack.c.b16 %v2253, %v2251
        %v2898 = vpack.c.b16 %v2254, %v2252
        %v2899 = vpack.c.b16 %v2257, %v2255
        %v2900 = vpack.c.b16 %v2258, %v2256
        %v2901 = vpack.c.b16 %v2261, %v2259
        %v2902 = vpack.c.b16 %v2262, %v2260
        %v2903 = vpack.c.b16 %v2265, %v2263
        %v2904 = vpack.c.b16 %v2266, %v2264
        %v2905 = vpack.c.b16 %v2269, %v2267
        %v2906 = vpack.c.b16 %v2270, %v2268
        %v2907 = vpack.c.b16 %v2273, %v2271
        %v2908 = vpack.c.b16 %v2274, %v2272
        %v2909 = vpack.c.b16 %v2277, %v2275
        %v2910 = vpack.c.b16 %v2278, %v2276
        %v2911 = vpack.c.b16 %v2281, %v2279
        %v2912 = vpack.c.b16 %v2282, %v2280
        %v2913 = vpack.c.b16 %v2285, %v2283
        %v2914 = vpack.c.b16 %v2286, %v2284
        %v2915 = vpack.c.b16 %v2289, %v2287
        %v2916 = vpack.c.b16 %v2290, %v2288
        %v2917 = vpack.c.b16 %v2293, %v2291
        %v2918 = vpack.c.b16 %v2294, %v2292
        %v2919 = vpack.c.b16 %v2297, %v2295
        %v2920 = vpack.c.b16 %v2298, %v2296
        %v2921 = vpack.c.b16 %v2301, %v2299
        %v2922 = vpack.c.b16 %v2302, %v2300
        %v2923 = vpack.c.b16 %v2305, %v2303
        %v2924 = vpack.c.b16 %v2306, %v2304
        %v2925 = vpack.c.b16 %v2309, %v2307
        %v2926 = vpack.c.b16 %v2310, %v2308
        %v2927 = vpack.c.b16 %v2313, %v2311
        %v2928 = vpack.c.b16 %v2314, %v2312
        %v2929 = vpack.c.b16 %v2317, %v2315
        %v2930 = vpack.c.b16 %v2318, %v2316
        %v2931 = vpack.c.b16 %v2321, %v2319
        %v2932 = vpack.c.b16 %v2322, %v2320
        %v2933 = vpack.c.b16 %v2325, %v2323
        %v2934 = vpack.c.b16 %v2326, %v2324
        %v2935 = vpack.c.b16 %v2329, %v2327
        %v2936 = vpack.c.b16 %v2330, %v2328
        %v2937 = vpack.c.b16 %v2333, %v2331
        %v2938 = vpack.c.b16 %v2334, %v2332
        %v2939 = vpack.c.b16 %v2337, %v2335
        %v2940 = vpack.c.b16 %v2338, %v2336
        %v2941 = vpack.c.b16 %v2341, %v2339
        %v2942 = vpack.c.b16 %v2342, %v2340
        %v2943 = vpack.c.b16 %v2345, %v2343
        %v2944 = vpack.c.b16 %v2346, %v2344
        %v2945 = vpack.c.b16 %v2349, %v2347
        %v2946 = vpack.c.b16 %v2350, %v2348
        %v2947 = vpack.c.b16 %v2353, %v2351
        %v2948 = vpack.c.b16 %v2354, %v2352
        %v2949 = vpack.c.b16 %v2357, %v2355
        %v2950 = vpack.c.b16 %v2358, %v2356
        %v2951 = vpack.c.b16 %v2361, %v2359
        %v2952 = vpack.c.b16 %v2362, %v2360
        %v2953 = vpack.c.b16 %v2365, %v2363
        %v2954 = vpack.c.b16 %v2366, %v2364
        %v2955 = vpack.c.b16 %v2369, %v2367
        %v2956 = vpack.c.b16 %v2370, %v2368
        %v2957 = vpack.c.b16 %v2373, %v2371
        %v2958 = vpack.c.b16 %v2374, %v2372
        %v2959 = vpack.c.b16 %v2377, %v2375
        %v2960 = vpack.c.b16 %v2378, %v2376
        %v2961 = vpack.c.b16 %v2381, %v2379
        %v2962 = vpack.c.b16 %v2382, %v2380
        %v2963 = vpack.c.b16 %v2385, %v2383
        %v2964 = vpack.c.b16 %v2386, %v2384
        %v2965 = vpack.c.b16 %v2389, %v2387
        %v2966 = vpack.c.b16 %v2390, %v2388
        %v2967 = vpack.c.b16 %v2393, %v2391
        %v2968 = vpack.c.b16 %v2394, %v2392
        %v2969 = vpack.c.b16 %v2397, %v2395
        %v2970 = vpack.c.b16 %v2398, %v2396
        %v2971 = vpack.c.b16 %v2401, %v2399
        %v2972 = vpack.c.b16 %v2402, %v2400
        %v2973 = vpack.c.b16 %v2405, %v2403
        %v2974 = vpack.c.b16 %v2406, %v2404
        %v2975 = vpack.c.b16 %v2409, %v2407
        %v2976 = vpack.c.b16 %v2410, %v2408
        %v2977 = vpack.c.b16 %v2413, %v2411
        %v2978 = vpack.c.b16 %v2414, %v2412
        %v2979 = vpack.c.b16 %v2417, %v2415
        %v2980 = vpack.c.b16 %v2418, %v2416
        %v2981 = vpack.c.b16 %v2421, %v2419
        %v2982 = vpack.c.b16 %v2422, %v2420
        %v2983 = vpack.c.b16 %v2425, %v2423
        %v2984 = vpack.c.b16 %v2426, %v2424
        %v2985 = vpack.c.b16 %v2429, %v2427
        %v2986 = vpack.c.b16 %v2430, %v2428
        %v2987 = vpack.c.b16 %v2433, %v2431
        %v2988 = vpack.c.b16 %v2434, %v2432
        %v2989 = vpack.c.b16 %v2437, %v2435
        %v2990 = vpack.c.b16 %v2438, %v2436
        %v2991 = vpack.c.b16 %v2441, %v2439
        %v2992 = vpack.c.b16 %v2442, %v2440
        %v2993 = vpack.c.b16 %v2445, %v2443
        %v2994 = vpack.c.b16 %v2446, %v2444
        %v2995 = vpack.c.b16 %v2449, %v2447
        %v2996 = vpack.c.b16 %v2450, %v2448
        %v2997 = vpack.c.b16 %v2453, %v2451
        %v2998 = vpack.c.b16 %v2454, %v2452
        %v2999 = vpack.c.b16 %v2457, %v2455
        %v3000 = vpack.c.b16 %v2458, %v2456
        %v3001 = vpack.c.b16 %v2461, %v2459
        %v3002 = vpack.c.b16 %v2462, %v2460
        %v3003 = vpack.c.b16 %v2465, %v2463
        %v3004 = vpack.c.b16 %v2466, %v2464
        %v3005 = vpack.c.b16 %v2469, %v2467
        %v3006 = vpack.c.b16 %v2470, %v2468
        %v3007 = vpack.c.b16 %v2473, %v2471
        %v3008 = vpack.c.b16 %v2474, %v2472
        %v3009 = vpack.c.b16 %v2477, %v2475
        %v3010 = vpack.c.b16 %v2478, %v2476
        %v3011 = vpack.c.b16 %v2481, %v2479
        %v3012 = vpack.c.b16 %v2482, %v2480
        %v3013 = vpack.c.b16 %v2485, %v2483
        %v3014 = vpack.c.b16 %v2486, %v2484
        %v3015 = vpack.c.b16 %v2489, %v2487
        %v3016 = vpack.c.b16 %v2490, %v2488
        %v3017 = vpack.c.b16 %v2493, %v2491
        %v3018 = vpack.c.b16 %v2494, %v2492
        %v3019 = vpack.c.b16 %v2497, %v2495
        %v3020 = vpack.c.b16 %v2498, %v2496
        %v3021 = vpack.c.b16 %v2501, %v2499
        %v3022 = vpack.c.b16 %v2502, %v2500
        %v3023 = vpack.c.b16 %v2505, %v2503
        %v3024 = vpack.c.b16 %v2506, %v2504
        %v3025 = vpack.c.b16 %v2509, %v2507
        %v3026 = vpack.c.b16 %v2510, %v2508
        %v3027 = vpack.c.b16 %v2513, %v2511
        %v3028 = vpack.c.b16 %v2514, %v2512
        %v3029 = vpack.c.b16 %v2517, %v2515
        %v3030 = vpack.c.b16 %v2518, %v2516
        %3543 = vmatprep.subr.bf16.mxu0 %v2520
        %3544 = vmatpush1.bf16.msra.mxu0 %v2519
        %3545 = vmatprep.subr.bf16.mxu0 %v2522
        %3546 = vmatpush1.bf16.msra.mxu0 %v2521
        %3547 = vmatprep.subr.bf16.mxu0 %v2524
        %3548 = vmatpush1.bf16.msra.mxu0 %v2523
        %3549 = vmatprep.subr.bf16.mxu0 %v2526
        %3550 = vmatpush1.bf16.msra.mxu0 %v2525
        %3551 = vmatprep.subr.bf16.mxu0 %v2528
        %3552 = vmatpush1.bf16.msra.mxu0 %v2527
        %3553 = vmatprep.subr.bf16.mxu0 %v2530
        %3554 = vmatpush1.bf16.msra.mxu0 %v2529
        %3555 = vmatprep.subr.bf16.mxu0 %v2532
        %3556 = vmatpush1.bf16.msra.mxu0 %v2531
        %3557 = vmatprep.subr.bf16.mxu0 %v2534
        %3558 = vmatpush1.bf16.msra.mxu0 %v2533
        %3559 = vmatprep.subr.bf16.mxu0 %v2536
        %3560 = vmatpush1.bf16.msra.mxu0 %v2535
        %3561 = vmatprep.subr.bf16.mxu0 %v2538
        %3562 = vmatpush1.bf16.msra.mxu0 %v2537
        %3563 = vmatprep.subr.bf16.mxu0 %v2540
        %3564 = vmatpush1.bf16.msra.mxu0 %v2539
        %3565 = vmatprep.subr.bf16.mxu0 %v2542
        %3566 = vmatpush1.bf16.msra.mxu0 %v2541
        %3567 = vmatprep.subr.bf16.mxu0 %v2544
        %3568 = vmatpush1.bf16.msra.mxu0 %v2543
        %3569 = vmatprep.subr.bf16.mxu0 %v2546
        %3570 = vmatpush1.bf16.msra.mxu0 %v2545
        %3571 = vmatprep.subr.bf16.mxu0 %v2548
        %3572 = vmatpush1.bf16.msra.mxu0 %v2547
        %3573 = vmatprep.subr.bf16.mxu0 %v2550
        %3574 = vmatpush1.bf16.msra.mxu0 %v2549
        %3575 = vmatprep.mubr.bf16.mxu0 %v920
        %3576 = vmatmul.mubr.bf16.gmra.mrb[0].mxu0 %v919
        %v3577 = vpop.f32.mrb[0].mxu0
        %v3578 = vadd.f32 0.0, %v3577
        %v3579 = vpop.f32.mrb[0].mxu0
        %v3580 = vadd.f32 0.0, %v3579
        %v3581 = vpop.f32.mrb[0].mxu0
        %v3582 = vpop.f32.mrb[0].mxu0
        %3583 = vdwg.mxu0
        %3584 = vmatprep.subr.bf16.mxu0 %v2552
        %3585 = vmatpush1.bf16.msra.mxu0 %v2551
        %3586 = vmatprep.subr.bf16.mxu0 %v2554
        %3587 = vmatpush1.bf16.msra.mxu0 %v2553
        %3588 = vmatprep.subr.bf16.mxu0 %v2556
        %3589 = vmatpush1.bf16.msra.mxu0 %v2555
        %3590 = vmatprep.subr.bf16.mxu0 %v2558
        %3591 = vmatpush1.bf16.msra.mxu0 %v2557
        %3592 = vmatprep.subr.bf16.mxu0 %v2560
        %3593 = vmatpush1.bf16.msra.mxu0 %v2559
        %3594 = vmatprep.subr.bf16.mxu0 %v2562
        %3595 = vmatpush1.bf16.msra.mxu0 %v2561
        %3596 = vmatprep.subr.bf16.mxu0 %v2564
        %3597 = vmatpush1.bf16.msra.mxu0 %v2563
        %3598 = vmatprep.subr.bf16.mxu0 %v2566
        %3599 = vmatpush1.bf16.msra.mxu0 %v2565
        %3600 = vmatprep.subr.bf16.mxu0 %v2568
        %3601 = vmatpush1.bf16.msra.mxu0 %v2567
        %3602 = vmatprep.subr.bf16.mxu0 %v2570
        %3603 = vmatpush1.bf16.msra.mxu0 %v2569
        %3604 = vmatprep.subr.bf16.mxu0 %v2572
        %3605 = vmatpush1.bf16.msra.mxu0 %v2571
        %3606 = vmatprep.subr.bf16.mxu0 %v2574
        %3607 = vmatpush1.bf16.msra.mxu0 %v2573
        %3608 = vmatprep.subr.bf16.mxu0 %v2576
        %3609 = vmatpush1.bf16.msra.mxu0 %v2575
        %3610 = vmatprep.subr.bf16.mxu0 %v2578
        %3611 = vmatpush1.bf16.msra.mxu0 %v2577
        %3612 = vmatprep.subr.bf16.mxu0 %v2580
        %3613 = vmatpush1.bf16.msra.mxu0 %v2579
        %3614 = vmatprep.subr.bf16.mxu0 %v2582
        %3615 = vmatpush1.bf16.msra.mxu0 %v2581
        %3616 = vmatprep.mubr.bf16.mxu0 %v922
        %3617 = vmatmul.mubr.bf16.gmra.mrb[0].mxu0 %v921
        %v3618 = vpop.f32.mrb[0].mxu0
        %v3619 = vadd.f32 %v3578, %v3618
        %v3620 = vpop.f32.mrb[0].mxu0
        %v3621 = vadd.f32 %v3580, %v3620
        %v3622 = vpop.f32.mrb[0].mxu0
        %v3623 = vpop.f32.mrb[0].mxu0
        %3624 = vdwg.mxu0
        %3625 = vmatprep.subr.bf16.mxu0 %v2584
        %3626 = vmatpush1.bf16.msra.mxu0 %v2583
        %3627 = vmatprep.subr.bf16.mxu0 %v2586
        %3628 = vmatpush1.bf16.msra.mxu0 %v2585
        %3629 = vmatprep.subr.bf16.mxu0 %v2588
        %3630 = vmatpush1.bf16.msra.mxu0 %v2587
        %3631 = vmatprep.subr.bf16.mxu0 %v2590
        %3632 = vmatpush1.bf16.msra.mxu0 %v2589
        %3633 = vmatprep.subr.bf16.mxu0 %v2592
        %3634 = vmatpush1.bf16.msra.mxu0 %v2591
        %3635 = vmatprep.subr.bf16.mxu0 %v2594
        %3636 = vmatpush1.bf16.msra.mxu0 %v2593
        %3637 = vmatprep.subr.bf16.mxu0 %v2596
        %3638 = vmatpush1.bf16.msra.mxu0 %v2595
        %3639 = vmatprep.subr.bf16.mxu0 %v2598
        %3640 = vmatpush1.bf16.msra.mxu0 %v2597
        %3641 = vmatprep.subr.bf16.mxu0 %v2600
        %3642 = vmatpush1.bf16.msra.mxu0 %v2599
        %3643 = vmatprep.subr.bf16.mxu0 %v2602
        %3644 = vmatpush1.bf16.msra.mxu0 %v2601
        %3645 = vmatprep.subr.bf16.mxu0 %v2604
        %3646 = vmatpush1.bf16.msra.mxu0 %v2603
        %3647 = vmatprep.subr.bf16.mxu0 %v2606
        %3648 = vmatpush1.bf16.msra.mxu0 %v2605
        %3649 = vmatprep.subr.bf16.mxu0 %v2608
        %3650 = vmatpush1.bf16.msra.mxu0 %v2607
        %3651 = vmatprep.subr.bf16.mxu0 %v2610
        %3652 = vmatpush1.bf16.msra.mxu0 %v2609
        %3653 = vmatprep.subr.bf16.mxu0 %v2612
        %3654 = vmatpush1.bf16.msra.mxu0 %v2611
        %3655 = vmatprep.subr.bf16.mxu0 %v2614
        %3656 = vmatpush1.bf16.msra.mxu0 %v2613
        %3657 = vmatprep.mubr.bf16.mxu0 %v924
        %3658 = vmatmul.mubr.bf16.gmra.mrb[0].mxu0 %v923
        %v3659 = vpop.f32.mrb[0].mxu0
        %v3660 = vadd.f32 %v3619, %v3659
        %v3661 = vpop.f32.mrb[0].mxu0
        %v3662 = vadd.f32 %v3621, %v3661
        %v3663 = vpop.f32.mrb[0].mxu0
        %v3664 = vpop.f32.mrb[0].mxu0
        %3665 = vdwg.mxu0
        %3666 = vmatprep.subr.bf16.mxu0 %v2616
        %3667 = vmatpush1.bf16.msra.mxu0 %v2615
        %3668 = vmatprep.subr.bf16.mxu0 %v2618
        %3669 = vmatpush1.bf16.msra.mxu0 %v2617
        %3670 = vmatprep.subr.bf16.mxu0 %v2620
        %3671 = vmatpush1.bf16.msra.mxu0 %v2619
        %3672 = vmatprep.subr.bf16.mxu0 %v2622
        %3673 = vmatpush1.bf16.msra.mxu0 %v2621
        %3674 = vmatprep.subr.bf16.mxu0 %v2624
        %3675 = vmatpush1.bf16.msra.mxu0 %v2623
        %3676 = vmatprep.subr.bf16.mxu0 %v2626
        %3677 = vmatpush1.bf16.msra.mxu0 %v2625
        %3678 = vmatprep.subr.bf16.mxu0 %v2628
        %3679 = vmatpush1.bf16.msra.mxu0 %v2627
        %3680 = vmatprep.subr.bf16.mxu0 %v2630
        %3681 = vmatpush1.bf16.msra.mxu0 %v2629
        %3682 = vmatprep.subr.bf16.mxu0 %v2632
        %3683 = vmatpush1.bf16.msra.mxu0 %v2631
        %3684 = vmatprep.subr.bf16.mxu0 %v2634
        %3685 = vmatpush1.bf16.msra.mxu0 %v2633
        %3686 = vmatprep.subr.bf16.mxu0 %v2636
        %3687 = vmatpush1.bf16.msra.mxu0 %v2635
        %3688 = vmatprep.subr.bf16.mxu0 %v2638
        %3689 = vmatpush1.bf16.msra.mxu0 %v2637
        %3690 = vmatprep.subr.bf16.mxu0 %v2640
        %3691 = vmatpush1.bf16.msra.mxu0 %v2639
        %3692 = vmatprep.subr.bf16.mxu0 %v2642
        %3693 = vmatpush1.bf16.msra.mxu0 %v2641
        %3694 = vmatprep.subr.bf16.mxu0 %v2644
        %3695 = vmatpush1.bf16.msra.mxu0 %v2643
        %3696 = vmatprep.subr.bf16.mxu0 %v2646
        %3697 = vmatpush1.bf16.msra.mxu0 %v2645
        %3698 = vmatprep.mubr.bf16.mxu0 %v926
        %3699 = vmatmul.mubr.bf16.gmra.mrb[0].mxu0 %v925
        %v3700 = vpop.f32.mrb[0].mxu0
        %v3701 = vadd.f32 %v3660, %v3700
        %v3702 = vpop.f32.mrb[0].mxu0
        %v3703 = vadd.f32 %v3662, %v3702
        %v3704 = vpop.f32.mrb[0].mxu0
        %v3705 = vpop.f32.mrb[0].mxu0
        %3706 = vdwg.mxu0
        %3707 = vmatprep.subr.bf16.mxu0 %v2648
        %3708 = vmatpush1.bf16.msra.mxu0 %v2647
        %3709 = vmatprep.subr.bf16.mxu0 %v2650
        %3710 = vmatpush1.bf16.msra.mxu0 %v2649
        %3711 = vmatprep.subr.bf16.mxu0 %v2652
        %3712 = vmatpush1.bf16.msra.mxu0 %v2651
        %3713 = vmatprep.subr.bf16.mxu0 %v2654
        %3714 = vmatpush1.bf16.msra.mxu0 %v2653
        %3715 = vmatprep.subr.bf16.mxu0 %v2656
        %3716 = vmatpush1.bf16.msra.mxu0 %v2655
        %3717 = vmatprep.subr.bf16.mxu0 %v2658
        %3718 = vmatpush1.bf16.msra.mxu0 %v2657
        %3719 = vmatprep.subr.bf16.mxu0 %v2660
        %3720 = vmatpush1.bf16.msra.mxu0 %v2659
        %3721 = vmatprep.subr.bf16.mxu0 %v2662
        %3722 = vmatpush1.bf16.msra.mxu0 %v2661
        %3723 = vmatprep.subr.bf16.mxu0 %v2664
        %3724 = vmatpush1.bf16.msra.mxu0 %v2663
        %3725 = vmatprep.subr.bf16.mxu0 %v2666
        %3726 = vmatpush1.bf16.msra.mxu0 %v2665
        %3727 = vmatprep.subr.bf16.mxu0 %v2668
        %3728 = vmatpush1.bf16.msra.mxu0 %v2667
        %3729 = vmatprep.subr.bf16.mxu0 %v2670
        %3730 = vmatpush1.bf16.msra.mxu0 %v2669
        %3731 = vmatprep.subr.bf16.mxu0 %v2672
        %3732 = vmatpush1.bf16.msra.mxu0 %v2671
        %3733 = vmatprep.subr.bf16.mxu0 %v2674
        %3734 = vmatpush1.bf16.msra.mxu0 %v2673
        %3735 = vmatprep.subr.bf16.mxu0 %v2676
        %3736 = vmatpush1.bf16.msra.mxu0 %v2675
        %3737 = vmatprep.subr.bf16.mxu0 %v2678
        %3738 = vmatpush1.bf16.msra.mxu0 %v2677
        %3739 = vmatprep.mubr.bf16.mxu0 %v928
        %3740 = vmatmul.mubr.bf16.gmra.mrb[0].mxu0 %v927
        %v3741 = vpop.f32.mrb[0].mxu0
        %v3742 = vadd.f32 %v3701, %v3741
        %v3743 = vpop.f32.mrb[0].mxu0
        %v3744 = vadd.f32 %v3703, %v3743
        %v3745 = vpop.f32.mrb[0].mxu0
        %v3746 = vpop.f32.mrb[0].mxu0
        %3747 = vdwg.mxu0
        %3748 = vmatprep.subr.bf16.mxu0 %v2680
        %3749 = vmatpush1.bf16.msra.mxu0 %v2679
        %3750 = vmatprep.subr.bf16.mxu0 %v2682
        %3751 = vmatpush1.bf16.msra.mxu0 %v2681
        %3752 = vmatprep.subr.bf16.mxu0 %v2684
        %3753 = vmatpush1.bf16.msra.mxu0 %v2683
        %3754 = vmatprep.subr.bf16.mxu0 %v2686
        %3755 = vmatpush1.bf16.msra.mxu0 %v2685
        %3756 = vmatprep.subr.bf16.mxu0 %v2688
        %3757 = vmatpush1.bf16.msra.mxu0 %v2687
        %3758 = vmatprep.subr.bf16.mxu0 %v2690
        %3759 = vmatpush1.bf16.msra.mxu0 %v2689
        %3760 = vmatprep.subr.bf16.mxu0 %v2692
        %3761 = vmatpush1.bf16.msra.mxu0 %v2691
        %3762 = vmatprep.subr.bf16.mxu0 %v2694
        %3763 = vmatpush1.bf16.msra.mxu0 %v2693
        %3764 = vmatprep.subr.bf16.mxu0 %v2696
        %3765 = vmatpush1.bf16.msra.mxu0 %v2695
        %3766 = vmatprep.subr.bf16.mxu0 %v2698
        %3767 = vmatpush1.bf16.msra.mxu0 %v2697
        %3768 = vmatprep.subr.bf16.mxu0 %v2700
        %3769 = vmatpush1.bf16.msra.mxu0 %v2699
        %3770 = vmatprep.subr.bf16.mxu0 %v2702
        %3771 = vmatpush1.bf16.msra.mxu0 %v2701
        %3772 = vmatprep.subr.bf16.mxu0 %v2704
        %3773 = vmatpush1.bf16.msra.mxu0 %v2703
        %3774 = vmatprep.subr.bf16.mxu0 %v2706
        %3775 = vmatpush1.bf16.msra.mxu0 %v2705
        %3776 = vmatprep.subr.bf16.mxu0 %v2708
        %3777 = vmatpush1.bf16.msra.mxu0 %v2707
        %3778 = vmatprep.subr.bf16.mxu0 %v2710
        %3779 = vmatpush1.bf16.msra.mxu0 %v2709
        %3780 = vmatprep.mubr.bf16.mxu0 %v930
        %3781 = vmatmul.mubr.bf16.gmra.mrb[0].mxu0 %v929
        %v3782 = vpop.f32.mrb[0].mxu0
        %v3783 = vadd.f32 %v3742, %v3782
        %v3784 = vpop.f32.mrb[0].mxu0
        %v3785 = vadd.f32 %v3744, %v3784
        %v3786 = vpop.f32.mrb[0].mxu0
        %v3787 = vpop.f32.mrb[0].mxu0
        %3788 = vdwg.mxu0
        %3789 = vmatprep.subr.bf16.mxu0 %v2712
        %3790 = vmatpush1.bf16.msra.mxu0 %v2711
        %3791 = vmatprep.subr.bf16.mxu0 %v2714
        %3792 = vmatpush1.bf16.msra.mxu0 %v2713
        %3793 = vmatprep.subr.bf16.mxu0 %v2716
        %3794 = vmatpush1.bf16.msra.mxu0 %v2715
        %3795 = vmatprep.subr.bf16.mxu0 %v2718
        %3796 = vmatpush1.bf16.msra.mxu0 %v2717
        %3797 = vmatprep.subr.bf16.mxu0 %v2720
        %3798 = vmatpush1.bf16.msra.mxu0 %v2719
        %3799 = vmatprep.subr.bf16.mxu0 %v2722
        %3800 = vmatpush1.bf16.msra.mxu0 %v2721
        %3801 = vmatprep.subr.bf16.mxu0 %v2724
        %3802 = vmatpush1.bf16.msra.mxu0 %v2723
        %3803 = vmatprep.subr.bf16.mxu0 %v2726
        %3804 = vmatpush1.bf16.msra.mxu0 %v2725
        %3805 = vmatprep.subr.bf16.mxu0 %v2728
        %3806 = vmatpush1.bf16.msra.mxu0 %v2727
        %3807 = vmatprep.subr.bf16.mxu0 %v2730
        %3808 = vmatpush1.bf16.msra.mxu0 %v2729
        %3809 = vmatprep.subr.bf16.mxu0 %v2732
        %3810 = vmatpush1.bf16.msra.mxu0 %v2731
        %3811 = vmatprep.subr.bf16.mxu0 %v2734
        %3812 = vmatpush1.bf16.msra.mxu0 %v2733
        %3813 = vmatprep.subr.bf16.mxu0 %v2736
        %3814 = vmatpush1.bf16.msra.mxu0 %v2735
        %3815 = vmatprep.subr.bf16.mxu0 %v2738
        %3816 = vmatpush1.bf16.msra.mxu0 %v2737
        %3817 = vmatprep.subr.bf16.mxu0 %v2740
        %3818 = vmatpush1.bf16.msra.mxu0 %v2739
        %3819 = vmatprep.subr.bf16.mxu0 %v2742
        %3820 = vmatpush1.bf16.msra.mxu0 %v2741
        %3821 = vmatprep.mubr.bf16.mxu0 %v932
        %3822 = vmatmul.mubr.bf16.gmra.mrb[0].mxu0 %v931
        %v3823 = vpop.f32.mrb[0].mxu0
        %v3824 = vadd.f32 %v3783, %v3823
        %v3825 = vpop.f32.mrb[0].mxu0
        %v3826 = vadd.f32 %v3785, %v3825
        %v3827 = vpop.f32.mrb[0].mxu0
        %v3828 = vpop.f32.mrb[0].mxu0
        %3829 = vdwg.mxu0
        %3830 = vmatprep.subr.bf16.mxu0 %v2744
        %3831 = vmatpush1.bf16.msra.mxu0 %v2743
        %3832 = vmatprep.subr.bf16.mxu0 %v2746
        %3833 = vmatpush1.bf16.msra.mxu0 %v2745
        %3834 = vmatprep.subr.bf16.mxu0 %v2748
        %3835 = vmatpush1.bf16.msra.mxu0 %v2747
        %3836 = vmatprep.subr.bf16.mxu0 %v2750
        %3837 = vmatpush1.bf16.msra.mxu0 %v2749
        %3838 = vmatprep.subr.bf16.mxu0 %v2752
        %3839 = vmatpush1.bf16.msra.mxu0 %v2751
        %3840 = vmatprep.subr.bf16.mxu0 %v2754
        %3841 = vmatpush1.bf16.msra.mxu0 %v2753
        %3842 = vmatprep.subr.bf16.mxu0 %v2756
        %3843 = vmatpush1.bf16.msra.mxu0 %v2755
        %3844 = vmatprep.subr.bf16.mxu0 %v2758
        %3845 = vmatpush1.bf16.msra.mxu0 %v2757
        %3846 = vmatprep.subr.bf16.mxu0 %v2760
        %3847 = vmatpush1.bf16.msra.mxu0 %v2759
        %3848 = vmatprep.subr.bf16.mxu0 %v2762
        %3849 = vmatpush1.bf16.msra.mxu0 %v2761
        %3850 = vmatprep.subr.bf16.mxu0 %v2764
        %3851 = vmatpush1.bf16.msra.mxu0 %v2763
        %3852 = vmatprep.subr.bf16.mxu0 %v2766
        %3853 = vmatpush1.bf16.msra.mxu0 %v2765
        %3854 = vmatprep.subr.bf16.mxu0 %v2768
        %3855 = vmatpush1.bf16.msra.mxu0 %v2767
        %3856 = vmatprep.subr.bf16.mxu0 %v2770
        %3857 = vmatpush1.bf16.msra.mxu0 %v2769
        %3858 = vmatprep.subr.bf16.mxu0 %v2772
        %3859 = vmatpush1.bf16.msra.mxu0 %v2771
        %3860 = vmatprep.subr.bf16.mxu0 %v2774
        %3861 = vmatpush1.bf16.msra.mxu0 %v2773
        %3862 = vmatprep.mubr.bf16.mxu0 %v934
        %3863 = vmatmul.mubr.bf16.gmra.mrb[0].mxu0 %v933
        %v3864 = vpop.f32.mrb[0].mxu0
        %v3865 = vadd.f32 %v3824, %v3864
        %v3866 = vpop.f32.mrb[0].mxu0
        %v3867 = vadd.f32 %v3826, %v3866
        %v3868 = vpop.f32.mrb[0].mxu0
        %v3869 = vpop.f32.mrb[0].mxu0
        %3870 = vdwg.mxu0
        %3871 = vmatprep.subr.bf16.mxu0 %v2776
        %3872 = vmatpush1.bf16.msra.mxu0 %v2775
        %3873 = vmatprep.subr.bf16.mxu0 %v2778
        %3874 = vmatpush1.bf16.msra.mxu0 %v2777
        %3875 = vmatprep.subr.bf16.mxu0 %v2780
        %3876 = vmatpush1.bf16.msra.mxu0 %v2779
        %3877 = vmatprep.subr.bf16.mxu0 %v2782
        %3878 = vmatpush1.bf16.msra.mxu0 %v2781
        %3879 = vmatprep.subr.bf16.mxu0 %v2784
        %3880 = vmatpush1.bf16.msra.mxu0 %v2783
        %3881 = vmatprep.subr.bf16.mxu0 %v2786
        %3882 = vmatpush1.bf16.msra.mxu0 %v2785
        %3883 = vmatprep.subr.bf16.mxu0 %v2788
        %3884 = vmatpush1.bf16.msra.mxu0 %v2787
        %3885 = vmatprep.subr.bf16.mxu0 %v2790
        %3886 = vmatpush1.bf16.msra.mxu0 %v2789
        %3887 = vmatprep.subr.bf16.mxu0 %v2792
        %3888 = vmatpush1.bf16.msra.mxu0 %v2791
        %3889 = vmatprep.subr.bf16.mxu0 %v2794
        %3890 = vmatpush1.bf16.msra.mxu0 %v2793
        %3891 = vmatprep.subr.bf16.mxu0 %v2796
        %3892 = vmatpush1.bf16.msra.mxu0 %v2795
        %3893 = vmatprep.subr.bf16.mxu0 %v2798
        %3894 = vmatpush1.bf16.msra.mxu0 %v2797
        %3895 = vmatprep.subr.bf16.mxu0 %v2800
        %3896 = vmatpush1.bf16.msra.mxu0 %v2799
        %3897 = vmatprep.subr.bf16.mxu0 %v2802
        %3898 = vmatpush1.bf16.msra.mxu0 %v2801
        %3899 = vmatprep.subr.bf16.mxu0 %v2804
        %3900 = vmatpush1.bf16.msra.mxu0 %v2803
        %3901 = vmatprep.subr.bf16.mxu0 %v2806
        %3902 = vmatpush1.bf16.msra.mxu0 %v2805
        %3903 = vmatprep.mubr.bf16.mxu0 %v936
        %3904 = vmatmul.mubr.bf16.gmra.mrb[0].mxu0 %v935
        %v3905 = vpop.f32.mrb[0].mxu0
        %v3906 = vadd.f32 %v3865, %v3905
        %v3907 = vpop.f32.mrb[0].mxu0
        %v3908 = vadd.f32 %v3867, %v3907
        %v3909 = vpop.f32.mrb[0].mxu0
        %v3910 = vpop.f32.mrb[0].mxu0
        %3911 = vdwg.mxu0
        %3912 = vmatprep.subr.bf16.mxu0 %v2808
        %3913 = vmatpush1.bf16.msra.mxu0 %v2807
        %3914 = vmatprep.subr.bf16.mxu0 %v2810
        %3915 = vmatpush1.bf16.msra.mxu0 %v2809
        %3916 = vmatprep.subr.bf16.mxu0 %v2812
        %3917 = vmatpush1.bf16.msra.mxu0 %v2811
        %3918 = vmatprep.subr.bf16.mxu0 %v2814
        %3919 = vmatpush1.bf16.msra.mxu0 %v2813
        %3920 = vmatprep.subr.bf16.mxu0 %v2816
        %3921 = vmatpush1.bf16.msra.mxu0 %v2815
        %3922 = vmatprep.subr.bf16.mxu0 %v2818
        %3923 = vmatpush1.bf16.msra.mxu0 %v2817
        %3924 = vmatprep.subr.bf16.mxu0 %v2820
        %3925 = vmatpush1.bf16.msra.mxu0 %v2819
        %3926 = vmatprep.subr.bf16.mxu0 %v2822
        %3927 = vmatpush1.bf16.msra.mxu0 %v2821
        %3928 = vmatprep.subr.bf16.mxu0 %v2824
        %3929 = vmatpush1.bf16.msra.mxu0 %v2823
        %3930 = vmatprep.subr.bf16.mxu0 %v2826
        %3931 = vmatpush1.bf16.msra.mxu0 %v2825
        %3932 = vmatprep.subr.bf16.mxu0 %v2828
        %3933 = vmatpush1.bf16.msra.mxu0 %v2827
        %3934 = vmatprep.subr.bf16.mxu0 %v2830
        %3935 = vmatpush1.bf16.msra.mxu0 %v2829
        %3936 = vmatprep.subr.bf16.mxu0 %v2832
        %3937 = vmatpush1.bf16.msra.mxu0 %v2831
        %3938 = vmatprep.subr.bf16.mxu0 %v2834
        %3939 = vmatpush1.bf16.msra.mxu0 %v2833
        %3940 = vmatprep.subr.bf16.mxu0 %v2836
        %3941 = vmatpush1.bf16.msra.mxu0 %v2835
        %3942 = vmatprep.subr.bf16.mxu0 %v2838
        %3943 = vmatpush1.bf16.msra.mxu0 %v2837
        %3944 = vmatprep.mubr.bf16.mxu0 %v938
        %3945 = vmatmul.mubr.bf16.gmra.mrb[0].mxu0 %v937
        %v3946 = vpop.f32.mrb[0].mxu0
        %v3947 = vadd.f32 %v3906, %v3946
        %v3948 = vpop.f32.mrb[0].mxu0
        %v3949 = vadd.f32 %v3908, %v3948
        %v3950 = vpop.f32.mrb[0].mxu0
        %v3951 = vpop.f32.mrb[0].mxu0
        %3952 = vdwg.mxu0
        %3953 = vmatprep.subr.bf16.mxu0 %v2840
        %3954 = vmatpush1.bf16.msra.mxu0 %v2839
        %3955 = vmatprep.subr.bf16.mxu0 %v2842
        %3956 = vmatpush1.bf16.msra.mxu0 %v2841
        %3957 = vmatprep.subr.bf16.mxu0 %v2844
        %3958 = vmatpush1.bf16.msra.mxu0 %v2843
        %3959 = vmatprep.subr.bf16.mxu0 %v2846
        %3960 = vmatpush1.bf16.msra.mxu0 %v2845
        %3961 = vmatprep.subr.bf16.mxu0 %v2848
        %3962 = vmatpush1.bf16.msra.mxu0 %v2847
        %3963 = vmatprep.subr.bf16.mxu0 %v2850
        %3964 = vmatpush1.bf16.msra.mxu0 %v2849
        %3965 = vmatprep.subr.bf16.mxu0 %v2852
        %3966 = vmatpush1.bf16.msra.mxu0 %v2851
        %3967 = vmatprep.subr.bf16.mxu0 %v2854
        %3968 = vmatpush1.bf16.msra.mxu0 %v2853
        %3969 = vmatprep.subr.bf16.mxu0 %v2856
        %3970 = vmatpush1.bf16.msra.mxu0 %v2855
        %3971 = vmatprep.subr.bf16.mxu0 %v2858
        %3972 = vmatpush1.bf16.msra.mxu0 %v2857
        %3973 = vmatprep.subr.bf16.mxu0 %v2860
        %3974 = vmatpush1.bf16.msra.mxu0 %v2859
        %3975 = vmatprep.subr.bf16.mxu0 %v2862
        %3976 = vmatpush1.bf16.msra.mxu0 %v2861
        %3977 = vmatprep.subr.bf16.mxu0 %v2864
        %3978 = vmatpush1.bf16.msra.mxu0 %v2863
        %3979 = vmatprep.subr.bf16.mxu0 %v2866
        %3980 = vmatpush1.bf16.msra.mxu0 %v2865
        %3981 = vmatprep.subr.bf16.mxu0 %v2868
        %3982 = vmatpush1.bf16.msra.mxu0 %v2867
        %3983 = vmatprep.subr.bf16.mxu0 %v2870
        %3984 = vmatpush1.bf16.msra.mxu0 %v2869
        %3985 = vmatprep.mubr.bf16.mxu0 %v940
        %3986 = vmatmul.mubr.bf16.gmra.mrb[0].mxu0 %v939
        %v3987 = vpop.f32.mrb[0].mxu0
        %v3988 = vadd.f32 %v3947, %v3987
        %v3989 = vpop.f32.mrb[0].mxu0
        %v3990 = vadd.f32 %v3949, %v3989
        %v3991 = vpop.f32.mrb[0].mxu0
        %v3992 = vpop.f32.mrb[0].mxu0
        %3993 = vdwg.mxu0
        %3994 = vmatprep.subr.bf16.mxu0 %v2872
        %3995 = vmatpush1.bf16.msra.mxu0 %v2871
        %3996 = vmatprep.subr.bf16.mxu0 %v2874
        %3997 = vmatpush1.bf16.msra.mxu0 %v2873
        %3998 = vmatprep.subr.bf16.mxu0 %v2876
        %3999 = vmatpush1.bf16.msra.mxu0 %v2875
        %4000 = vmatprep.subr.bf16.mxu0 %v2878
        %4001 = vmatpush1.bf16.msra.mxu0 %v2877
        %4002 = vmatprep.subr.bf16.mxu0 %v2880
        %4003 = vmatpush1.bf16.msra.mxu0 %v2879
        %4004 = vmatprep.subr.bf16.mxu0 %v2882
        %4005 = vmatpush1.bf16.msra.mxu0 %v2881
        %4006 = vmatprep.subr.bf16.mxu0 %v2884
        %4007 = vmatpush1.bf16.msra.mxu0 %v2883
        %4008 = vmatprep.subr.bf16.mxu0 %v2886
        %4009 = vmatpush1.bf16.msra.mxu0 %v2885
        %4010 = vmatprep.subr.bf16.mxu0 %v2888
        %4011 = vmatpush1.bf16.msra.mxu0 %v2887
        %4012 = vmatprep.subr.bf16.mxu0 %v2890
        %4013 = vmatpush1.bf16.msra.mxu0 %v2889
        %4014 = vmatprep.subr.bf16.mxu0 %v2892
        %4015 = vmatpush1.bf16.msra.mxu0 %v2891
        %4016 = vmatprep.subr.bf16.mxu0 %v2894
        %4017 = vmatpush1.bf16.msra.mxu0 %v2893
        %4018 = vmatprep.subr.bf16.mxu0 %v2896
        %4019 = vmatpush1.bf16.msra.mxu0 %v2895
        %4020 = vmatprep.subr.bf16.mxu0 %v2898
        %4021 = vmatpush1.bf16.msra.mxu0 %v2897
        %4022 = vmatprep.subr.bf16.mxu0 %v2900
        %4023 = vmatpush1.bf16.msra.mxu0 %v2899
        %4024 = vmatprep.subr.bf16.mxu0 %v2902
        %4025 = vmatpush1.bf16.msra.mxu0 %v2901
        %4026 = vmatprep.mubr.bf16.mxu0 %v942
        %4027 = vmatmul.mubr.bf16.gmra.mrb[0].mxu0 %v941
        %v4028 = vpop.f32.mrb[0].mxu0
        %v4029 = vadd.f32 %v3988, %v4028
        %v4030 = vpop.f32.mrb[0].mxu0
        %v4031 = vadd.f32 %v3990, %v4030
        %v4032 = vpop.f32.mrb[0].mxu0
        %v4033 = vpop.f32.mrb[0].mxu0
        %4034 = vdwg.mxu0
        %4035 = vmatprep.subr.bf16.mxu0 %v2904
        %4036 = vmatpush1.bf16.msra.mxu0 %v2903
        %4037 = vmatprep.subr.bf16.mxu0 %v2906
        %4038 = vmatpush1.bf16.msra.mxu0 %v2905
        %4039 = vmatprep.subr.bf16.mxu0 %v2908
        %4040 = vmatpush1.bf16.msra.mxu0 %v2907
        %4041 = vmatprep.subr.bf16.mxu0 %v2910
        %4042 = vmatpush1.bf16.msra.mxu0 %v2909
        %4043 = vmatprep.subr.bf16.mxu0 %v2912
        %4044 = vmatpush1.bf16.msra.mxu0 %v2911
        %4045 = vmatprep.subr.bf16.mxu0 %v2914
        %4046 = vmatpush1.bf16.msra.mxu0 %v2913
        %4047 = vmatprep.subr.bf16.mxu0 %v2916
        %4048 = vmatpush1.bf16.msra.mxu0 %v2915
        %4049 = vmatprep.subr.bf16.mxu0 %v2918
        %4050 = vmatpush1.bf16.msra.mxu0 %v2917
        %4051 = vmatprep.subr.bf16.mxu0 %v2920
        %4052 = vmatpush1.bf16.msra.mxu0 %v2919
        %4053 = vmatprep.subr.bf16.mxu0 %v2922
        %4054 = vmatpush1.bf16.msra.mxu0 %v2921
        %4055 = vmatprep.subr.bf16.mxu0 %v2924
        %4056 = vmatpush1.bf16.msra.mxu0 %v2923
        %4057 = vmatprep.subr.bf16.mxu0 %v2926
        %4058 = vmatpush1.bf16.msra.mxu0 %v2925
        %4059 = vmatprep.subr.bf16.mxu0 %v2928
        %4060 = vmatpush1.bf16.msra.mxu0 %v2927
        %4061 = vmatprep.subr.bf16.mxu0 %v2930
        %4062 = vmatpush1.bf16.msra.mxu0 %v2929
        %4063 = vmatprep.subr.bf16.mxu0 %v2932
        %4064 = vmatpush1.bf16.msra.mxu0 %v2931
        %4065 = vmatprep.subr.bf16.mxu0 %v2934
        %4066 = vmatpush1.bf16.msra.mxu0 %v2933
        %4067 = vmatprep.mubr.bf16.mxu0 %v944
        %4068 = vmatmul.mubr.bf16.gmra.mrb[0].mxu0 %v943
        %v4069 = vpop.f32.mrb[0].mxu0
        %v4070 = vadd.f32 %v4029, %v4069
        %v4071 = vpop.f32.mrb[0].mxu0
        %v4072 = vadd.f32 %v4031, %v4071
        %v4073 = vpop.f32.mrb[0].mxu0
        %v4074 = vpop.f32.mrb[0].mxu0
        %4075 = vdwg.mxu0
        %4076 = vmatprep.subr.bf16.mxu0 %v2936
        %4077 = vmatpush1.bf16.msra.mxu0 %v2935
        %4078 = vmatprep.subr.bf16.mxu0 %v2938
        %4079 = vmatpush1.bf16.msra.mxu0 %v2937
        %4080 = vmatprep.subr.bf16.mxu0 %v2940
        %4081 = vmatpush1.bf16.msra.mxu0 %v2939
        %4082 = vmatprep.subr.bf16.mxu0 %v2942
        %4083 = vmatpush1.bf16.msra.mxu0 %v2941
        %4084 = vmatprep.subr.bf16.mxu0 %v2944
        %4085 = vmatpush1.bf16.msra.mxu0 %v2943
        %4086 = vmatprep.subr.bf16.mxu0 %v2946
        %4087 = vmatpush1.bf16.msra.mxu0 %v2945
        %4088 = vmatprep.subr.bf16.mxu0 %v2948
        %4089 = vmatpush1.bf16.msra.mxu0 %v2947
        %4090 = vmatprep.subr.bf16.mxu0 %v2950
        %4091 = vmatpush1.bf16.msra.mxu0 %v2949
        %4092 = vmatprep.subr.bf16.mxu0 %v2952
        %4093 = vmatpush1.bf16.msra.mxu0 %v2951
        %4094 = vmatprep.subr.bf16.mxu0 %v2954
        %4095 = vmatpush1.bf16.msra.mxu0 %v2953
        %4096 = vmatprep.subr.bf16.mxu0 %v2956
        %4097 = vmatpush1.bf16.msra.mxu0 %v2955
        %4098 = vmatprep.subr.bf16.mxu0 %v2958
        %4099 = vmatpush1.bf16.msra.mxu0 %v2957
        %4100 = vmatprep.subr.bf16.mxu0 %v2960
        %4101 = vmatpush1.bf16.msra.mxu0 %v2959
        %4102 = vmatprep.subr.bf16.mxu0 %v2962
        %4103 = vmatpush1.bf16.msra.mxu0 %v2961
        %4104 = vmatprep.subr.bf16.mxu0 %v2964
        %4105 = vmatpush1.bf16.msra.mxu0 %v2963
        %4106 = vmatprep.subr.bf16.mxu0 %v2966
        %4107 = vmatpush1.bf16.msra.mxu0 %v2965
        %4108 = vmatprep.mubr.bf16.mxu0 %v946
        %4109 = vmatmul.mubr.bf16.gmra.mrb[0].mxu0 %v945
        %v4110 = vpop.f32.mrb[0].mxu0
        %v4111 = vadd.f32 %v4070, %v4110
        %v4112 = vpop.f32.mrb[0].mxu0
        %v4113 = vadd.f32 %v4072, %v4112
        %v4114 = vpop.f32.mrb[0].mxu0
        %v4115 = vpop.f32.mrb[0].mxu0
        %4116 = vdwg.mxu0
        %4117 = vmatprep.subr.bf16.mxu0 %v2968
        %4118 = vmatpush1.bf16.msra.mxu0 %v2967
        %4119 = vmatprep.subr.bf16.mxu0 %v2970
        %4120 = vmatpush1.bf16.msra.mxu0 %v2969
        %4121 = vmatprep.subr.bf16.mxu0 %v2972
        %4122 = vmatpush1.bf16.msra.mxu0 %v2971
        %4123 = vmatprep.subr.bf16.mxu0 %v2974
        %4124 = vmatpush1.bf16.msra.mxu0 %v2973
        %4125 = vmatprep.subr.bf16.mxu0 %v2976
        %4126 = vmatpush1.bf16.msra.mxu0 %v2975
        %4127 = vmatprep.subr.bf16.mxu0 %v2978
        %4128 = vmatpush1.bf16.msra.mxu0 %v2977
        %4129 = vmatprep.subr.bf16.mxu0 %v2980
        %4130 = vmatpush1.bf16.msra.mxu0 %v2979
        %4131 = vmatprep.subr.bf16.mxu0 %v2982
        %4132 = vmatpush1.bf16.msra.mxu0 %v2981
        %4133 = vmatprep.subr.bf16.mxu0 %v2984
        %4134 = vmatpush1.bf16.msra.mxu0 %v2983
        %4135 = vmatprep.subr.bf16.mxu0 %v2986
        %4136 = vmatpush1.bf16.msra.mxu0 %v2985
        %4137 = vmatprep.subr.bf16.mxu0 %v2988
        %4138 = vmatpush1.bf16.msra.mxu0 %v2987
        %4139 = vmatprep.subr.bf16.mxu0 %v2990
        %4140 = vmatpush1.bf16.msra.mxu0 %v2989
        %4141 = vmatprep.subr.bf16.mxu0 %v2992
        %4142 = vmatpush1.bf16.msra.mxu0 %v2991
        %4143 = vmatprep.subr.bf16.mxu0 %v2994
        %4144 = vmatpush1.bf16.msra.mxu0 %v2993
        %4145 = vmatprep.subr.bf16.mxu0 %v2996
        %4146 = vmatpush1.bf16.msra.mxu0 %v2995
        %4147 = vmatprep.subr.bf16.mxu0 %v2998
        %4148 = vmatpush1.bf16.msra.mxu0 %v2997
        %4149 = vmatprep.mubr.bf16.mxu0 %v948
        %4150 = vmatmul.mubr.bf16.gmra.mrb[0].mxu0 %v947
        %v4151 = vpop.f32.mrb[0].mxu0
        %v4152 = vadd.f32 %v4111, %v4151
        %v4153 = vpop.f32.mrb[0].mxu0
        %v4154 = vadd.f32 %v4113, %v4153
        %v4155 = vpop.f32.mrb[0].mxu0
        %v4156 = vpop.f32.mrb[0].mxu0
        %4157 = vdwg.mxu0
        %4158 = vmatprep.subr.bf16.mxu0 %v3000
        %4159 = vmatpush1.bf16.msra.mxu0 %v2999
        %4160 = vmatprep.subr.bf16.mxu0 %v3002
        %4161 = vmatpush1.bf16.msra.mxu0 %v3001
        %4162 = vmatprep.subr.bf16.mxu0 %v3004
        %4163 = vmatpush1.bf16.msra.mxu0 %v3003
        %4164 = vmatprep.subr.bf16.mxu0 %v3006
        %4165 = vmatpush1.bf16.msra.mxu0 %v3005
        %4166 = vmatprep.subr.bf16.mxu0 %v3008
        %4167 = vmatpush1.bf16.msra.mxu0 %v3007
        %4168 = vmatprep.subr.bf16.mxu0 %v3010
        %4169 = vmatpush1.bf16.msra.mxu0 %v3009
        %4170 = vmatprep.subr.bf16.mxu0 %v3012
        %4171 = vmatpush1.bf16.msra.mxu0 %v3011
        %4172 = vmatprep.subr.bf16.mxu0 %v3014
        %4173 = vmatpush1.bf16.msra.mxu0 %v3013
        %4174 = vmatprep.subr.bf16.mxu0 %v3016
        %4175 = vmatpush1.bf16.msra.mxu0 %v3015
        %4176 = vmatprep.subr.bf16.mxu0 %v3018
        %4177 = vmatpush1.bf16.msra.mxu0 %v3017
        %4178 = vmatprep.subr.bf16.mxu0 %v3020
        %4179 = vmatpush1.bf16.msra.mxu0 %v3019
        %4180 = vmatprep.subr.bf16.mxu0 %v3022
        %4181 = vmatpush1.bf16.msra.mxu0 %v3021
        %4182 = vmatprep.subr.bf16.mxu0 %v3024
        %4183 = vmatpush1.bf16.msra.mxu0 %v3023
        %4184 = vmatprep.subr.bf16.mxu0 %v3026
        %4185 = vmatpush1.bf16.msra.mxu0 %v3025
        %4186 = vmatprep.subr.bf16.mxu0 %v3028
        %4187 = vmatpush1.bf16.msra.mxu0 %v3027
        %4188 = vmatprep.subr.bf16.mxu0 %v3030
        %4189 = vmatpush1.bf16.msra.mxu0 %v3029
        %4190 = vmatprep.mubr.bf16.mxu0 %v950
        %4191 = vmatmul.mubr.bf16.gmra.mrb[0].mxu0 %v949
        %v4192 = vpop.f32.mrb[0].mxu0
        %v4193 = vadd.f32 %v4152, %v4192
        %v4194 = vpop.f32.mrb[0].mxu0
        %v4195 = vadd.f32 %v4154, %v4194
        %v4196 = vpop.f32.mrb[0].mxu0
        %v4197 = vpop.f32.mrb[0].mxu0
        %4198 = vdwg.mxu0
        %v4199 = vadd.f32 %v341, %v4193
        %v4200 = vadd.f32 %v342, %v4195
        %4201 = vst [vmem:[#allocation2] sm:$0xff] %v4199
        %4202 = vst [vmem:[#allocation2 + $0x8] sm:$0xff] %v4200
        %p4203 = scmp.eq.s32.totalorder %s26, 1
        // Predicated region
        $region53: #{discriminator_forward.10} parent=35 // pred_check
          %p4204 = pneg %p4203
        $region54: #{discriminator_forward.10} parent=35 // pred_check_branch
          %4206 = sbr.rel (%p4204) target = $region56
        $region55: #{discriminator_forward.10} parent=35 // pred_region
          %v4207 = vld [vmem:[#allocation2] sm:$0xff]
          %v4208 = vld [vmem:[#allocation2 + $0x8] sm:$0xff]
          %v4209 = vld [vmem:[%s270] sm:$0x3]
          %v4211 = vlaneseq
          %v4212 = vshrl.u32 %v4211, 7
          %v4213 = vsub.s32 0, %v4212
          %v4214 = vrot.slane %v4209, %v4213
          %v4215 = vlaneseq
          %v4216 = vshrl.u32 %v4215, 7
          %v4217 = vsub.s32 1, %v4216
          %v4218 = vrot.slane %v4209, %v4217
          %v4221 = vmul.f32 %v4207, %v4214
          %v4222 = vmul.f32 %v4208, %v4218
          %v4223 = vld [vmem:[%s279] sm:$0x3]
          %v4225 = vlaneseq
          %v4226 = vshrl.u32 %v4225, 7
          %v4227 = vsub.s32 0, %v4226
          %v4228 = vrot.slane %v4223, %v4227
          %v4229 = vlaneseq
          %v4230 = vshrl.u32 %v4229, 7
          %v4231 = vsub.s32 1, %v4230
          %v4232 = vrot.slane %v4223, %v4231
          %v4235 = vadd.f32 %v4221, %v4228
          %v4236 = vadd.f32 %v4222, %v4232
          %vm4237 = vcmp.gt.f32.partialorder %v4235, 0.0
          %vm4238 = vcmp.gt.f32.partialorder %v4236, 0.0
          %v4239 = vmul.f32 %v4235, 0.2
          %v4240 = vmul.f32 %v4236, 0.2
          %v4241 = vsel %vm4237, %v4235, %v4239
          %v4242 = vsel %vm4238, %v4236, %v4240
          %v4243 = vpack.c.bf16 %v4241, %v4241
          %v4244 = vpack.c.bf16 %v4242, %v4242
          %v4247 = vunpack.c.l.b16 %v4243
          %v4248 = vunpack.c.l.b16 %v4244
          %v4249 = vpack.c.b16 %v4248, %v4247
          %4251 = vst [vmem:[%s333] sm:$0xff] %v4249
        $region56: #{discriminator_forward.10} parent=35 // pred_fallthru
          _
        %s4252 = smul.u32 2, %s25
        %p4253 = scmp.lt.s32.totalorder %s4252, 7
        %s4254 = scalar_select %p4253, %s4252, 7
        %s4255 = smul.addr %s4254, 4
        %s4256 = scalar_lea.vmem %s4, %s4255
        // Predicated region
        $region57: #{discriminator_forward.10} parent=35 // pred_check
          %p4257 = pneg %p157
        $region58: #{discriminator_forward.10} parent=35 // pred_check_branch
          %4259 = sbr.rel (%p4257) target = $region60
        $region59: #{discriminator_forward.10} parent=35 // pred_region
          %s4260 = smul.u32 2, %s25
        $region60: #{discriminator_forward.10} parent=35 // pred_fallthru
          _
      $region36: #{discriminator_forward.10} parent=5 // pred_fallthru
        _
      %p4261 = scmp.le.s32.totalorder 2, %s16
      // Predicated region
      $region61: #{discriminator_forward.10} parent=5 // pred_check
        %p4262 = pneg %p4261
      $region62: #{discriminator_forward.10} parent=5 // pred_check_branch
        %4264 = sbr.rel (%p4262) target = $region64
      $region63: #{discriminator_forward.10} parent=5 // pred_region
        %s4265 = ssub.s32 %s16, 2
        // Predicated region
        $region65: #{discriminator_forward.10} parent=63 // pred_check
          %p4266 = pneg %p163
        $region66: #{discriminator_forward.10} parent=63 // pred_check_branch
          %4268 = sbr.rel (%p4266) target = $region68
        $region67: #{discriminator_forward.10} parent=63 // pred_region
          %s4269 = smul.u32 2, %s27
          %p4270 = scmp.lt.s32.totalorder %s4269, 7
          %s4271 = scalar_select %p4270, %s4269, 7
          %s4272 = smul.addr %s4271, 4
          %s4273 = scalar_lea.vmem %s4, %s4272
        $region68: #{discriminator_forward.10} parent=63 // pred_fallthru
          _
      $region64: #{discriminator_forward.10} parent=5 // pred_fallthru
        _
    $region6: #{discriminator_forward.10} parent=1 // loop_footer
      %s20 = sadd.s32 1, %s16
    $region7: #{discriminator_forward.10} parent=1 // loop_footer_branch
      %15 = sbr.rel target = $region3
    $region8: #{discriminator_forward.10} parent=1 // loop_exit
      _
    %4274 = vsyncpa [#allocation4], 1
    %s4275 = scalar_lea.sflag [#allocation4], 1
    %4276 = vsyncpa %s4275, 1
    %4277 = vsyncpa [#allocation6], 1
    %s4278 = scalar_lea.sflag [#allocation6], 1
    %4279 = vsyncpa %s4278, 1

</llo_original>
